<compile_context>
chip_gen: v7x
topology: tpu7x:2x2x1
jax: 0.10.0
libtpu: 0.0.40
codegen_flags: <defaults>
</compile_context>

<pallas_src>
import jax
import jax.numpy as jnp
from jax import lax
from jax.experimental import pallas as pl
from jax.experimental.pallas import tpu as pltpu


# ----------------------------------------------------------------------------
# Pallas kernels
# ----------------------------------------------------------------------------
def _bilstm_kernel(xf_ref, xr_ref, wf_ref, wb_ref, whh_ref, b_ref, out_ref,
                   xp_scr, h_scr, c_scr):
    """Bidirectional LSTM over the full (padded) sequence, both directions fused.

    xf_ref : (T, NB, D)     time-major inputs, original order   (forward dir)
    xr_ref : (T, NB, D)     time-major inputs, per-seq reversed (backward dir)
    wf_ref : (D, 8*Hp)      input->gate weights, forward dir in even Hp-blocks
    wb_ref : (D, 8*Hp)      input->gate weights, backward dir in odd Hp-blocks
    whh_ref: (2*Hp, 8*Hp)   block-diagonal hidden->gate weights (both dirs)
    b_ref  : (1, 8*Hp)      combined bias (b_ih + b_hh), both dirs interleaved
    out_ref: (T, NB, 2*Hp)  hidden state [h_fwd | h_bwd] at every step
    xp_scr : (T, NB, 8*Hp)  f32 scratch: precomputed input projection
    h_scr, c_scr : (NB, 2*Hp) f32 scratch: recurrent state [fwd | bwd]
    """
    T, NB, D = xf_ref.shape
    G = wf_ref.shape[1]          # 8 * Hp
    Hp2 = h_scr.shape[1]         # 2 * Hp (per-gate slab width, both directions)

    # ---- prologue: hoisted, fused input projection (one big matmul per direction)
    xf = xf_ref[...].reshape(T * NB, D)
    xr = xr_ref[...].reshape(T * NB, D)
    xp = (jnp.dot(xf, wf_ref[...], preferred_element_type=jnp.float32)
          + jnp.dot(xr, wb_ref[...], preferred_element_type=jnp.float32)
          + b_ref[...])
    xp_scr[...] = xp.reshape(T, NB, G)

    h_scr[...] = jnp.zeros_like(h_scr)
    c_scr[...] = jnp.zeros_like(c_scr)

    # ---- recurrence: one (NB, 2Hp) @ (2Hp, 8Hp) matmul per step
    def step(t, carry):
        h = h_scr[...]
        c = c_scr[...]
        gates = xp_scr[t] + jnp.dot(h, whh_ref[...],
                                    preferred_element_type=jnp.float32)
        i_g = jax.nn.sigmoid(gates[:, 0 * Hp2:1 * Hp2])
        f_g = jax.nn.sigmoid(gates[:, 1 * Hp2:2 * Hp2])
        g_g = jnp.tanh(gates[:, 2 * Hp2:3 * Hp2])
        o_g = jax.nn.sigmoid(gates[:, 3 * Hp2:4 * Hp2])
        c_new = f_g * c + i_g * g_g
        h_new = o_g * jnp.tanh(c_new)
        h_scr[...] = h_new
        c_scr[...] = c_new
        out_ref[t] = h_new.astype(out_ref.dtype)   # lane-dense (NB, 2Hp) slab store
        return carry

    lax.fori_loop(0, T, step, 0, unroll=True)


def _mlp_head_kernel(x_ref, w1_ref, b1_ref, w2_ref, b2_ref, out_ref):
    """ReLU(Linear1) -> Linear2 -> log_softmax."""
    h = jnp.dot(x_ref[...], w1_ref[...], preferred_element_type=jnp.float32) + b1_ref[...]
    h = jnp.maximum(h, 0.0)
    # TODO(synk): nn.Dropout is identity at inference; no stochastic dropout applied.
    logits = jnp.dot(h, w2_ref[...], preferred_element_type=jnp.float32) + b2_ref[...]
    m = jnp.max(logits, axis=-1, keepdims=True)
    z = logits - m
    lse = jnp.log(jnp.sum(jnp.exp(z), axis=-1, keepdims=True))
    out_ref[...] = (z - lse).astype(out_ref.dtype)


# ----------------------------------------------------------------------------
# Wrappers (glue in plain JAX; hot paths run in the kernels above)
# ----------------------------------------------------------------------------
_VMEM_SPEC = pl.BlockSpec(memory_space=pltpu.MemorySpace.VMEM)


def bilstm_pallas(xf_tbd, xr_tbd, p, Hp, nb_tile):
    """One pallas_call per layer: both directions, whole stacked batch."""
    T, Np, D = xf_tbd.shape
    G = p["wih_f"].shape[1]
    Hp2 = 2 * Hp
    grid = (Np // nb_tile,)
    return pl.pallas_call(
        _bilstm_kernel,
        out_shape=jax.ShapeDtypeStruct((T, Np, Hp2), jnp.float32),
        grid=grid,
        in_specs=[
            pl.BlockSpec((T, nb_tile, D), lambda i: (0, i, 0)),
            pl.BlockSpec((T, nb_tile, D), lambda i: (0, i, 0)),
            pl.BlockSpec((D, G), lambda i: (0, 0)),
            pl.BlockSpec((Hp2 // 2 * 0 + D, G), lambda i: (0, 0)) if False else
            pl.BlockSpec((D, G), lambda i: (0, 0)),
            pl.BlockSpec((Hp2, G), lambda i: (0, 0)),
            pl.BlockSpec((1, G), lambda i: (0, 0)),
        ],
        out_specs=pl.BlockSpec((T, nb_tile, Hp2), lambda i: (0, i, 0)),
        scratch_shapes=[pltpu.VMEM((T, nb_tile, G), jnp.float32),
                        pltpu.VMEM((nb_tile, Hp2), jnp.float32),
                        pltpu.VMEM((nb_tile, Hp2), jnp.float32)],
        compiler_params=pltpu.CompilerParams(
            dimension_semantics=("parallel",)),
    )(xf_tbd, xr_tbd, p["wih_f"], p["wih_b"], p["whh"], p["b"])


def bilstm_layer(x_btd, lengths, p, H, Hp):
    """Bidirectional LSTM with packed-sequence semantics (zeroed pads)."""
    B2, T, _ = x_btd.shape
    t_idx = jnp.arange(T)
    mask = (t_idx[None, :] < lengths[:, None])[..., None]                 # (B2, T, 1)

    # backward direction input: reverse each sentence's valid prefix
    rev_idx = jnp.clip(lengths[:, None] - 1 - t_idx[None, :], 0, T - 1)   # (B2, T)
    x_rev = jnp.take_along_axis(x_btd, rev_idx[..., None], axis=1)

    # pad batch to a sublane multiple, go time-major
    Np = ((B2 + 7) // 8) * 8
    pad = Np - B2
    xf = jnp.transpose(jnp.pad(x_btd, ((0, pad), (0, 0), (0, 0))), (1, 0, 2))
    xr = jnp.transpose(jnp.pad(x_rev, ((0, pad), (0, 0), (0, 0))), (1, 0, 2))

    nb_tile = 8  # Np is always a multiple of 8
    out = bilstm_pallas(xf, xr, p, Hp, nb_tile)                           # (T, Np, 2Hp)
    out = jnp.transpose(out, (1, 0, 2))[:B2]                              # (B2, T, 2Hp)

    out_f = jnp.where(mask, out[..., :H], 0.0)
    out_b_rev = out[..., Hp:Hp + H]
    out_b = jnp.where(mask, jnp.take_along_axis(out_b_rev, rev_idx[..., None], axis=1), 0.0)
    return jnp.concatenate([out_f, out_b], axis=-1)                       # (B2, T, 2H)


def sentence_encoder(token_ids, lengths, params, H, Hp):
    embed = jnp.take(params["emb"], token_ids, axis=0)                    # (B2, T, E)
    out1 = bilstm_layer(embed, lengths, params["lstm1"], H, Hp)
    in2 = jnp.concatenate([embed, out1], axis=-1)
    out2 = bilstm_layer(in2, lengths, params["lstm2"], H, Hp)
    in3 = jnp.concatenate([embed, out1 + out2], axis=-1)                  # residual shortcut
    out3 = bilstm_layer(in3, lengths, params["lstm3"], H, Hp)
    T = token_ids.shape[1]
    mask = (jnp.arange(T)[None, :] < lengths[:, None])[..., None]
    pooled = jnp.max(jnp.where(mask, out3, -jnp.inf), axis=1)             # max over valid steps
    pooled = jnp.where(lengths[:, None] > 0, pooled, 0.0)                 # zero-length guard
    return pooled


def infer_sentences_forward(params, premises, hypotheses, premises_len, hypotheses_len):
    H, Hp = params["H"], params["Hp"]
    B = premises.shape[0]
    # stack premise + hypothesis on the batch axis -> one encoder pass (3 LSTM kernels total)
    tokens = jnp.concatenate([premises, hypotheses], axis=0)
    lengths = jnp.concatenate([premises_len, hypotheses_len], axis=0)
    pooled = sentence_encoder(tokens, lengths, params, H, Hp)             # (2B, 2H)
    p, h = pooled[:B], pooled[B:]
    feats = jnp.concatenate([p, h, jnp.abs(p - h), p * h], axis=1)        # (B, 8H)
    out_dim = params["w2"].shape[1]
    return pl.pallas_call(
        _mlp_head_kernel,
        out_shape=jax.ShapeDtypeStruct((B, out_dim), jnp.float32),
        in_specs=[_VMEM_SPEC] * 5,
        out_specs=_VMEM_SPEC,
    )(feats, params["w1"], params["b1"], params["w2"], params["b2"])


# ----------------------------------------------------------------------------
# Deterministic parameter init (shapes per the module's __init__), fused layout
# ----------------------------------------------------------------------------
def _fused_lstm_params(key, in_dim, H, Hp):
    """Build gate-fused, lane-padded, direction-interleaved LSTM weights."""
    s = 1.0 / (H ** 0.5)
    ks = jax.random.split(key, 6)

    def u(k, shape):
        return jax.random.uniform(k, shape, jnp.float32, -s, s)

    G = 8 * Hp
    # raw per-direction weights, gate order (i, f, g, o)
    w_ih_f = u(ks[0], (in_dim, 4, H)); w_hh_f = u(ks[1], (H, 4, H)); b_f = u(ks[2], (4, H)) * 2.0
    w_ih_b = u(ks[3], (in_dim, 4, H)); w_hh_b = u(ks[4], (H, 4, H)); b_b = u(ks[5], (4, H)) * 2.0

    # lane layout: 8 blocks of Hp = [i_f, i_b, f_f, f_b, g_f, g_b, o_f, o_b]
    wih_f = jnp.zeros((in_dim, 8, Hp), jnp.float32).at[:, 0::2, :H].set(w_ih_f)
    wih_b = jnp.zeros((in_dim, 8, Hp), jnp.float32).at[:, 1::2, :H].set(w_ih_b)
    whh = jnp.zeros((2 * Hp, 8, Hp), jnp.float32)
    whh = whh.at[:H, 0::2, :H].set(w_hh_f)            # forward hidden rows -> even blocks
    whh = whh.at[Hp:Hp + H, 1::2, :H].set(w_hh_b)     # backward hidden rows -> odd blocks
    b = jnp.zeros((8, Hp), jnp.float32).at[0::2, :H].set(b_f).at[1::2, :H].set(b_b)

    return {"wih_f": wih_f.reshape(in_dim, G),
            "wih_b": wih_b.reshape(in_dim, G),
            "whh": whh.reshape(2 * Hp, G),
            "b": b.reshape(1, G)}


def init_params(key, vocab_size, output_size, embedding_dim, H, hidden_layer_size):
    Hp = ((H + 127) // 128) * 128
    keys = jax.random.split(key, 8)

    def u(k, shape, scale):
        return jax.random.uniform(k, shape, jnp.float32, -scale, scale)

    emb = jax.random.normal(keys[0], (vocab_size, embedding_dim), jnp.float32) * 0.1
    emb = emb.at[0].set(0.0)  # padding_idx=0

    params = {
        "H": H, "Hp": Hp,
        "emb": emb,
        "lstm1": _fused_lstm_params(keys[1], embedding_dim, H, Hp),
        "lstm2": _fused_lstm_params(keys[2], embedding_dim + 2 * H, H, Hp),
        "lstm3": _fused_lstm_params(keys[3], embedding_dim + 2 * H, H, Hp),
        "w1": u(keys[4], (2 * H * 4, hidden_layer_size), 1.0 / ((2 * H * 4) ** 0.5)),
        "b1": u(keys[5], (1, hidden_layer_size), 1.0 / ((2 * H * 4) ** 0.5)),
        "w2": u(keys[6], (hidden_layer_size, output_size), 1.0 / (hidden_layer_size ** 0.5)),
        "b2": u(keys[7], (1, output_size), 1.0 / (hidden_layer_size ** 0.5)),
    }
    return params


# ----------------------------------------------------------------------------
if __name__ == "__main__":
    vocab_size = 20
    output_size = 3
    embedding_dim = 16
    bilstm_output_dim = 16
    hidden_layer_size = 32
    B, T = 2, 8

    key = jax.random.PRNGKey(0)
    pkey, hkey, wkey = jax.random.split(key, 3)

    premises_len = jnp.array([8, 5], dtype=jnp.int32)
    hypotheses_len = jnp.array([6, 8], dtype=jnp.int32)
    premises = jax.random.randint(pkey, (B, T), 1, vocab_size, dtype=jnp.int32)
    hypotheses = jax.random.randint(hkey, (B, T), 1, vocab_size, dtype=jnp.int32)
    t_idx = jnp.arange(T)[None, :]
    premises = jnp.where(t_idx < premises_len[:, None], premises, 0)      # pad token = 0
    hypotheses = jnp.where(t_idx < hypotheses_len[:, None], hypotheses, 0)

    params = init_params(wkey, vocab_size, output_size, embedding_dim,
                         bilstm_output_dim, hidden_layer_size)

    out = infer_sentences_forward(params, premises, hypotheses,
                                  premises_len, hypotheses_len)
    out = jax.block_until_ready(out)

    assert out.shape == (B, output_size)
    assert bool(jnp.all(jnp.isfinite(out)))
    # log_softmax rows must sum to ~1 in prob space
    assert bool(jnp.allclose(jnp.sum(jnp.exp(out), axis=-1), 1.0, atol=1e-4))
    print("KERNEL_OK")
</pallas_src>

<mosaic_0001>
module attributes {stable_mosaic.version = 11 : i64} {
  func.func @_bilstm_kernel(%arg0: i32, %arg1: memref<8x8x16xf32, #tpu.memory_space<vmem>>, %arg2: memref<8x8x16xf32, #tpu.memory_space<vmem>>, %arg3: memref<16x1024xf32, #tpu.memory_space<vmem>>, %arg4: memref<16x1024xf32, #tpu.memory_space<vmem>>, %arg5: memref<256x1024xf32, #tpu.memory_space<vmem>>, %arg6: memref<1x1024xf32, #tpu.memory_space<vmem>>, %arg7: memref<8x8x256xf32, #tpu.memory_space<vmem>>, %arg8: memref<8x8x1024xf32, #tpu.memory_space<vmem>>, %arg9: memref<8x256xf32, #tpu.memory_space<vmem>>, %arg10: memref<8x256xf32, #tpu.memory_space<vmem>>) attributes {dimension_semantics = [#tpu.dimension_semantics<parallel>], iteration_bounds = array<i64: 1>, scalar_prefetch = 0 : i64, scratch_operands = 3 : i64, tpu.core_type = #tpu.core_type<tc>, window_params = [{transform_indices = @transform_0, window_bounds = array<i64: 8, 8, 16>}, {transform_indices = @transform_1, window_bounds = array<i64: 8, 8, 16>}, {pipeline_mode = #tpu.pipeline_mode<synchronous>, transform_indices = @transform_2, window_bounds = array<i64: 16, 1024>}, {pipeline_mode = #tpu.pipeline_mode<synchronous>, transform_indices = @transform_3, window_bounds = array<i64: 16, 1024>}, {pipeline_mode = #tpu.pipeline_mode<synchronous>, transform_indices = @transform_4, window_bounds = array<i64: 256, 1024>}, {pipeline_mode = #tpu.pipeline_mode<synchronous>, transform_indices = @transform_5, window_bounds = array<i64: 1, 1024>}, {transform_indices = @transform_6, window_bounds = array<i64: 8, 8, 256>}]} {
    %c0 = arith.constant 0 : index
    %c0_0 = arith.constant 0 : index
    %c0_1 = arith.constant 0 : index
    %0 = vector.load %arg1[%c0, %c0_0, %c0_1] : memref<8x8x16xf32, #tpu.memory_space<vmem>>, vector<8x8x16xf32>
    %1 = vector.shape_cast %0 : vector<8x8x16xf32> to vector<64x16xf32>
    %c0_2 = arith.constant 0 : index
    %c0_3 = arith.constant 0 : index
    %c0_4 = arith.constant 0 : index
    %2 = vector.load %arg2[%c0_2, %c0_3, %c0_4] : memref<8x8x16xf32, #tpu.memory_space<vmem>>, vector<8x8x16xf32>
    %3 = vector.shape_cast %2 : vector<8x8x16xf32> to vector<64x16xf32>
    %c0_5 = arith.constant 0 : index
    %c0_6 = arith.constant 0 : index
    %4 = vector.load %arg3[%c0_5, %c0_6] : memref<16x1024xf32, #tpu.memory_space<vmem>>, vector<16x1024xf32>
    %cst = arith.constant dense<0.000000e+00> : vector<64x1024xf32>
    %5 = tpu.matmul %1, %4, %cst {dimension_numbers = #tpu.dot_dimension_numbers<[1], [0], [0], [1], [0, 0, 1, 1], [], []>} : vector<64x16xf32>, vector<16x1024xf32>, vector<64x1024xf32> -> vector<64x1024xf32>
    %c0_7 = arith.constant 0 : index
    %c0_8 = arith.constant 0 : index
    %6 = vector.load %arg4[%c0_7, %c0_8] : memref<16x1024xf32, #tpu.memory_space<vmem>>, vector<16x1024xf32>
    %cst_9 = arith.constant dense<0.000000e+00> : vector<64x1024xf32>
    %7 = tpu.matmul %3, %6, %cst_9 {dimension_numbers = #tpu.dot_dimension_numbers<[1], [0], [0], [1], [0, 0, 1, 1], [], []>} : vector<64x16xf32>, vector<16x1024xf32>, vector<64x1024xf32> -> vector<64x1024xf32>
    %8 = arith.addf %5, %7 : vector<64x1024xf32>
    %c0_10 = arith.constant 0 : index
    %c0_11 = arith.constant 0 : index
    %9 = vector.load %arg6[%c0_10, %c0_11] : memref<1x1024xf32, #tpu.memory_space<vmem>>, vector<1x1024xf32>
    %10 = vector.broadcast %9 : vector<1x1024xf32> to vector<64x1024xf32>
    %11 = arith.addf %8, %10 : vector<64x1024xf32>
    %12 = vector.shape_cast %11 : vector<64x1024xf32> to vector<8x8x1024xf32>
    %c0_12 = arith.constant 0 : index
    %c0_13 = arith.constant 0 : index
    %c0_14 = arith.constant 0 : index
    %13 = vector.load %arg8[%c0_12, %c0_13, %c0_14] : memref<8x8x1024xf32, #tpu.memory_space<vmem>>, vector<8x8x1024xf32>
    tpu.vector_store %arg8[%c0_12, %c0_13, %c0_14], %12 {strides = array<i32>} : memref<8x8x1024xf32, #tpu.memory_space<vmem>>, vector<8x8x1024xf32>,
    %cst_15 = arith.constant 0.000000e+00 : f32
    %14 = vector.broadcast %cst_15 : f32 to vector<8x256xf32>
    %c0_16 = arith.constant 0 : index
    %c0_17 = arith.constant 0 : index
    %15 = vector.load %arg9[%c0_16, %c0_17] : memref<8x256xf32, #tpu.memory_space<vmem>>, vector<8x256xf32>
    tpu.vector_store %arg9[%c0_16, %c0_17], %14 {strides = array<i32>} : memref<8x256xf32, #tpu.memory_space<vmem>>, vector<8x256xf32>,
    %cst_18 = arith.constant 0.000000e+00 : f32
    %16 = vector.broadcast %cst_18 : f32 to vector<8x256xf32>
    %c0_19 = arith.constant 0 : index
    %c0_20 = arith.constant 0 : index
    %17 = vector.load %arg10[%c0_19, %c0_20] : memref<8x256xf32, #tpu.memory_space<vmem>>, vector<8x256xf32>
    tpu.vector_store %arg10[%c0_19, %c0_20], %16 {strides = array<i32>} : memref<8x256xf32, #tpu.memory_space<vmem>>, vector<8x256xf32>,
    %c0_i32 = arith.constant 0 : i32
    %c0_21 = arith.constant 0 : index
    %c0_22 = arith.constant 0 : index
    %18 = vector.load %arg9[%c0_21, %c0_22] : memref<8x256xf32, #tpu.memory_space<vmem>>, vector<8x256xf32>
    %c0_23 = arith.constant 0 : index
    %c0_24 = arith.constant 0 : index
    %19 = vector.load %arg10[%c0_23, %c0_24] : memref<8x256xf32, #tpu.memory_space<vmem>>, vector<8x256xf32>
    %20 = arith.index_cast %c0_i32 : i32 to index
    %c0_25 = arith.constant 0 : index
    %c0_26 = arith.constant 0 : index
    %21 = vector.load %arg8[%20, %c0_25, %c0_26] : memref<8x8x1024xf32, #tpu.memory_space<vmem>>, vector<1x8x1024xf32>
    %22 = vector.shape_cast %21 : vector<1x8x1024xf32> to vector<8x1024xf32>
    %c0_27 = arith.constant 0 : index
    %c0_28 = arith.constant 0 : index
    %23 = vector.load %arg5[%c0_27, %c0_28] : memref<256x1024xf32, #tpu.memory_space<vmem>>, vector<256x1024xf32>
    %cst_29 = arith.constant dense<0.000000e+00> : vector<8x1024xf32>
    %24 = tpu.matmul %18, %23, %cst_29 {dimension_numbers = #tpu.dot_dimension_numbers<[1], [0], [0], [1], [0, 0, 1, 1], [], []>} : vector<8x256xf32>, vector<256x1024xf32>, vector<8x1024xf32> -> vector<8x1024xf32>
    %25 = arith.addf %22, %24 : vector<8x1024xf32>
    %26 = vector.extract_strided_slice %25 {offsets = [0, 0], sizes = [8, 256], strides = [1, 1]} : vector<8x1024xf32> to vector<8x256xf32>
    %27 = arith.negf %26 : vector<8x256xf32>
    %28 = math.exp %27 : vector<8x256xf32>
    %cst_30 = arith.constant 1.000000e+00 : f32
    %29 = vector.broadcast %cst_30 : f32 to vector<8x256xf32>
    %30 = arith.addf %29, %28 : vector<8x256xf32>
    %31 = arith.divf %29, %30 : vector<8x256xf32>
    %32 = vector.extract_strided_slice %25 {offsets = [0, 256], sizes = [8, 256], strides = [1, 1]} : vector<8x1024xf32> to vector<8x256xf32>
    %33 = arith.negf %32 : vector<8x256xf32>
    %34 = math.exp %33 : vector<8x256xf32>
    %cst_31 = arith.constant 1.000000e+00 : f32
    %35 = vector.broadcast %cst_31 : f32 to vector<8x256xf32>
    %36 = arith.addf %35, %34 : vector<8x256xf32>
    %37 = arith.divf %35, %36 : vector<8x256xf32>
    %38 = vector.extract_strided_slice %25 {offsets = [0, 512], sizes = [8, 256], strides = [1, 1]} : vector<8x1024xf32> to vector<8x256xf32>
    %39 = math.tanh %38 : vector<8x256xf32>
    %40 = vector.extract_strided_slice %25 {offsets = [0, 768], sizes = [8, 256], strides = [1, 1]} : vector<8x1024xf32> to vector<8x256xf32>
    %41 = arith.negf %40 : vector<8x256xf32>
    %42 = math.exp %41 : vector<8x256xf32>
    %cst_32 = arith.constant 1.000000e+00 : f32
    %43 = vector.broadcast %cst_32 : f32 to vector<8x256xf32>
    %44 = arith.addf %43, %42 : vector<8x256xf32>
    %45 = arith.divf %43, %44 : vector<8x256xf32>
    %46 = arith.mulf %37, %19 : vector<8x256xf32>
    %47 = arith.mulf %31, %39 : vector<8x256xf32>
    %48 = arith.addf %46, %47 : vector<8x256xf32>
    %49 = math.tanh %48 : vector<8x256xf32>
    %50 = arith.mulf %45, %49 : vector<8x256xf32>
    %c0_33 = arith.constant 0 : index
    %c0_34 = arith.constant 0 : index
    %51 = vector.load %arg9[%c0_33, %c0_34] : memref<8x256xf32, #tpu.memory_space<vmem>>, vector<8x256xf32>
    tpu.vector_store %arg9[%c0_33, %c0_34], %50 {strides = array<i32>} : memref<8x256xf32, #tpu.memory_space<vmem>>, vector<8x256xf32>,
    %c0_35 = arith.constant 0 : index
    %c0_36 = arith.constant 0 : index
    %52 = vector.load %arg10[%c0_35, %c0_36] : memref<8x256xf32, #tpu.memory_space<vmem>>, vector<8x256xf32>
    tpu.vector_store %arg10[%c0_35, %c0_36], %48 {strides = array<i32>} : memref<8x256xf32, #tpu.memory_space<vmem>>, vector<8x256xf32>,
    %53 = arith.index_cast %c0_i32 : i32 to index
    %c0_37 = arith.constant 0 : index
    %c0_38 = arith.constant 0 : index
    %54 = vector.load %arg7[%53, %c0_37, %c0_38] : memref<8x8x256xf32, #tpu.memory_space<vmem>>, vector<1x8x256xf32>
    %55 = vector.shape_cast %54 : vector<1x8x256xf32> to vector<8x256xf32>
    %56 = vector.shape_cast %50 : vector<8x256xf32> to vector<1x8x256xf32>
    tpu.vector_store %arg7[%53, %c0_37, %c0_38], %56 {strides = array<i32>} : memref<8x8x256xf32, #tpu.memory_space<vmem>>, vector<1x8x256xf32>,
    %c1_i32 = arith.constant 1 : i32
    %c0_39 = arith.constant 0 : index
    %c0_40 = arith.constant 0 : index
    %57 = vector.load %arg9[%c0_39, %c0_40] : memref<8x256xf32, #tpu.memory_space<vmem>>, vector<8x256xf32>
    %c0_41 = arith.constant 0 : index
    %c0_42 = arith.constant 0 : index
    %58 = vector.load %arg10[%c0_41, %c0_42] : memref<8x256xf32, #tpu.memory_space<vmem>>, vector<8x256xf32>
    %59 = arith.index_cast %c1_i32 : i32 to index
    %c0_43 = arith.constant 0 : index
    %c0_44 = arith.constant 0 : index
    %60 = vector.load %arg8[%59, %c0_43, %c0_44] : memref<8x8x1024xf32, #tpu.memory_space<vmem>>, vector<1x8x1024xf32>
    %61 = vector.shape_cast %60 : vector<1x8x1024xf32> to vector<8x1024xf32>
    %c0_45 = arith.constant 0 : index
    %c0_46 = arith.constant 0 : index
    %62 = vector.load %arg5[%c0_45, %c0_46] : memref<256x1024xf32, #tpu.memory_space<vmem>>, vector<256x1024xf32>
    %cst_47 = arith.constant dense<0.000000e+00> : vector<8x1024xf32>
    %63 = tpu.matmul %57, %62, %cst_47 {dimension_numbers = #tpu.dot_dimension_numbers<[1], [0], [0], [1], [0, 0, 1, 1], [], []>} : vector<8x256xf32>, vector<256x1024xf32>, vector<8x1024xf32> -> vector<8x1024xf32>
    %64 = arith.addf %61, %63 : vector<8x1024xf32>
    %65 = vector.extract_strided_slice %64 {offsets = [0, 0], sizes = [8, 256], strides = [1, 1]} : vector<8x1024xf32> to vector<8x256xf32>
    %66 = arith.negf %65 : vector<8x256xf32>
    %67 = math.exp %66 : vector<8x256xf32>
    %cst_48 = arith.constant 1.000000e+00 : f32
    %68 = vector.broadcast %cst_48 : f32 to vector<8x256xf32>
    %69 = arith.addf %68, %67 : vector<8x256xf32>
    %70 = arith.divf %68, %69 : vector<8x256xf32>
    %71 = vector.extract_strided_slice %64 {offsets = [0, 256], sizes = [8, 256], strides = [1, 1]} : vector<8x1024xf32> to vector<8x256xf32>
    %72 = arith.negf %71 : vector<8x256xf32>
    %73 = math.exp %72 : vector<8x256xf32>
    %cst_49 = arith.constant 1.000000e+00 : f32
    %74 = vector.broadcast %cst_49 : f32 to vector<8x256xf32>
    %75 = arith.addf %74, %73 : vector<8x256xf32>
    %76 = arith.divf %74, %75 : vector<8x256xf32>
    %77 = vector.extract_strided_slice %64 {offsets = [0, 512], sizes = [8, 256], strides = [1, 1]} : vector<8x1024xf32> to vector<8x256xf32>
    %78 = math.tanh %77 : vector<8x256xf32>
    %79 = vector.extract_strided_slice %64 {offsets = [0, 768], sizes = [8, 256], strides = [1, 1]} : vector<8x1024xf32> to vector<8x256xf32>
    %80 = arith.negf %79 : vector<8x256xf32>
    %81 = math.exp %80 : vector<8x256xf32>
    %cst_50 = arith.constant 1.000000e+00 : f32
    %82 = vector.broadcast %cst_50 : f32 to vector<8x256xf32>
    %83 = arith.addf %82, %81 : vector<8x256xf32>
    %84 = arith.divf %82, %83 : vector<8x256xf32>
    %85 = arith.mulf %76, %58 : vector<8x256xf32>
    %86 = arith.mulf %70, %78 : vector<8x256xf32>
    %87 = arith.addf %85, %86 : vector<8x256xf32>
    %88 = math.tanh %87 : vector<8x256xf32>
    %89 = arith.mulf %84, %88 : vector<8x256xf32>
    %c0_51 = arith.constant 0 : index
    %c0_52 = arith.constant 0 : index
    %90 = vector.load %arg9[%c0_51, %c0_52] : memref<8x256xf32, #tpu.memory_space<vmem>>, vector<8x256xf32>
    tpu.vector_store %arg9[%c0_51, %c0_52], %89 {strides = array<i32>} : memref<8x256xf32, #tpu.memory_space<vmem>>, vector<8x256xf32>,
    %c0_53 = arith.constant 0 : index
    %c0_54 = arith.constant 0 : index
    %91 = vector.load %arg10[%c0_53, %c0_54] : memref<8x256xf32, #tpu.memory_space<vmem>>, vector<8x256xf32>
    tpu.vector_store %arg10[%c0_53, %c0_54], %87 {strides = array<i32>} : memref<8x256xf32, #tpu.memory_space<vmem>>, vector<8x256xf32>,
    %92 = arith.index_cast %c1_i32 : i32 to index
    %c0_55 = arith.constant 0 : index
    %c0_56 = arith.constant 0 : index
    %93 = vector.load %arg7[%92, %c0_55, %c0_56] : memref<8x8x256xf32, #tpu.memory_space<vmem>>, vector<1x8x256xf32>
    %94 = vector.shape_cast %93 : vector<1x8x256xf32> to vector<8x256xf32>
    %95 = vector.shape_cast %89 : vector<8x256xf32> to vector<1x8x256xf32>
    tpu.vector_store %arg7[%92, %c0_55, %c0_56], %95 {strides = array<i32>} : memref<8x8x256xf32, #tpu.memory_space<vmem>>, vector<1x8x256xf32>,
    %c2_i32 = arith.constant 2 : i32
    %c0_57 = arith.constant 0 : index
    %c0_58 = arith.constant 0 : index
    %96 = vector.load %arg9[%c0_57, %c0_58] : memref<8x256xf32, #tpu.memory_space<vmem>>, vector<8x256xf32>
    %c0_59 = arith.constant 0 : index
    %c0_60 = arith.constant 0 : index
    %97 = vector.load %arg10[%c0_59, %c0_60] : memref<8x256xf32, #tpu.memory_space<vmem>>, vector<8x256xf32>
    %98 = arith.index_cast %c2_i32 : i32 to index
    %c0_61 = arith.constant 0 : index
    %c0_62 = arith.constant 0 : index
    %99 = vector.load %arg8[%98, %c0_61, %c0_62] : memref<8x8x1024xf32, #tpu.memory_space<vmem>>, vector<1x8x1024xf32>
    %100 = vector.shape_cast %99 : vector<1x8x1024xf32> to vector<8x1024xf32>
    %c0_63 = arith.constant 0 : index
    %c0_64 = arith.constant 0 : index
    %101 = vector.load %arg5[%c0_63, %c0_64] : memref<256x1024xf32, #tpu.memory_space<vmem>>, vector<256x1024xf32>
    %cst_65 = arith.constant dense<0.000000e+00> : vector<8x1024xf32>
    %102 = tpu.matmul %96, %101, %cst_65 {dimension_numbers = #tpu.dot_dimension_numbers<[1], [0], [0], [1], [0, 0, 1, 1], [], []>} : vector<8x256xf32>, vector<256x1024xf32>, vector<8x1024xf32> -> vector<8x1024xf32>
    %103 = arith.addf %100, %102 : vector<8x1024xf32>
    %104 = vector.extract_strided_slice %103 {offsets = [0, 0], sizes = [8, 256], strides = [1, 1]} : vector<8x1024xf32> to vector<8x256xf32>
    %105 = arith.negf %104 : vector<8x256xf32>
    %106 = math.exp %105 : vector<8x256xf32>
    %cst_66 = arith.constant 1.000000e+00 : f32
    %107 = vector.broadcast %cst_66 : f32 to vector<8x256xf32>
    %108 = arith.addf %107, %106 : vector<8x256xf32>
    %109 = arith.divf %107, %108 : vector<8x256xf32>
    %110 = vector.extract_strided_slice %103 {offsets = [0, 256], sizes = [8, 256], strides = [1, 1]} : vector<8x1024xf32> to vector<8x256xf32>
    %111 = arith.negf %110 : vector<8x256xf32>
    %112 = math.exp %111 : vector<8x256xf32>
    %cst_67 = arith.constant 1.000000e+00 : f32
    %113 = vector.broadcast %cst_67 : f32 to vector<8x256xf32>
    %114 = arith.addf %113, %112 : vector<8x256xf32>
    %115 = arith.divf %113, %114 : vector<8x256xf32>
    %116 = vector.extract_strided_slice %103 {offsets = [0, 512], sizes = [8, 256], strides = [1, 1]} : vector<8x1024xf32> to vector<8x256xf32>
    %117 = math.tanh %116 : vector<8x256xf32>
    %118 = vector.extract_strided_slice %103 {offsets = [0, 768], sizes = [8, 256], strides = [1, 1]} : vector<8x1024xf32> to vector<8x256xf32>
    %119 = arith.negf %118 : vector<8x256xf32>
    %120 = math.exp %119 : vector<8x256xf32>
    %cst_68 = arith.constant 1.000000e+00 : f32
    %121 = vector.broadcast %cst_68 : f32 to vector<8x256xf32>
    %122 = arith.addf %121, %120 : vector<8x256xf32>
    %123 = arith.divf %121, %122 : vector<8x256xf32>
    %124 = arith.mulf %115, %97 : vector<8x256xf32>
    %125 = arith.mulf %109, %117 : vector<8x256xf32>
    %126 = arith.addf %124, %125 : vector<8x256xf32>
    %127 = math.tanh %126 : vector<8x256xf32>
    %128 = arith.mulf %123, %127 : vector<8x256xf32>
    %c0_69 = arith.constant 0 : index
    %c0_70 = arith.constant 0 : index
    %129 = vector.load %arg9[%c0_69, %c0_70] : memref<8x256xf32, #tpu.memory_space<vmem>>, vector<8x256xf32>
    tpu.vector_store %arg9[%c0_69, %c0_70], %128 {strides = array<i32>} : memref<8x256xf32, #tpu.memory_space<vmem>>, vector<8x256xf32>,
    %c0_71 = arith.constant 0 : index
    %c0_72 = arith.constant 0 : index
    %130 = vector.load %arg10[%c0_71, %c0_72] : memref<8x256xf32, #tpu.memory_space<vmem>>, vector<8x256xf32>
    tpu.vector_store %arg10[%c0_71, %c0_72], %126 {strides = array<i32>} : memref<8x256xf32, #tpu.memory_space<vmem>>, vector<8x256xf32>,
    %131 = arith.index_cast %c2_i32 : i32 to index
    %c0_73 = arith.constant 0 : index
    %c0_74 = arith.constant 0 : index
    %132 = vector.load %arg7[%131, %c0_73, %c0_74] : memref<8x8x256xf32, #tpu.memory_space<vmem>>, vector<1x8x256xf32>
    %133 = vector.shape_cast %132 : vector<1x8x256xf32> to vector<8x256xf32>
    %134 = vector.shape_cast %128 : vector<8x256xf32> to vector<1x8x256xf32>
    tpu.vector_store %arg7[%131, %c0_73, %c0_74], %134 {strides = array<i32>} : memref<8x8x256xf32, #tpu.memory_space<vmem>>, vector<1x8x256xf32>,
    %c3_i32 = arith.constant 3 : i32
    %c0_75 = arith.constant 0 : index
    %c0_76 = arith.constant 0 : index
    %135 = vector.load %arg9[%c0_75, %c0_76] : memref<8x256xf32, #tpu.memory_space<vmem>>, vector<8x256xf32>
    %c0_77 = arith.constant 0 : index
    %c0_78 = arith.constant 0 : index
    %136 = vector.load %arg10[%c0_77, %c0_78] : memref<8x256xf32, #tpu.memory_space<vmem>>, vector<8x256xf32>
    %137 = arith.index_cast %c3_i32 : i32 to index
    %c0_79 = arith.constant 0 : index
    %c0_80 = arith.constant 0 : index
    %138 = vector.load %arg8[%137, %c0_79, %c0_80] : memref<8x8x1024xf32, #tpu.memory_space<vmem>>, vector<1x8x1024xf32>
    %139 = vector.shape_cast %138 : vector<1x8x1024xf32> to vector<8x1024xf32>
    %c0_81 = arith.constant 0 : index
    %c0_82 = arith.constant 0 : index
    %140 = vector.load %arg5[%c0_81, %c0_82] : memref<256x1024xf32, #tpu.memory_space<vmem>>, vector<256x1024xf32>
    %cst_83 = arith.constant dense<0.000000e+00> : vector<8x1024xf32>
    %141 = tpu.matmul %135, %140, %cst_83 {dimension_numbers = #tpu.dot_dimension_numbers<[1], [0], [0], [1], [0, 0, 1, 1], [], []>} : vector<8x256xf32>, vector<256x1024xf32>, vector<8x1024xf32> -> vector<8x1024xf32>
    %142 = arith.addf %139, %141 : vector<8x1024xf32>
    %143 = vector.extract_strided_slice %142 {offsets = [0, 0], sizes = [8, 256], strides = [1, 1]} : vector<8x1024xf32> to vector<8x256xf32>
    %144 = arith.negf %143 : vector<8x256xf32>
    %145 = math.exp %144 : vector<8x256xf32>
    %cst_84 = arith.constant 1.000000e+00 : f32
    %146 = vector.broadcast %cst_84 : f32 to vector<8x256xf32>
    %147 = arith.addf %146, %145 : vector<8x256xf32>
    %148 = arith.divf %146, %147 : vector<8x256xf32>
    %149 = vector.extract_strided_slice %142 {offsets = [0, 256], sizes = [8, 256], strides = [1, 1]} : vector<8x1024xf32> to vector<8x256xf32>
    %150 = arith.negf %149 : vector<8x256xf32>
    %151 = math.exp %150 : vector<8x256xf32>
    %cst_85 = arith.constant 1.000000e+00 : f32
    %152 = vector.broadcast %cst_85 : f32 to vector<8x256xf32>
    %153 = arith.addf %152, %151 : vector<8x256xf32>
    %154 = arith.divf %152, %153 : vector<8x256xf32>
    %155 = vector.extract_strided_slice %142 {offsets = [0, 512], sizes = [8, 256], strides = [1, 1]} : vector<8x1024xf32> to vector<8x256xf32>
    %156 = math.tanh %155 : vector<8x256xf32>
    %157 = vector.extract_strided_slice %142 {offsets = [0, 768], sizes = [8, 256], strides = [1, 1]} : vector<8x1024xf32> to vector<8x256xf32>
    %158 = arith.negf %157 : vector<8x256xf32>
    %159 = math.exp %158 : vector<8x256xf32>
    %cst_86 = arith.constant 1.000000e+00 : f32
    %160 = vector.broadcast %cst_86 : f32 to vector<8x256xf32>
    %161 = arith.addf %160, %159 : vector<8x256xf32>
    %162 = arith.divf %160, %161 : vector<8x256xf32>
    %163 = arith.mulf %154, %136 : vector<8x256xf32>
    %164 = arith.mulf %148, %156 : vector<8x256xf32>
    %165 = arith.addf %163, %164 : vector<8x256xf32>
    %166 = math.tanh %165 : vector<8x256xf32>
    %167 = arith.mulf %162, %166 : vector<8x256xf32>
    %c0_87 = arith.constant 0 : index
    %c0_88 = arith.constant 0 : index
    %168 = vector.load %arg9[%c0_87, %c0_88] : memref<8x256xf32, #tpu.memory_space<vmem>>, vector<8x256xf32>
    tpu.vector_store %arg9[%c0_87, %c0_88], %167 {strides = array<i32>} : memref<8x256xf32, #tpu.memory_space<vmem>>, vector<8x256xf32>,
    %c0_89 = arith.constant 0 : index
    %c0_90 = arith.constant 0 : index
    %169 = vector.load %arg10[%c0_89, %c0_90] : memref<8x256xf32, #tpu.memory_space<vmem>>, vector<8x256xf32>
    tpu.vector_store %arg10[%c0_89, %c0_90], %165 {strides = array<i32>} : memref<8x256xf32, #tpu.memory_space<vmem>>, vector<8x256xf32>,
    %170 = arith.index_cast %c3_i32 : i32 to index
    %c0_91 = arith.constant 0 : index
    %c0_92 = arith.constant 0 : index
    %171 = vector.load %arg7[%170, %c0_91, %c0_92] : memref<8x8x256xf32, #tpu.memory_space<vmem>>, vector<1x8x256xf32>
    %172 = vector.shape_cast %171 : vector<1x8x256xf32> to vector<8x256xf32>
    %173 = vector.shape_cast %167 : vector<8x256xf32> to vector<1x8x256xf32>
    tpu.vector_store %arg7[%170, %c0_91, %c0_92], %173 {strides = array<i32>} : memref<8x8x256xf32, #tpu.memory_space<vmem>>, vector<1x8x256xf32>,
    %c4_i32 = arith.constant 4 : i32
    %c0_93 = arith.constant 0 : index
    %c0_94 = arith.constant 0 : index
    %174 = vector.load %arg9[%c0_93, %c0_94] : memref<8x256xf32, #tpu.memory_space<vmem>>, vector<8x256xf32>
    %c0_95 = arith.constant 0 : index
    %c0_96 = arith.constant 0 : index
    %175 = vector.load %arg10[%c0_95, %c0_96] : memref<8x256xf32, #tpu.memory_space<vmem>>, vector<8x256xf32>
    %176 = arith.index_cast %c4_i32 : i32 to index
    %c0_97 = arith.constant 0 : index
    %c0_98 = arith.constant 0 : index
    %177 = vector.load %arg8[%176, %c0_97, %c0_98] : memref<8x8x1024xf32, #tpu.memory_space<vmem>>, vector<1x8x1024xf32>
    %178 = vector.shape_cast %177 : vector<1x8x1024xf32> to vector<8x1024xf32>
    %c0_99 = arith.constant 0 : index
    %c0_100 = arith.constant 0 : index
    %179 = vector.load %arg5[%c0_99, %c0_100] : memref<256x1024xf32, #tpu.memory_space<vmem>>, vector<256x1024xf32>
    %cst_101 = arith.constant dense<0.000000e+00> : vector<8x1024xf32>
    %180 = tpu.matmul %174, %179, %cst_101 {dimension_numbers = #tpu.dot_dimension_numbers<[1], [0], [0], [1], [0, 0, 1, 1], [], []>} : vector<8x256xf32>, vector<256x1024xf32>, vector<8x1024xf32> -> vector<8x1024xf32>
    %181 = arith.addf %178, %180 : vector<8x1024xf32>
    %182 = vector.extract_strided_slice %181 {offsets = [0, 0], sizes = [8, 256], strides = [1, 1]} : vector<8x1024xf32> to vector<8x256xf32>
    %183 = arith.negf %182 : vector<8x256xf32>
    %184 = math.exp %183 : vector<8x256xf32>
    %cst_102 = arith.constant 1.000000e+00 : f32
    %185 = vector.broadcast %cst_102 : f32 to vector<8x256xf32>
    %186 = arith.addf %185, %184 : vector<8x256xf32>
    %187 = arith.divf %185, %186 : vector<8x256xf32>
    %188 = vector.extract_strided_slice %181 {offsets = [0, 256], sizes = [8, 256], strides = [1, 1]} : vector<8x1024xf32> to vector<8x256xf32>
    %189 = arith.negf %188 : vector<8x256xf32>
    %190 = math.exp %189 : vector<8x256xf32>
    %cst_103 = arith.constant 1.000000e+00 : f32
    %191 = vector.broadcast %cst_103 : f32 to vector<8x256xf32>
    %192 = arith.addf %191, %190 : vector<8x256xf32>
    %193 = arith.divf %191, %192 : vector<8x256xf32>
    %194 = vector.extract_strided_slice %181 {offsets = [0, 512], sizes = [8, 256], strides = [1, 1]} : vector<8x1024xf32> to vector<8x256xf32>
    %195 = math.tanh %194 : vector<8x256xf32>
    %196 = vector.extract_strided_slice %181 {offsets = [0, 768], sizes = [8, 256], strides = [1, 1]} : vector<8x1024xf32> to vector<8x256xf32>
    %197 = arith.negf %196 : vector<8x256xf32>
    %198 = math.exp %197 : vector<8x256xf32>
    %cst_104 = arith.constant 1.000000e+00 : f32
    %199 = vector.broadcast %cst_104 : f32 to vector<8x256xf32>
    %200 = arith.addf %199, %198 : vector<8x256xf32>
    %201 = arith.divf %199, %200 : vector<8x256xf32>
    %202 = arith.mulf %193, %175 : vector<8x256xf32>
    %203 = arith.mulf %187, %195 : vector<8x256xf32>
    %204 = arith.addf %202, %203 : vector<8x256xf32>
    %205 = math.tanh %204 : vector<8x256xf32>
    %206 = arith.mulf %201, %205 : vector<8x256xf32>
    %c0_105 = arith.constant 0 : index
    %c0_106 = arith.constant 0 : index
    %207 = vector.load %arg9[%c0_105, %c0_106] : memref<8x256xf32, #tpu.memory_space<vmem>>, vector<8x256xf32>
    tpu.vector_store %arg9[%c0_105, %c0_106], %206 {strides = array<i32>} : memref<8x256xf32, #tpu.memory_space<vmem>>, vector<8x256xf32>,
    %c0_107 = arith.constant 0 : index
    %c0_108 = arith.constant 0 : index
    %208 = vector.load %arg10[%c0_107, %c0_108] : memref<8x256xf32, #tpu.memory_space<vmem>>, vector<8x256xf32>
    tpu.vector_store %arg10[%c0_107, %c0_108], %204 {strides = array<i32>} : memref<8x256xf32, #tpu.memory_space<vmem>>, vector<8x256xf32>,
    %209 = arith.index_cast %c4_i32 : i32 to index
    %c0_109 = arith.constant 0 : index
    %c0_110 = arith.constant 0 : index
    %210 = vector.load %arg7[%209, %c0_109, %c0_110] : memref<8x8x256xf32, #tpu.memory_space<vmem>>, vector<1x8x256xf32>
    %211 = vector.shape_cast %210 : vector<1x8x256xf32> to vector<8x256xf32>
    %212 = vector.shape_cast %206 : vector<8x256xf32> to vector<1x8x256xf32>
    tpu.vector_store %arg7[%209, %c0_109, %c0_110], %212 {strides = array<i32>} : memref<8x8x256xf32, #tpu.memory_space<vmem>>, vector<1x8x256xf32>,
    %c5_i32 = arith.constant 5 : i32
    %c0_111 = arith.constant 0 : index
    %c0_112 = arith.constant 0 : index
    %213 = vector.load %arg9[%c0_111, %c0_112] : memref<8x256xf32, #tpu.memory_space<vmem>>, vector<8x256xf32>
    %c0_113 = arith.constant 0 : index
    %c0_114 = arith.constant 0 : index
    %214 = vector.load %arg10[%c0_113, %c0_114] : memref<8x256xf32, #tpu.memory_space<vmem>>, vector<8x256xf32>
    %215 = arith.index_cast %c5_i32 : i32 to index
    %c0_115 = arith.constant 0 : index
    %c0_116 = arith.constant 0 : index
    %216 = vector.load %arg8[%215, %c0_115, %c0_116] : memref<8x8x1024xf32, #tpu.memory_space<vmem>>, vector<1x8x1024xf32>
    %217 = vector.shape_cast %216 : vector<1x8x1024xf32> to vector<8x1024xf32>
    %c0_117 = arith.constant 0 : index
    %c0_118 = arith.constant 0 : index
    %218 = vector.load %arg5[%c0_117, %c0_118] : memref<256x1024xf32, #tpu.memory_space<vmem>>, vector<256x1024xf32>
    %cst_119 = arith.constant dense<0.000000e+00> : vector<8x1024xf32>
    %219 = tpu.matmul %213, %218, %cst_119 {dimension_numbers = #tpu.dot_dimension_numbers<[1], [0], [0], [1], [0, 0, 1, 1], [], []>} : vector<8x256xf32>, vector<256x1024xf32>, vector<8x1024xf32> -> vector<8x1024xf32>
    %220 = arith.addf %217, %219 : vector<8x1024xf32>
    %221 = vector.extract_strided_slice %220 {offsets = [0, 0], sizes = [8, 256], strides = [1, 1]} : vector<8x1024xf32> to vector<8x256xf32>
    %222 = arith.negf %221 : vector<8x256xf32>
    %223 = math.exp %222 : vector<8x256xf32>
    %cst_120 = arith.constant 1.000000e+00 : f32
    %224 = vector.broadcast %cst_120 : f32 to vector<8x256xf32>
    %225 = arith.addf %224, %223 : vector<8x256xf32>
    %226 = arith.divf %224, %225 : vector<8x256xf32>
    %227 = vector.extract_strided_slice %220 {offsets = [0, 256], sizes = [8, 256], strides = [1, 1]} : vector<8x1024xf32> to vector<8x256xf32>
    %228 = arith.negf %227 : vector<8x256xf32>
    %229 = math.exp %228 : vector<8x256xf32>
    %cst_121 = arith.constant 1.000000e+00 : f32
    %230 = vector.broadcast %cst_121 : f32 to vector<8x256xf32>
    %231 = arith.addf %230, %229 : vector<8x256xf32>
    %232 = arith.divf %230, %231 : vector<8x256xf32>
    %233 = vector.extract_strided_slice %220 {offsets = [0, 512], sizes = [8, 256], strides = [1, 1]} : vector<8x1024xf32> to vector<8x256xf32>
    %234 = math.tanh %233 : vector<8x256xf32>
    %235 = vector.extract_strided_slice %220 {offsets = [0, 768], sizes = [8, 256], strides = [1, 1]} : vector<8x1024xf32> to vector<8x256xf32>
    %236 = arith.negf %235 : vector<8x256xf32>
    %237 = math.exp %236 : vector<8x256xf32>
    %cst_122 = arith.constant 1.000000e+00 : f32
    %238 = vector.broadcast %cst_122 : f32 to vector<8x256xf32>
    %239 = arith.addf %238, %237 : vector<8x256xf32>
    %240 = arith.divf %238, %239 : vector<8x256xf32>
    %241 = arith.mulf %232, %214 : vector<8x256xf32>
    %242 = arith.mulf %226, %234 : vector<8x256xf32>
    %243 = arith.addf %241, %242 : vector<8x256xf32>
    %244 = math.tanh %243 : vector<8x256xf32>
    %245 = arith.mulf %240, %244 : vector<8x256xf32>
    %c0_123 = arith.constant 0 : index
    %c0_124 = arith.constant 0 : index
    %246 = vector.load %arg9[%c0_123, %c0_124] : memref<8x256xf32, #tpu.memory_space<vmem>>, vector<8x256xf32>
    tpu.vector_store %arg9[%c0_123, %c0_124], %245 {strides = array<i32>} : memref<8x256xf32, #tpu.memory_space<vmem>>, vector<8x256xf32>,
    %c0_125 = arith.constant 0 : index
    %c0_126 = arith.constant 0 : index
    %247 = vector.load %arg10[%c0_125, %c0_126] : memref<8x256xf32, #tpu.memory_space<vmem>>, vector<8x256xf32>
    tpu.vector_store %arg10[%c0_125, %c0_126], %243 {strides = array<i32>} : memref<8x256xf32, #tpu.memory_space<vmem>>, vector<8x256xf32>,
    %248 = arith.index_cast %c5_i32 : i32 to index
    %c0_127 = arith.constant 0 : index
    %c0_128 = arith.constant 0 : index
    %249 = vector.load %arg7[%248, %c0_127, %c0_128] : memref<8x8x256xf32, #tpu.memory_space<vmem>>, vector<1x8x256xf32>
    %250 = vector.shape_cast %249 : vector<1x8x256xf32> to vector<8x256xf32>
    %251 = vector.shape_cast %245 : vector<8x256xf32> to vector<1x8x256xf32>
    tpu.vector_store %arg7[%248, %c0_127, %c0_128], %251 {strides = array<i32>} : memref<8x8x256xf32, #tpu.memory_space<vmem>>, vector<1x8x256xf32>,
    %c6_i32 = arith.constant 6 : i32
    %c0_129 = arith.constant 0 : index
    %c0_130 = arith.constant 0 : index
    %252 = vector.load %arg9[%c0_129, %c0_130] : memref<8x256xf32, #tpu.memory_space<vmem>>, vector<8x256xf32>
    %c0_131 = arith.constant 0 : index
    %c0_132 = arith.constant 0 : index
    %253 = vector.load %arg10[%c0_131, %c0_132] : memref<8x256xf32, #tpu.memory_space<vmem>>, vector<8x256xf32>
    %254 = arith.index_cast %c6_i32 : i32 to index
    %c0_133 = arith.constant 0 : index
    %c0_134 = arith.constant 0 : index
    %255 = vector.load %arg8[%254, %c0_133, %c0_134] : memref<8x8x1024xf32, #tpu.memory_space<vmem>>, vector<1x8x1024xf32>
    %256 = vector.shape_cast %255 : vector<1x8x1024xf32> to vector<8x1024xf32>
    %c0_135 = arith.constant 0 : index
    %c0_136 = arith.constant 0 : index
    %257 = vector.load %arg5[%c0_135, %c0_136] : memref<256x1024xf32, #tpu.memory_space<vmem>>, vector<256x1024xf32>
    %cst_137 = arith.constant dense<0.000000e+00> : vector<8x1024xf32>
    %258 = tpu.matmul %252, %257, %cst_137 {dimension_numbers = #tpu.dot_dimension_numbers<[1], [0], [0], [1], [0, 0, 1, 1], [], []>} : vector<8x256xf32>, vector<256x1024xf32>, vector<8x1024xf32> -> vector<8x1024xf32>
    %259 = arith.addf %256, %258 : vector<8x1024xf32>
    %260 = vector.extract_strided_slice %259 {offsets = [0, 0], sizes = [8, 256], strides = [1, 1]} : vector<8x1024xf32> to vector<8x256xf32>
    %261 = arith.negf %260 : vector<8x256xf32>
    %262 = math.exp %261 : vector<8x256xf32>
    %cst_138 = arith.constant 1.000000e+00 : f32
    %263 = vector.broadcast %cst_138 : f32 to vector<8x256xf32>
    %264 = arith.addf %263, %262 : vector<8x256xf32>
    %265 = arith.divf %263, %264 : vector<8x256xf32>
    %266 = vector.extract_strided_slice %259 {offsets = [0, 256], sizes = [8, 256], strides = [1, 1]} : vector<8x1024xf32> to vector<8x256xf32>
    %267 = arith.negf %266 : vector<8x256xf32>
    %268 = math.exp %267 : vector<8x256xf32>
    %cst_139 = arith.constant 1.000000e+00 : f32
    %269 = vector.broadcast %cst_139 : f32 to vector<8x256xf32>
    %270 = arith.addf %269, %268 : vector<8x256xf32>
    %271 = arith.divf %269, %270 : vector<8x256xf32>
    %272 = vector.extract_strided_slice %259 {offsets = [0, 512], sizes = [8, 256], strides = [1, 1]} : vector<8x1024xf32> to vector<8x256xf32>
    %273 = math.tanh %272 : vector<8x256xf32>
    %274 = vector.extract_strided_slice %259 {offsets = [0, 768], sizes = [8, 256], strides = [1, 1]} : vector<8x1024xf32> to vector<8x256xf32>
    %275 = arith.negf %274 : vector<8x256xf32>
    %276 = math.exp %275 : vector<8x256xf32>
    %cst_140 = arith.constant 1.000000e+00 : f32
    %277 = vector.broadcast %cst_140 : f32 to vector<8x256xf32>
    %278 = arith.addf %277, %276 : vector<8x256xf32>
    %279 = arith.divf %277, %278 : vector<8x256xf32>
    %280 = arith.mulf %271, %253 : vector<8x256xf32>
    %281 = arith.mulf %265, %273 : vector<8x256xf32>
    %282 = arith.addf %280, %281 : vector<8x256xf32>
    %283 = math.tanh %282 : vector<8x256xf32>
    %284 = arith.mulf %279, %283 : vector<8x256xf32>
    %c0_141 = arith.constant 0 : index
    %c0_142 = arith.constant 0 : index
    %285 = vector.load %arg9[%c0_141, %c0_142] : memref<8x256xf32, #tpu.memory_space<vmem>>, vector<8x256xf32>
    tpu.vector_store %arg9[%c0_141, %c0_142], %284 {strides = array<i32>} : memref<8x256xf32, #tpu.memory_space<vmem>>, vector<8x256xf32>,
    %c0_143 = arith.constant 0 : index
    %c0_144 = arith.constant 0 : index
    %286 = vector.load %arg10[%c0_143, %c0_144] : memref<8x256xf32, #tpu.memory_space<vmem>>, vector<8x256xf32>
    tpu.vector_store %arg10[%c0_143, %c0_144], %282 {strides = array<i32>} : memref<8x256xf32, #tpu.memory_space<vmem>>, vector<8x256xf32>,
    %287 = arith.index_cast %c6_i32 : i32 to index
    %c0_145 = arith.constant 0 : index
    %c0_146 = arith.constant 0 : index
    %288 = vector.load %arg7[%287, %c0_145, %c0_146] : memref<8x8x256xf32, #tpu.memory_space<vmem>>, vector<1x8x256xf32>
    %289 = vector.shape_cast %288 : vector<1x8x256xf32> to vector<8x256xf32>
    %290 = vector.shape_cast %284 : vector<8x256xf32> to vector<1x8x256xf32>
    tpu.vector_store %arg7[%287, %c0_145, %c0_146], %290 {strides = array<i32>} : memref<8x8x256xf32, #tpu.memory_space<vmem>>, vector<1x8x256xf32>,
    %c7_i32 = arith.constant 7 : i32
    %c0_147 = arith.constant 0 : index
    %c0_148 = arith.constant 0 : index
    %291 = vector.load %arg9[%c0_147, %c0_148] : memref<8x256xf32, #tpu.memory_space<vmem>>, vector<8x256xf32>
    %c0_149 = arith.constant 0 : index
    %c0_150 = arith.constant 0 : index
    %292 = vector.load %arg10[%c0_149, %c0_150] : memref<8x256xf32, #tpu.memory_space<vmem>>, vector<8x256xf32>
    %293 = arith.index_cast %c7_i32 : i32 to index
    %c0_151 = arith.constant 0 : index
    %c0_152 = arith.constant 0 : index
    %294 = vector.load %arg8[%293, %c0_151, %c0_152] : memref<8x8x1024xf32, #tpu.memory_space<vmem>>, vector<1x8x1024xf32>
    %295 = vector.shape_cast %294 : vector<1x8x1024xf32> to vector<8x1024xf32>
    %c0_153 = arith.constant 0 : index
    %c0_154 = arith.constant 0 : index
    %296 = vector.load %arg5[%c0_153, %c0_154] : memref<256x1024xf32, #tpu.memory_space<vmem>>, vector<256x1024xf32>
    %cst_155 = arith.constant dense<0.000000e+00> : vector<8x1024xf32>
    %297 = tpu.matmul %291, %296, %cst_155 {dimension_numbers = #tpu.dot_dimension_numbers<[1], [0], [0], [1], [0, 0, 1, 1], [], []>} : vector<8x256xf32>, vector<256x1024xf32>, vector<8x1024xf32> -> vector<8x1024xf32>
    %298 = arith.addf %295, %297 : vector<8x1024xf32>
    %299 = vector.extract_strided_slice %298 {offsets = [0, 0], sizes = [8, 256], strides = [1, 1]} : vector<8x1024xf32> to vector<8x256xf32>
    %300 = arith.negf %299 : vector<8x256xf32>
    %301 = math.exp %300 : vector<8x256xf32>
    %cst_156 = arith.constant 1.000000e+00 : f32
    %302 = vector.broadcast %cst_156 : f32 to vector<8x256xf32>
    %303 = arith.addf %302, %301 : vector<8x256xf32>
    %304 = arith.divf %302, %303 : vector<8x256xf32>
    %305 = vector.extract_strided_slice %298 {offsets = [0, 256], sizes = [8, 256], strides = [1, 1]} : vector<8x1024xf32> to vector<8x256xf32>
    %306 = arith.negf %305 : vector<8x256xf32>
    %307 = math.exp %306 : vector<8x256xf32>
    %cst_157 = arith.constant 1.000000e+00 : f32
    %308 = vector.broadcast %cst_157 : f32 to vector<8x256xf32>
    %309 = arith.addf %308, %307 : vector<8x256xf32>
    %310 = arith.divf %308, %309 : vector<8x256xf32>
    %311 = vector.extract_strided_slice %298 {offsets = [0, 512], sizes = [8, 256], strides = [1, 1]} : vector<8x1024xf32> to vector<8x256xf32>
    %312 = math.tanh %311 : vector<8x256xf32>
    %313 = vector.extract_strided_slice %298 {offsets = [0, 768], sizes = [8, 256], strides = [1, 1]} : vector<8x1024xf32> to vector<8x256xf32>
    %314 = arith.negf %313 : vector<8x256xf32>
    %315 = math.exp %314 : vector<8x256xf32>
    %cst_158 = arith.constant 1.000000e+00 : f32
    %316 = vector.broadcast %cst_158 : f32 to vector<8x256xf32>
    %317 = arith.addf %316, %315 : vector<8x256xf32>
    %318 = arith.divf %316, %317 : vector<8x256xf32>
    %319 = arith.mulf %310, %292 : vector<8x256xf32>
    %320 = arith.mulf %304, %312 : vector<8x256xf32>
    %321 = arith.addf %319, %320 : vector<8x256xf32>
    %322 = math.tanh %321 : vector<8x256xf32>
    %323 = arith.mulf %318, %322 : vector<8x256xf32>
    %c0_159 = arith.constant 0 : index
    %c0_160 = arith.constant 0 : index
    %324 = vector.load %arg9[%c0_159, %c0_160] : memref<8x256xf32, #tpu.memory_space<vmem>>, vector<8x256xf32>
    tpu.vector_store %arg9[%c0_159, %c0_160], %323 {strides = array<i32>} : memref<8x256xf32, #tpu.memory_space<vmem>>, vector<8x256xf32>,
    %c0_161 = arith.constant 0 : index
    %c0_162 = arith.constant 0 : index
    %325 = vector.load %arg10[%c0_161, %c0_162] : memref<8x256xf32, #tpu.memory_space<vmem>>, vector<8x256xf32>
    tpu.vector_store %arg10[%c0_161, %c0_162], %321 {strides = array<i32>} : memref<8x256xf32, #tpu.memory_space<vmem>>, vector<8x256xf32>,
    %326 = arith.index_cast %c7_i32 : i32 to index
    %c0_163 = arith.constant 0 : index
    %c0_164 = arith.constant 0 : index
    %327 = vector.load %arg7[%326, %c0_163, %c0_164] : memref<8x8x256xf32, #tpu.memory_space<vmem>>, vector<1x8x256xf32>
    %328 = vector.shape_cast %327 : vector<1x8x256xf32> to vector<8x256xf32>
    %329 = vector.shape_cast %323 : vector<8x256xf32> to vector<1x8x256xf32>
    tpu.vector_store %arg7[%326, %c0_163, %c0_164], %329 {strides = array<i32>} : memref<8x8x256xf32, #tpu.memory_space<vmem>>, vector<1x8x256xf32>,
    %c8_i32 = arith.constant 8 : i32
    return
  }
  func.func @transform_0(%arg0: i32) -> (i32, i32, i32) {
    %c0_i32 = arith.constant 0 : i32
    %c0_i32_0 = arith.constant 0 : i32
    %c0_i32_1 = arith.constant 0 : i32
    return %c0_i32, %arg0, %c0_i32_0 : i32, i32, i32
  }
  func.func @transform_1(%arg0: i32) -> (i32, i32, i32) {
    %c0_i32 = arith.constant 0 : i32
    %c0_i32_0 = arith.constant 0 : i32
    %c0_i32_1 = arith.constant 0 : i32
    return %c0_i32, %arg0, %c0_i32_0 : i32, i32, i32
  }
  func.func @transform_2(%arg0: i32) -> (i32, i32) {
    %c0_i32 = arith.constant 0 : i32
    %c0_i32_0 = arith.constant 0 : i32
    %c0_i32_1 = arith.constant 0 : i32
    return %c0_i32, %c0_i32_0 : i32, i32
  }
  func.func @transform_3(%arg0: i32) -> (i32, i32) {
    %c0_i32 = arith.constant 0 : i32
    %c0_i32_0 = arith.constant 0 : i32
    %c0_i32_1 = arith.constant 0 : i32
    return %c0_i32, %c0_i32_0 : i32, i32
  }
  func.func @transform_4(%arg0: i32) -> (i32, i32) {
    %c0_i32 = arith.constant 0 : i32
    %c0_i32_0 = arith.constant 0 : i32
    %c0_i32_1 = arith.constant 0 : i32
    return %c0_i32, %c0_i32_0 : i32, i32
  }
  func.func @transform_5(%arg0: i32) -> (i32, i32) {
    %c0_i32 = arith.constant 0 : i32
    %c0_i32_0 = arith.constant 0 : i32
    %c0_i32_1 = arith.constant 0 : i32
    return %c0_i32, %c0_i32_0 : i32, i32
  }
  func.func @transform_6(%arg0: i32) -> (i32, i32, i32) {
    %c0_i32 = arith.constant 0 : i32
    %c0_i32_0 = arith.constant 0 : i32
    %c0_i32_1 = arith.constant 0 : i32
    return %c0_i32, %arg0, %c0_i32_0 : i32, i32, i32
  }
}

</mosaic_0001>

<llo_original>
// kernel: tpu_custom_call.1
$region0: #{tpu_custom_call.1}
  #allocation0 [shape = 'u32[]', space=smem, size = 0x4, offset = 0x4, fixed_abs, tag = 'smem constant byte address 0x4 - core index']
  #allocation1 [shape = 'u32[144,128]{1,0:T(1,128)}', space=vmem, size = 0x12000, scoped, tag = 'internal scratch']
  #allocation2 [shape = 'f32[8,8,1024]{2,1,0:T(8,128)}', space=vmem, size = 0x40000, scoped, tag = 'scratch operand']
  #allocation3 [shape = 'f32[8,256]{1,0:T(8,128)}', space=vmem, size = 0x2000, scoped, tag = 'scratch operand']
  #allocation4 [shape = 'f32[8,256]{1,0:T(8,128)}', space=vmem, size = 0x2000, scoped, tag = 'scratch operand']
  %s0 = inlined_call_operand.hbm [shape: f32[8,8,16], index: 0, kind: input, shape index: {}]
  %s1 = inlined_call_operand.hbm [shape: f32[8,8,16], index: 1, kind: input, shape index: {}]
  %s2 = inlined_call_operand.hbm [shape: f32[16,1024], index: 2, kind: input, shape index: {}]
  %s3 = inlined_call_operand.hbm [shape: f32[16,1024], index: 3, kind: input, shape index: {}]
  %s4 = inlined_call_operand.hbm [shape: f32[256,1024], index: 4, kind: input, shape index: {}]
  %s5 = inlined_call_operand.vmem [shape: f32[1,1024], index: 5, kind: input, shape index: {}]
  %s6 = inlined_call_operand.hbm [shape: f32[8,8,256], index: 6, kind: output, shape index: {}]
  %s7 = sld [smem:[#allocation0]]
  $region54: #{tpu_custom_call.1} parent=0
    _
  %s9 = ssub.s32 1, %s7
  %s10 = scalar_select 0, %s9, %s7
  $region1: #{tpu_custom_call.1} parent=0
    #allocation5 [shape = 'u8[32768]{0}', space=vmem, size = 0x8000, scoped, tag = 'input window, operand 0, single buffered']
    #allocation6 [shape = 's32[1]{0}', space=sflag, size = 0x4, scoped, tag = 'scoped memory for tpu_custom_call.1']
    #allocation7 [shape = 's32[1]{0}', space=sflag, size = 0x4, scoped, tag = 'scoped memory for tpu_custom_call.1']
    #allocation8 [shape = 'u8[32768]{0}', space=vmem, size = 0x8000, scoped, tag = 'input window, operand 1, single buffered']
    #allocation9 [shape = 's32[1]{0}', space=sflag, size = 0x4, scoped, tag = 'scoped memory for tpu_custom_call.1']
    #allocation10 [shape = 'u8[65536]{0}', space=vmem, size = 0x10000, scoped, tag = 'input window, operand 2, single buffered']
    #allocation11 [shape = 'u8[65536]{0}', space=vmem, size = 0x10000, scoped, tag = 'input window, operand 3, single buffered']
    #allocation12 [shape = 's32[1]{0}', space=sflag, size = 0x4, scoped, tag = 'scoped memory for tpu_custom_call.1']
    #allocation13 [shape = 'u8[1048576]{0}', space=vmem, size = 0x100000, scoped, tag = 'input window, operand 4, single buffered']
    #allocation14 [shape = 'u8[65536]{0}', space=vmem, size = 0x10000, scoped, tag = 'output window, operand 0, single buffered']
    %11 = vsyncpa [#allocation6], 0
    %12 = vsyncpa [#allocation9], 0
    %13 = vsyncpa [#allocation12], 0
    %14 = vsyncpa [#allocation7], 0
    // Predicated region
    $region2: #{tpu_custom_call.1} parent=1 // pred_check
      _
    $region3: #{tpu_custom_call.1} parent=1 // pred_check_branch
      %16 = sbr.rel (0) target = $region5
    $region4: #{tpu_custom_call.1} parent=1 // pred_region
      %s18 = ssub.s32 1024, 1024
      %19 = vsyncadd [#allocation6], %s18
      %s20 = sshll.u32 [#allocation5], 4
      %s21 = int_to_ptr.vmem [resolvable:$true] %s20
      %26 = dma.hbm_to_vmem [thread:$0]  %s0, 1024, %s21, [#allocation6], 128, 128, 8
    $region5: #{tpu_custom_call.1} parent=1 // pred_fallthru
      _
    // Predicated region
    $region6: #{tpu_custom_call.1} parent=1 // pred_check
      _
    $region7: #{tpu_custom_call.1} parent=1 // pred_check_branch
      %28 = sbr.rel (0) target = $region9
    $region8: #{tpu_custom_call.1} parent=1 // pred_region
      %s30 = ssub.s32 1024, 1024
      %31 = vsyncadd [#allocation9], %s30
      %s32 = sshll.u32 [#allocation8], 4
      %s33 = int_to_ptr.vmem [resolvable:$true] %s32
      %38 = dma.hbm_to_vmem [thread:$0]  %s1, 1024, %s33, [#allocation9], 128, 128, 8
    $region9: #{tpu_custom_call.1} parent=1 // pred_fallthru
      _
    // Predicated region
    $region10: #{tpu_custom_call.1} parent=1 // pred_check
      _
    $region11: #{tpu_custom_call.1} parent=1 // pred_check_branch
      %40 = sbr.rel (0) target = $region13
    $region12: #{tpu_custom_call.1} parent=1 // pred_region
      %s42 = ssub.s32 2048, 2048
      %43 = vsyncadd [#allocation9], %s42
      %s44 = sshll.u32 [#allocation10], 4
      %s45 = int_to_ptr.vmem [resolvable:$true] %s44
      %50 = dma.hbm_to_vmem [thread:$0]  %s2, 2048, %s45, [#allocation9], 1024, 1024, 64
    $region13: #{tpu_custom_call.1} parent=1 // pred_fallthru
      _
    // Predicated region
    $region14: #{tpu_custom_call.1} parent=1 // pred_check
      _
    $region15: #{tpu_custom_call.1} parent=1 // pred_check_branch
      %52 = sbr.rel (0) target = $region17
    $region16: #{tpu_custom_call.1} parent=1 // pred_region
      %s54 = ssub.s32 2048, 2048
      %55 = vsyncadd [#allocation12], %s54
      %s56 = sshll.u32 [#allocation11], 4
      %s57 = int_to_ptr.vmem [resolvable:$true] %s56
      %62 = dma.hbm_to_vmem [thread:$0]  %s3, 2048, %s57, [#allocation12], 1024, 1024, 64
    $region17: #{tpu_custom_call.1} parent=1 // pred_fallthru
      _
    // Predicated region
    $region18: #{tpu_custom_call.1} parent=1 // pred_check
      _
    $region19: #{tpu_custom_call.1} parent=1 // pred_check_branch
      %64 = sbr.rel (0) target = $region21
    $region20: #{tpu_custom_call.1} parent=1 // pred_region
      %s66 = ssub.s32 32768, 32768
      %67 = vsyncadd [#allocation12], %s66
      %s68 = sshll.u32 [#allocation13], 4
      %s69 = int_to_ptr.vmem [resolvable:$true] %s68
      %74 = dma.hbm_to_vmem [thread:$0]  %s4, 32768, %s69, [#allocation12], 1024, 1024, 64
    $region21: #{tpu_custom_call.1} parent=1 // pred_fallthru
      _
    // Predicated region
    $region22: #{tpu_custom_call.1} parent=1 // pred_check
      _
    $region23: #{tpu_custom_call.1} parent=1 // pred_check_branch
      %76 = sbr.rel (0) target = $region25
    $region24: #{tpu_custom_call.1} parent=1 // pred_region
      _
    $region25: #{tpu_custom_call.1} parent=1 // pred_fallthru
      _
    // Predicated region
    $region26: #{tpu_custom_call.1} parent=1 // pred_check
      _
    $region27: #{tpu_custom_call.1} parent=1 // pred_check_branch
      %78 = sbr.rel (0) target = $region29
    $region28: #{tpu_custom_call.1} parent=1 // pred_region
      %79 = dma.done [#allocation6], 1024
    $region29: #{tpu_custom_call.1} parent=1 // pred_fallthru
      _
    // Predicated region
    $region30: #{tpu_custom_call.1} parent=1 // pred_check
      _
    $region31: #{tpu_custom_call.1} parent=1 // pred_check_branch
      %81 = sbr.rel (0) target = $region33
    $region32: #{tpu_custom_call.1} parent=1 // pred_region
      %82 = dma.done [#allocation9], 1024
    $region33: #{tpu_custom_call.1} parent=1 // pred_fallthru
      _
    // Predicated region
    $region34: #{tpu_custom_call.1} parent=1 // pred_check
      _
    $region35: #{tpu_custom_call.1} parent=1 // pred_check_branch
      %84 = sbr.rel (0) target = $region37
    $region36: #{tpu_custom_call.1} parent=1 // pred_region
      %85 = dma.done [#allocation9], 2048
    $region37: #{tpu_custom_call.1} parent=1 // pred_fallthru
      _
    // Predicated region
    $region38: #{tpu_custom_call.1} parent=1 // pred_check
      _
    $region39: #{tpu_custom_call.1} parent=1 // pred_check_branch
      %87 = sbr.rel (0) target = $region41
    $region40: #{tpu_custom_call.1} parent=1 // pred_region
      %88 = dma.done [#allocation12], 2048
    $region41: #{tpu_custom_call.1} parent=1 // pred_fallthru
      _
    // Predicated region
    $region42: #{tpu_custom_call.1} parent=1 // pred_check
      _
    $region43: #{tpu_custom_call.1} parent=1 // pred_check_branch
      %90 = sbr.rel (0) target = $region45
    $region44: #{tpu_custom_call.1} parent=1 // pred_region
      %91 = dma.done [#allocation12], 32768
    $region45: #{tpu_custom_call.1} parent=1 // pred_fallthru
      _
    %v92 = vld [vmem:[#allocation5] sm:$0xff]
    %v93 = vld [vmem:[#allocation5 + $0x8] sm:$0xff]
    %v94 = vld [vmem:[#allocation5 + $0x10] sm:$0xff]
    %v95 = vld [vmem:[#allocation5 + $0x18] sm:$0xff]
    %v96 = vld [vmem:[#allocation5 + $0x20] sm:$0xff]
    %v97 = vld [vmem:[#allocation5 + $0x28] sm:$0xff]
    %v98 = vld [vmem:[#allocation5 + $0x30] sm:$0xff]
    %v99 = vld [vmem:[#allocation5 + $0x38] sm:$0xff]
    %v100 = vld [vmem:[#allocation8] sm:$0xff]
    %v101 = vld [vmem:[#allocation8 + $0x8] sm:$0xff]
    %v102 = vld [vmem:[#allocation8 + $0x10] sm:$0xff]
    %v103 = vld [vmem:[#allocation8 + $0x18] sm:$0xff]
    %v104 = vld [vmem:[#allocation8 + $0x20] sm:$0xff]
    %v105 = vld [vmem:[#allocation8 + $0x28] sm:$0xff]
    %v106 = vld [vmem:[#allocation8 + $0x30] sm:$0xff]
    %v107 = vld [vmem:[#allocation8 + $0x38] sm:$0xff]
    %v108 = vld [vmem:[#allocation10] sm:$0xff]
    %v109 = vld [vmem:[#allocation10 + $0x8] sm:$0xff]
    %v110 = vld [vmem:[#allocation10 + $0x10] sm:$0xff]
    %v111 = vld [vmem:[#allocation10 + $0x18] sm:$0xff]
    %v112 = vld [vmem:[#allocation10 + $0x20] sm:$0xff]
    %v113 = vld [vmem:[#allocation10 + $0x28] sm:$0xff]
    %v114 = vld [vmem:[#allocation10 + $0x30] sm:$0xff]
    %v115 = vld [vmem:[#allocation10 + $0x38] sm:$0xff]
    %v116 = vld [vmem:[#allocation10 + $0x40] sm:$0xff]
    %v117 = vld [vmem:[#allocation10 + $0x48] sm:$0xff]
    %v118 = vld [vmem:[#allocation10 + $0x50] sm:$0xff]
    %v119 = vld [vmem:[#allocation10 + $0x58] sm:$0xff]
    %v120 = vld [vmem:[#allocation10 + $0x60] sm:$0xff]
    %v121 = vld [vmem:[#allocation10 + $0x68] sm:$0xff]
    %v122 = vld [vmem:[#allocation10 + $0x70] sm:$0xff]
    %v123 = vld [vmem:[#allocation10 + $0x78] sm:$0xff]
    %v124 = vld [vmem:[#allocation11] sm:$0xff]
    %v125 = vld [vmem:[#allocation11 + $0x8] sm:$0xff]
    %v126 = vld [vmem:[#allocation11 + $0x10] sm:$0xff]
    %v127 = vld [vmem:[#allocation11 + $0x18] sm:$0xff]
    %v128 = vld [vmem:[#allocation11 + $0x20] sm:$0xff]
    %v129 = vld [vmem:[#allocation11 + $0x28] sm:$0xff]
    %v130 = vld [vmem:[#allocation11 + $0x30] sm:$0xff]
    %v131 = vld [vmem:[#allocation11 + $0x38] sm:$0xff]
    %v132 = vld [vmem:[#allocation11 + $0x40] sm:$0xff]
    %v133 = vld [vmem:[#allocation11 + $0x48] sm:$0xff]
    %v134 = vld [vmem:[#allocation11 + $0x50] sm:$0xff]
    %v135 = vld [vmem:[#allocation11 + $0x58] sm:$0xff]
    %v136 = vld [vmem:[#allocation11 + $0x60] sm:$0xff]
    %v137 = vld [vmem:[#allocation11 + $0x68] sm:$0xff]
    %v138 = vld [vmem:[#allocation11 + $0x70] sm:$0xff]
    %v139 = vld [vmem:[#allocation11 + $0x78] sm:$0xff]
    %vm140 = vcmask 130048
    %v142 = vsel %vm140, %v100, 0
    %v145 = vsel %vm140, %v101, 0
    %v148 = vsel %vm140, %v102, 0
    %v151 = vsel %vm140, %v103, 0
    %v154 = vsel %vm140, %v104, 0
    %v157 = vsel %vm140, %v105, 0
    %v160 = vsel %vm140, %v106, 0
    %v163 = vsel %vm140, %v107, 0
    %165 = vmatprep.subr.mxu0 %v125
    %166 = vmatpush1.msra.mxu0 %v124
    %167 = vmatprep.subr.mxu0 %v133
    %168 = vmatpush1.msra.mxu0 %v132
    %169 = vmatprep.subr.mxu0 0.0
    %170 = vmatpush1.msra.mxu0 0.0
    %171 = vmatprep.subr.mxu0 0.0
    %172 = vmatpush1.msra.mxu0 0.0
    %173 = vmatprep.subr.mxu0 0.0
    %174 = vmatpush1.msra.mxu0 0.0
    %175 = vmatprep.subr.mxu0 0.0
    %176 = vmatpush1.msra.mxu0 0.0
    %177 = vmatprep.subr.mxu0 0.0
    %178 = vmatpush1.msra.mxu0 0.0
    %179 = vmatprep.subr.mxu0 0.0
    %180 = vmatpush1.msra.mxu0 0.0
    %181 = vmatprep.subr.mxu0 0.0
    %182 = vmatpush1.msra.mxu0 0.0
    %183 = vmatprep.subr.mxu0 0.0
    %184 = vmatpush1.msra.mxu0 0.0
    %185 = vmatprep.subr.mxu0 0.0
    %186 = vmatpush1.msra.mxu0 0.0
    %187 = vmatprep.subr.mxu0 0.0
    %188 = vmatpush1.msra.mxu0 0.0
    %189 = vmatprep.subr.mxu0 0.0
    %190 = vmatpush1.msra.mxu0 0.0
    %191 = vmatprep.subr.mxu0 0.0
    %192 = vmatpush1.msra.mxu0 0.0
    %193 = vmatprep.subr.mxu0 0.0
    %194 = vmatpush1.msra.mxu0 0.0
    %195 = vmatprep.subr.mxu0 0.0
    %196 = vmatpush1.msra.mxu0 0.0
    %197 = vmatprep.subr.mxu0 0.0
    %198 = vmatpush1.msra.mxu0 0.0
    %199 = vmatprep.subr.mxu0 0.0
    %200 = vmatpush1.msra.mxu0 0.0
    %201 = vmatprep.subr.mxu0 0.0
    %202 = vmatpush1.msra.mxu0 0.0
    %203 = vmatprep.subr.mxu0 0.0
    %204 = vmatpush1.msra.mxu0 0.0
    %205 = vmatprep.subr.mxu0 0.0
    %206 = vmatpush1.msra.mxu0 0.0
    %207 = vmatprep.subr.mxu0 0.0
    %208 = vmatpush1.msra.mxu0 0.0
    %209 = vmatprep.subr.mxu0 0.0
    %210 = vmatpush1.msra.mxu0 0.0
    %211 = vmatprep.subr.mxu0 0.0
    %212 = vmatpush1.msra.mxu0 0.0
    %213 = vmatprep.subr.mxu0 0.0
    %214 = vmatpush1.msra.mxu0 0.0
    %215 = vmatprep.subr.mxu0 0.0
    %216 = vmatpush1.msra.mxu0 0.0
    %217 = vmatprep.subr.mxu0 0.0
    %218 = vmatpush1.msra.mxu0 0.0
    %219 = vmatprep.subr.mxu0 0.0
    %220 = vmatpush1.msra.mxu0 0.0
    %221 = vmatprep.subr.mxu0 0.0
    %222 = vmatpush1.msra.mxu0 0.0
    %223 = vmatprep.subr.mxu0 0.0
    %224 = vmatpush1.msra.mxu0 0.0
    %225 = vmatprep.subr.mxu0 0.0
    %226 = vmatpush1.msra.mxu0 0.0
    %227 = vmatprep.subr.mxu0 0.0
    %228 = vmatpush1.msra.mxu0 0.0
    %229 = vmatprep.mubr.f32.mxu0 0.0
    %230 = vmatmul.mubr.f32.gmra.mrb[0].mxu0 %v142
    %v231 = vpop.f32.mrb[0].mxu0
    %v232 = vadd.f32 0.0, %v231
    %v233 = vpop.f32.mrb[0].mxu0
    %v234 = vadd.f32 0.0, %v233
    %235 = vmatprep.mubr.f32.mxu0 0.0
    %236 = vmatmul.mubr.f32.gmra.mrb[0].mxu0 %v145
    %v237 = vpop.f32.mrb[0].mxu0
    %v238 = vadd.f32 0.0, %v237
    %v239 = vpop.f32.mrb[0].mxu0
    %v240 = vadd.f32 0.0, %v239
    %241 = vmatprep.mubr.f32.mxu0 0.0
    %242 = vmatmul.mubr.f32.gmra.mrb[0].mxu0 %v148
    %v243 = vpop.f32.mrb[0].mxu0
    %v244 = vadd.f32 0.0, %v243
    %v245 = vpop.f32.mrb[0].mxu0
    %v246 = vadd.f32 0.0, %v245
    %247 = vmatprep.mubr.f32.mxu0 0.0
    %248 = vmatmul.mubr.f32.gmra.mrb[0].mxu0 %v151
    %v249 = vpop.f32.mrb[0].mxu0
    %v250 = vadd.f32 0.0, %v249
    %v251 = vpop.f32.mrb[0].mxu0
    %v252 = vadd.f32 0.0, %v251
    %253 = vmatprep.mubr.f32.mxu0 0.0
    %254 = vmatmul.mubr.f32.gmra.mrb[0].mxu0 %v154
    %v255 = vpop.f32.mrb[0].mxu0
    %v256 = vadd.f32 0.0, %v255
    %v257 = vpop.f32.mrb[0].mxu0
    %v258 = vadd.f32 0.0, %v257
    %259 = vmatprep.mubr.f32.mxu0 0.0
    %260 = vmatmul.mubr.f32.gmra.mrb[0].mxu0 %v157
    %v261 = vpop.f32.mrb[0].mxu0
    %v262 = vadd.f32 0.0, %v261
    %v263 = vpop.f32.mrb[0].mxu0
    %v264 = vadd.f32 0.0, %v263
    %265 = vmatprep.mubr.f32.mxu0 0.0
    %266 = vmatmul.mubr.f32.gmra.mrb[0].mxu0 %v160
    %v267 = vpop.f32.mrb[0].mxu0
    %v268 = vadd.f32 0.0, %v267
    %v269 = vpop.f32.mrb[0].mxu0
    %v270 = vadd.f32 0.0, %v269
    %271 = vmatprep.mubr.f32.mxu0 0.0
    %272 = vmatmul.mubr.f32.gmra.mrb[0].mxu0 %v163
    %v273 = vpop.f32.mrb[0].mxu0
    %v274 = vadd.f32 0.0, %v273
    %v275 = vpop.f32.mrb[0].mxu0
    %v276 = vadd.f32 0.0, %v275
    %277 = vdwg.mxu0
    %278 = vmatprep.subr.mxu0 %v127
    %279 = vmatpush1.msra.mxu0 %v126
    %280 = vmatprep.subr.mxu0 %v135
    %281 = vmatpush1.msra.mxu0 %v134
    %282 = vmatprep.subr.mxu0 0.0
    %283 = vmatpush1.msra.mxu0 0.0
    %284 = vmatprep.subr.mxu0 0.0
    %285 = vmatpush1.msra.mxu0 0.0
    %286 = vmatprep.subr.mxu0 0.0
    %287 = vmatpush1.msra.mxu0 0.0
    %288 = vmatprep.subr.mxu0 0.0
    %289 = vmatpush1.msra.mxu0 0.0
    %290 = vmatprep.subr.mxu0 0.0
    %291 = vmatpush1.msra.mxu0 0.0
    %292 = vmatprep.subr.mxu0 0.0
    %293 = vmatpush1.msra.mxu0 0.0
    %294 = vmatprep.subr.mxu0 0.0
    %295 = vmatpush1.msra.mxu0 0.0
    %296 = vmatprep.subr.mxu0 0.0
    %297 = vmatpush1.msra.mxu0 0.0
    %298 = vmatprep.subr.mxu0 0.0
    %299 = vmatpush1.msra.mxu0 0.0
    %300 = vmatprep.subr.mxu0 0.0
    %301 = vmatpush1.msra.mxu0 0.0
    %302 = vmatprep.subr.mxu0 0.0
    %303 = vmatpush1.msra.mxu0 0.0
    %304 = vmatprep.subr.mxu0 0.0
    %305 = vmatpush1.msra.mxu0 0.0
    %306 = vmatprep.subr.mxu0 0.0
    %307 = vmatpush1.msra.mxu0 0.0
    %308 = vmatprep.subr.mxu0 0.0
    %309 = vmatpush1.msra.mxu0 0.0
    %310 = vmatprep.subr.mxu0 0.0
    %311 = vmatpush1.msra.mxu0 0.0
    %312 = vmatprep.subr.mxu0 0.0
    %313 = vmatpush1.msra.mxu0 0.0
    %314 = vmatprep.subr.mxu0 0.0
    %315 = vmatpush1.msra.mxu0 0.0
    %316 = vmatprep.subr.mxu0 0.0
    %317 = vmatpush1.msra.mxu0 0.0
    %318 = vmatprep.subr.mxu0 0.0
    %319 = vmatpush1.msra.mxu0 0.0
    %320 = vmatprep.subr.mxu0 0.0
    %321 = vmatpush1.msra.mxu0 0.0
    %322 = vmatprep.subr.mxu0 0.0
    %323 = vmatpush1.msra.mxu0 0.0
    %324 = vmatprep.subr.mxu0 0.0
    %325 = vmatpush1.msra.mxu0 0.0
    %326 = vmatprep.subr.mxu0 0.0
    %327 = vmatpush1.msra.mxu0 0.0
    %328 = vmatprep.subr.mxu0 0.0
    %329 = vmatpush1.msra.mxu0 0.0
    %330 = vmatprep.subr.mxu0 0.0
    %331 = vmatpush1.msra.mxu0 0.0
    %332 = vmatprep.subr.mxu0 0.0
    %333 = vmatpush1.msra.mxu0 0.0
    %334 = vmatprep.subr.mxu0 0.0
    %335 = vmatpush1.msra.mxu0 0.0
    %336 = vmatprep.subr.mxu0 0.0
    %337 = vmatpush1.msra.mxu0 0.0
    %338 = vmatprep.subr.mxu0 0.0
    %339 = vmatpush1.msra.mxu0 0.0
    %340 = vmatprep.subr.mxu0 0.0
    %341 = vmatpush1.msra.mxu0 0.0
    %342 = vmatprep.mubr.f32.mxu0 0.0
    %343 = vmatmul.mubr.f32.gmra.mrb[0].mxu0 %v142
    %v344 = vpop.f32.mrb[0].mxu0
    %v345 = vadd.f32 0.0, %v344
    %v346 = vpop.f32.mrb[0].mxu0
    %v347 = vadd.f32 0.0, %v346
    %348 = vmatprep.mubr.f32.mxu0 0.0
    %349 = vmatmul.mubr.f32.gmra.mrb[0].mxu0 %v145
    %v350 = vpop.f32.mrb[0].mxu0
    %v351 = vadd.f32 0.0, %v350
    %v352 = vpop.f32.mrb[0].mxu0
    %v353 = vadd.f32 0.0, %v352
    %354 = vmatprep.mubr.f32.mxu0 0.0
    %355 = vmatmul.mubr.f32.gmra.mrb[0].mxu0 %v148
    %v356 = vpop.f32.mrb[0].mxu0
    %v357 = vadd.f32 0.0, %v356
    %v358 = vpop.f32.mrb[0].mxu0
    %v359 = vadd.f32 0.0, %v358
    %360 = vmatprep.mubr.f32.mxu0 0.0
    %361 = vmatmul.mubr.f32.gmra.mrb[0].mxu0 %v151
    %v362 = vpop.f32.mrb[0].mxu0
    %v363 = vadd.f32 0.0, %v362
    %v364 = vpop.f32.mrb[0].mxu0
    %v365 = vadd.f32 0.0, %v364
    %366 = vmatprep.mubr.f32.mxu0 0.0
    %367 = vmatmul.mubr.f32.gmra.mrb[0].mxu0 %v154
    %v368 = vpop.f32.mrb[0].mxu0
    %v369 = vadd.f32 0.0, %v368
    %v370 = vpop.f32.mrb[0].mxu0
    %v371 = vadd.f32 0.0, %v370
    %372 = vmatprep.mubr.f32.mxu0 0.0
    %373 = vmatmul.mubr.f32.gmra.mrb[0].mxu0 %v157
    %v374 = vpop.f32.mrb[0].mxu0
    %v375 = vadd.f32 0.0, %v374
    %v376 = vpop.f32.mrb[0].mxu0
    %v377 = vadd.f32 0.0, %v376
    %378 = vmatprep.mubr.f32.mxu0 0.0
    %379 = vmatmul.mubr.f32.gmra.mrb[0].mxu0 %v160
    %v380 = vpop.f32.mrb[0].mxu0
    %v381 = vadd.f32 0.0, %v380
    %v382 = vpop.f32.mrb[0].mxu0
    %v383 = vadd.f32 0.0, %v382
    %384 = vmatprep.mubr.f32.mxu0 0.0
    %385 = vmatmul.mubr.f32.gmra.mrb[0].mxu0 %v163
    %v386 = vpop.f32.mrb[0].mxu0
    %v387 = vadd.f32 0.0, %v386
    %v388 = vpop.f32.mrb[0].mxu0
    %v389 = vadd.f32 0.0, %v388
    %390 = vdwg.mxu0
    %391 = vmatprep.subr.mxu0 %v129
    %392 = vmatpush1.msra.mxu0 %v128
    %393 = vmatprep.subr.mxu0 %v137
    %394 = vmatpush1.msra.mxu0 %v136
    %395 = vmatprep.subr.mxu0 0.0
    %396 = vmatpush1.msra.mxu0 0.0
    %397 = vmatprep.subr.mxu0 0.0
    %398 = vmatpush1.msra.mxu0 0.0
    %399 = vmatprep.subr.mxu0 0.0
    %400 = vmatpush1.msra.mxu0 0.0
    %401 = vmatprep.subr.mxu0 0.0
    %402 = vmatpush1.msra.mxu0 0.0
    %403 = vmatprep.subr.mxu0 0.0
    %404 = vmatpush1.msra.mxu0 0.0
    %405 = vmatprep.subr.mxu0 0.0
    %406 = vmatpush1.msra.mxu0 0.0
    %407 = vmatprep.subr.mxu0 0.0
    %408 = vmatpush1.msra.mxu0 0.0
    %409 = vmatprep.subr.mxu0 0.0
    %410 = vmatpush1.msra.mxu0 0.0
    %411 = vmatprep.subr.mxu0 0.0
    %412 = vmatpush1.msra.mxu0 0.0
    %413 = vmatprep.subr.mxu0 0.0
    %414 = vmatpush1.msra.mxu0 0.0
    %415 = vmatprep.subr.mxu0 0.0
    %416 = vmatpush1.msra.mxu0 0.0
    %417 = vmatprep.subr.mxu0 0.0
    %418 = vmatpush1.msra.mxu0 0.0
    %419 = vmatprep.subr.mxu0 0.0
    %420 = vmatpush1.msra.mxu0 0.0
    %421 = vmatprep.subr.mxu0 0.0
    %422 = vmatpush1.msra.mxu0 0.0
    %423 = vmatprep.subr.mxu0 0.0
    %424 = vmatpush1.msra.mxu0 0.0
    %425 = vmatprep.subr.mxu0 0.0
    %426 = vmatpush1.msra.mxu0 0.0
    %427 = vmatprep.subr.mxu0 0.0
    %428 = vmatpush1.msra.mxu0 0.0
    %429 = vmatprep.subr.mxu0 0.0
    %430 = vmatpush1.msra.mxu0 0.0
    %431 = vmatprep.subr.mxu0 0.0
    %432 = vmatpush1.msra.mxu0 0.0
    %433 = vmatprep.subr.mxu0 0.0
    %434 = vmatpush1.msra.mxu0 0.0
    %435 = vmatprep.subr.mxu0 0.0
    %436 = vmatpush1.msra.mxu0 0.0
    %437 = vmatprep.subr.mxu0 0.0
    %438 = vmatpush1.msra.mxu0 0.0
    %439 = vmatprep.subr.mxu0 0.0
    %440 = vmatpush1.msra.mxu0 0.0
    %441 = vmatprep.subr.mxu0 0.0
    %442 = vmatpush1.msra.mxu0 0.0
    %443 = vmatprep.subr.mxu0 0.0
    %444 = vmatpush1.msra.mxu0 0.0
    %445 = vmatprep.subr.mxu0 0.0
    %446 = vmatpush1.msra.mxu0 0.0
    %447 = vmatprep.subr.mxu0 0.0
    %448 = vmatpush1.msra.mxu0 0.0
    %449 = vmatprep.subr.mxu0 0.0
    %450 = vmatpush1.msra.mxu0 0.0
    %451 = vmatprep.subr.mxu0 0.0
    %452 = vmatpush1.msra.mxu0 0.0
    %453 = vmatprep.subr.mxu0 0.0
    %454 = vmatpush1.msra.mxu0 0.0
    %455 = vmatprep.mubr.f32.mxu0 0.0
    %456 = vmatmul.mubr.f32.gmra.mrb[0].mxu0 %v142
    %v457 = vpop.f32.mrb[0].mxu0
    %v458 = vadd.f32 0.0, %v457
    %v459 = vpop.f32.mrb[0].mxu0
    %v460 = vadd.f32 0.0, %v459
    %461 = vmatprep.mubr.f32.mxu0 0.0
    %462 = vmatmul.mubr.f32.gmra.mrb[0].mxu0 %v145
    %v463 = vpop.f32.mrb[0].mxu0
    %v464 = vadd.f32 0.0, %v463
    %v465 = vpop.f32.mrb[0].mxu0
    %v466 = vadd.f32 0.0, %v465
    %467 = vmatprep.mubr.f32.mxu0 0.0
    %468 = vmatmul.mubr.f32.gmra.mrb[0].mxu0 %v148
    %v469 = vpop.f32.mrb[0].mxu0
    %v470 = vadd.f32 0.0, %v469
    %v471 = vpop.f32.mrb[0].mxu0
    %v472 = vadd.f32 0.0, %v471
    %473 = vmatprep.mubr.f32.mxu0 0.0
    %474 = vmatmul.mubr.f32.gmra.mrb[0].mxu0 %v151
    %v475 = vpop.f32.mrb[0].mxu0
    %v476 = vadd.f32 0.0, %v475
    %v477 = vpop.f32.mrb[0].mxu0
    %v478 = vadd.f32 0.0, %v477
    %479 = vmatprep.mubr.f32.mxu0 0.0
    %480 = vmatmul.mubr.f32.gmra.mrb[0].mxu0 %v154
    %v481 = vpop.f32.mrb[0].mxu0
    %v482 = vadd.f32 0.0, %v481
    %v483 = vpop.f32.mrb[0].mxu0
    %v484 = vadd.f32 0.0, %v483
    %485 = vmatprep.mubr.f32.mxu0 0.0
    %486 = vmatmul.mubr.f32.gmra.mrb[0].mxu0 %v157
    %v487 = vpop.f32.mrb[0].mxu0
    %v488 = vadd.f32 0.0, %v487
    %v489 = vpop.f32.mrb[0].mxu0
    %v490 = vadd.f32 0.0, %v489
    %491 = vmatprep.mubr.f32.mxu0 0.0
    %492 = vmatmul.mubr.f32.gmra.mrb[0].mxu0 %v160
    %v493 = vpop.f32.mrb[0].mxu0
    %v494 = vadd.f32 0.0, %v493
    %v495 = vpop.f32.mrb[0].mxu0
    %v496 = vadd.f32 0.0, %v495
    %497 = vmatprep.mubr.f32.mxu0 0.0
    %498 = vmatmul.mubr.f32.gmra.mrb[0].mxu0 %v163
    %v499 = vpop.f32.mrb[0].mxu0
    %v500 = vadd.f32 0.0, %v499
    %v501 = vpop.f32.mrb[0].mxu0
    %v502 = vadd.f32 0.0, %v501
    %503 = vdwg.mxu0
    %504 = vmatprep.subr.mxu0 %v131
    %505 = vmatpush1.msra.mxu0 %v130
    %506 = vmatprep.subr.mxu0 %v139
    %507 = vmatpush1.msra.mxu0 %v138
    %508 = vmatprep.subr.mxu0 0.0
    %509 = vmatpush1.msra.mxu0 0.0
    %510 = vmatprep.subr.mxu0 0.0
    %511 = vmatpush1.msra.mxu0 0.0
    %512 = vmatprep.subr.mxu0 0.0
    %513 = vmatpush1.msra.mxu0 0.0
    %514 = vmatprep.subr.mxu0 0.0
    %515 = vmatpush1.msra.mxu0 0.0
    %516 = vmatprep.subr.mxu0 0.0
    %517 = vmatpush1.msra.mxu0 0.0
    %518 = vmatprep.subr.mxu0 0.0
    %519 = vmatpush1.msra.mxu0 0.0
    %520 = vmatprep.subr.mxu0 0.0
    %521 = vmatpush1.msra.mxu0 0.0
    %522 = vmatprep.subr.mxu0 0.0
    %523 = vmatpush1.msra.mxu0 0.0
    %524 = vmatprep.subr.mxu0 0.0
    %525 = vmatpush1.msra.mxu0 0.0
    %526 = vmatprep.subr.mxu0 0.0
    %527 = vmatpush1.msra.mxu0 0.0
    %528 = vmatprep.subr.mxu0 0.0
    %529 = vmatpush1.msra.mxu0 0.0
    %530 = vmatprep.subr.mxu0 0.0
    %531 = vmatpush1.msra.mxu0 0.0
    %532 = vmatprep.subr.mxu0 0.0
    %533 = vmatpush1.msra.mxu0 0.0
    %534 = vmatprep.subr.mxu0 0.0
    %535 = vmatpush1.msra.mxu0 0.0
    %536 = vmatprep.subr.mxu0 0.0
    %537 = vmatpush1.msra.mxu0 0.0
    %538 = vmatprep.subr.mxu0 0.0
    %539 = vmatpush1.msra.mxu0 0.0
    %540 = vmatprep.subr.mxu0 0.0
    %541 = vmatpush1.msra.mxu0 0.0
    %542 = vmatprep.subr.mxu0 0.0
    %543 = vmatpush1.msra.mxu0 0.0
    %544 = vmatprep.subr.mxu0 0.0
    %545 = vmatpush1.msra.mxu0 0.0
    %546 = vmatprep.subr.mxu0 0.0
    %547 = vmatpush1.msra.mxu0 0.0
    %548 = vmatprep.subr.mxu0 0.0
    %549 = vmatpush1.msra.mxu0 0.0
    %550 = vmatprep.subr.mxu0 0.0
    %551 = vmatpush1.msra.mxu0 0.0
    %552 = vmatprep.subr.mxu0 0.0
    %553 = vmatpush1.msra.mxu0 0.0
    %554 = vmatprep.subr.mxu0 0.0
    %555 = vmatpush1.msra.mxu0 0.0
    %556 = vmatprep.subr.mxu0 0.0
    %557 = vmatpush1.msra.mxu0 0.0
    %558 = vmatprep.subr.mxu0 0.0
    %559 = vmatpush1.msra.mxu0 0.0
    %560 = vmatprep.subr.mxu0 0.0
    %561 = vmatpush1.msra.mxu0 0.0
    %562 = vmatprep.subr.mxu0 0.0
    %563 = vmatpush1.msra.mxu0 0.0
    %564 = vmatprep.subr.mxu0 0.0
    %565 = vmatpush1.msra.mxu0 0.0
    %566 = vmatprep.subr.mxu0 0.0
    %567 = vmatpush1.msra.mxu0 0.0
    %568 = vmatprep.mubr.f32.mxu0 0.0
    %569 = vmatmul.mubr.f32.gmra.mrb[0].mxu0 %v142
    %v570 = vpop.f32.mrb[0].mxu0
    %v571 = vadd.f32 0.0, %v570
    %v572 = vpop.f32.mrb[0].mxu0
    %v573 = vadd.f32 0.0, %v572
    %574 = vmatprep.mubr.f32.mxu0 0.0
    %575 = vmatmul.mubr.f32.gmra.mrb[0].mxu0 %v145
    %v576 = vpop.f32.mrb[0].mxu0
    %v577 = vadd.f32 0.0, %v576
    %v578 = vpop.f32.mrb[0].mxu0
    %v579 = vadd.f32 0.0, %v578
    %580 = vmatprep.mubr.f32.mxu0 0.0
    %581 = vmatmul.mubr.f32.gmra.mrb[0].mxu0 %v148
    %v582 = vpop.f32.mrb[0].mxu0
    %v583 = vadd.f32 0.0, %v582
    %v584 = vpop.f32.mrb[0].mxu0
    %v585 = vadd.f32 0.0, %v584
    %586 = vmatprep.mubr.f32.mxu0 0.0
    %587 = vmatmul.mubr.f32.gmra.mrb[0].mxu0 %v151
    %v588 = vpop.f32.mrb[0].mxu0
    %v589 = vadd.f32 0.0, %v588
    %v590 = vpop.f32.mrb[0].mxu0
    %v591 = vadd.f32 0.0, %v590
    %592 = vmatprep.mubr.f32.mxu0 0.0
    %593 = vmatmul.mubr.f32.gmra.mrb[0].mxu0 %v154
    %v594 = vpop.f32.mrb[0].mxu0
    %v595 = vadd.f32 0.0, %v594
    %v596 = vpop.f32.mrb[0].mxu0
    %v597 = vadd.f32 0.0, %v596
    %598 = vmatprep.mubr.f32.mxu0 0.0
    %599 = vmatmul.mubr.f32.gmra.mrb[0].mxu0 %v157
    %v600 = vpop.f32.mrb[0].mxu0
    %v601 = vadd.f32 0.0, %v600
    %v602 = vpop.f32.mrb[0].mxu0
    %v603 = vadd.f32 0.0, %v602
    %604 = vmatprep.mubr.f32.mxu0 0.0
    %605 = vmatmul.mubr.f32.gmra.mrb[0].mxu0 %v160
    %v606 = vpop.f32.mrb[0].mxu0
    %v607 = vadd.f32 0.0, %v606
    %v608 = vpop.f32.mrb[0].mxu0
    %v609 = vadd.f32 0.0, %v608
    %610 = vmatprep.mubr.f32.mxu0 0.0
    %611 = vmatmul.mubr.f32.gmra.mrb[0].mxu0 %v163
    %v612 = vpop.f32.mrb[0].mxu0
    %v613 = vadd.f32 0.0, %v612
    %v614 = vpop.f32.mrb[0].mxu0
    %v615 = vadd.f32 0.0, %v614
    %616 = vdwg.mxu0
    %v618 = vsel %vm140, %v92, 0
    %v621 = vsel %vm140, %v93, 0
    %v624 = vsel %vm140, %v94, 0
    %v627 = vsel %vm140, %v95, 0
    %v630 = vsel %vm140, %v96, 0
    %v633 = vsel %vm140, %v97, 0
    %v636 = vsel %vm140, %v98, 0
    %v639 = vsel %vm140, %v99, 0
    %641 = vmatprep.subr.mxu0 %v109
    %642 = vmatpush1.msra.mxu0 %v108
    %643 = vmatprep.subr.mxu0 %v117
    %644 = vmatpush1.msra.mxu0 %v116
    %645 = vmatprep.subr.mxu0 0.0
    %646 = vmatpush1.msra.mxu0 0.0
    %647 = vmatprep.subr.mxu0 0.0
    %648 = vmatpush1.msra.mxu0 0.0
    %649 = vmatprep.subr.mxu0 0.0
    %650 = vmatpush1.msra.mxu0 0.0
    %651 = vmatprep.subr.mxu0 0.0
    %652 = vmatpush1.msra.mxu0 0.0
    %653 = vmatprep.subr.mxu0 0.0
    %654 = vmatpush1.msra.mxu0 0.0
    %655 = vmatprep.subr.mxu0 0.0
    %656 = vmatpush1.msra.mxu0 0.0
    %657 = vmatprep.subr.mxu0 0.0
    %658 = vmatpush1.msra.mxu0 0.0
    %659 = vmatprep.subr.mxu0 0.0
    %660 = vmatpush1.msra.mxu0 0.0
    %661 = vmatprep.subr.mxu0 0.0
    %662 = vmatpush1.msra.mxu0 0.0
    %663 = vmatprep.subr.mxu0 0.0
    %664 = vmatpush1.msra.mxu0 0.0
    %665 = vmatprep.subr.mxu0 0.0
    %666 = vmatpush1.msra.mxu0 0.0
    %667 = vmatprep.subr.mxu0 0.0
    %668 = vmatpush1.msra.mxu0 0.0
    %669 = vmatprep.subr.mxu0 0.0
    %670 = vmatpush1.msra.mxu0 0.0
    %671 = vmatprep.subr.mxu0 0.0
    %672 = vmatpush1.msra.mxu0 0.0
    %673 = vmatprep.subr.mxu0 0.0
    %674 = vmatpush1.msra.mxu0 0.0
    %675 = vmatprep.subr.mxu0 0.0
    %676 = vmatpush1.msra.mxu0 0.0
    %677 = vmatprep.subr.mxu0 0.0
    %678 = vmatpush1.msra.mxu0 0.0
    %679 = vmatprep.subr.mxu0 0.0
    %680 = vmatpush1.msra.mxu0 0.0
    %681 = vmatprep.subr.mxu0 0.0
    %682 = vmatpush1.msra.mxu0 0.0
    %683 = vmatprep.subr.mxu0 0.0
    %684 = vmatpush1.msra.mxu0 0.0
    %685 = vmatprep.subr.mxu0 0.0
    %686 = vmatpush1.msra.mxu0 0.0
    %687 = vmatprep.subr.mxu0 0.0
    %688 = vmatpush1.msra.mxu0 0.0
    %689 = vmatprep.subr.mxu0 0.0
    %690 = vmatpush1.msra.mxu0 0.0
    %691 = vmatprep.subr.mxu0 0.0
    %692 = vmatpush1.msra.mxu0 0.0
    %693 = vmatprep.subr.mxu0 0.0
    %694 = vmatpush1.msra.mxu0 0.0
    %695 = vmatprep.subr.mxu0 0.0
    %696 = vmatpush1.msra.mxu0 0.0
    %697 = vmatprep.subr.mxu0 0.0
    %698 = vmatpush1.msra.mxu0 0.0
    %699 = vmatprep.subr.mxu0 0.0
    %700 = vmatpush1.msra.mxu0 0.0
    %701 = vmatprep.subr.mxu0 0.0
    %702 = vmatpush1.msra.mxu0 0.0
    %703 = vmatprep.subr.mxu0 0.0
    %704 = vmatpush1.msra.mxu0 0.0
    %705 = vmatprep.mubr.f32.mxu0 0.0
    %706 = vmatmul.mubr.f32.gmra.mrb[0].mxu0 %v618
    %v707 = vpop.f32.mrb[0].mxu0
    %v708 = vadd.f32 %v232, %v707
    %v709 = vpop.f32.mrb[0].mxu0
    %v710 = vadd.f32 %v234, %v709
    %711 = vmatprep.mubr.f32.mxu0 0.0
    %712 = vmatmul.mubr.f32.gmra.mrb[0].mxu0 %v621
    %v713 = vpop.f32.mrb[0].mxu0
    %v714 = vadd.f32 %v238, %v713
    %v715 = vpop.f32.mrb[0].mxu0
    %v716 = vadd.f32 %v240, %v715
    %717 = vmatprep.mubr.f32.mxu0 0.0
    %718 = vmatmul.mubr.f32.gmra.mrb[0].mxu0 %v624
    %v719 = vpop.f32.mrb[0].mxu0
    %v720 = vadd.f32 %v244, %v719
    %v721 = vpop.f32.mrb[0].mxu0
    %v722 = vadd.f32 %v246, %v721
    %723 = vmatprep.mubr.f32.mxu0 0.0
    %724 = vmatmul.mubr.f32.gmra.mrb[0].mxu0 %v627
    %v725 = vpop.f32.mrb[0].mxu0
    %v726 = vadd.f32 %v250, %v725
    %v727 = vpop.f32.mrb[0].mxu0
    %v728 = vadd.f32 %v252, %v727
    %729 = vmatprep.mubr.f32.mxu0 0.0
    %730 = vmatmul.mubr.f32.gmra.mrb[0].mxu0 %v630
    %v731 = vpop.f32.mrb[0].mxu0
    %v732 = vadd.f32 %v256, %v731
    %v733 = vpop.f32.mrb[0].mxu0
    %v734 = vadd.f32 %v258, %v733
    %735 = vmatprep.mubr.f32.mxu0 0.0
    %736 = vmatmul.mubr.f32.gmra.mrb[0].mxu0 %v633
    %v737 = vpop.f32.mrb[0].mxu0
    %v738 = vadd.f32 %v262, %v737
    %v739 = vpop.f32.mrb[0].mxu0
    %v740 = vadd.f32 %v264, %v739
    %741 = vmatprep.mubr.f32.mxu0 0.0
    %742 = vmatmul.mubr.f32.gmra.mrb[0].mxu0 %v636
    %v743 = vpop.f32.mrb[0].mxu0
    %v744 = vadd.f32 %v268, %v743
    %v745 = vpop.f32.mrb[0].mxu0
    %v746 = vadd.f32 %v270, %v745
    %747 = vmatprep.mubr.f32.mxu0 0.0
    %748 = vmatmul.mubr.f32.gmra.mrb[0].mxu0 %v639
    %v749 = vpop.f32.mrb[0].mxu0
    %v750 = vadd.f32 %v274, %v749
    %v751 = vpop.f32.mrb[0].mxu0
    %v752 = vadd.f32 %v276, %v751
    %753 = vdwg.mxu0
    %754 = vmatprep.subr.mxu0 %v111
    %755 = vmatpush1.msra.mxu0 %v110
    %756 = vmatprep.subr.mxu0 %v119
    %757 = vmatpush1.msra.mxu0 %v118
    %758 = vmatprep.subr.mxu0 0.0
    %759 = vmatpush1.msra.mxu0 0.0
    %760 = vmatprep.subr.mxu0 0.0
    %761 = vmatpush1.msra.mxu0 0.0
    %762 = vmatprep.subr.mxu0 0.0
    %763 = vmatpush1.msra.mxu0 0.0
    %764 = vmatprep.subr.mxu0 0.0
    %765 = vmatpush1.msra.mxu0 0.0
    %766 = vmatprep.subr.mxu0 0.0
    %767 = vmatpush1.msra.mxu0 0.0
    %768 = vmatprep.subr.mxu0 0.0
    %769 = vmatpush1.msra.mxu0 0.0
    %770 = vmatprep.subr.mxu0 0.0
    %771 = vmatpush1.msra.mxu0 0.0
    %772 = vmatprep.subr.mxu0 0.0
    %773 = vmatpush1.msra.mxu0 0.0
    %774 = vmatprep.subr.mxu0 0.0
    %775 = vmatpush1.msra.mxu0 0.0
    %776 = vmatprep.subr.mxu0 0.0
    %777 = vmatpush1.msra.mxu0 0.0
    %778 = vmatprep.subr.mxu0 0.0
    %779 = vmatpush1.msra.mxu0 0.0
    %780 = vmatprep.subr.mxu0 0.0
    %781 = vmatpush1.msra.mxu0 0.0
    %782 = vmatprep.subr.mxu0 0.0
    %783 = vmatpush1.msra.mxu0 0.0
    %784 = vmatprep.subr.mxu0 0.0
    %785 = vmatpush1.msra.mxu0 0.0
    %786 = vmatprep.subr.mxu0 0.0
    %787 = vmatpush1.msra.mxu0 0.0
    %788 = vmatprep.subr.mxu0 0.0
    %789 = vmatpush1.msra.mxu0 0.0
    %790 = vmatprep.subr.mxu0 0.0
    %791 = vmatpush1.msra.mxu0 0.0
    %792 = vmatprep.subr.mxu0 0.0
    %793 = vmatpush1.msra.mxu0 0.0
    %794 = vmatprep.subr.mxu0 0.0
    %795 = vmatpush1.msra.mxu0 0.0
    %796 = vmatprep.subr.mxu0 0.0
    %797 = vmatpush1.msra.mxu0 0.0
    %798 = vmatprep.subr.mxu0 0.0
    %799 = vmatpush1.msra.mxu0 0.0
    %800 = vmatprep.subr.mxu0 0.0
    %801 = vmatpush1.msra.mxu0 0.0
    %802 = vmatprep.subr.mxu0 0.0
    %803 = vmatpush1.msra.mxu0 0.0
    %804 = vmatprep.subr.mxu0 0.0
    %805 = vmatpush1.msra.mxu0 0.0
    %806 = vmatprep.subr.mxu0 0.0
    %807 = vmatpush1.msra.mxu0 0.0
    %808 = vmatprep.subr.mxu0 0.0
    %809 = vmatpush1.msra.mxu0 0.0
    %810 = vmatprep.subr.mxu0 0.0
    %811 = vmatpush1.msra.mxu0 0.0
    %812 = vmatprep.subr.mxu0 0.0
    %813 = vmatpush1.msra.mxu0 0.0
    %814 = vmatprep.subr.mxu0 0.0
    %815 = vmatpush1.msra.mxu0 0.0
    %816 = vmatprep.subr.mxu0 0.0
    %817 = vmatpush1.msra.mxu0 0.0
    %818 = vmatprep.mubr.f32.mxu0 0.0
    %819 = vmatmul.mubr.f32.gmra.mrb[0].mxu0 %v618
    %v820 = vpop.f32.mrb[0].mxu0
    %v821 = vadd.f32 %v345, %v820
    %v822 = vpop.f32.mrb[0].mxu0
    %v823 = vadd.f32 %v347, %v822
    %824 = vmatprep.mubr.f32.mxu0 0.0
    %825 = vmatmul.mubr.f32.gmra.mrb[0].mxu0 %v621
    %v826 = vpop.f32.mrb[0].mxu0
    %v827 = vadd.f32 %v351, %v826
    %v828 = vpop.f32.mrb[0].mxu0
    %v829 = vadd.f32 %v353, %v828
    %830 = vmatprep.mubr.f32.mxu0 0.0
    %831 = vmatmul.mubr.f32.gmra.mrb[0].mxu0 %v624
    %v832 = vpop.f32.mrb[0].mxu0
    %v833 = vadd.f32 %v357, %v832
    %v834 = vpop.f32.mrb[0].mxu0
    %v835 = vadd.f32 %v359, %v834
    %836 = vmatprep.mubr.f32.mxu0 0.0
    %837 = vmatmul.mubr.f32.gmra.mrb[0].mxu0 %v627
    %v838 = vpop.f32.mrb[0].mxu0
    %v839 = vadd.f32 %v363, %v838
    %v840 = vpop.f32.mrb[0].mxu0
    %v841 = vadd.f32 %v365, %v840
    %842 = vmatprep.mubr.f32.mxu0 0.0
    %843 = vmatmul.mubr.f32.gmra.mrb[0].mxu0 %v630
    %v844 = vpop.f32.mrb[0].mxu0
    %v845 = vadd.f32 %v369, %v844
    %v846 = vpop.f32.mrb[0].mxu0
    %v847 = vadd.f32 %v371, %v846
    %848 = vmatprep.mubr.f32.mxu0 0.0
    %849 = vmatmul.mubr.f32.gmra.mrb[0].mxu0 %v633
    %v850 = vpop.f32.mrb[0].mxu0
    %v851 = vadd.f32 %v375, %v850
    %v852 = vpop.f32.mrb[0].mxu0
    %v853 = vadd.f32 %v377, %v852
    %854 = vmatprep.mubr.f32.mxu0 0.0
    %855 = vmatmul.mubr.f32.gmra.mrb[0].mxu0 %v636
    %v856 = vpop.f32.mrb[0].mxu0
    %v857 = vadd.f32 %v381, %v856
    %v858 = vpop.f32.mrb[0].mxu0
    %v859 = vadd.f32 %v383, %v858
    %860 = vmatprep.mubr.f32.mxu0 0.0
    %861 = vmatmul.mubr.f32.gmra.mrb[0].mxu0 %v639
    %v862 = vpop.f32.mrb[0].mxu0
    %v863 = vadd.f32 %v387, %v862
    %v864 = vpop.f32.mrb[0].mxu0
    %v865 = vadd.f32 %v389, %v864
    %866 = vdwg.mxu0
    %867 = vmatprep.subr.mxu0 %v113
    %868 = vmatpush1.msra.mxu0 %v112
    %869 = vmatprep.subr.mxu0 %v121
    %870 = vmatpush1.msra.mxu0 %v120
    %871 = vmatprep.subr.mxu0 0.0
    %872 = vmatpush1.msra.mxu0 0.0
    %873 = vmatprep.subr.mxu0 0.0
    %874 = vmatpush1.msra.mxu0 0.0
    %875 = vmatprep.subr.mxu0 0.0
    %876 = vmatpush1.msra.mxu0 0.0
    %877 = vmatprep.subr.mxu0 0.0
    %878 = vmatpush1.msra.mxu0 0.0
    %879 = vmatprep.subr.mxu0 0.0
    %880 = vmatpush1.msra.mxu0 0.0
    %881 = vmatprep.subr.mxu0 0.0
    %882 = vmatpush1.msra.mxu0 0.0
    %883 = vmatprep.subr.mxu0 0.0
    %884 = vmatpush1.msra.mxu0 0.0
    %885 = vmatprep.subr.mxu0 0.0
    %886 = vmatpush1.msra.mxu0 0.0
    %887 = vmatprep.subr.mxu0 0.0
    %888 = vmatpush1.msra.mxu0 0.0
    %889 = vmatprep.subr.mxu0 0.0
    %890 = vmatpush1.msra.mxu0 0.0
    %891 = vmatprep.subr.mxu0 0.0
    %892 = vmatpush1.msra.mxu0 0.0
    %893 = vmatprep.subr.mxu0 0.0
    %894 = vmatpush1.msra.mxu0 0.0
    %895 = vmatprep.subr.mxu0 0.0
    %896 = vmatpush1.msra.mxu0 0.0
    %897 = vmatprep.subr.mxu0 0.0
    %898 = vmatpush1.msra.mxu0 0.0
    %899 = vmatprep.subr.mxu0 0.0
    %900 = vmatpush1.msra.mxu0 0.0
    %901 = vmatprep.subr.mxu0 0.0
    %902 = vmatpush1.msra.mxu0 0.0
    %903 = vmatprep.subr.mxu0 0.0
    %904 = vmatpush1.msra.mxu0 0.0
    %905 = vmatprep.subr.mxu0 0.0
    %906 = vmatpush1.msra.mxu0 0.0
    %907 = vmatprep.subr.mxu0 0.0
    %908 = vmatpush1.msra.mxu0 0.0
    %909 = vmatprep.subr.mxu0 0.0
    %910 = vmatpush1.msra.mxu0 0.0
    %911 = vmatprep.subr.mxu0 0.0
    %912 = vmatpush1.msra.mxu0 0.0
    %913 = vmatprep.subr.mxu0 0.0
    %914 = vmatpush1.msra.mxu0 0.0
    %915 = vmatprep.subr.mxu0 0.0
    %916 = vmatpush1.msra.mxu0 0.0
    %917 = vmatprep.subr.mxu0 0.0
    %918 = vmatpush1.msra.mxu0 0.0
    %919 = vmatprep.subr.mxu0 0.0
    %920 = vmatpush1.msra.mxu0 0.0
    %921 = vmatprep.subr.mxu0 0.0
    %922 = vmatpush1.msra.mxu0 0.0
    %923 = vmatprep.subr.mxu0 0.0
    %924 = vmatpush1.msra.mxu0 0.0
    %925 = vmatprep.subr.mxu0 0.0
    %926 = vmatpush1.msra.mxu0 0.0
    %927 = vmatprep.subr.mxu0 0.0
    %928 = vmatpush1.msra.mxu0 0.0
    %929 = vmatprep.subr.mxu0 0.0
    %930 = vmatpush1.msra.mxu0 0.0
    %931 = vmatprep.mubr.f32.mxu0 0.0
    %932 = vmatmul.mubr.f32.gmra.mrb[0].mxu0 %v618
    %v933 = vpop.f32.mrb[0].mxu0
    %v934 = vadd.f32 %v458, %v933
    %v935 = vpop.f32.mrb[0].mxu0
    %v936 = vadd.f32 %v460, %v935
    %937 = vmatprep.mubr.f32.mxu0 0.0
    %938 = vmatmul.mubr.f32.gmra.mrb[0].mxu0 %v621
    %v939 = vpop.f32.mrb[0].mxu0
    %v940 = vadd.f32 %v464, %v939
    %v941 = vpop.f32.mrb[0].mxu0
    %v942 = vadd.f32 %v466, %v941
    %943 = vmatprep.mubr.f32.mxu0 0.0
    %944 = vmatmul.mubr.f32.gmra.mrb[0].mxu0 %v624
    %v945 = vpop.f32.mrb[0].mxu0
    %v946 = vadd.f32 %v470, %v945
    %v947 = vpop.f32.mrb[0].mxu0
    %v948 = vadd.f32 %v472, %v947
    %949 = vmatprep.mubr.f32.mxu0 0.0
    %950 = vmatmul.mubr.f32.gmra.mrb[0].mxu0 %v627
    %v951 = vpop.f32.mrb[0].mxu0
    %v952 = vadd.f32 %v476, %v951
    %v953 = vpop.f32.mrb[0].mxu0
    %v954 = vadd.f32 %v478, %v953
    %955 = vmatprep.mubr.f32.mxu0 0.0
    %956 = vmatmul.mubr.f32.gmra.mrb[0].mxu0 %v630
    %v957 = vpop.f32.mrb[0].mxu0
    %v958 = vadd.f32 %v482, %v957
    %v959 = vpop.f32.mrb[0].mxu0
    %v960 = vadd.f32 %v484, %v959
    %961 = vmatprep.mubr.f32.mxu0 0.0
    %962 = vmatmul.mubr.f32.gmra.mrb[0].mxu0 %v633
    %v963 = vpop.f32.mrb[0].mxu0
    %v964 = vadd.f32 %v488, %v963
    %v965 = vpop.f32.mrb[0].mxu0
    %v966 = vadd.f32 %v490, %v965
    %967 = vmatprep.mubr.f32.mxu0 0.0
    %968 = vmatmul.mubr.f32.gmra.mrb[0].mxu0 %v636
    %v969 = vpop.f32.mrb[0].mxu0
    %v970 = vadd.f32 %v494, %v969
    %v971 = vpop.f32.mrb[0].mxu0
    %v972 = vadd.f32 %v496, %v971
    %973 = vmatprep.mubr.f32.mxu0 0.0
    %974 = vmatmul.mubr.f32.gmra.mrb[0].mxu0 %v639
    %v975 = vpop.f32.mrb[0].mxu0
    %v976 = vadd.f32 %v500, %v975
    %v977 = vpop.f32.mrb[0].mxu0
    %v978 = vadd.f32 %v502, %v977
    %979 = vdwg.mxu0
    %980 = vmatprep.subr.mxu0 %v115
    %981 = vmatpush1.msra.mxu0 %v114
    %982 = vmatprep.subr.mxu0 %v123
    %983 = vmatpush1.msra.mxu0 %v122
    %984 = vmatprep.subr.mxu0 0.0
    %985 = vmatpush1.msra.mxu0 0.0
    %986 = vmatprep.subr.mxu0 0.0
    %987 = vmatpush1.msra.mxu0 0.0
    %988 = vmatprep.subr.mxu0 0.0
    %989 = vmatpush1.msra.mxu0 0.0
    %990 = vmatprep.subr.mxu0 0.0
    %991 = vmatpush1.msra.mxu0 0.0
    %992 = vmatprep.subr.mxu0 0.0
    %993 = vmatpush1.msra.mxu0 0.0
    %994 = vmatprep.subr.mxu0 0.0
    %995 = vmatpush1.msra.mxu0 0.0
    %996 = vmatprep.subr.mxu0 0.0
    %997 = vmatpush1.msra.mxu0 0.0
    %998 = vmatprep.subr.mxu0 0.0
    %999 = vmatpush1.msra.mxu0 0.0
    %1000 = vmatprep.subr.mxu0 0.0
    %1001 = vmatpush1.msra.mxu0 0.0
    %1002 = vmatprep.subr.mxu0 0.0
    %1003 = vmatpush1.msra.mxu0 0.0
    %1004 = vmatprep.subr.mxu0 0.0
    %1005 = vmatpush1.msra.mxu0 0.0
    %1006 = vmatprep.subr.mxu0 0.0
    %1007 = vmatpush1.msra.mxu0 0.0
    %1008 = vmatprep.subr.mxu0 0.0
    %1009 = vmatpush1.msra.mxu0 0.0
    %1010 = vmatprep.subr.mxu0 0.0
    %1011 = vmatpush1.msra.mxu0 0.0
    %1012 = vmatprep.subr.mxu0 0.0
    %1013 = vmatpush1.msra.mxu0 0.0
    %1014 = vmatprep.subr.mxu0 0.0
    %1015 = vmatpush1.msra.mxu0 0.0
    %1016 = vmatprep.subr.mxu0 0.0
    %1017 = vmatpush1.msra.mxu0 0.0
    %1018 = vmatprep.subr.mxu0 0.0
    %1019 = vmatpush1.msra.mxu0 0.0
    %1020 = vmatprep.subr.mxu0 0.0
    %1021 = vmatpush1.msra.mxu0 0.0
    %1022 = vmatprep.subr.mxu0 0.0
    %1023 = vmatpush1.msra.mxu0 0.0
    %1024 = vmatprep.subr.mxu0 0.0
    %1025 = vmatpush1.msra.mxu0 0.0
    %1026 = vmatprep.subr.mxu0 0.0
    %1027 = vmatpush1.msra.mxu0 0.0
    %1028 = vmatprep.subr.mxu0 0.0
    %1029 = vmatpush1.msra.mxu0 0.0
    %1030 = vmatprep.subr.mxu0 0.0
    %1031 = vmatpush1.msra.mxu0 0.0
    %1032 = vmatprep.subr.mxu0 0.0
    %1033 = vmatpush1.msra.mxu0 0.0
    %1034 = vmatprep.subr.mxu0 0.0
    %1035 = vmatpush1.msra.mxu0 0.0
    %1036 = vmatprep.subr.mxu0 0.0
    %1037 = vmatpush1.msra.mxu0 0.0
    %1038 = vmatprep.subr.mxu0 0.0
    %1039 = vmatpush1.msra.mxu0 0.0
    %1040 = vmatprep.subr.mxu0 0.0
    %1041 = vmatpush1.msra.mxu0 0.0
    %1042 = vmatprep.subr.mxu0 0.0
    %1043 = vmatpush1.msra.mxu0 0.0
    %1044 = vmatprep.mubr.f32.mxu0 0.0
    %1045 = vmatmul.mubr.f32.gmra.mrb[0].mxu0 %v618
    %v1046 = vpop.f32.mrb[0].mxu0
    %v1047 = vadd.f32 %v571, %v1046
    %v1048 = vpop.f32.mrb[0].mxu0
    %v1049 = vadd.f32 %v573, %v1048
    %1050 = vmatprep.mubr.f32.mxu0 0.0
    %1051 = vmatmul.mubr.f32.gmra.mrb[0].mxu0 %v621
    %v1052 = vpop.f32.mrb[0].mxu0
    %v1053 = vadd.f32 %v577, %v1052
    %v1054 = vpop.f32.mrb[0].mxu0
    %v1055 = vadd.f32 %v579, %v1054
    %1056 = vmatprep.mubr.f32.mxu0 0.0
    %1057 = vmatmul.mubr.f32.gmra.mrb[0].mxu0 %v624
    %v1058 = vpop.f32.mrb[0].mxu0
    %v1059 = vadd.f32 %v583, %v1058
    %v1060 = vpop.f32.mrb[0].mxu0
    %v1061 = vadd.f32 %v585, %v1060
    %1062 = vmatprep.mubr.f32.mxu0 0.0
    %1063 = vmatmul.mubr.f32.gmra.mrb[0].mxu0 %v627
    %v1064 = vpop.f32.mrb[0].mxu0
    %v1065 = vadd.f32 %v589, %v1064
    %v1066 = vpop.f32.mrb[0].mxu0
    %v1067 = vadd.f32 %v591, %v1066
    %1068 = vmatprep.mubr.f32.mxu0 0.0
    %1069 = vmatmul.mubr.f32.gmra.mrb[0].mxu0 %v630
    %v1070 = vpop.f32.mrb[0].mxu0
    %v1071 = vadd.f32 %v595, %v1070
    %v1072 = vpop.f32.mrb[0].mxu0
    %v1073 = vadd.f32 %v597, %v1072
    %1074 = vmatprep.mubr.f32.mxu0 0.0
    %1075 = vmatmul.mubr.f32.gmra.mrb[0].mxu0 %v633
    %v1076 = vpop.f32.mrb[0].mxu0
    %v1077 = vadd.f32 %v601, %v1076
    %v1078 = vpop.f32.mrb[0].mxu0
    %v1079 = vadd.f32 %v603, %v1078
    %1080 = vmatprep.mubr.f32.mxu0 0.0
    %1081 = vmatmul.mubr.f32.gmra.mrb[0].mxu0 %v636
    %v1082 = vpop.f32.mrb[0].mxu0
    %v1083 = vadd.f32 %v607, %v1082
    %v1084 = vpop.f32.mrb[0].mxu0
    %v1085 = vadd.f32 %v609, %v1084
    %1086 = vmatprep.mubr.f32.mxu0 0.0
    %1087 = vmatmul.mubr.f32.gmra.mrb[0].mxu0 %v639
    %v1088 = vpop.f32.mrb[0].mxu0
    %v1089 = vadd.f32 %v613, %v1088
    %v1090 = vpop.f32.mrb[0].mxu0
    %v1091 = vadd.f32 %v615, %v1090
    %1092 = vdwg.mxu0
    %v1093 = vld [vmem:[%s5] sm:$0xff]
    %v1095 = vlaneseq
    %v1096 = vshrl.u32 %v1095, 7
    %v1097 = vsub.s32 0, %v1096
    %v1098 = vrot.slane %v1093, %v1097
    %v1099 = vlaneseq
    %v1100 = vshrl.u32 %v1099, 7
    %v1101 = vsub.s32 1, %v1100
    %v1102 = vrot.slane %v1093, %v1101
    %v1103 = vlaneseq
    %v1104 = vshrl.u32 %v1103, 7
    %v1105 = vsub.s32 2, %v1104
    %v1106 = vrot.slane %v1093, %v1105
    %v1107 = vlaneseq
    %v1108 = vshrl.u32 %v1107, 7
    %v1109 = vsub.s32 3, %v1108
    %v1110 = vrot.slane %v1093, %v1109
    %v1111 = vlaneseq
    %v1112 = vshrl.u32 %v1111, 7
    %v1113 = vsub.s32 4, %v1112
    %v1114 = vrot.slane %v1093, %v1113
    %v1115 = vlaneseq
    %v1116 = vshrl.u32 %v1115, 7
    %v1117 = vsub.s32 5, %v1116
    %v1118 = vrot.slane %v1093, %v1117
    %v1119 = vlaneseq
    %v1120 = vshrl.u32 %v1119, 7
    %v1121 = vsub.s32 6, %v1120
    %v1122 = vrot.slane %v1093, %v1121
    %v1123 = vlaneseq
    %v1124 = vshrl.u32 %v1123, 7
    %v1125 = vsub.s32 7, %v1124
    %v1126 = vrot.slane %v1093, %v1125
    %v1135 = vadd.f32 %v708, %v1098
    %v1136 = vadd.f32 %v710, %v1102
    %v1137 = vadd.f32 %v821, %v1106
    %v1138 = vadd.f32 %v823, %v1110
    %v1139 = vadd.f32 %v934, %v1114
    %v1140 = vadd.f32 %v936, %v1118
    %v1141 = vadd.f32 %v1047, %v1122
    %v1142 = vadd.f32 %v1049, %v1126
    %v1143 = vadd.f32 %v714, %v1098
    %v1144 = vadd.f32 %v716, %v1102
    %v1145 = vadd.f32 %v827, %v1106
    %v1146 = vadd.f32 %v829, %v1110
    %v1147 = vadd.f32 %v940, %v1114
    %v1148 = vadd.f32 %v942, %v1118
    %v1149 = vadd.f32 %v1053, %v1122
    %v1150 = vadd.f32 %v1055, %v1126
    %v1151 = vadd.f32 %v720, %v1098
    %v1152 = vadd.f32 %v722, %v1102
    %v1153 = vadd.f32 %v833, %v1106
    %v1154 = vadd.f32 %v835, %v1110
    %v1155 = vadd.f32 %v946, %v1114
    %v1156 = vadd.f32 %v948, %v1118
    %v1157 = vadd.f32 %v1059, %v1122
    %v1158 = vadd.f32 %v1061, %v1126
    %v1159 = vadd.f32 %v726, %v1098
    %v1160 = vadd.f32 %v728, %v1102
    %v1161 = vadd.f32 %v839, %v1106
    %v1162 = vadd.f32 %v841, %v1110
    %v1163 = vadd.f32 %v952, %v1114
    %v1164 = vadd.f32 %v954, %v1118
    %v1165 = vadd.f32 %v1065, %v1122
    %v1166 = vadd.f32 %v1067, %v1126
    %v1167 = vadd.f32 %v732, %v1098
    %v1168 = vadd.f32 %v734, %v1102
    %v1169 = vadd.f32 %v845, %v1106
    %v1170 = vadd.f32 %v847, %v1110
    %v1171 = vadd.f32 %v958, %v1114
    %v1172 = vadd.f32 %v960, %v1118
    %v1173 = vadd.f32 %v1071, %v1122
    %v1174 = vadd.f32 %v1073, %v1126
    %v1175 = vadd.f32 %v738, %v1098
    %v1176 = vadd.f32 %v740, %v1102
    %v1177 = vadd.f32 %v851, %v1106
    %v1178 = vadd.f32 %v853, %v1110
    %v1179 = vadd.f32 %v964, %v1114
    %v1180 = vadd.f32 %v966, %v1118
    %v1181 = vadd.f32 %v1077, %v1122
    %v1182 = vadd.f32 %v1079, %v1126
    %v1183 = vadd.f32 %v744, %v1098
    %v1184 = vadd.f32 %v746, %v1102
    %v1185 = vadd.f32 %v857, %v1106
    %v1186 = vadd.f32 %v859, %v1110
    %v1187 = vadd.f32 %v970, %v1114
    %v1188 = vadd.f32 %v972, %v1118
    %v1189 = vadd.f32 %v1083, %v1122
    %v1190 = vadd.f32 %v1085, %v1126
    %v1191 = vadd.f32 %v750, %v1098
    %v1192 = vadd.f32 %v752, %v1102
    %v1193 = vadd.f32 %v863, %v1106
    %v1194 = vadd.f32 %v865, %v1110
    %v1195 = vadd.f32 %v976, %v1114
    %v1196 = vadd.f32 %v978, %v1118
    %v1197 = vadd.f32 %v1089, %v1122
    %v1198 = vadd.f32 %v1091, %v1126
    %1199 = vst [vmem:[#allocation2] sm:$0xff] %v1135
    %1200 = vst [vmem:[#allocation2 + $0x8] sm:$0xff] %v1136
    %1201 = vst [vmem:[#allocation2 + $0x10] sm:$0xff] %v1137
    %1202 = vst [vmem:[#allocation2 + $0x18] sm:$0xff] %v1138
    %1203 = vst [vmem:[#allocation2 + $0x20] sm:$0xff] %v1139
    %1204 = vst [vmem:[#allocation2 + $0x28] sm:$0xff] %v1140
    %1205 = vst [vmem:[#allocation2 + $0x30] sm:$0xff] %v1141
    %1206 = vst [vmem:[#allocation2 + $0x38] sm:$0xff] %v1142
    %1207 = vst [vmem:[#allocation2 + $0x40] sm:$0xff] %v1143
    %1208 = vst [vmem:[#allocation2 + $0x48] sm:$0xff] %v1144
    %1209 = vst [vmem:[#allocation2 + $0x50] sm:$0xff] %v1145
    %1210 = vst [vmem:[#allocation2 + $0x58] sm:$0xff] %v1146
    %1211 = vst [vmem:[#allocation2 + $0x60] sm:$0xff] %v1147
    %1212 = vst [vmem:[#allocation2 + $0x68] sm:$0xff] %v1148
    %1213 = vst [vmem:[#allocation2 + $0x70] sm:$0xff] %v1149
    %1214 = vst [vmem:[#allocation2 + $0x78] sm:$0xff] %v1150
    %1215 = vst [vmem:[#allocation2 + $0x80] sm:$0xff] %v1151
    %1216 = vst [vmem:[#allocation2 + $0x88] sm:$0xff] %v1152
    %1217 = vst [vmem:[#allocation2 + $0x90] sm:$0xff] %v1153
    %1218 = vst [vmem:[#allocation2 + $0x98] sm:$0xff] %v1154
    %1219 = vst [vmem:[#allocation2 + $0xa0] sm:$0xff] %v1155
    %1220 = vst [vmem:[#allocation2 + $0xa8] sm:$0xff] %v1156
    %1221 = vst [vmem:[#allocation2 + $0xb0] sm:$0xff] %v1157
    %1222 = vst [vmem:[#allocation2 + $0xb8] sm:$0xff] %v1158
    %1223 = vst [vmem:[#allocation2 + $0xc0] sm:$0xff] %v1159
    %1224 = vst [vmem:[#allocation2 + $0xc8] sm:$0xff] %v1160
    %1225 = vst [vmem:[#allocation2 + $0xd0] sm:$0xff] %v1161
    %1226 = vst [vmem:[#allocation2 + $0xd8] sm:$0xff] %v1162
    %1227 = vst [vmem:[#allocation2 + $0xe0] sm:$0xff] %v1163
    %1228 = vst [vmem:[#allocation2 + $0xe8] sm:$0xff] %v1164
    %1229 = vst [vmem:[#allocation2 + $0xf0] sm:$0xff] %v1165
    %1230 = vst [vmem:[#allocation2 + $0xf8] sm:$0xff] %v1166
    %1231 = vst [vmem:[#allocation2 + $0x100] sm:$0xff] %v1167
    %1232 = vst [vmem:[#allocation2 + $0x108] sm:$0xff] %v1168
    %1233 = vst [vmem:[#allocation2 + $0x110] sm:$0xff] %v1169
    %1234 = vst [vmem:[#allocation2 + $0x118] sm:$0xff] %v1170
    %1235 = vst [vmem:[#allocation2 + $0x120] sm:$0xff] %v1171
    %1236 = vst [vmem:[#allocation2 + $0x128] sm:$0xff] %v1172
    %1237 = vst [vmem:[#allocation2 + $0x130] sm:$0xff] %v1173
    %1238 = vst [vmem:[#allocation2 + $0x138] sm:$0xff] %v1174
    %1239 = vst [vmem:[#allocation2 + $0x140] sm:$0xff] %v1175
    %1240 = vst [vmem:[#allocation2 + $0x148] sm:$0xff] %v1176
    %1241 = vst [vmem:[#allocation2 + $0x150] sm:$0xff] %v1177
    %1242 = vst [vmem:[#allocation2 + $0x158] sm:$0xff] %v1178
    %1243 = vst [vmem:[#allocation2 + $0x160] sm:$0xff] %v1179
    %1244 = vst [vmem:[#allocation2 + $0x168] sm:$0xff] %v1180
    %1245 = vst [vmem:[#allocation2 + $0x170] sm:$0xff] %v1181
    %1246 = vst [vmem:[#allocation2 + $0x178] sm:$0xff] %v1182
    %1247 = vst [vmem:[#allocation2 + $0x180] sm:$0xff] %v1183
    %1248 = vst [vmem:[#allocation2 + $0x188] sm:$0xff] %v1184
    %1249 = vst [vmem:[#allocation2 + $0x190] sm:$0xff] %v1185
    %1250 = vst [vmem:[#allocation2 + $0x198] sm:$0xff] %v1186
    %1251 = vst [vmem:[#allocation2 + $0x1a0] sm:$0xff] %v1187
    %1252 = vst [vmem:[#allocation2 + $0x1a8] sm:$0xff] %v1188
    %1253 = vst [vmem:[#allocation2 + $0x1b0] sm:$0xff] %v1189
    %1254 = vst [vmem:[#allocation2 + $0x1b8] sm:$0xff] %v1190
    %1255 = vst [vmem:[#allocation2 + $0x1c0] sm:$0xff] %v1191
    %1256 = vst [vmem:[#allocation2 + $0x1c8] sm:$0xff] %v1192
    %1257 = vst [vmem:[#allocation2 + $0x1d0] sm:$0xff] %v1193
    %1258 = vst [vmem:[#allocation2 + $0x1d8] sm:$0xff] %v1194
    %1259 = vst [vmem:[#allocation2 + $0x1e0] sm:$0xff] %v1195
    %1260 = vst [vmem:[#allocation2 + $0x1e8] sm:$0xff] %v1196
    %1261 = vst [vmem:[#allocation2 + $0x1f0] sm:$0xff] %v1197
    %1262 = vst [vmem:[#allocation2 + $0x1f8] sm:$0xff] %v1198
    %1263 = vst [vmem:[#allocation3] sm:$0xff] 0.0
    %1264 = vst [vmem:[#allocation3 + $0x8] sm:$0xff] 0.0
    %1265 = vst [vmem:[#allocation4] sm:$0xff] 0.0
    %1266 = vst [vmem:[#allocation4 + $0x8] sm:$0xff] 0.0
    %v1267 = vld [vmem:[#allocation3] sm:$0xff]
    %v1268 = vld [vmem:[#allocation3 + $0x8] sm:$0xff]
    %v1269 = vld [vmem:[#allocation4] sm:$0xff]
    %v1270 = vld [vmem:[#allocation4 + $0x8] sm:$0xff]
    %v1271 = vld [vmem:[#allocation2] sm:$0xff]
    %v1272 = vld [vmem:[#allocation2 + $0x8] sm:$0xff]
    %v1273 = vld [vmem:[#allocation2 + $0x10] sm:$0xff]
    %v1274 = vld [vmem:[#allocation2 + $0x18] sm:$0xff]
    %v1275 = vld [vmem:[#allocation2 + $0x20] sm:$0xff]
    %v1276 = vld [vmem:[#allocation2 + $0x28] sm:$0xff]
    %v1277 = vld [vmem:[#allocation2 + $0x30] sm:$0xff]
    %v1278 = vld [vmem:[#allocation2 + $0x38] sm:$0xff]
    %v1279 = vld [vmem:[#allocation13] sm:$0xff]
    %v1280 = vld [vmem:[#allocation13 + $0x8] sm:$0xff]
    %v1281 = vld [vmem:[#allocation13 + $0x10] sm:$0xff]
    %v1282 = vld [vmem:[#allocation13 + $0x18] sm:$0xff]
    %v1283 = vld [vmem:[#allocation13 + $0x20] sm:$0xff]
    %v1284 = vld [vmem:[#allocation13 + $0x28] sm:$0xff]
    %v1285 = vld [vmem:[#allocation13 + $0x30] sm:$0xff]
    %v1286 = vld [vmem:[#allocation13 + $0x38] sm:$0xff]
    %v1287 = vld [vmem:[#allocation13 + $0x40] sm:$0xff]
    %v1288 = vld [vmem:[#allocation13 + $0x48] sm:$0xff]
    %v1289 = vld [vmem:[#allocation13 + $0x50] sm:$0xff]
    %v1290 = vld [vmem:[#allocation13 + $0x58] sm:$0xff]
    %v1291 = vld [vmem:[#allocation13 + $0x60] sm:$0xff]
    %v1292 = vld [vmem:[#allocation13 + $0x68] sm:$0xff]
    %v1293 = vld [vmem:[#allocation13 + $0x70] sm:$0xff]
    %v1294 = vld [vmem:[#allocation13 + $0x78] sm:$0xff]
    %v1295 = vld [vmem:[#allocation13 + $0x80] sm:$0xff]
    %v1296 = vld [vmem:[#allocation13 + $0x88] sm:$0xff]
    %v1297 = vld [vmem:[#allocation13 + $0x90] sm:$0xff]
    %v1298 = vld [vmem:[#allocation13 + $0x98] sm:$0xff]
    %v1299 = vld [vmem:[#allocation13 + $0xa0] sm:$0xff]
    %v1300 = vld [vmem:[#allocation13 + $0xa8] sm:$0xff]
    %v1301 = vld [vmem:[#allocation13 + $0xb0] sm:$0xff]
    %v1302 = vld [vmem:[#allocation13 + $0xb8] sm:$0xff]
    %v1303 = vld [vmem:[#allocation13 + $0xc0] sm:$0xff]
    %v1304 = vld [vmem:[#allocation13 + $0xc8] sm:$0xff]
    %v1305 = vld [vmem:[#allocation13 + $0xd0] sm:$0xff]
    %v1306 = vld [vmem:[#allocation13 + $0xd8] sm:$0xff]
    %v1307 = vld [vmem:[#allocation13 + $0xe0] sm:$0xff]
    %v1308 = vld [vmem:[#allocation13 + $0xe8] sm:$0xff]
    %v1309 = vld [vmem:[#allocation13 + $0xf0] sm:$0xff]
    %v1310 = vld [vmem:[#allocation13 + $0xf8] sm:$0xff]
    %v1311 = vld [vmem:[#allocation13 + $0x100] sm:$0xff]
    %v1312 = vld [vmem:[#allocation13 + $0x108] sm:$0xff]
    %v1313 = vld [vmem:[#allocation13 + $0x110] sm:$0xff]
    %v1314 = vld [vmem:[#allocation13 + $0x118] sm:$0xff]
    %v1315 = vld [vmem:[#allocation13 + $0x120] sm:$0xff]
    %v1316 = vld [vmem:[#allocation13 + $0x128] sm:$0xff]
    %v1317 = vld [vmem:[#allocation13 + $0x130] sm:$0xff]
    %v1318 = vld [vmem:[#allocation13 + $0x138] sm:$0xff]
    %v1319 = vld [vmem:[#allocation13 + $0x140] sm:$0xff]
    %v1320 = vld [vmem:[#allocation13 + $0x148] sm:$0xff]
    %v1321 = vld [vmem:[#allocation13 + $0x150] sm:$0xff]
    %v1322 = vld [vmem:[#allocation13 + $0x158] sm:$0xff]
    %v1323 = vld [vmem:[#allocation13 + $0x160] sm:$0xff]
    %v1324 = vld [vmem:[#allocation13 + $0x168] sm:$0xff]
    %v1325 = vld [vmem:[#allocation13 + $0x170] sm:$0xff]
    %v1326 = vld [vmem:[#allocation13 + $0x178] sm:$0xff]
    %v1327 = vld [vmem:[#allocation13 + $0x180] sm:$0xff]
    %v1328 = vld [vmem:[#allocation13 + $0x188] sm:$0xff]
    %v1329 = vld [vmem:[#allocation13 + $0x190] sm:$0xff]
    %v1330 = vld [vmem:[#allocation13 + $0x198] sm:$0xff]
    %v1331 = vld [vmem:[#allocation13 + $0x1a0] sm:$0xff]
    %v1332 = vld [vmem:[#allocation13 + $0x1a8] sm:$0xff]
    %v1333 = vld [vmem:[#allocation13 + $0x1b0] sm:$0xff]
    %v1334 = vld [vmem:[#allocation13 + $0x1b8] sm:$0xff]
    %v1335 = vld [vmem:[#allocation13 + $0x1c0] sm:$0xff]
    %v1336 = vld [vmem:[#allocation13 + $0x1c8] sm:$0xff]
    %v1337 = vld [vmem:[#allocation13 + $0x1d0] sm:$0xff]
    %v1338 = vld [vmem:[#allocation13 + $0x1d8] sm:$0xff]
    %v1339 = vld [vmem:[#allocation13 + $0x1e0] sm:$0xff]
    %v1340 = vld [vmem:[#allocation13 + $0x1e8] sm:$0xff]
    %v1341 = vld [vmem:[#allocation13 + $0x1f0] sm:$0xff]
    %v1342 = vld [vmem:[#allocation13 + $0x1f8] sm:$0xff]
    %v1343 = vld [vmem:[#allocation13 + $0x200] sm:$0xff]
    %v1344 = vld [vmem:[#allocation13 + $0x208] sm:$0xff]
    %v1345 = vld [vmem:[#allocation13 + $0x210] sm:$0xff]
    %v1346 = vld [vmem:[#allocation13 + $0x218] sm:$0xff]
    %v1347 = vld [vmem:[#allocation13 + $0x220] sm:$0xff]
    %v1348 = vld [vmem:[#allocation13 + $0x228] sm:$0xff]
    %v1349 = vld [vmem:[#allocation13 + $0x230] sm:$0xff]
    %v1350 = vld [vmem:[#allocation13 + $0x238] sm:$0xff]
    %v1351 = vld [vmem:[#allocation13 + $0x240] sm:$0xff]
    %v1352 = vld [vmem:[#allocation13 + $0x248] sm:$0xff]
    %v1353 = vld [vmem:[#allocation13 + $0x250] sm:$0xff]
    %v1354 = vld [vmem:[#allocation13 + $0x258] sm:$0xff]
    %v1355 = vld [vmem:[#allocation13 + $0x260] sm:$0xff]
    %v1356 = vld [vmem:[#allocation13 + $0x268] sm:$0xff]
    %v1357 = vld [vmem:[#allocation13 + $0x270] sm:$0xff]
    %v1358 = vld [vmem:[#allocation13 + $0x278] sm:$0xff]
    %v1359 = vld [vmem:[#allocation13 + $0x280] sm:$0xff]
    %v1360 = vld [vmem:[#allocation13 + $0x288] sm:$0xff]
    %v1361 = vld [vmem:[#allocation13 + $0x290] sm:$0xff]
    %v1362 = vld [vmem:[#allocation13 + $0x298] sm:$0xff]
    %v1363 = vld [vmem:[#allocation13 + $0x2a0] sm:$0xff]
    %v1364 = vld [vmem:[#allocation13 + $0x2a8] sm:$0xff]
    %v1365 = vld [vmem:[#allocation13 + $0x2b0] sm:$0xff]
    %v1366 = vld [vmem:[#allocation13 + $0x2b8] sm:$0xff]
    %v1367 = vld [vmem:[#allocation13 + $0x2c0] sm:$0xff]
    %v1368 = vld [vmem:[#allocation13 + $0x2c8] sm:$0xff]
    %v1369 = vld [vmem:[#allocation13 + $0x2d0] sm:$0xff]
    %v1370 = vld [vmem:[#allocation13 + $0x2d8] sm:$0xff]
    %v1371 = vld [vmem:[#allocation13 + $0x2e0] sm:$0xff]
    %v1372 = vld [vmem:[#allocation13 + $0x2e8] sm:$0xff]
    %v1373 = vld [vmem:[#allocation13 + $0x2f0] sm:$0xff]
    %v1374 = vld [vmem:[#allocation13 + $0x2f8] sm:$0xff]
    %v1375 = vld [vmem:[#allocation13 + $0x300] sm:$0xff]
    %v1376 = vld [vmem:[#allocation13 + $0x308] sm:$0xff]
    %v1377 = vld [vmem:[#allocation13 + $0x310] sm:$0xff]
    %v1378 = vld [vmem:[#allocation13 + $0x318] sm:$0xff]
    %v1379 = vld [vmem:[#allocation13 + $0x320] sm:$0xff]
    %v1380 = vld [vmem:[#allocation13 + $0x328] sm:$0xff]
    %v1381 = vld [vmem:[#allocation13 + $0x330] sm:$0xff]
    %v1382 = vld [vmem:[#allocation13 + $0x338] sm:$0xff]
    %v1383 = vld [vmem:[#allocation13 + $0x340] sm:$0xff]
    %v1384 = vld [vmem:[#allocation13 + $0x348] sm:$0xff]
    %v1385 = vld [vmem:[#allocation13 + $0x350] sm:$0xff]
    %v1386 = vld [vmem:[#allocation13 + $0x358] sm:$0xff]
    %v1387 = vld [vmem:[#allocation13 + $0x360] sm:$0xff]
    %v1388 = vld [vmem:[#allocation13 + $0x368] sm:$0xff]
    %v1389 = vld [vmem:[#allocation13 + $0x370] sm:$0xff]
    %v1390 = vld [vmem:[#allocation13 + $0x378] sm:$0xff]
    %v1391 = vld [vmem:[#allocation13 + $0x380] sm:$0xff]
    %v1392 = vld [vmem:[#allocation13 + $0x388] sm:$0xff]
    %v1393 = vld [vmem:[#allocation13 + $0x390] sm:$0xff]
    %v1394 = vld [vmem:[#allocation13 + $0x398] sm:$0xff]
    %v1395 = vld [vmem:[#allocation13 + $0x3a0] sm:$0xff]
    %v1396 = vld [vmem:[#allocation13 + $0x3a8] sm:$0xff]
    %v1397 = vld [vmem:[#allocation13 + $0x3b0] sm:$0xff]
    %v1398 = vld [vmem:[#allocation13 + $0x3b8] sm:$0xff]
    %v1399 = vld [vmem:[#allocation13 + $0x3c0] sm:$0xff]
    %v1400 = vld [vmem:[#allocation13 + $0x3c8] sm:$0xff]
    %v1401 = vld [vmem:[#allocation13 + $0x3d0] sm:$0xff]
    %v1402 = vld [vmem:[#allocation13 + $0x3d8] sm:$0xff]
    %v1403 = vld [vmem:[#allocation13 + $0x3e0] sm:$0xff]
    %v1404 = vld [vmem:[#allocation13 + $0x3e8] sm:$0xff]
    %v1405 = vld [vmem:[#allocation13 + $0x3f0] sm:$0xff]
    %v1406 = vld [vmem:[#allocation13 + $0x3f8] sm:$0xff]
    %v1407 = vld [vmem:[#allocation13 + $0x400] sm:$0xff]
    %v1408 = vld [vmem:[#allocation13 + $0x408] sm:$0xff]
    %v1409 = vld [vmem:[#allocation13 + $0x410] sm:$0xff]
    %v1410 = vld [vmem:[#allocation13 + $0x418] sm:$0xff]
    %v1411 = vld [vmem:[#allocation13 + $0x420] sm:$0xff]
    %v1412 = vld [vmem:[#allocation13 + $0x428] sm:$0xff]
    %v1413 = vld [vmem:[#allocation13 + $0x430] sm:$0xff]
    %v1414 = vld [vmem:[#allocation13 + $0x438] sm:$0xff]
    %v1415 = vld [vmem:[#allocation13 + $0x440] sm:$0xff]
    %v1416 = vld [vmem:[#allocation13 + $0x448] sm:$0xff]
    %v1417 = vld [vmem:[#allocation13 + $0x450] sm:$0xff]
    %v1418 = vld [vmem:[#allocation13 + $0x458] sm:$0xff]
    %v1419 = vld [vmem:[#allocation13 + $0x460] sm:$0xff]
    %v1420 = vld [vmem:[#allocation13 + $0x468] sm:$0xff]
    %v1421 = vld [vmem:[#allocation13 + $0x470] sm:$0xff]
    %v1422 = vld [vmem:[#allocation13 + $0x478] sm:$0xff]
    %v1423 = vld [vmem:[#allocation13 + $0x480] sm:$0xff]
    %v1424 = vld [vmem:[#allocation13 + $0x488] sm:$0xff]
    %v1425 = vld [vmem:[#allocation13 + $0x490] sm:$0xff]
    %v1426 = vld [vmem:[#allocation13 + $0x498] sm:$0xff]
    %v1427 = vld [vmem:[#allocation13 + $0x4a0] sm:$0xff]
    %v1428 = vld [vmem:[#allocation13 + $0x4a8] sm:$0xff]
    %v1429 = vld [vmem:[#allocation13 + $0x4b0] sm:$0xff]
    %v1430 = vld [vmem:[#allocation13 + $0x4b8] sm:$0xff]
    %v1431 = vld [vmem:[#allocation13 + $0x4c0] sm:$0xff]
    %v1432 = vld [vmem:[#allocation13 + $0x4c8] sm:$0xff]
    %v1433 = vld [vmem:[#allocation13 + $0x4d0] sm:$0xff]
    %v1434 = vld [vmem:[#allocation13 + $0x4d8] sm:$0xff]
    %v1435 = vld [vmem:[#allocation13 + $0x4e0] sm:$0xff]
    %v1436 = vld [vmem:[#allocation13 + $0x4e8] sm:$0xff]
    %v1437 = vld [vmem:[#allocation13 + $0x4f0] sm:$0xff]
    %v1438 = vld [vmem:[#allocation13 + $0x4f8] sm:$0xff]
    %v1439 = vld [vmem:[#allocation13 + $0x500] sm:$0xff]
    %v1440 = vld [vmem:[#allocation13 + $0x508] sm:$0xff]
    %v1441 = vld [vmem:[#allocation13 + $0x510] sm:$0xff]
    %v1442 = vld [vmem:[#allocation13 + $0x518] sm:$0xff]
    %v1443 = vld [vmem:[#allocation13 + $0x520] sm:$0xff]
    %v1444 = vld [vmem:[#allocation13 + $0x528] sm:$0xff]
    %v1445 = vld [vmem:[#allocation13 + $0x530] sm:$0xff]
    %v1446 = vld [vmem:[#allocation13 + $0x538] sm:$0xff]
    %v1447 = vld [vmem:[#allocation13 + $0x540] sm:$0xff]
    %v1448 = vld [vmem:[#allocation13 + $0x548] sm:$0xff]
    %v1449 = vld [vmem:[#allocation13 + $0x550] sm:$0xff]
    %v1450 = vld [vmem:[#allocation13 + $0x558] sm:$0xff]
    %v1451 = vld [vmem:[#allocation13 + $0x560] sm:$0xff]
    %v1452 = vld [vmem:[#allocation13 + $0x568] sm:$0xff]
    %v1453 = vld [vmem:[#allocation13 + $0x570] sm:$0xff]
    %v1454 = vld [vmem:[#allocation13 + $0x578] sm:$0xff]
    %v1455 = vld [vmem:[#allocation13 + $0x580] sm:$0xff]
    %v1456 = vld [vmem:[#allocation13 + $0x588] sm:$0xff]
    %v1457 = vld [vmem:[#allocation13 + $0x590] sm:$0xff]
    %v1458 = vld [vmem:[#allocation13 + $0x598] sm:$0xff]
    %v1459 = vld [vmem:[#allocation13 + $0x5a0] sm:$0xff]
    %v1460 = vld [vmem:[#allocation13 + $0x5a8] sm:$0xff]
    %v1461 = vld [vmem:[#allocation13 + $0x5b0] sm:$0xff]
    %v1462 = vld [vmem:[#allocation13 + $0x5b8] sm:$0xff]
    %v1463 = vld [vmem:[#allocation13 + $0x5c0] sm:$0xff]
    %v1464 = vld [vmem:[#allocation13 + $0x5c8] sm:$0xff]
    %v1465 = vld [vmem:[#allocation13 + $0x5d0] sm:$0xff]
    %v1466 = vld [vmem:[#allocation13 + $0x5d8] sm:$0xff]
    %v1467 = vld [vmem:[#allocation13 + $0x5e0] sm:$0xff]
    %v1468 = vld [vmem:[#allocation13 + $0x5e8] sm:$0xff]
    %v1469 = vld [vmem:[#allocation13 + $0x5f0] sm:$0xff]
    %v1470 = vld [vmem:[#allocation13 + $0x5f8] sm:$0xff]
    %v1471 = vld [vmem:[#allocation13 + $0x600] sm:$0xff]
    %v1472 = vld [vmem:[#allocation13 + $0x608] sm:$0xff]
    %v1473 = vld [vmem:[#allocation13 + $0x610] sm:$0xff]
    %v1474 = vld [vmem:[#allocation13 + $0x618] sm:$0xff]
    %v1475 = vld [vmem:[#allocation13 + $0x620] sm:$0xff]
    %v1476 = vld [vmem:[#allocation13 + $0x628] sm:$0xff]
    %v1477 = vld [vmem:[#allocation13 + $0x630] sm:$0xff]
    %v1478 = vld [vmem:[#allocation13 + $0x638] sm:$0xff]
    %v1479 = vld [vmem:[#allocation13 + $0x640] sm:$0xff]
    %v1480 = vld [vmem:[#allocation13 + $0x648] sm:$0xff]
    %v1481 = vld [vmem:[#allocation13 + $0x650] sm:$0xff]
    %v1482 = vld [vmem:[#allocation13 + $0x658] sm:$0xff]
    %v1483 = vld [vmem:[#allocation13 + $0x660] sm:$0xff]
    %v1484 = vld [vmem:[#allocation13 + $0x668] sm:$0xff]
    %v1485 = vld [vmem:[#allocation13 + $0x670] sm:$0xff]
    %v1486 = vld [vmem:[#allocation13 + $0x678] sm:$0xff]
    %v1487 = vld [vmem:[#allocation13 + $0x680] sm:$0xff]
    %v1488 = vld [vmem:[#allocation13 + $0x688] sm:$0xff]
    %v1489 = vld [vmem:[#allocation13 + $0x690] sm:$0xff]
    %v1490 = vld [vmem:[#allocation13 + $0x698] sm:$0xff]
    %v1491 = vld [vmem:[#allocation13 + $0x6a0] sm:$0xff]
    %v1492 = vld [vmem:[#allocation13 + $0x6a8] sm:$0xff]
    %v1493 = vld [vmem:[#allocation13 + $0x6b0] sm:$0xff]
    %v1494 = vld [vmem:[#allocation13 + $0x6b8] sm:$0xff]
    %v1495 = vld [vmem:[#allocation13 + $0x6c0] sm:$0xff]
    %v1496 = vld [vmem:[#allocation13 + $0x6c8] sm:$0xff]
    %v1497 = vld [vmem:[#allocation13 + $0x6d0] sm:$0xff]
    %v1498 = vld [vmem:[#allocation13 + $0x6d8] sm:$0xff]
    %v1499 = vld [vmem:[#allocation13 + $0x6e0] sm:$0xff]
    %v1500 = vld [vmem:[#allocation13 + $0x6e8] sm:$0xff]
    %v1501 = vld [vmem:[#allocation13 + $0x6f0] sm:$0xff]
    %v1502 = vld [vmem:[#allocation13 + $0x6f8] sm:$0xff]
    %v1503 = vld [vmem:[#allocation13 + $0x700] sm:$0xff]
    %v1504 = vld [vmem:[#allocation13 + $0x708] sm:$0xff]
    %v1505 = vld [vmem:[#allocation13 + $0x710] sm:$0xff]
    %v1506 = vld [vmem:[#allocation13 + $0x718] sm:$0xff]
    %v1507 = vld [vmem:[#allocation13 + $0x720] sm:$0xff]
    %v1508 = vld [vmem:[#allocation13 + $0x728] sm:$0xff]
    %v1509 = vld [vmem:[#allocation13 + $0x730] sm:$0xff]
    %v1510 = vld [vmem:[#allocation13 + $0x738] sm:$0xff]
    %v1511 = vld [vmem:[#allocation13 + $0x740] sm:$0xff]
    %v1512 = vld [vmem:[#allocation13 + $0x748] sm:$0xff]
    %v1513 = vld [vmem:[#allocation13 + $0x750] sm:$0xff]
    %v1514 = vld [vmem:[#allocation13 + $0x758] sm:$0xff]
    %v1515 = vld [vmem:[#allocation13 + $0x760] sm:$0xff]
    %v1516 = vld [vmem:[#allocation13 + $0x768] sm:$0xff]
    %v1517 = vld [vmem:[#allocation13 + $0x770] sm:$0xff]
    %v1518 = vld [vmem:[#allocation13 + $0x778] sm:$0xff]
    %v1519 = vld [vmem:[#allocation13 + $0x780] sm:$0xff]
    %v1520 = vld [vmem:[#allocation13 + $0x788] sm:$0xff]
    %v1521 = vld [vmem:[#allocation13 + $0x790] sm:$0xff]
    %v1522 = vld [vmem:[#allocation13 + $0x798] sm:$0xff]
    %v1523 = vld [vmem:[#allocation13 + $0x7a0] sm:$0xff]
    %v1524 = vld [vmem:[#allocation13 + $0x7a8] sm:$0xff]
    %v1525 = vld [vmem:[#allocation13 + $0x7b0] sm:$0xff]
    %v1526 = vld [vmem:[#allocation13 + $0x7b8] sm:$0xff]
    %v1527 = vld [vmem:[#allocation13 + $0x7c0] sm:$0xff]
    %v1528 = vld [vmem:[#allocation13 + $0x7c8] sm:$0xff]
    %v1529 = vld [vmem:[#allocation13 + $0x7d0] sm:$0xff]
    %v1530 = vld [vmem:[#allocation13 + $0x7d8] sm:$0xff]
    %v1531 = vld [vmem:[#allocation13 + $0x7e0] sm:$0xff]
    %v1532 = vld [vmem:[#allocation13 + $0x7e8] sm:$0xff]
    %v1533 = vld [vmem:[#allocation13 + $0x7f0] sm:$0xff]
    %v1534 = vld [vmem:[#allocation13 + $0x7f8] sm:$0xff]
    %1535 = vmatprep.subr.mxu0 %v1280
    %1536 = vmatpush1.msra.mxu0 %v1279
    %1537 = vmatprep.subr.mxu0 %v1288
    %1538 = vmatpush1.msra.mxu0 %v1287
    %1539 = vmatprep.subr.mxu0 %v1296
    %1540 = vmatpush1.msra.mxu0 %v1295
    %1541 = vmatprep.subr.mxu0 %v1304
    %1542 = vmatpush1.msra.mxu0 %v1303
    %1543 = vmatprep.subr.mxu0 %v1312
    %1544 = vmatpush1.msra.mxu0 %v1311
    %1545 = vmatprep.subr.mxu0 %v1320
    %1546 = vmatpush1.msra.mxu0 %v1319
    %1547 = vmatprep.subr.mxu0 %v1328
    %1548 = vmatpush1.msra.mxu0 %v1327
    %1549 = vmatprep.subr.mxu0 %v1336
    %1550 = vmatpush1.msra.mxu0 %v1335
    %1551 = vmatprep.subr.mxu0 %v1344
    %1552 = vmatpush1.msra.mxu0 %v1343
    %1553 = vmatprep.subr.mxu0 %v1352
    %1554 = vmatpush1.msra.mxu0 %v1351
    %1555 = vmatprep.subr.mxu0 %v1360
    %1556 = vmatpush1.msra.mxu0 %v1359
    %1557 = vmatprep.subr.mxu0 %v1368
    %1558 = vmatpush1.msra.mxu0 %v1367
    %1559 = vmatprep.subr.mxu0 %v1376
    %1560 = vmatpush1.msra.mxu0 %v1375
    %1561 = vmatprep.subr.mxu0 %v1384
    %1562 = vmatpush1.msra.mxu0 %v1383
    %1563 = vmatprep.subr.mxu0 %v1392
    %1564 = vmatpush1.msra.mxu0 %v1391
    %1565 = vmatprep.subr.mxu0 %v1400
    %1566 = vmatpush1.msra.mxu0 %v1399
    %1567 = vmatprep.subr.mxu0 %v1408
    %1568 = vmatpush1.msra.mxu0 %v1407
    %1569 = vmatprep.subr.mxu0 %v1416
    %1570 = vmatpush1.msra.mxu0 %v1415
    %1571 = vmatprep.subr.mxu0 %v1424
    %1572 = vmatpush1.msra.mxu0 %v1423
    %1573 = vmatprep.subr.mxu0 %v1432
    %1574 = vmatpush1.msra.mxu0 %v1431
    %1575 = vmatprep.subr.mxu0 %v1440
    %1576 = vmatpush1.msra.mxu0 %v1439
    %1577 = vmatprep.subr.mxu0 %v1448
    %1578 = vmatpush1.msra.mxu0 %v1447
    %1579 = vmatprep.subr.mxu0 %v1456
    %1580 = vmatpush1.msra.mxu0 %v1455
    %1581 = vmatprep.subr.mxu0 %v1464
    %1582 = vmatpush1.msra.mxu0 %v1463
    %1583 = vmatprep.subr.mxu0 %v1472
    %1584 = vmatpush1.msra.mxu0 %v1471
    %1585 = vmatprep.subr.mxu0 %v1480
    %1586 = vmatpush1.msra.mxu0 %v1479
    %1587 = vmatprep.subr.mxu0 %v1488
    %1588 = vmatpush1.msra.mxu0 %v1487
    %1589 = vmatprep.subr.mxu0 %v1496
    %1590 = vmatpush1.msra.mxu0 %v1495
    %1591 = vmatprep.subr.mxu0 %v1504
    %1592 = vmatpush1.msra.mxu0 %v1503
    %1593 = vmatprep.subr.mxu0 %v1512
    %1594 = vmatpush1.msra.mxu0 %v1511
    %1595 = vmatprep.subr.mxu0 %v1520
    %1596 = vmatpush1.msra.mxu0 %v1519
    %1597 = vmatprep.subr.mxu0 %v1528
    %1598 = vmatpush1.msra.mxu0 %v1527
    %1599 = vmatprep.mubr.f32.mxu0 %v1268
    %1600 = vmatmul.mubr.f32.gmra.mrb[0].mxu0 %v1267
    %v1601 = vpop.f32.mrb[0].mxu0
    %v1602 = vadd.f32 0.0, %v1601
    %v1603 = vpop.f32.mrb[0].mxu0
    %v1604 = vadd.f32 0.0, %v1603
    %1605 = vdwg.mxu0
    %1606 = vmatprep.subr.mxu0 %v1282
    %1607 = vmatpush1.msra.mxu0 %v1281
    %1608 = vmatprep.subr.mxu0 %v1290
    %1609 = vmatpush1.msra.mxu0 %v1289
    %1610 = vmatprep.subr.mxu0 %v1298
    %1611 = vmatpush1.msra.mxu0 %v1297
    %1612 = vmatprep.subr.mxu0 %v1306
    %1613 = vmatpush1.msra.mxu0 %v1305
    %1614 = vmatprep.subr.mxu0 %v1314
    %1615 = vmatpush1.msra.mxu0 %v1313
    %1616 = vmatprep.subr.mxu0 %v1322
    %1617 = vmatpush1.msra.mxu0 %v1321
    %1618 = vmatprep.subr.mxu0 %v1330
    %1619 = vmatpush1.msra.mxu0 %v1329
    %1620 = vmatprep.subr.mxu0 %v1338
    %1621 = vmatpush1.msra.mxu0 %v1337
    %1622 = vmatprep.subr.mxu0 %v1346
    %1623 = vmatpush1.msra.mxu0 %v1345
    %1624 = vmatprep.subr.mxu0 %v1354
    %1625 = vmatpush1.msra.mxu0 %v1353
    %1626 = vmatprep.subr.mxu0 %v1362
    %1627 = vmatpush1.msra.mxu0 %v1361
    %1628 = vmatprep.subr.mxu0 %v1370
    %1629 = vmatpush1.msra.mxu0 %v1369
    %1630 = vmatprep.subr.mxu0 %v1378
    %1631 = vmatpush1.msra.mxu0 %v1377
    %1632 = vmatprep.subr.mxu0 %v1386
    %1633 = vmatpush1.msra.mxu0 %v1385
    %1634 = vmatprep.subr.mxu0 %v1394
    %1635 = vmatpush1.msra.mxu0 %v1393
    %1636 = vmatprep.subr.mxu0 %v1402
    %1637 = vmatpush1.msra.mxu0 %v1401
    %1638 = vmatprep.subr.mxu0 %v1410
    %1639 = vmatpush1.msra.mxu0 %v1409
    %1640 = vmatprep.subr.mxu0 %v1418
    %1641 = vmatpush1.msra.mxu0 %v1417
    %1642 = vmatprep.subr.mxu0 %v1426
    %1643 = vmatpush1.msra.mxu0 %v1425
    %1644 = vmatprep.subr.mxu0 %v1434
    %1645 = vmatpush1.msra.mxu0 %v1433
    %1646 = vmatprep.subr.mxu0 %v1442
    %1647 = vmatpush1.msra.mxu0 %v1441
    %1648 = vmatprep.subr.mxu0 %v1450
    %1649 = vmatpush1.msra.mxu0 %v1449
    %1650 = vmatprep.subr.mxu0 %v1458
    %1651 = vmatpush1.msra.mxu0 %v1457
    %1652 = vmatprep.subr.mxu0 %v1466
    %1653 = vmatpush1.msra.mxu0 %v1465
    %1654 = vmatprep.subr.mxu0 %v1474
    %1655 = vmatpush1.msra.mxu0 %v1473
    %1656 = vmatprep.subr.mxu0 %v1482
    %1657 = vmatpush1.msra.mxu0 %v1481
    %1658 = vmatprep.subr.mxu0 %v1490
    %1659 = vmatpush1.msra.mxu0 %v1489
    %1660 = vmatprep.subr.mxu0 %v1498
    %1661 = vmatpush1.msra.mxu0 %v1497
    %1662 = vmatprep.subr.mxu0 %v1506
    %1663 = vmatpush1.msra.mxu0 %v1505
    %1664 = vmatprep.subr.mxu0 %v1514
    %1665 = vmatpush1.msra.mxu0 %v1513
    %1666 = vmatprep.subr.mxu0 %v1522
    %1667 = vmatpush1.msra.mxu0 %v1521
    %1668 = vmatprep.subr.mxu0 %v1530
    %1669 = vmatpush1.msra.mxu0 %v1529
    %1670 = vmatprep.mubr.f32.mxu0 %v1268
    %1671 = vmatmul.mubr.f32.gmra.mrb[0].mxu0 %v1267
    %v1672 = vpop.f32.mrb[0].mxu0
    %v1673 = vadd.f32 0.0, %v1672
    %v1674 = vpop.f32.mrb[0].mxu0
    %v1675 = vadd.f32 0.0, %v1674
    %1676 = vdwg.mxu0
    %1677 = vmatprep.subr.mxu0 %v1284
    %1678 = vmatpush1.msra.mxu0 %v1283
    %1679 = vmatprep.subr.mxu0 %v1292
    %1680 = vmatpush1.msra.mxu0 %v1291
    %1681 = vmatprep.subr.mxu0 %v1300
    %1682 = vmatpush1.msra.mxu0 %v1299
    %1683 = vmatprep.subr.mxu0 %v1308
    %1684 = vmatpush1.msra.mxu0 %v1307
    %1685 = vmatprep.subr.mxu0 %v1316
    %1686 = vmatpush1.msra.mxu0 %v1315
    %1687 = vmatprep.subr.mxu0 %v1324
    %1688 = vmatpush1.msra.mxu0 %v1323
    %1689 = vmatprep.subr.mxu0 %v1332
    %1690 = vmatpush1.msra.mxu0 %v1331
    %1691 = vmatprep.subr.mxu0 %v1340
    %1692 = vmatpush1.msra.mxu0 %v1339
    %1693 = vmatprep.subr.mxu0 %v1348
    %1694 = vmatpush1.msra.mxu0 %v1347
    %1695 = vmatprep.subr.mxu0 %v1356
    %1696 = vmatpush1.msra.mxu0 %v1355
    %1697 = vmatprep.subr.mxu0 %v1364
    %1698 = vmatpush1.msra.mxu0 %v1363
    %1699 = vmatprep.subr.mxu0 %v1372
    %1700 = vmatpush1.msra.mxu0 %v1371
    %1701 = vmatprep.subr.mxu0 %v1380
    %1702 = vmatpush1.msra.mxu0 %v1379
    %1703 = vmatprep.subr.mxu0 %v1388
    %1704 = vmatpush1.msra.mxu0 %v1387
    %1705 = vmatprep.subr.mxu0 %v1396
    %1706 = vmatpush1.msra.mxu0 %v1395
    %1707 = vmatprep.subr.mxu0 %v1404
    %1708 = vmatpush1.msra.mxu0 %v1403
    %1709 = vmatprep.subr.mxu0 %v1412
    %1710 = vmatpush1.msra.mxu0 %v1411
    %1711 = vmatprep.subr.mxu0 %v1420
    %1712 = vmatpush1.msra.mxu0 %v1419
    %1713 = vmatprep.subr.mxu0 %v1428
    %1714 = vmatpush1.msra.mxu0 %v1427
    %1715 = vmatprep.subr.mxu0 %v1436
    %1716 = vmatpush1.msra.mxu0 %v1435
    %1717 = vmatprep.subr.mxu0 %v1444
    %1718 = vmatpush1.msra.mxu0 %v1443
    %1719 = vmatprep.subr.mxu0 %v1452
    %1720 = vmatpush1.msra.mxu0 %v1451
    %1721 = vmatprep.subr.mxu0 %v1460
    %1722 = vmatpush1.msra.mxu0 %v1459
    %1723 = vmatprep.subr.mxu0 %v1468
    %1724 = vmatpush1.msra.mxu0 %v1467
    %1725 = vmatprep.subr.mxu0 %v1476
    %1726 = vmatpush1.msra.mxu0 %v1475
    %1727 = vmatprep.subr.mxu0 %v1484
    %1728 = vmatpush1.msra.mxu0 %v1483
    %1729 = vmatprep.subr.mxu0 %v1492
    %1730 = vmatpush1.msra.mxu0 %v1491
    %1731 = vmatprep.subr.mxu0 %v1500
    %1732 = vmatpush1.msra.mxu0 %v1499
    %1733 = vmatprep.subr.mxu0 %v1508
    %1734 = vmatpush1.msra.mxu0 %v1507
    %1735 = vmatprep.subr.mxu0 %v1516
    %1736 = vmatpush1.msra.mxu0 %v1515
    %1737 = vmatprep.subr.mxu0 %v1524
    %1738 = vmatpush1.msra.mxu0 %v1523
    %1739 = vmatprep.subr.mxu0 %v1532
    %1740 = vmatpush1.msra.mxu0 %v1531
    %1741 = vmatprep.mubr.f32.mxu0 %v1268
    %1742 = vmatmul.mubr.f32.gmra.mrb[0].mxu0 %v1267
    %v1743 = vpop.f32.mrb[0].mxu0
    %v1744 = vadd.f32 0.0, %v1743
    %v1745 = vpop.f32.mrb[0].mxu0
    %v1746 = vadd.f32 0.0, %v1745
    %1747 = vdwg.mxu0
    %1748 = vmatprep.subr.mxu0 %v1286
    %1749 = vmatpush1.msra.mxu0 %v1285
    %1750 = vmatprep.subr.mxu0 %v1294
    %1751 = vmatpush1.msra.mxu0 %v1293
    %1752 = vmatprep.subr.mxu0 %v1302
    %1753 = vmatpush1.msra.mxu0 %v1301
    %1754 = vmatprep.subr.mxu0 %v1310
    %1755 = vmatpush1.msra.mxu0 %v1309
    %1756 = vmatprep.subr.mxu0 %v1318
    %1757 = vmatpush1.msra.mxu0 %v1317
    %1758 = vmatprep.subr.mxu0 %v1326
    %1759 = vmatpush1.msra.mxu0 %v1325
    %1760 = vmatprep.subr.mxu0 %v1334
    %1761 = vmatpush1.msra.mxu0 %v1333
    %1762 = vmatprep.subr.mxu0 %v1342
    %1763 = vmatpush1.msra.mxu0 %v1341
    %1764 = vmatprep.subr.mxu0 %v1350
    %1765 = vmatpush1.msra.mxu0 %v1349
    %1766 = vmatprep.subr.mxu0 %v1358
    %1767 = vmatpush1.msra.mxu0 %v1357
    %1768 = vmatprep.subr.mxu0 %v1366
    %1769 = vmatpush1.msra.mxu0 %v1365
    %1770 = vmatprep.subr.mxu0 %v1374
    %1771 = vmatpush1.msra.mxu0 %v1373
    %1772 = vmatprep.subr.mxu0 %v1382
    %1773 = vmatpush1.msra.mxu0 %v1381
    %1774 = vmatprep.subr.mxu0 %v1390
    %1775 = vmatpush1.msra.mxu0 %v1389
    %1776 = vmatprep.subr.mxu0 %v1398
    %1777 = vmatpush1.msra.mxu0 %v1397
    %1778 = vmatprep.subr.mxu0 %v1406
    %1779 = vmatpush1.msra.mxu0 %v1405
    %1780 = vmatprep.subr.mxu0 %v1414
    %1781 = vmatpush1.msra.mxu0 %v1413
    %1782 = vmatprep.subr.mxu0 %v1422
    %1783 = vmatpush1.msra.mxu0 %v1421
    %1784 = vmatprep.subr.mxu0 %v1430
    %1785 = vmatpush1.msra.mxu0 %v1429
    %1786 = vmatprep.subr.mxu0 %v1438
    %1787 = vmatpush1.msra.mxu0 %v1437
    %1788 = vmatprep.subr.mxu0 %v1446
    %1789 = vmatpush1.msra.mxu0 %v1445
    %1790 = vmatprep.subr.mxu0 %v1454
    %1791 = vmatpush1.msra.mxu0 %v1453
    %1792 = vmatprep.subr.mxu0 %v1462
    %1793 = vmatpush1.msra.mxu0 %v1461
    %1794 = vmatprep.subr.mxu0 %v1470
    %1795 = vmatpush1.msra.mxu0 %v1469
    %1796 = vmatprep.subr.mxu0 %v1478
    %1797 = vmatpush1.msra.mxu0 %v1477
    %1798 = vmatprep.subr.mxu0 %v1486
    %1799 = vmatpush1.msra.mxu0 %v1485
    %1800 = vmatprep.subr.mxu0 %v1494
    %1801 = vmatpush1.msra.mxu0 %v1493
    %1802 = vmatprep.subr.mxu0 %v1502
    %1803 = vmatpush1.msra.mxu0 %v1501
    %1804 = vmatprep.subr.mxu0 %v1510
    %1805 = vmatpush1.msra.mxu0 %v1509
    %1806 = vmatprep.subr.mxu0 %v1518
    %1807 = vmatpush1.msra.mxu0 %v1517
    %1808 = vmatprep.subr.mxu0 %v1526
    %1809 = vmatpush1.msra.mxu0 %v1525
    %1810 = vmatprep.subr.mxu0 %v1534
    %1811 = vmatpush1.msra.mxu0 %v1533
    %1812 = vmatprep.mubr.f32.mxu0 %v1268
    %1813 = vmatmul.mubr.f32.gmra.mrb[0].mxu0 %v1267
    %v1814 = vpop.f32.mrb[0].mxu0
    %v1815 = vadd.f32 0.0, %v1814
    %v1816 = vpop.f32.mrb[0].mxu0
    %v1817 = vadd.f32 0.0, %v1816
    %1818 = vdwg.mxu0
    %v1819 = vadd.f32 %v1271, %v1602
    %v1820 = vadd.f32 %v1272, %v1604
    %v1821 = vadd.f32 %v1273, %v1673
    %v1822 = vadd.f32 %v1274, %v1675
    %v1823 = vadd.f32 %v1275, %v1744
    %v1824 = vadd.f32 %v1276, %v1746
    %v1825 = vadd.f32 %v1277, %v1815
    %v1826 = vadd.f32 %v1278, %v1817
    %v1827 = vxor.u32 %v1819, 2147483648
    %v1828 = vxor.u32 %v1820, 2147483648
    %v1829 = vmul.f32 %v1827, 1.442695
    %v1830 = vpow.pop %v1829
    %v1831 = vmul.f32 %v1828, 1.442695
    %v1832 = vpow.pop %v1831
    %v1833 = vadd.f32 %v1830, 1.0
    %v1834 = vadd.f32 %v1832, 1.0
    %v1835 = vrcp.pop %v1833
    %v1836 = vmul.f32 1.0, %v1835
    %v1837 = vrcp.pop %v1834
    %v1838 = vmul.f32 1.0, %v1837
    %v1839 = vxor.u32 %v1821, 2147483648
    %v1840 = vxor.u32 %v1822, 2147483648
    %v1841 = vmul.f32 %v1839, 1.442695
    %v1842 = vpow.pop %v1841
    %v1843 = vmul.f32 %v1840, 1.442695
    %v1844 = vpow.pop %v1843
    %v1845 = vadd.f32 %v1842, 1.0
    %v1846 = vadd.f32 %v1844, 1.0
    %v1847 = vrcp.pop %v1845
    %v1848 = vmul.f32 1.0, %v1847
    %v1849 = vrcp.pop %v1846
    %v1850 = vmul.f32 1.0, %v1849
    %v1851 = vtanh.pop %v1823
    %v1852 = vtanh.pop %v1824
    %v1853 = vxor.u32 %v1825, 2147483648
    %v1854 = vxor.u32 %v1826, 2147483648
    %v1855 = vmul.f32 %v1853, 1.442695
    %v1856 = vpow.pop %v1855
    %v1857 = vmul.f32 %v1854, 1.442695
    %v1858 = vpow.pop %v1857
    %v1859 = vadd.f32 %v1856, 1.0
    %v1860 = vadd.f32 %v1858, 1.0
    %v1861 = vrcp.pop %v1859
    %v1862 = vmul.f32 1.0, %v1861
    %v1863 = vrcp.pop %v1860
    %v1864 = vmul.f32 1.0, %v1863
    %v1865 = vmul.f32 %v1848, %v1269
    %v1866 = vmul.f32 %v1850, %v1270
    %v1867 = vmul.f32 %v1836, %v1851
    %v1868 = vmul.f32 %v1838, %v1852
    %v1869 = vadd.f32 %v1865, %v1867
    %v1870 = vadd.f32 %v1866, %v1868
    %v1871 = vtanh.pop %v1869
    %v1872 = vtanh.pop %v1870
    %v1873 = vmul.f32 %v1862, %v1871
    %v1874 = vmul.f32 %v1864, %v1872
    %1875 = vst [vmem:[#allocation3] sm:$0xff] %v1873
    %1876 = vst [vmem:[#allocation3 + $0x8] sm:$0xff] %v1874
    %1877 = vst [vmem:[#allocation4] sm:$0xff] %v1869
    %1878 = vst [vmem:[#allocation4 + $0x8] sm:$0xff] %v1870
    %1879 = vst [vmem:[#allocation14] sm:$0xff] %v1873
    %1880 = vst [vmem:[#allocation14 + $0x8] sm:$0xff] %v1874
    %v1881 = vld [vmem:[#allocation3] sm:$0xff]
    %v1882 = vld [vmem:[#allocation3 + $0x8] sm:$0xff]
    %v1883 = vld [vmem:[#allocation4] sm:$0xff]
    %v1884 = vld [vmem:[#allocation4 + $0x8] sm:$0xff]
    %s1885 = scalar_lea.vmem [#allocation2], 64
    %v1886 = vld [vmem:[%s1885] sm:$0xff]
    %v1887 = vld [vmem:[%s1885 + $0x8] sm:$0xff]
    %v1888 = vld [vmem:[%s1885 + $0x10] sm:$0xff]
    %v1889 = vld [vmem:[%s1885 + $0x18] sm:$0xff]
    %v1890 = vld [vmem:[%s1885 + $0x20] sm:$0xff]
    %v1891 = vld [vmem:[%s1885 + $0x28] sm:$0xff]
    %v1892 = vld [vmem:[%s1885 + $0x30] sm:$0xff]
    %v1893 = vld [vmem:[%s1885 + $0x38] sm:$0xff]
    %v1894 = vld [vmem:[#allocation13] sm:$0xff]
    %v1895 = vld [vmem:[#allocation13 + $0x8] sm:$0xff]
    %v1896 = vld [vmem:[#allocation13 + $0x10] sm:$0xff]
    %v1897 = vld [vmem:[#allocation13 + $0x18] sm:$0xff]
    %v1898 = vld [vmem:[#allocation13 + $0x20] sm:$0xff]
    %v1899 = vld [vmem:[#allocation13 + $0x28] sm:$0xff]
    %v1900 = vld [vmem:[#allocation13 + $0x30] sm:$0xff]
    %v1901 = vld [vmem:[#allocation13 + $0x38] sm:$0xff]
    %v1902 = vld [vmem:[#allocation13 + $0x40] sm:$0xff]
    %v1903 = vld [vmem:[#allocation13 + $0x48] sm:$0xff]
    %v1904 = vld [vmem:[#allocation13 + $0x50] sm:$0xff]
    %v1905 = vld [vmem:[#allocation13 + $0x58] sm:$0xff]
    %v1906 = vld [vmem:[#allocation13 + $0x60] sm:$0xff]
    %v1907 = vld [vmem:[#allocation13 + $0x68] sm:$0xff]
    %v1908 = vld [vmem:[#allocation13 + $0x70] sm:$0xff]
    %v1909 = vld [vmem:[#allocation13 + $0x78] sm:$0xff]
    %v1910 = vld [vmem:[#allocation13 + $0x80] sm:$0xff]
    %v1911 = vld [vmem:[#allocation13 + $0x88] sm:$0xff]
    %v1912 = vld [vmem:[#allocation13 + $0x90] sm:$0xff]
    %v1913 = vld [vmem:[#allocation13 + $0x98] sm:$0xff]
    %v1914 = vld [vmem:[#allocation13 + $0xa0] sm:$0xff]
    %v1915 = vld [vmem:[#allocation13 + $0xa8] sm:$0xff]
    %v1916 = vld [vmem:[#allocation13 + $0xb0] sm:$0xff]
    %v1917 = vld [vmem:[#allocation13 + $0xb8] sm:$0xff]
    %v1918 = vld [vmem:[#allocation13 + $0xc0] sm:$0xff]
    %v1919 = vld [vmem:[#allocation13 + $0xc8] sm:$0xff]
    %v1920 = vld [vmem:[#allocation13 + $0xd0] sm:$0xff]
    %v1921 = vld [vmem:[#allocation13 + $0xd8] sm:$0xff]
    %v1922 = vld [vmem:[#allocation13 + $0xe0] sm:$0xff]
    %v1923 = vld [vmem:[#allocation13 + $0xe8] sm:$0xff]
    %v1924 = vld [vmem:[#allocation13 + $0xf0] sm:$0xff]
    %v1925 = vld [vmem:[#allocation13 + $0xf8] sm:$0xff]
    %v1926 = vld [vmem:[#allocation13 + $0x100] sm:$0xff]
    %v1927 = vld [vmem:[#allocation13 + $0x108] sm:$0xff]
    %v1928 = vld [vmem:[#allocation13 + $0x110] sm:$0xff]
    %v1929 = vld [vmem:[#allocation13 + $0x118] sm:$0xff]
    %v1930 = vld [vmem:[#allocation13 + $0x120] sm:$0xff]
    %v1931 = vld [vmem:[#allocation13 + $0x128] sm:$0xff]
    %v1932 = vld [vmem:[#allocation13 + $0x130] sm:$0xff]
    %v1933 = vld [vmem:[#allocation13 + $0x138] sm:$0xff]
    %v1934 = vld [vmem:[#allocation13 + $0x140] sm:$0xff]
    %v1935 = vld [vmem:[#allocation13 + $0x148] sm:$0xff]
    %v1936 = vld [vmem:[#allocation13 + $0x150] sm:$0xff]
    %v1937 = vld [vmem:[#allocation13 + $0x158] sm:$0xff]
    %v1938 = vld [vmem:[#allocation13 + $0x160] sm:$0xff]
    %v1939 = vld [vmem:[#allocation13 + $0x168] sm:$0xff]
    %v1940 = vld [vmem:[#allocation13 + $0x170] sm:$0xff]
    %v1941 = vld [vmem:[#allocation13 + $0x178] sm:$0xff]
    %v1942 = vld [vmem:[#allocation13 + $0x180] sm:$0xff]
    %v1943 = vld [vmem:[#allocation13 + $0x188] sm:$0xff]
    %v1944 = vld [vmem:[#allocation13 + $0x190] sm:$0xff]
    %v1945 = vld [vmem:[#allocation13 + $0x198] sm:$0xff]
    %v1946 = vld [vmem:[#allocation13 + $0x1a0] sm:$0xff]
    %v1947 = vld [vmem:[#allocation13 + $0x1a8] sm:$0xff]
    %v1948 = vld [vmem:[#allocation13 + $0x1b0] sm:$0xff]
    %v1949 = vld [vmem:[#allocation13 + $0x1b8] sm:$0xff]
    %v1950 = vld [vmem:[#allocation13 + $0x1c0] sm:$0xff]
    %v1951 = vld [vmem:[#allocation13 + $0x1c8] sm:$0xff]
    %v1952 = vld [vmem:[#allocation13 + $0x1d0] sm:$0xff]
    %v1953 = vld [vmem:[#allocation13 + $0x1d8] sm:$0xff]
    %v1954 = vld [vmem:[#allocation13 + $0x1e0] sm:$0xff]
    %v1955 = vld [vmem:[#allocation13 + $0x1e8] sm:$0xff]
    %v1956 = vld [vmem:[#allocation13 + $0x1f0] sm:$0xff]
    %v1957 = vld [vmem:[#allocation13 + $0x1f8] sm:$0xff]
    %v1958 = vld [vmem:[#allocation13 + $0x200] sm:$0xff]
    %v1959 = vld [vmem:[#allocation13 + $0x208] sm:$0xff]
    %v1960 = vld [vmem:[#allocation13 + $0x210] sm:$0xff]
    %v1961 = vld [vmem:[#allocation13 + $0x218] sm:$0xff]
    %v1962 = vld [vmem:[#allocation13 + $0x220] sm:$0xff]
    %v1963 = vld [vmem:[#allocation13 + $0x228] sm:$0xff]
    %v1964 = vld [vmem:[#allocation13 + $0x230] sm:$0xff]
    %v1965 = vld [vmem:[#allocation13 + $0x238] sm:$0xff]
    %v1966 = vld [vmem:[#allocation13 + $0x240] sm:$0xff]
    %v1967 = vld [vmem:[#allocation13 + $0x248] sm:$0xff]
    %v1968 = vld [vmem:[#allocation13 + $0x250] sm:$0xff]
    %v1969 = vld [vmem:[#allocation13 + $0x258] sm:$0xff]
    %v1970 = vld [vmem:[#allocation13 + $0x260] sm:$0xff]
    %v1971 = vld [vmem:[#allocation13 + $0x268] sm:$0xff]
    %v1972 = vld [vmem:[#allocation13 + $0x270] sm:$0xff]
    %v1973 = vld [vmem:[#allocation13 + $0x278] sm:$0xff]
    %v1974 = vld [vmem:[#allocation13 + $0x280] sm:$0xff]
    %v1975 = vld [vmem:[#allocation13 + $0x288] sm:$0xff]
    %v1976 = vld [vmem:[#allocation13 + $0x290] sm:$0xff]
    %v1977 = vld [vmem:[#allocation13 + $0x298] sm:$0xff]
    %v1978 = vld [vmem:[#allocation13 + $0x2a0] sm:$0xff]
    %v1979 = vld [vmem:[#allocation13 + $0x2a8] sm:$0xff]
    %v1980 = vld [vmem:[#allocation13 + $0x2b0] sm:$0xff]
    %v1981 = vld [vmem:[#allocation13 + $0x2b8] sm:$0xff]
    %v1982 = vld [vmem:[#allocation13 + $0x2c0] sm:$0xff]
    %v1983 = vld [vmem:[#allocation13 + $0x2c8] sm:$0xff]
    %v1984 = vld [vmem:[#allocation13 + $0x2d0] sm:$0xff]
    %v1985 = vld [vmem:[#allocation13 + $0x2d8] sm:$0xff]
    %v1986 = vld [vmem:[#allocation13 + $0x2e0] sm:$0xff]
    %v1987 = vld [vmem:[#allocation13 + $0x2e8] sm:$0xff]
    %v1988 = vld [vmem:[#allocation13 + $0x2f0] sm:$0xff]
    %v1989 = vld [vmem:[#allocation13 + $0x2f8] sm:$0xff]
    %v1990 = vld [vmem:[#allocation13 + $0x300] sm:$0xff]
    %v1991 = vld [vmem:[#allocation13 + $0x308] sm:$0xff]
    %v1992 = vld [vmem:[#allocation13 + $0x310] sm:$0xff]
    %v1993 = vld [vmem:[#allocation13 + $0x318] sm:$0xff]
    %v1994 = vld [vmem:[#allocation13 + $0x320] sm:$0xff]
    %v1995 = vld [vmem:[#allocation13 + $0x328] sm:$0xff]
    %v1996 = vld [vmem:[#allocation13 + $0x330] sm:$0xff]
    %v1997 = vld [vmem:[#allocation13 + $0x338] sm:$0xff]
    %v1998 = vld [vmem:[#allocation13 + $0x340] sm:$0xff]
    %v1999 = vld [vmem:[#allocation13 + $0x348] sm:$0xff]
    %v2000 = vld [vmem:[#allocation13 + $0x350] sm:$0xff]
    %v2001 = vld [vmem:[#allocation13 + $0x358] sm:$0xff]
    %v2002 = vld [vmem:[#allocation13 + $0x360] sm:$0xff]
    %v2003 = vld [vmem:[#allocation13 + $0x368] sm:$0xff]
    %v2004 = vld [vmem:[#allocation13 + $0x370] sm:$0xff]
    %v2005 = vld [vmem:[#allocation13 + $0x378] sm:$0xff]
    %v2006 = vld [vmem:[#allocation13 + $0x380] sm:$0xff]
    %v2007 = vld [vmem:[#allocation13 + $0x388] sm:$0xff]
    %v2008 = vld [vmem:[#allocation13 + $0x390] sm:$0xff]
    %v2009 = vld [vmem:[#allocation13 + $0x398] sm:$0xff]
    %v2010 = vld [vmem:[#allocation13 + $0x3a0] sm:$0xff]
    %v2011 = vld [vmem:[#allocation13 + $0x3a8] sm:$0xff]
    %v2012 = vld [vmem:[#allocation13 + $0x3b0] sm:$0xff]
    %v2013 = vld [vmem:[#allocation13 + $0x3b8] sm:$0xff]
    %v2014 = vld [vmem:[#allocation13 + $0x3c0] sm:$0xff]
    %v2015 = vld [vmem:[#allocation13 + $0x3c8] sm:$0xff]
    %v2016 = vld [vmem:[#allocation13 + $0x3d0] sm:$0xff]
    %v2017 = vld [vmem:[#allocation13 + $0x3d8] sm:$0xff]
    %v2018 = vld [vmem:[#allocation13 + $0x3e0] sm:$0xff]
    %v2019 = vld [vmem:[#allocation13 + $0x3e8] sm:$0xff]
    %v2020 = vld [vmem:[#allocation13 + $0x3f0] sm:$0xff]
    %v2021 = vld [vmem:[#allocation13 + $0x3f8] sm:$0xff]
    %v2022 = vld [vmem:[#allocation13 + $0x400] sm:$0xff]
    %v2023 = vld [vmem:[#allocation13 + $0x408] sm:$0xff]
    %v2024 = vld [vmem:[#allocation13 + $0x410] sm:$0xff]
    %v2025 = vld [vmem:[#allocation13 + $0x418] sm:$0xff]
    %v2026 = vld [vmem:[#allocation13 + $0x420] sm:$0xff]
    %v2027 = vld [vmem:[#allocation13 + $0x428] sm:$0xff]
    %v2028 = vld [vmem:[#allocation13 + $0x430] sm:$0xff]
    %v2029 = vld [vmem:[#allocation13 + $0x438] sm:$0xff]
    %v2030 = vld [vmem:[#allocation13 + $0x440] sm:$0xff]
    %v2031 = vld [vmem:[#allocation13 + $0x448] sm:$0xff]
    %v2032 = vld [vmem:[#allocation13 + $0x450] sm:$0xff]
    %v2033 = vld [vmem:[#allocation13 + $0x458] sm:$0xff]
    %v2034 = vld [vmem:[#allocation13 + $0x460] sm:$0xff]
    %v2035 = vld [vmem:[#allocation13 + $0x468] sm:$0xff]
    %v2036 = vld [vmem:[#allocation13 + $0x470] sm:$0xff]
    %v2037 = vld [vmem:[#allocation13 + $0x478] sm:$0xff]
    %v2038 = vld [vmem:[#allocation13 + $0x480] sm:$0xff]
    %v2039 = vld [vmem:[#allocation13 + $0x488] sm:$0xff]
    %v2040 = vld [vmem:[#allocation13 + $0x490] sm:$0xff]
    %v2041 = vld [vmem:[#allocation13 + $0x498] sm:$0xff]
    %v2042 = vld [vmem:[#allocation13 + $0x4a0] sm:$0xff]
    %v2043 = vld [vmem:[#allocation13 + $0x4a8] sm:$0xff]
    %v2044 = vld [vmem:[#allocation13 + $0x4b0] sm:$0xff]
    %v2045 = vld [vmem:[#allocation13 + $0x4b8] sm:$0xff]
    %v2046 = vld [vmem:[#allocation13 + $0x4c0] sm:$0xff]
    %v2047 = vld [vmem:[#allocation13 + $0x4c8] sm:$0xff]
    %v2048 = vld [vmem:[#allocation13 + $0x4d0] sm:$0xff]
    %v2049 = vld [vmem:[#allocation13 + $0x4d8] sm:$0xff]
    %v2050 = vld [vmem:[#allocation13 + $0x4e0] sm:$0xff]
    %v2051 = vld [vmem:[#allocation13 + $0x4e8] sm:$0xff]
    %v2052 = vld [vmem:[#allocation13 + $0x4f0] sm:$0xff]
    %v2053 = vld [vmem:[#allocation13 + $0x4f8] sm:$0xff]
    %v2054 = vld [vmem:[#allocation13 + $0x500] sm:$0xff]
    %v2055 = vld [vmem:[#allocation13 + $0x508] sm:$0xff]
    %v2056 = vld [vmem:[#allocation13 + $0x510] sm:$0xff]
    %v2057 = vld [vmem:[#allocation13 + $0x518] sm:$0xff]
    %v2058 = vld [vmem:[#allocation13 + $0x520] sm:$0xff]
    %v2059 = vld [vmem:[#allocation13 + $0x528] sm:$0xff]
    %v2060 = vld [vmem:[#allocation13 + $0x530] sm:$0xff]
    %v2061 = vld [vmem:[#allocation13 + $0x538] sm:$0xff]
    %v2062 = vld [vmem:[#allocation13 + $0x540] sm:$0xff]
    %v2063 = vld [vmem:[#allocation13 + $0x548] sm:$0xff]
    %v2064 = vld [vmem:[#allocation13 + $0x550] sm:$0xff]
    %v2065 = vld [vmem:[#allocation13 + $0x558] sm:$0xff]
    %v2066 = vld [vmem:[#allocation13 + $0x560] sm:$0xff]
    %v2067 = vld [vmem:[#allocation13 + $0x568] sm:$0xff]
    %v2068 = vld [vmem:[#allocation13 + $0x570] sm:$0xff]
    %v2069 = vld [vmem:[#allocation13 + $0x578] sm:$0xff]
    %v2070 = vld [vmem:[#allocation13 + $0x580] sm:$0xff]
    %v2071 = vld [vmem:[#allocation13 + $0x588] sm:$0xff]
    %v2072 = vld [vmem:[#allocation13 + $0x590] sm:$0xff]
    %v2073 = vld [vmem:[#allocation13 + $0x598] sm:$0xff]
    %v2074 = vld [vmem:[#allocation13 + $0x5a0] sm:$0xff]
    %v2075 = vld [vmem:[#allocation13 + $0x5a8] sm:$0xff]
    %v2076 = vld [vmem:[#allocation13 + $0x5b0] sm:$0xff]
    %v2077 = vld [vmem:[#allocation13 + $0x5b8] sm:$0xff]
    %v2078 = vld [vmem:[#allocation13 + $0x5c0] sm:$0xff]
    %v2079 = vld [vmem:[#allocation13 + $0x5c8] sm:$0xff]
    %v2080 = vld [vmem:[#allocation13 + $0x5d0] sm:$0xff]
    %v2081 = vld [vmem:[#allocation13 + $0x5d8] sm:$0xff]
    %v2082 = vld [vmem:[#allocation13 + $0x5e0] sm:$0xff]
    %v2083 = vld [vmem:[#allocation13 + $0x5e8] sm:$0xff]
    %v2084 = vld [vmem:[#allocation13 + $0x5f0] sm:$0xff]
    %v2085 = vld [vmem:[#allocation13 + $0x5f8] sm:$0xff]
    %v2086 = vld [vmem:[#allocation13 + $0x600] sm:$0xff]
    %v2087 = vld [vmem:[#allocation13 + $0x608] sm:$0xff]
    %v2088 = vld [vmem:[#allocation13 + $0x610] sm:$0xff]
    %v2089 = vld [vmem:[#allocation13 + $0x618] sm:$0xff]
    %v2090 = vld [vmem:[#allocation13 + $0x620] sm:$0xff]
    %v2091 = vld [vmem:[#allocation13 + $0x628] sm:$0xff]
    %v2092 = vld [vmem:[#allocation13 + $0x630] sm:$0xff]
    %v2093 = vld [vmem:[#allocation13 + $0x638] sm:$0xff]
    %v2094 = vld [vmem:[#allocation13 + $0x640] sm:$0xff]
    %v2095 = vld [vmem:[#allocation13 + $0x648] sm:$0xff]
    %v2096 = vld [vmem:[#allocation13 + $0x650] sm:$0xff]
    %v2097 = vld [vmem:[#allocation13 + $0x658] sm:$0xff]
    %v2098 = vld [vmem:[#allocation13 + $0x660] sm:$0xff]
    %v2099 = vld [vmem:[#allocation13 + $0x668] sm:$0xff]
    %v2100 = vld [vmem:[#allocation13 + $0x670] sm:$0xff]
    %v2101 = vld [vmem:[#allocation13 + $0x678] sm:$0xff]
    %v2102 = vld [vmem:[#allocation13 + $0x680] sm:$0xff]
    %v2103 = vld [vmem:[#allocation13 + $0x688] sm:$0xff]
    %v2104 = vld [vmem:[#allocation13 + $0x690] sm:$0xff]
    %v2105 = vld [vmem:[#allocation13 + $0x698] sm:$0xff]
    %v2106 = vld [vmem:[#allocation13 + $0x6a0] sm:$0xff]
    %v2107 = vld [vmem:[#allocation13 + $0x6a8] sm:$0xff]
    %v2108 = vld [vmem:[#allocation13 + $0x6b0] sm:$0xff]
    %v2109 = vld [vmem:[#allocation13 + $0x6b8] sm:$0xff]
    %v2110 = vld [vmem:[#allocation13 + $0x6c0] sm:$0xff]
    %v2111 = vld [vmem:[#allocation13 + $0x6c8] sm:$0xff]
    %v2112 = vld [vmem:[#allocation13 + $0x6d0] sm:$0xff]
    %v2113 = vld [vmem:[#allocation13 + $0x6d8] sm:$0xff]
    %v2114 = vld [vmem:[#allocation13 + $0x6e0] sm:$0xff]
    %v2115 = vld [vmem:[#allocation13 + $0x6e8] sm:$0xff]
    %v2116 = vld [vmem:[#allocation13 + $0x6f0] sm:$0xff]
    %v2117 = vld [vmem:[#allocation13 + $0x6f8] sm:$0xff]
    %v2118 = vld [vmem:[#allocation13 + $0x700] sm:$0xff]
    %v2119 = vld [vmem:[#allocation13 + $0x708] sm:$0xff]
    %v2120 = vld [vmem:[#allocation13 + $0x710] sm:$0xff]
    %v2121 = vld [vmem:[#allocation13 + $0x718] sm:$0xff]
    %v2122 = vld [vmem:[#allocation13 + $0x720] sm:$0xff]
    %v2123 = vld [vmem:[#allocation13 + $0x728] sm:$0xff]
    %v2124 = vld [vmem:[#allocation13 + $0x730] sm:$0xff]
    %v2125 = vld [vmem:[#allocation13 + $0x738] sm:$0xff]
    %v2126 = vld [vmem:[#allocation13 + $0x740] sm:$0xff]
    %v2127 = vld [vmem:[#allocation13 + $0x748] sm:$0xff]
    %v2128 = vld [vmem:[#allocation13 + $0x750] sm:$0xff]
    %v2129 = vld [vmem:[#allocation13 + $0x758] sm:$0xff]
    %v2130 = vld [vmem:[#allocation13 + $0x760] sm:$0xff]
    %v2131 = vld [vmem:[#allocation13 + $0x768] sm:$0xff]
    %v2132 = vld [vmem:[#allocation13 + $0x770] sm:$0xff]
    %v2133 = vld [vmem:[#allocation13 + $0x778] sm:$0xff]
    %v2134 = vld [vmem:[#allocation13 + $0x780] sm:$0xff]
    %v2135 = vld [vmem:[#allocation13 + $0x788] sm:$0xff]
    %v2136 = vld [vmem:[#allocation13 + $0x790] sm:$0xff]
    %v2137 = vld [vmem:[#allocation13 + $0x798] sm:$0xff]
    %v2138 = vld [vmem:[#allocation13 + $0x7a0] sm:$0xff]
    %v2139 = vld [vmem:[#allocation13 + $0x7a8] sm:$0xff]
    %v2140 = vld [vmem:[#allocation13 + $0x7b0] sm:$0xff]
    %v2141 = vld [vmem:[#allocation13 + $0x7b8] sm:$0xff]
    %v2142 = vld [vmem:[#allocation13 + $0x7c0] sm:$0xff]
    %v2143 = vld [vmem:[#allocation13 + $0x7c8] sm:$0xff]
    %v2144 = vld [vmem:[#allocation13 + $0x7d0] sm:$0xff]
    %v2145 = vld [vmem:[#allocation13 + $0x7d8] sm:$0xff]
    %v2146 = vld [vmem:[#allocation13 + $0x7e0] sm:$0xff]
    %v2147 = vld [vmem:[#allocation13 + $0x7e8] sm:$0xff]
    %v2148 = vld [vmem:[#allocation13 + $0x7f0] sm:$0xff]
    %v2149 = vld [vmem:[#allocation13 + $0x7f8] sm:$0xff]
    %2150 = vmatprep.subr.mxu0 %v1895
    %2151 = vmatpush1.msra.mxu0 %v1894
    %2152 = vmatprep.subr.mxu0 %v1903
    %2153 = vmatpush1.msra.mxu0 %v1902
    %2154 = vmatprep.subr.mxu0 %v1911
    %2155 = vmatpush1.msra.mxu0 %v1910
    %2156 = vmatprep.subr.mxu0 %v1919
    %2157 = vmatpush1.msra.mxu0 %v1918
    %2158 = vmatprep.subr.mxu0 %v1927
    %2159 = vmatpush1.msra.mxu0 %v1926
    %2160 = vmatprep.subr.mxu0 %v1935
    %2161 = vmatpush1.msra.mxu0 %v1934
    %2162 = vmatprep.subr.mxu0 %v1943
    %2163 = vmatpush1.msra.mxu0 %v1942
    %2164 = vmatprep.subr.mxu0 %v1951
    %2165 = vmatpush1.msra.mxu0 %v1950
    %2166 = vmatprep.subr.mxu0 %v1959
    %2167 = vmatpush1.msra.mxu0 %v1958
    %2168 = vmatprep.subr.mxu0 %v1967
    %2169 = vmatpush1.msra.mxu0 %v1966
    %2170 = vmatprep.subr.mxu0 %v1975
    %2171 = vmatpush1.msra.mxu0 %v1974
    %2172 = vmatprep.subr.mxu0 %v1983
    %2173 = vmatpush1.msra.mxu0 %v1982
    %2174 = vmatprep.subr.mxu0 %v1991
    %2175 = vmatpush1.msra.mxu0 %v1990
    %2176 = vmatprep.subr.mxu0 %v1999
    %2177 = vmatpush1.msra.mxu0 %v1998
    %2178 = vmatprep.subr.mxu0 %v2007
    %2179 = vmatpush1.msra.mxu0 %v2006
    %2180 = vmatprep.subr.mxu0 %v2015
    %2181 = vmatpush1.msra.mxu0 %v2014
    %2182 = vmatprep.subr.mxu0 %v2023
    %2183 = vmatpush1.msra.mxu0 %v2022
    %2184 = vmatprep.subr.mxu0 %v2031
    %2185 = vmatpush1.msra.mxu0 %v2030
    %2186 = vmatprep.subr.mxu0 %v2039
    %2187 = vmatpush1.msra.mxu0 %v2038
    %2188 = vmatprep.subr.mxu0 %v2047
    %2189 = vmatpush1.msra.mxu0 %v2046
    %2190 = vmatprep.subr.mxu0 %v2055
    %2191 = vmatpush1.msra.mxu0 %v2054
    %2192 = vmatprep.subr.mxu0 %v2063
    %2193 = vmatpush1.msra.mxu0 %v2062
    %2194 = vmatprep.subr.mxu0 %v2071
    %2195 = vmatpush1.msra.mxu0 %v2070
    %2196 = vmatprep.subr.mxu0 %v2079
    %2197 = vmatpush1.msra.mxu0 %v2078
    %2198 = vmatprep.subr.mxu0 %v2087
    %2199 = vmatpush1.msra.mxu0 %v2086
    %2200 = vmatprep.subr.mxu0 %v2095
    %2201 = vmatpush1.msra.mxu0 %v2094
    %2202 = vmatprep.subr.mxu0 %v2103
    %2203 = vmatpush1.msra.mxu0 %v2102
    %2204 = vmatprep.subr.mxu0 %v2111
    %2205 = vmatpush1.msra.mxu0 %v2110
    %2206 = vmatprep.subr.mxu0 %v2119
    %2207 = vmatpush1.msra.mxu0 %v2118
    %2208 = vmatprep.subr.mxu0 %v2127
    %2209 = vmatpush1.msra.mxu0 %v2126
    %2210 = vmatprep.subr.mxu0 %v2135
    %2211 = vmatpush1.msra.mxu0 %v2134
    %2212 = vmatprep.subr.mxu0 %v2143
    %2213 = vmatpush1.msra.mxu0 %v2142
    %2214 = vmatprep.mubr.f32.mxu0 %v1882
    %2215 = vmatmul.mubr.f32.gmra.mrb[0].mxu0 %v1881
    %v2216 = vpop.f32.mrb[0].mxu0
    %v2217 = vadd.f32 0.0, %v2216
    %v2218 = vpop.f32.mrb[0].mxu0
    %v2219 = vadd.f32 0.0, %v2218
    %2220 = vdwg.mxu0
    %2221 = vmatprep.subr.mxu0 %v1897
    %2222 = vmatpush1.msra.mxu0 %v1896
    %2223 = vmatprep.subr.mxu0 %v1905
    %2224 = vmatpush1.msra.mxu0 %v1904
    %2225 = vmatprep.subr.mxu0 %v1913
    %2226 = vmatpush1.msra.mxu0 %v1912
    %2227 = vmatprep.subr.mxu0 %v1921
    %2228 = vmatpush1.msra.mxu0 %v1920
    %2229 = vmatprep.subr.mxu0 %v1929
    %2230 = vmatpush1.msra.mxu0 %v1928
    %2231 = vmatprep.subr.mxu0 %v1937
    %2232 = vmatpush1.msra.mxu0 %v1936
    %2233 = vmatprep.subr.mxu0 %v1945
    %2234 = vmatpush1.msra.mxu0 %v1944
    %2235 = vmatprep.subr.mxu0 %v1953
    %2236 = vmatpush1.msra.mxu0 %v1952
    %2237 = vmatprep.subr.mxu0 %v1961
    %2238 = vmatpush1.msra.mxu0 %v1960
    %2239 = vmatprep.subr.mxu0 %v1969
    %2240 = vmatpush1.msra.mxu0 %v1968
    %2241 = vmatprep.subr.mxu0 %v1977
    %2242 = vmatpush1.msra.mxu0 %v1976
    %2243 = vmatprep.subr.mxu0 %v1985
    %2244 = vmatpush1.msra.mxu0 %v1984
    %2245 = vmatprep.subr.mxu0 %v1993
    %2246 = vmatpush1.msra.mxu0 %v1992
    %2247 = vmatprep.subr.mxu0 %v2001
    %2248 = vmatpush1.msra.mxu0 %v2000
    %2249 = vmatprep.subr.mxu0 %v2009
    %2250 = vmatpush1.msra.mxu0 %v2008
    %2251 = vmatprep.subr.mxu0 %v2017
    %2252 = vmatpush1.msra.mxu0 %v2016
    %2253 = vmatprep.subr.mxu0 %v2025
    %2254 = vmatpush1.msra.mxu0 %v2024
    %2255 = vmatprep.subr.mxu0 %v2033
    %2256 = vmatpush1.msra.mxu0 %v2032
    %2257 = vmatprep.subr.mxu0 %v2041
    %2258 = vmatpush1.msra.mxu0 %v2040
    %2259 = vmatprep.subr.mxu0 %v2049
    %2260 = vmatpush1.msra.mxu0 %v2048
    %2261 = vmatprep.subr.mxu0 %v2057
    %2262 = vmatpush1.msra.mxu0 %v2056
    %2263 = vmatprep.subr.mxu0 %v2065
    %2264 = vmatpush1.msra.mxu0 %v2064
    %2265 = vmatprep.subr.mxu0 %v2073
    %2266 = vmatpush1.msra.mxu0 %v2072
    %2267 = vmatprep.subr.mxu0 %v2081
    %2268 = vmatpush1.msra.mxu0 %v2080
    %2269 = vmatprep.subr.mxu0 %v2089
    %2270 = vmatpush1.msra.mxu0 %v2088
    %2271 = vmatprep.subr.mxu0 %v2097
    %2272 = vmatpush1.msra.mxu0 %v2096
    %2273 = vmatprep.subr.mxu0 %v2105
    %2274 = vmatpush1.msra.mxu0 %v2104
    %2275 = vmatprep.subr.mxu0 %v2113
    %2276 = vmatpush1.msra.mxu0 %v2112
    %2277 = vmatprep.subr.mxu0 %v2121
    %2278 = vmatpush1.msra.mxu0 %v2120
    %2279 = vmatprep.subr.mxu0 %v2129
    %2280 = vmatpush1.msra.mxu0 %v2128
    %2281 = vmatprep.subr.mxu0 %v2137
    %2282 = vmatpush1.msra.mxu0 %v2136
    %2283 = vmatprep.subr.mxu0 %v2145
    %2284 = vmatpush1.msra.mxu0 %v2144
    %2285 = vmatprep.mubr.f32.mxu0 %v1882
    %2286 = vmatmul.mubr.f32.gmra.mrb[0].mxu0 %v1881
    %v2287 = vpop.f32.mrb[0].mxu0
    %v2288 = vadd.f32 0.0, %v2287
    %v2289 = vpop.f32.mrb[0].mxu0
    %v2290 = vadd.f32 0.0, %v2289
    %2291 = vdwg.mxu0
    %2292 = vmatprep.subr.mxu0 %v1899
    %2293 = vmatpush1.msra.mxu0 %v1898
    %2294 = vmatprep.subr.mxu0 %v1907
    %2295 = vmatpush1.msra.mxu0 %v1906
    %2296 = vmatprep.subr.mxu0 %v1915
    %2297 = vmatpush1.msra.mxu0 %v1914
    %2298 = vmatprep.subr.mxu0 %v1923
    %2299 = vmatpush1.msra.mxu0 %v1922
    %2300 = vmatprep.subr.mxu0 %v1931
    %2301 = vmatpush1.msra.mxu0 %v1930
    %2302 = vmatprep.subr.mxu0 %v1939
    %2303 = vmatpush1.msra.mxu0 %v1938
    %2304 = vmatprep.subr.mxu0 %v1947
    %2305 = vmatpush1.msra.mxu0 %v1946
    %2306 = vmatprep.subr.mxu0 %v1955
    %2307 = vmatpush1.msra.mxu0 %v1954
    %2308 = vmatprep.subr.mxu0 %v1963
    %2309 = vmatpush1.msra.mxu0 %v1962
    %2310 = vmatprep.subr.mxu0 %v1971
    %2311 = vmatpush1.msra.mxu0 %v1970
    %2312 = vmatprep.subr.mxu0 %v1979
    %2313 = vmatpush1.msra.mxu0 %v1978
    %2314 = vmatprep.subr.mxu0 %v1987
    %2315 = vmatpush1.msra.mxu0 %v1986
    %2316 = vmatprep.subr.mxu0 %v1995
    %2317 = vmatpush1.msra.mxu0 %v1994
    %2318 = vmatprep.subr.mxu0 %v2003
    %2319 = vmatpush1.msra.mxu0 %v2002
    %2320 = vmatprep.subr.mxu0 %v2011
    %2321 = vmatpush1.msra.mxu0 %v2010
    %2322 = vmatprep.subr.mxu0 %v2019
    %2323 = vmatpush1.msra.mxu0 %v2018
    %2324 = vmatprep.subr.mxu0 %v2027
    %2325 = vmatpush1.msra.mxu0 %v2026
    %2326 = vmatprep.subr.mxu0 %v2035
    %2327 = vmatpush1.msra.mxu0 %v2034
    %2328 = vmatprep.subr.mxu0 %v2043
    %2329 = vmatpush1.msra.mxu0 %v2042
    %2330 = vmatprep.subr.mxu0 %v2051
    %2331 = vmatpush1.msra.mxu0 %v2050
    %2332 = vmatprep.subr.mxu0 %v2059
    %2333 = vmatpush1.msra.mxu0 %v2058
    %2334 = vmatprep.subr.mxu0 %v2067
    %2335 = vmatpush1.msra.mxu0 %v2066
    %2336 = vmatprep.subr.mxu0 %v2075
    %2337 = vmatpush1.msra.mxu0 %v2074
    %2338 = vmatprep.subr.mxu0 %v2083
    %2339 = vmatpush1.msra.mxu0 %v2082
    %2340 = vmatprep.subr.mxu0 %v2091
    %2341 = vmatpush1.msra.mxu0 %v2090
    %2342 = vmatprep.subr.mxu0 %v2099
    %2343 = vmatpush1.msra.mxu0 %v2098
    %2344 = vmatprep.subr.mxu0 %v2107
    %2345 = vmatpush1.msra.mxu0 %v2106
    %2346 = vmatprep.subr.mxu0 %v2115
    %2347 = vmatpush1.msra.mxu0 %v2114
    %2348 = vmatprep.subr.mxu0 %v2123
    %2349 = vmatpush1.msra.mxu0 %v2122
    %2350 = vmatprep.subr.mxu0 %v2131
    %2351 = vmatpush1.msra.mxu0 %v2130
    %2352 = vmatprep.subr.mxu0 %v2139
    %2353 = vmatpush1.msra.mxu0 %v2138
    %2354 = vmatprep.subr.mxu0 %v2147
    %2355 = vmatpush1.msra.mxu0 %v2146
    %2356 = vmatprep.mubr.f32.mxu0 %v1882
    %2357 = vmatmul.mubr.f32.gmra.mrb[0].mxu0 %v1881
    %v2358 = vpop.f32.mrb[0].mxu0
    %v2359 = vadd.f32 0.0, %v2358
    %v2360 = vpop.f32.mrb[0].mxu0
    %v2361 = vadd.f32 0.0, %v2360
    %2362 = vdwg.mxu0
    %2363 = vmatprep.subr.mxu0 %v1901
    %2364 = vmatpush1.msra.mxu0 %v1900
    %2365 = vmatprep.subr.mxu0 %v1909
    %2366 = vmatpush1.msra.mxu0 %v1908
    %2367 = vmatprep.subr.mxu0 %v1917
    %2368 = vmatpush1.msra.mxu0 %v1916
    %2369 = vmatprep.subr.mxu0 %v1925
    %2370 = vmatpush1.msra.mxu0 %v1924
    %2371 = vmatprep.subr.mxu0 %v1933
    %2372 = vmatpush1.msra.mxu0 %v1932
    %2373 = vmatprep.subr.mxu0 %v1941
    %2374 = vmatpush1.msra.mxu0 %v1940
    %2375 = vmatprep.subr.mxu0 %v1949
    %2376 = vmatpush1.msra.mxu0 %v1948
    %2377 = vmatprep.subr.mxu0 %v1957
    %2378 = vmatpush1.msra.mxu0 %v1956
    %2379 = vmatprep.subr.mxu0 %v1965
    %2380 = vmatpush1.msra.mxu0 %v1964
    %2381 = vmatprep.subr.mxu0 %v1973
    %2382 = vmatpush1.msra.mxu0 %v1972
    %2383 = vmatprep.subr.mxu0 %v1981
    %2384 = vmatpush1.msra.mxu0 %v1980
    %2385 = vmatprep.subr.mxu0 %v1989
    %2386 = vmatpush1.msra.mxu0 %v1988
    %2387 = vmatprep.subr.mxu0 %v1997
    %2388 = vmatpush1.msra.mxu0 %v1996
    %2389 = vmatprep.subr.mxu0 %v2005
    %2390 = vmatpush1.msra.mxu0 %v2004
    %2391 = vmatprep.subr.mxu0 %v2013
    %2392 = vmatpush1.msra.mxu0 %v2012
    %2393 = vmatprep.subr.mxu0 %v2021
    %2394 = vmatpush1.msra.mxu0 %v2020
    %2395 = vmatprep.subr.mxu0 %v2029
    %2396 = vmatpush1.msra.mxu0 %v2028
    %2397 = vmatprep.subr.mxu0 %v2037
    %2398 = vmatpush1.msra.mxu0 %v2036
    %2399 = vmatprep.subr.mxu0 %v2045
    %2400 = vmatpush1.msra.mxu0 %v2044
    %2401 = vmatprep.subr.mxu0 %v2053
    %2402 = vmatpush1.msra.mxu0 %v2052
    %2403 = vmatprep.subr.mxu0 %v2061
    %2404 = vmatpush1.msra.mxu0 %v2060
    %2405 = vmatprep.subr.mxu0 %v2069
    %2406 = vmatpush1.msra.mxu0 %v2068
    %2407 = vmatprep.subr.mxu0 %v2077
    %2408 = vmatpush1.msra.mxu0 %v2076
    %2409 = vmatprep.subr.mxu0 %v2085
    %2410 = vmatpush1.msra.mxu0 %v2084
    %2411 = vmatprep.subr.mxu0 %v2093
    %2412 = vmatpush1.msra.mxu0 %v2092
    %2413 = vmatprep.subr.mxu0 %v2101
    %2414 = vmatpush1.msra.mxu0 %v2100
    %2415 = vmatprep.subr.mxu0 %v2109
    %2416 = vmatpush1.msra.mxu0 %v2108
    %2417 = vmatprep.subr.mxu0 %v2117
    %2418 = vmatpush1.msra.mxu0 %v2116
    %2419 = vmatprep.subr.mxu0 %v2125
    %2420 = vmatpush1.msra.mxu0 %v2124
    %2421 = vmatprep.subr.mxu0 %v2133
    %2422 = vmatpush1.msra.mxu0 %v2132
    %2423 = vmatprep.subr.mxu0 %v2141
    %2424 = vmatpush1.msra.mxu0 %v2140
    %2425 = vmatprep.subr.mxu0 %v2149
    %2426 = vmatpush1.msra.mxu0 %v2148
    %2427 = vmatprep.mubr.f32.mxu0 %v1882
    %2428 = vmatmul.mubr.f32.gmra.mrb[0].mxu0 %v1881
    %v2429 = vpop.f32.mrb[0].mxu0
    %v2430 = vadd.f32 0.0, %v2429
    %v2431 = vpop.f32.mrb[0].mxu0
    %v2432 = vadd.f32 0.0, %v2431
    %2433 = vdwg.mxu0
    %v2434 = vadd.f32 %v1886, %v2217
    %v2435 = vadd.f32 %v1887, %v2219
    %v2436 = vadd.f32 %v1888, %v2288
    %v2437 = vadd.f32 %v1889, %v2290
    %v2438 = vadd.f32 %v1890, %v2359
    %v2439 = vadd.f32 %v1891, %v2361
    %v2440 = vadd.f32 %v1892, %v2430
    %v2441 = vadd.f32 %v1893, %v2432
    %v2442 = vxor.u32 %v2434, 2147483648
    %v2443 = vxor.u32 %v2435, 2147483648
    %v2444 = vmul.f32 %v2442, 1.442695
    %v2445 = vpow.pop %v2444
    %v2446 = vmul.f32 %v2443, 1.442695
    %v2447 = vpow.pop %v2446
    %v2448 = vadd.f32 %v2445, 1.0
    %v2449 = vadd.f32 %v2447, 1.0
    %v2450 = vrcp.pop %v2448
    %v2451 = vmul.f32 1.0, %v2450
    %v2452 = vrcp.pop %v2449
    %v2453 = vmul.f32 1.0, %v2452
    %v2454 = vxor.u32 %v2436, 2147483648
    %v2455 = vxor.u32 %v2437, 2147483648
    %v2456 = vmul.f32 %v2454, 1.442695
    %v2457 = vpow.pop %v2456
    %v2458 = vmul.f32 %v2455, 1.442695
    %v2459 = vpow.pop %v2458
    %v2460 = vadd.f32 %v2457, 1.0
    %v2461 = vadd.f32 %v2459, 1.0
    %v2462 = vrcp.pop %v2460
    %v2463 = vmul.f32 1.0, %v2462
    %v2464 = vrcp.pop %v2461
    %v2465 = vmul.f32 1.0, %v2464
    %v2466 = vtanh.pop %v2438
    %v2467 = vtanh.pop %v2439
    %v2468 = vxor.u32 %v2440, 2147483648
    %v2469 = vxor.u32 %v2441, 2147483648
    %v2470 = vmul.f32 %v2468, 1.442695
    %v2471 = vpow.pop %v2470
    %v2472 = vmul.f32 %v2469, 1.442695
    %v2473 = vpow.pop %v2472
    %v2474 = vadd.f32 %v2471, 1.0
    %v2475 = vadd.f32 %v2473, 1.0
    %v2476 = vrcp.pop %v2474
    %v2477 = vmul.f32 1.0, %v2476
    %v2478 = vrcp.pop %v2475
    %v2479 = vmul.f32 1.0, %v2478
    %v2480 = vmul.f32 %v2463, %v1883
    %v2481 = vmul.f32 %v2465, %v1884
    %v2482 = vmul.f32 %v2451, %v2466
    %v2483 = vmul.f32 %v2453, %v2467
    %v2484 = vadd.f32 %v2480, %v2482
    %v2485 = vadd.f32 %v2481, %v2483
    %v2486 = vtanh.pop %v2484
    %v2487 = vtanh.pop %v2485
    %v2488 = vmul.f32 %v2477, %v2486
    %v2489 = vmul.f32 %v2479, %v2487
    %2490 = vst [vmem:[#allocation3] sm:$0xff] %v2488
    %2491 = vst [vmem:[#allocation3 + $0x8] sm:$0xff] %v2489
    %2492 = vst [vmem:[#allocation4] sm:$0xff] %v2484
    %2493 = vst [vmem:[#allocation4 + $0x8] sm:$0xff] %v2485
    %s2494 = scalar_lea.vmem [#allocation14], 16
    %2495 = vst [vmem:[%s2494] sm:$0xff] %v2488
    %2496 = vst [vmem:[%s2494 + $0x8] sm:$0xff] %v2489
    %v2497 = vld [vmem:[#allocation3] sm:$0xff]
    %v2498 = vld [vmem:[#allocation3 + $0x8] sm:$0xff]
    %v2499 = vld [vmem:[#allocation4] sm:$0xff]
    %v2500 = vld [vmem:[#allocation4 + $0x8] sm:$0xff]
    %s2501 = scalar_lea.vmem [#allocation2], 128
    %v2502 = vld [vmem:[%s2501] sm:$0xff]
    %v2503 = vld [vmem:[%s2501 + $0x8] sm:$0xff]
    %v2504 = vld [vmem:[%s2501 + $0x10] sm:$0xff]
    %v2505 = vld [vmem:[%s2501 + $0x18] sm:$0xff]
    %v2506 = vld [vmem:[%s2501 + $0x20] sm:$0xff]
    %v2507 = vld [vmem:[%s2501 + $0x28] sm:$0xff]
    %v2508 = vld [vmem:[%s2501 + $0x30] sm:$0xff]
    %v2509 = vld [vmem:[%s2501 + $0x38] sm:$0xff]
    %v2510 = vld [vmem:[#allocation13] sm:$0xff]
    %v2511 = vld [vmem:[#allocation13 + $0x8] sm:$0xff]
    %v2512 = vld [vmem:[#allocation13 + $0x10] sm:$0xff]
    %v2513 = vld [vmem:[#allocation13 + $0x18] sm:$0xff]
    %v2514 = vld [vmem:[#allocation13 + $0x20] sm:$0xff]
    %v2515 = vld [vmem:[#allocation13 + $0x28] sm:$0xff]
    %v2516 = vld [vmem:[#allocation13 + $0x30] sm:$0xff]
    %v2517 = vld [vmem:[#allocation13 + $0x38] sm:$0xff]
    %v2518 = vld [vmem:[#allocation13 + $0x40] sm:$0xff]
    %v2519 = vld [vmem:[#allocation13 + $0x48] sm:$0xff]
    %v2520 = vld [vmem:[#allocation13 + $0x50] sm:$0xff]
    %v2521 = vld [vmem:[#allocation13 + $0x58] sm:$0xff]
    %v2522 = vld [vmem:[#allocation13 + $0x60] sm:$0xff]
    %v2523 = vld [vmem:[#allocation13 + $0x68] sm:$0xff]
    %v2524 = vld [vmem:[#allocation13 + $0x70] sm:$0xff]
    %v2525 = vld [vmem:[#allocation13 + $0x78] sm:$0xff]
    %v2526 = vld [vmem:[#allocation13 + $0x80] sm:$0xff]
    %v2527 = vld [vmem:[#allocation13 + $0x88] sm:$0xff]
    %v2528 = vld [vmem:[#allocation13 + $0x90] sm:$0xff]
    %v2529 = vld [vmem:[#allocation13 + $0x98] sm:$0xff]
    %v2530 = vld [vmem:[#allocation13 + $0xa0] sm:$0xff]
    %v2531 = vld [vmem:[#allocation13 + $0xa8] sm:$0xff]
    %v2532 = vld [vmem:[#allocation13 + $0xb0] sm:$0xff]
    %v2533 = vld [vmem:[#allocation13 + $0xb8] sm:$0xff]
    %v2534 = vld [vmem:[#allocation13 + $0xc0] sm:$0xff]
    %v2535 = vld [vmem:[#allocation13 + $0xc8] sm:$0xff]
    %v2536 = vld [vmem:[#allocation13 + $0xd0] sm:$0xff]
    %v2537 = vld [vmem:[#allocation13 + $0xd8] sm:$0xff]
    %v2538 = vld [vmem:[#allocation13 + $0xe0] sm:$0xff]
    %v2539 = vld [vmem:[#allocation13 + $0xe8] sm:$0xff]
    %v2540 = vld [vmem:[#allocation13 + $0xf0] sm:$0xff]
    %v2541 = vld [vmem:[#allocation13 + $0xf8] sm:$0xff]
    %v2542 = vld [vmem:[#allocation13 + $0x100] sm:$0xff]
    %v2543 = vld [vmem:[#allocation13 + $0x108] sm:$0xff]
    %v2544 = vld [vmem:[#allocation13 + $0x110] sm:$0xff]
    %v2545 = vld [vmem:[#allocation13 + $0x118] sm:$0xff]
    %v2546 = vld [vmem:[#allocation13 + $0x120] sm:$0xff]
    %v2547 = vld [vmem:[#allocation13 + $0x128] sm:$0xff]
    %v2548 = vld [vmem:[#allocation13 + $0x130] sm:$0xff]
    %v2549 = vld [vmem:[#allocation13 + $0x138] sm:$0xff]
    %v2550 = vld [vmem:[#allocation13 + $0x140] sm:$0xff]
    %v2551 = vld [vmem:[#allocation13 + $0x148] sm:$0xff]
    %v2552 = vld [vmem:[#allocation13 + $0x150] sm:$0xff]
    %v2553 = vld [vmem:[#allocation13 + $0x158] sm:$0xff]
    %v2554 = vld [vmem:[#allocation13 + $0x160] sm:$0xff]
    %v2555 = vld [vmem:[#allocation13 + $0x168] sm:$0xff]
    %v2556 = vld [vmem:[#allocation13 + $0x170] sm:$0xff]
    %v2557 = vld [vmem:[#allocation13 + $0x178] sm:$0xff]
    %v2558 = vld [vmem:[#allocation13 + $0x180] sm:$0xff]
    %v2559 = vld [vmem:[#allocation13 + $0x188] sm:$0xff]
    %v2560 = vld [vmem:[#allocation13 + $0x190] sm:$0xff]
    %v2561 = vld [vmem:[#allocation13 + $0x198] sm:$0xff]
    %v2562 = vld [vmem:[#allocation13 + $0x1a0] sm:$0xff]
    %v2563 = vld [vmem:[#allocation13 + $0x1a8] sm:$0xff]
    %v2564 = vld [vmem:[#allocation13 + $0x1b0] sm:$0xff]
    %v2565 = vld [vmem:[#allocation13 + $0x1b8] sm:$0xff]
    %v2566 = vld [vmem:[#allocation13 + $0x1c0] sm:$0xff]
    %v2567 = vld [vmem:[#allocation13 + $0x1c8] sm:$0xff]
    %v2568 = vld [vmem:[#allocation13 + $0x1d0] sm:$0xff]
    %v2569 = vld [vmem:[#allocation13 + $0x1d8] sm:$0xff]
    %v2570 = vld [vmem:[#allocation13 + $0x1e0] sm:$0xff]
    %v2571 = vld [vmem:[#allocation13 + $0x1e8] sm:$0xff]
    %v2572 = vld [vmem:[#allocation13 + $0x1f0] sm:$0xff]
    %v2573 = vld [vmem:[#allocation13 + $0x1f8] sm:$0xff]
    %v2574 = vld [vmem:[#allocation13 + $0x200] sm:$0xff]
    %v2575 = vld [vmem:[#allocation13 + $0x208] sm:$0xff]
    %v2576 = vld [vmem:[#allocation13 + $0x210] sm:$0xff]
    %v2577 = vld [vmem:[#allocation13 + $0x218] sm:$0xff]
    %v2578 = vld [vmem:[#allocation13 + $0x220] sm:$0xff]
    %v2579 = vld [vmem:[#allocation13 + $0x228] sm:$0xff]
    %v2580 = vld [vmem:[#allocation13 + $0x230] sm:$0xff]
    %v2581 = vld [vmem:[#allocation13 + $0x238] sm:$0xff]
    %v2582 = vld [vmem:[#allocation13 + $0x240] sm:$0xff]
    %v2583 = vld [vmem:[#allocation13 + $0x248] sm:$0xff]
    %v2584 = vld [vmem:[#allocation13 + $0x250] sm:$0xff]
    %v2585 = vld [vmem:[#allocation13 + $0x258] sm:$0xff]
    %v2586 = vld [vmem:[#allocation13 + $0x260] sm:$0xff]
    %v2587 = vld [vmem:[#allocation13 + $0x268] sm:$0xff]
    %v2588 = vld [vmem:[#allocation13 + $0x270] sm:$0xff]
    %v2589 = vld [vmem:[#allocation13 + $0x278] sm:$0xff]
    %v2590 = vld [vmem:[#allocation13 + $0x280] sm:$0xff]
    %v2591 = vld [vmem:[#allocation13 + $0x288] sm:$0xff]
    %v2592 = vld [vmem:[#allocation13 + $0x290] sm:$0xff]
    %v2593 = vld [vmem:[#allocation13 + $0x298] sm:$0xff]
    %v2594 = vld [vmem:[#allocation13 + $0x2a0] sm:$0xff]
    %v2595 = vld [vmem:[#allocation13 + $0x2a8] sm:$0xff]
    %v2596 = vld [vmem:[#allocation13 + $0x2b0] sm:$0xff]
    %v2597 = vld [vmem:[#allocation13 + $0x2b8] sm:$0xff]
    %v2598 = vld [vmem:[#allocation13 + $0x2c0] sm:$0xff]
    %v2599 = vld [vmem:[#allocation13 + $0x2c8] sm:$0xff]
    %v2600 = vld [vmem:[#allocation13 + $0x2d0] sm:$0xff]
    %v2601 = vld [vmem:[#allocation13 + $0x2d8] sm:$0xff]
    %v2602 = vld [vmem:[#allocation13 + $0x2e0] sm:$0xff]
    %v2603 = vld [vmem:[#allocation13 + $0x2e8] sm:$0xff]
    %v2604 = vld [vmem:[#allocation13 + $0x2f0] sm:$0xff]
    %v2605 = vld [vmem:[#allocation13 + $0x2f8] sm:$0xff]
    %v2606 = vld [vmem:[#allocation13 + $0x300] sm:$0xff]
    %v2607 = vld [vmem:[#allocation13 + $0x308] sm:$0xff]
    %v2608 = vld [vmem:[#allocation13 + $0x310] sm:$0xff]
    %v2609 = vld [vmem:[#allocation13 + $0x318] sm:$0xff]
    %v2610 = vld [vmem:[#allocation13 + $0x320] sm:$0xff]
    %v2611 = vld [vmem:[#allocation13 + $0x328] sm:$0xff]
    %v2612 = vld [vmem:[#allocation13 + $0x330] sm:$0xff]
    %v2613 = vld [vmem:[#allocation13 + $0x338] sm:$0xff]
    %v2614 = vld [vmem:[#allocation13 + $0x340] sm:$0xff]
    %v2615 = vld [vmem:[#allocation13 + $0x348] sm:$0xff]
    %v2616 = vld [vmem:[#allocation13 + $0x350] sm:$0xff]
    %v2617 = vld [vmem:[#allocation13 + $0x358] sm:$0xff]
    %v2618 = vld [vmem:[#allocation13 + $0x360] sm:$0xff]
    %v2619 = vld [vmem:[#allocation13 + $0x368] sm:$0xff]
    %v2620 = vld [vmem:[#allocation13 + $0x370] sm:$0xff]
    %v2621 = vld [vmem:[#allocation13 + $0x378] sm:$0xff]
    %v2622 = vld [vmem:[#allocation13 + $0x380] sm:$0xff]
    %v2623 = vld [vmem:[#allocation13 + $0x388] sm:$0xff]
    %v2624 = vld [vmem:[#allocation13 + $0x390] sm:$0xff]
    %v2625 = vld [vmem:[#allocation13 + $0x398] sm:$0xff]
    %v2626 = vld [vmem:[#allocation13 + $0x3a0] sm:$0xff]
    %v2627 = vld [vmem:[#allocation13 + $0x3a8] sm:$0xff]
    %v2628 = vld [vmem:[#allocation13 + $0x3b0] sm:$0xff]
    %v2629 = vld [vmem:[#allocation13 + $0x3b8] sm:$0xff]
    %v2630 = vld [vmem:[#allocation13 + $0x3c0] sm:$0xff]
    %v2631 = vld [vmem:[#allocation13 + $0x3c8] sm:$0xff]
    %v2632 = vld [vmem:[#allocation13 + $0x3d0] sm:$0xff]
    %v2633 = vld [vmem:[#allocation13 + $0x3d8] sm:$0xff]
    %v2634 = vld [vmem:[#allocation13 + $0x3e0] sm:$0xff]
    %v2635 = vld [vmem:[#allocation13 + $0x3e8] sm:$0xff]
    %v2636 = vld [vmem:[#allocation13 + $0x3f0] sm:$0xff]
    %v2637 = vld [vmem:[#allocation13 + $0x3f8] sm:$0xff]
    %v2638 = vld [vmem:[#allocation13 + $0x400] sm:$0xff]
    %v2639 = vld [vmem:[#allocation13 + $0x408] sm:$0xff]
    %v2640 = vld [vmem:[#allocation13 + $0x410] sm:$0xff]
    %v2641 = vld [vmem:[#allocation13 + $0x418] sm:$0xff]
    %v2642 = vld [vmem:[#allocation13 + $0x420] sm:$0xff]
    %v2643 = vld [vmem:[#allocation13 + $0x428] sm:$0xff]
    %v2644 = vld [vmem:[#allocation13 + $0x430] sm:$0xff]
    %v2645 = vld [vmem:[#allocation13 + $0x438] sm:$0xff]
    %v2646 = vld [vmem:[#allocation13 + $0x440] sm:$0xff]
    %v2647 = vld [vmem:[#allocation13 + $0x448] sm:$0xff]
    %v2648 = vld [vmem:[#allocation13 + $0x450] sm:$0xff]
    %v2649 = vld [vmem:[#allocation13 + $0x458] sm:$0xff]
    %v2650 = vld [vmem:[#allocation13 + $0x460] sm:$0xff]
    %v2651 = vld [vmem:[#allocation13 + $0x468] sm:$0xff]
    %v2652 = vld [vmem:[#allocation13 + $0x470] sm:$0xff]
    %v2653 = vld [vmem:[#allocation13 + $0x478] sm:$0xff]
    %v2654 = vld [vmem:[#allocation13 + $0x480] sm:$0xff]
    %v2655 = vld [vmem:[#allocation13 + $0x488] sm:$0xff]
    %v2656 = vld [vmem:[#allocation13 + $0x490] sm:$0xff]
    %v2657 = vld [vmem:[#allocation13 + $0x498] sm:$0xff]
    %v2658 = vld [vmem:[#allocation13 + $0x4a0] sm:$0xff]
    %v2659 = vld [vmem:[#allocation13 + $0x4a8] sm:$0xff]
    %v2660 = vld [vmem:[#allocation13 + $0x4b0] sm:$0xff]
    %v2661 = vld [vmem:[#allocation13 + $0x4b8] sm:$0xff]
    %v2662 = vld [vmem:[#allocation13 + $0x4c0] sm:$0xff]
    %v2663 = vld [vmem:[#allocation13 + $0x4c8] sm:$0xff]
    %v2664 = vld [vmem:[#allocation13 + $0x4d0] sm:$0xff]
    %v2665 = vld [vmem:[#allocation13 + $0x4d8] sm:$0xff]
    %v2666 = vld [vmem:[#allocation13 + $0x4e0] sm:$0xff]
    %v2667 = vld [vmem:[#allocation13 + $0x4e8] sm:$0xff]
    %v2668 = vld [vmem:[#allocation13 + $0x4f0] sm:$0xff]
    %v2669 = vld [vmem:[#allocation13 + $0x4f8] sm:$0xff]
    %v2670 = vld [vmem:[#allocation13 + $0x500] sm:$0xff]
    %v2671 = vld [vmem:[#allocation13 + $0x508] sm:$0xff]
    %v2672 = vld [vmem:[#allocation13 + $0x510] sm:$0xff]
    %v2673 = vld [vmem:[#allocation13 + $0x518] sm:$0xff]
    %v2674 = vld [vmem:[#allocation13 + $0x520] sm:$0xff]
    %v2675 = vld [vmem:[#allocation13 + $0x528] sm:$0xff]
    %v2676 = vld [vmem:[#allocation13 + $0x530] sm:$0xff]
    %v2677 = vld [vmem:[#allocation13 + $0x538] sm:$0xff]
    %v2678 = vld [vmem:[#allocation13 + $0x540] sm:$0xff]
    %v2679 = vld [vmem:[#allocation13 + $0x548] sm:$0xff]
    %v2680 = vld [vmem:[#allocation13 + $0x550] sm:$0xff]
    %v2681 = vld [vmem:[#allocation13 + $0x558] sm:$0xff]
    %v2682 = vld [vmem:[#allocation13 + $0x560] sm:$0xff]
    %v2683 = vld [vmem:[#allocation13 + $0x568] sm:$0xff]
    %v2684 = vld [vmem:[#allocation13 + $0x570] sm:$0xff]
    %v2685 = vld [vmem:[#allocation13 + $0x578] sm:$0xff]
    %v2686 = vld [vmem:[#allocation13 + $0x580] sm:$0xff]
    %v2687 = vld [vmem:[#allocation13 + $0x588] sm:$0xff]
    %v2688 = vld [vmem:[#allocation13 + $0x590] sm:$0xff]
    %v2689 = vld [vmem:[#allocation13 + $0x598] sm:$0xff]
    %v2690 = vld [vmem:[#allocation13 + $0x5a0] sm:$0xff]
    %v2691 = vld [vmem:[#allocation13 + $0x5a8] sm:$0xff]
    %v2692 = vld [vmem:[#allocation13 + $0x5b0] sm:$0xff]
    %v2693 = vld [vmem:[#allocation13 + $0x5b8] sm:$0xff]
    %v2694 = vld [vmem:[#allocation13 + $0x5c0] sm:$0xff]
    %v2695 = vld [vmem:[#allocation13 + $0x5c8] sm:$0xff]
    %v2696 = vld [vmem:[#allocation13 + $0x5d0] sm:$0xff]
    %v2697 = vld [vmem:[#allocation13 + $0x5d8] sm:$0xff]
    %v2698 = vld [vmem:[#allocation13 + $0x5e0] sm:$0xff]
    %v2699 = vld [vmem:[#allocation13 + $0x5e8] sm:$0xff]
    %v2700 = vld [vmem:[#allocation13 + $0x5f0] sm:$0xff]
    %v2701 = vld [vmem:[#allocation13 + $0x5f8] sm:$0xff]
    %v2702 = vld [vmem:[#allocation13 + $0x600] sm:$0xff]
    %v2703 = vld [vmem:[#allocation13 + $0x608] sm:$0xff]
    %v2704 = vld [vmem:[#allocation13 + $0x610] sm:$0xff]
    %v2705 = vld [vmem:[#allocation13 + $0x618] sm:$0xff]
    %v2706 = vld [vmem:[#allocation13 + $0x620] sm:$0xff]
    %v2707 = vld [vmem:[#allocation13 + $0x628] sm:$0xff]
    %v2708 = vld [vmem:[#allocation13 + $0x630] sm:$0xff]
    %v2709 = vld [vmem:[#allocation13 + $0x638] sm:$0xff]
    %v2710 = vld [vmem:[#allocation13 + $0x640] sm:$0xff]
    %v2711 = vld [vmem:[#allocation13 + $0x648] sm:$0xff]
    %v2712 = vld [vmem:[#allocation13 + $0x650] sm:$0xff]
    %v2713 = vld [vmem:[#allocation13 + $0x658] sm:$0xff]
    %v2714 = vld [vmem:[#allocation13 + $0x660] sm:$0xff]
    %v2715 = vld [vmem:[#allocation13 + $0x668] sm:$0xff]
    %v2716 = vld [vmem:[#allocation13 + $0x670] sm:$0xff]
    %v2717 = vld [vmem:[#allocation13 + $0x678] sm:$0xff]
    %v2718 = vld [vmem:[#allocation13 + $0x680] sm:$0xff]
    %v2719 = vld [vmem:[#allocation13 + $0x688] sm:$0xff]
    %v2720 = vld [vmem:[#allocation13 + $0x690] sm:$0xff]
    %v2721 = vld [vmem:[#allocation13 + $0x698] sm:$0xff]
    %v2722 = vld [vmem:[#allocation13 + $0x6a0] sm:$0xff]
    %v2723 = vld [vmem:[#allocation13 + $0x6a8] sm:$0xff]
    %v2724 = vld [vmem:[#allocation13 + $0x6b0] sm:$0xff]
    %v2725 = vld [vmem:[#allocation13 + $0x6b8] sm:$0xff]
    %v2726 = vld [vmem:[#allocation13 + $0x6c0] sm:$0xff]
    %v2727 = vld [vmem:[#allocation13 + $0x6c8] sm:$0xff]
    %v2728 = vld [vmem:[#allocation13 + $0x6d0] sm:$0xff]
    %v2729 = vld [vmem:[#allocation13 + $0x6d8] sm:$0xff]
    %v2730 = vld [vmem:[#allocation13 + $0x6e0] sm:$0xff]
    %v2731 = vld [vmem:[#allocation13 + $0x6e8] sm:$0xff]
    %v2732 = vld [vmem:[#allocation13 + $0x6f0] sm:$0xff]
    %v2733 = vld [vmem:[#allocation13 + $0x6f8] sm:$0xff]
    %v2734 = vld [vmem:[#allocation13 + $0x700] sm:$0xff]
    %v2735 = vld [vmem:[#allocation13 + $0x708] sm:$0xff]
    %v2736 = vld [vmem:[#allocation13 + $0x710] sm:$0xff]
    %v2737 = vld [vmem:[#allocation13 + $0x718] sm:$0xff]
    %v2738 = vld [vmem:[#allocation13 + $0x720] sm:$0xff]
    %v2739 = vld [vmem:[#allocation13 + $0x728] sm:$0xff]
    %v2740 = vld [vmem:[#allocation13 + $0x730] sm:$0xff]
    %v2741 = vld [vmem:[#allocation13 + $0x738] sm:$0xff]
    %v2742 = vld [vmem:[#allocation13 + $0x740] sm:$0xff]
    %v2743 = vld [vmem:[#allocation13 + $0x748] sm:$0xff]
    %v2744 = vld [vmem:[#allocation13 + $0x750] sm:$0xff]
    %v2745 = vld [vmem:[#allocation13 + $0x758] sm:$0xff]
    %v2746 = vld [vmem:[#allocation13 + $0x760] sm:$0xff]
    %v2747 = vld [vmem:[#allocation13 + $0x768] sm:$0xff]
    %v2748 = vld [vmem:[#allocation13 + $0x770] sm:$0xff]
    %v2749 = vld [vmem:[#allocation13 + $0x778] sm:$0xff]
    %v2750 = vld [vmem:[#allocation13 + $0x780] sm:$0xff]
    %v2751 = vld [vmem:[#allocation13 + $0x788] sm:$0xff]
    %v2752 = vld [vmem:[#allocation13 + $0x790] sm:$0xff]
    %v2753 = vld [vmem:[#allocation13 + $0x798] sm:$0xff]
    %v2754 = vld [vmem:[#allocation13 + $0x7a0] sm:$0xff]
    %v2755 = vld [vmem:[#allocation13 + $0x7a8] sm:$0xff]
    %v2756 = vld [vmem:[#allocation13 + $0x7b0] sm:$0xff]
    %v2757 = vld [vmem:[#allocation13 + $0x7b8] sm:$0xff]
    %v2758 = vld [vmem:[#allocation13 + $0x7c0] sm:$0xff]
    %v2759 = vld [vmem:[#allocation13 + $0x7c8] sm:$0xff]
    %v2760 = vld [vmem:[#allocation13 + $0x7d0] sm:$0xff]
    %v2761 = vld [vmem:[#allocation13 + $0x7d8] sm:$0xff]
    %v2762 = vld [vmem:[#allocation13 + $0x7e0] sm:$0xff]
    %v2763 = vld [vmem:[#allocation13 + $0x7e8] sm:$0xff]
    %v2764 = vld [vmem:[#allocation13 + $0x7f0] sm:$0xff]
    %v2765 = vld [vmem:[#allocation13 + $0x7f8] sm:$0xff]
    %2766 = vmatprep.subr.mxu0 %v2511
    %2767 = vmatpush1.msra.mxu0 %v2510
    %2768 = vmatprep.subr.mxu0 %v2519
    %2769 = vmatpush1.msra.mxu0 %v2518
    %2770 = vmatprep.subr.mxu0 %v2527
    %2771 = vmatpush1.msra.mxu0 %v2526
    %2772 = vmatprep.subr.mxu0 %v2535
    %2773 = vmatpush1.msra.mxu0 %v2534
    %2774 = vmatprep.subr.mxu0 %v2543
    %2775 = vmatpush1.msra.mxu0 %v2542
    %2776 = vmatprep.subr.mxu0 %v2551
    %2777 = vmatpush1.msra.mxu0 %v2550
    %2778 = vmatprep.subr.mxu0 %v2559
    %2779 = vmatpush1.msra.mxu0 %v2558
    %2780 = vmatprep.subr.mxu0 %v2567
    %2781 = vmatpush1.msra.mxu0 %v2566
    %2782 = vmatprep.subr.mxu0 %v2575
    %2783 = vmatpush1.msra.mxu0 %v2574
    %2784 = vmatprep.subr.mxu0 %v2583
    %2785 = vmatpush1.msra.mxu0 %v2582
    %2786 = vmatprep.subr.mxu0 %v2591
    %2787 = vmatpush1.msra.mxu0 %v2590
    %2788 = vmatprep.subr.mxu0 %v2599
    %2789 = vmatpush1.msra.mxu0 %v2598
    %2790 = vmatprep.subr.mxu0 %v2607
    %2791 = vmatpush1.msra.mxu0 %v2606
    %2792 = vmatprep.subr.mxu0 %v2615
    %2793 = vmatpush1.msra.mxu0 %v2614
    %2794 = vmatprep.subr.mxu0 %v2623
    %2795 = vmatpush1.msra.mxu0 %v2622
    %2796 = vmatprep.subr.mxu0 %v2631
    %2797 = vmatpush1.msra.mxu0 %v2630
    %2798 = vmatprep.subr.mxu0 %v2639
    %2799 = vmatpush1.msra.mxu0 %v2638
    %2800 = vmatprep.subr.mxu0 %v2647
    %2801 = vmatpush1.msra.mxu0 %v2646
    %2802 = vmatprep.subr.mxu0 %v2655
    %2803 = vmatpush1.msra.mxu0 %v2654
    %2804 = vmatprep.subr.mxu0 %v2663
    %2805 = vmatpush1.msra.mxu0 %v2662
    %2806 = vmatprep.subr.mxu0 %v2671
    %2807 = vmatpush1.msra.mxu0 %v2670
    %2808 = vmatprep.subr.mxu0 %v2679
    %2809 = vmatpush1.msra.mxu0 %v2678
    %2810 = vmatprep.subr.mxu0 %v2687
    %2811 = vmatpush1.msra.mxu0 %v2686
    %2812 = vmatprep.subr.mxu0 %v2695
    %2813 = vmatpush1.msra.mxu0 %v2694
    %2814 = vmatprep.subr.mxu0 %v2703
    %2815 = vmatpush1.msra.mxu0 %v2702
    %2816 = vmatprep.subr.mxu0 %v2711
    %2817 = vmatpush1.msra.mxu0 %v2710
    %2818 = vmatprep.subr.mxu0 %v2719
    %2819 = vmatpush1.msra.mxu0 %v2718
    %2820 = vmatprep.subr.mxu0 %v2727
    %2821 = vmatpush1.msra.mxu0 %v2726
    %2822 = vmatprep.subr.mxu0 %v2735
    %2823 = vmatpush1.msra.mxu0 %v2734
    %2824 = vmatprep.subr.mxu0 %v2743
    %2825 = vmatpush1.msra.mxu0 %v2742
    %2826 = vmatprep.subr.mxu0 %v2751
    %2827 = vmatpush1.msra.mxu0 %v2750
    %2828 = vmatprep.subr.mxu0 %v2759
    %2829 = vmatpush1.msra.mxu0 %v2758
    %2830 = vmatprep.mubr.f32.mxu0 %v2498
    %2831 = vmatmul.mubr.f32.gmra.mrb[0].mxu0 %v2497
    %v2832 = vpop.f32.mrb[0].mxu0
    %v2833 = vadd.f32 0.0, %v2832
    %v2834 = vpop.f32.mrb[0].mxu0
    %v2835 = vadd.f32 0.0, %v2834
    %2836 = vdwg.mxu0
    %2837 = vmatprep.subr.mxu0 %v2513
    %2838 = vmatpush1.msra.mxu0 %v2512
    %2839 = vmatprep.subr.mxu0 %v2521
    %2840 = vmatpush1.msra.mxu0 %v2520
    %2841 = vmatprep.subr.mxu0 %v2529
    %2842 = vmatpush1.msra.mxu0 %v2528
    %2843 = vmatprep.subr.mxu0 %v2537
    %2844 = vmatpush1.msra.mxu0 %v2536
    %2845 = vmatprep.subr.mxu0 %v2545
    %2846 = vmatpush1.msra.mxu0 %v2544
    %2847 = vmatprep.subr.mxu0 %v2553
    %2848 = vmatpush1.msra.mxu0 %v2552
    %2849 = vmatprep.subr.mxu0 %v2561
    %2850 = vmatpush1.msra.mxu0 %v2560
    %2851 = vmatprep.subr.mxu0 %v2569
    %2852 = vmatpush1.msra.mxu0 %v2568
    %2853 = vmatprep.subr.mxu0 %v2577
    %2854 = vmatpush1.msra.mxu0 %v2576
    %2855 = vmatprep.subr.mxu0 %v2585
    %2856 = vmatpush1.msra.mxu0 %v2584
    %2857 = vmatprep.subr.mxu0 %v2593
    %2858 = vmatpush1.msra.mxu0 %v2592
    %2859 = vmatprep.subr.mxu0 %v2601
    %2860 = vmatpush1.msra.mxu0 %v2600
    %2861 = vmatprep.subr.mxu0 %v2609
    %2862 = vmatpush1.msra.mxu0 %v2608
    %2863 = vmatprep.subr.mxu0 %v2617
    %2864 = vmatpush1.msra.mxu0 %v2616
    %2865 = vmatprep.subr.mxu0 %v2625
    %2866 = vmatpush1.msra.mxu0 %v2624
    %2867 = vmatprep.subr.mxu0 %v2633
    %2868 = vmatpush1.msra.mxu0 %v2632
    %2869 = vmatprep.subr.mxu0 %v2641
    %2870 = vmatpush1.msra.mxu0 %v2640
    %2871 = vmatprep.subr.mxu0 %v2649
    %2872 = vmatpush1.msra.mxu0 %v2648
    %2873 = vmatprep.subr.mxu0 %v2657
    %2874 = vmatpush1.msra.mxu0 %v2656
    %2875 = vmatprep.subr.mxu0 %v2665
    %2876 = vmatpush1.msra.mxu0 %v2664
    %2877 = vmatprep.subr.mxu0 %v2673
    %2878 = vmatpush1.msra.mxu0 %v2672
    %2879 = vmatprep.subr.mxu0 %v2681
    %2880 = vmatpush1.msra.mxu0 %v2680
    %2881 = vmatprep.subr.mxu0 %v2689
    %2882 = vmatpush1.msra.mxu0 %v2688
    %2883 = vmatprep.subr.mxu0 %v2697
    %2884 = vmatpush1.msra.mxu0 %v2696
    %2885 = vmatprep.subr.mxu0 %v2705
    %2886 = vmatpush1.msra.mxu0 %v2704
    %2887 = vmatprep.subr.mxu0 %v2713
    %2888 = vmatpush1.msra.mxu0 %v2712
    %2889 = vmatprep.subr.mxu0 %v2721
    %2890 = vmatpush1.msra.mxu0 %v2720
    %2891 = vmatprep.subr.mxu0 %v2729
    %2892 = vmatpush1.msra.mxu0 %v2728
    %2893 = vmatprep.subr.mxu0 %v2737
    %2894 = vmatpush1.msra.mxu0 %v2736
    %2895 = vmatprep.subr.mxu0 %v2745
    %2896 = vmatpush1.msra.mxu0 %v2744
    %2897 = vmatprep.subr.mxu0 %v2753
    %2898 = vmatpush1.msra.mxu0 %v2752
    %2899 = vmatprep.subr.mxu0 %v2761
    %2900 = vmatpush1.msra.mxu0 %v2760
    %2901 = vmatprep.mubr.f32.mxu0 %v2498
    %2902 = vmatmul.mubr.f32.gmra.mrb[0].mxu0 %v2497
    %v2903 = vpop.f32.mrb[0].mxu0
    %v2904 = vadd.f32 0.0, %v2903
    %v2905 = vpop.f32.mrb[0].mxu0
    %v2906 = vadd.f32 0.0, %v2905
    %2907 = vdwg.mxu0
    %2908 = vmatprep.subr.mxu0 %v2515
    %2909 = vmatpush1.msra.mxu0 %v2514
    %2910 = vmatprep.subr.mxu0 %v2523
    %2911 = vmatpush1.msra.mxu0 %v2522
    %2912 = vmatprep.subr.mxu0 %v2531
    %2913 = vmatpush1.msra.mxu0 %v2530
    %2914 = vmatprep.subr.mxu0 %v2539
    %2915 = vmatpush1.msra.mxu0 %v2538
    %2916 = vmatprep.subr.mxu0 %v2547
    %2917 = vmatpush1.msra.mxu0 %v2546
    %2918 = vmatprep.subr.mxu0 %v2555
    %2919 = vmatpush1.msra.mxu0 %v2554
    %2920 = vmatprep.subr.mxu0 %v2563
    %2921 = vmatpush1.msra.mxu0 %v2562
    %2922 = vmatprep.subr.mxu0 %v2571
    %2923 = vmatpush1.msra.mxu0 %v2570
    %2924 = vmatprep.subr.mxu0 %v2579
    %2925 = vmatpush1.msra.mxu0 %v2578
    %2926 = vmatprep.subr.mxu0 %v2587
    %2927 = vmatpush1.msra.mxu0 %v2586
    %2928 = vmatprep.subr.mxu0 %v2595
    %2929 = vmatpush1.msra.mxu0 %v2594
    %2930 = vmatprep.subr.mxu0 %v2603
    %2931 = vmatpush1.msra.mxu0 %v2602
    %2932 = vmatprep.subr.mxu0 %v2611
    %2933 = vmatpush1.msra.mxu0 %v2610
    %2934 = vmatprep.subr.mxu0 %v2619
    %2935 = vmatpush1.msra.mxu0 %v2618
    %2936 = vmatprep.subr.mxu0 %v2627
    %2937 = vmatpush1.msra.mxu0 %v2626
    %2938 = vmatprep.subr.mxu0 %v2635
    %2939 = vmatpush1.msra.mxu0 %v2634
    %2940 = vmatprep.subr.mxu0 %v2643
    %2941 = vmatpush1.msra.mxu0 %v2642
    %2942 = vmatprep.subr.mxu0 %v2651
    %2943 = vmatpush1.msra.mxu0 %v2650
    %2944 = vmatprep.subr.mxu0 %v2659
    %2945 = vmatpush1.msra.mxu0 %v2658
    %2946 = vmatprep.subr.mxu0 %v2667
    %2947 = vmatpush1.msra.mxu0 %v2666
    %2948 = vmatprep.subr.mxu0 %v2675
    %2949 = vmatpush1.msra.mxu0 %v2674
    %2950 = vmatprep.subr.mxu0 %v2683
    %2951 = vmatpush1.msra.mxu0 %v2682
    %2952 = vmatprep.subr.mxu0 %v2691
    %2953 = vmatpush1.msra.mxu0 %v2690
    %2954 = vmatprep.subr.mxu0 %v2699
    %2955 = vmatpush1.msra.mxu0 %v2698
    %2956 = vmatprep.subr.mxu0 %v2707
    %2957 = vmatpush1.msra.mxu0 %v2706
    %2958 = vmatprep.subr.mxu0 %v2715
    %2959 = vmatpush1.msra.mxu0 %v2714
    %2960 = vmatprep.subr.mxu0 %v2723
    %2961 = vmatpush1.msra.mxu0 %v2722
    %2962 = vmatprep.subr.mxu0 %v2731
    %2963 = vmatpush1.msra.mxu0 %v2730
    %2964 = vmatprep.subr.mxu0 %v2739
    %2965 = vmatpush1.msra.mxu0 %v2738
    %2966 = vmatprep.subr.mxu0 %v2747
    %2967 = vmatpush1.msra.mxu0 %v2746
    %2968 = vmatprep.subr.mxu0 %v2755
    %2969 = vmatpush1.msra.mxu0 %v2754
    %2970 = vmatprep.subr.mxu0 %v2763
    %2971 = vmatpush1.msra.mxu0 %v2762
    %2972 = vmatprep.mubr.f32.mxu0 %v2498
    %2973 = vmatmul.mubr.f32.gmra.mrb[0].mxu0 %v2497
    %v2974 = vpop.f32.mrb[0].mxu0
    %v2975 = vadd.f32 0.0, %v2974
    %v2976 = vpop.f32.mrb[0].mxu0
    %v2977 = vadd.f32 0.0, %v2976
    %2978 = vdwg.mxu0
    %2979 = vmatprep.subr.mxu0 %v2517
    %2980 = vmatpush1.msra.mxu0 %v2516
    %2981 = vmatprep.subr.mxu0 %v2525
    %2982 = vmatpush1.msra.mxu0 %v2524
    %2983 = vmatprep.subr.mxu0 %v2533
    %2984 = vmatpush1.msra.mxu0 %v2532
    %2985 = vmatprep.subr.mxu0 %v2541
    %2986 = vmatpush1.msra.mxu0 %v2540
    %2987 = vmatprep.subr.mxu0 %v2549
    %2988 = vmatpush1.msra.mxu0 %v2548
    %2989 = vmatprep.subr.mxu0 %v2557
    %2990 = vmatpush1.msra.mxu0 %v2556
    %2991 = vmatprep.subr.mxu0 %v2565
    %2992 = vmatpush1.msra.mxu0 %v2564
    %2993 = vmatprep.subr.mxu0 %v2573
    %2994 = vmatpush1.msra.mxu0 %v2572
    %2995 = vmatprep.subr.mxu0 %v2581
    %2996 = vmatpush1.msra.mxu0 %v2580
    %2997 = vmatprep.subr.mxu0 %v2589
    %2998 = vmatpush1.msra.mxu0 %v2588
    %2999 = vmatprep.subr.mxu0 %v2597
    %3000 = vmatpush1.msra.mxu0 %v2596
    %3001 = vmatprep.subr.mxu0 %v2605
    %3002 = vmatpush1.msra.mxu0 %v2604
    %3003 = vmatprep.subr.mxu0 %v2613
    %3004 = vmatpush1.msra.mxu0 %v2612
    %3005 = vmatprep.subr.mxu0 %v2621
    %3006 = vmatpush1.msra.mxu0 %v2620
    %3007 = vmatprep.subr.mxu0 %v2629
    %3008 = vmatpush1.msra.mxu0 %v2628
    %3009 = vmatprep.subr.mxu0 %v2637
    %3010 = vmatpush1.msra.mxu0 %v2636
    %3011 = vmatprep.subr.mxu0 %v2645
    %3012 = vmatpush1.msra.mxu0 %v2644
    %3013 = vmatprep.subr.mxu0 %v2653
    %3014 = vmatpush1.msra.mxu0 %v2652
    %3015 = vmatprep.subr.mxu0 %v2661
    %3016 = vmatpush1.msra.mxu0 %v2660
    %3017 = vmatprep.subr.mxu0 %v2669
    %3018 = vmatpush1.msra.mxu0 %v2668
    %3019 = vmatprep.subr.mxu0 %v2677
    %3020 = vmatpush1.msra.mxu0 %v2676
    %3021 = vmatprep.subr.mxu0 %v2685
    %3022 = vmatpush1.msra.mxu0 %v2684
    %3023 = vmatprep.subr.mxu0 %v2693
    %3024 = vmatpush1.msra.mxu0 %v2692
    %3025 = vmatprep.subr.mxu0 %v2701
    %3026 = vmatpush1.msra.mxu0 %v2700
    %3027 = vmatprep.subr.mxu0 %v2709
    %3028 = vmatpush1.msra.mxu0 %v2708
    %3029 = vmatprep.subr.mxu0 %v2717
    %3030 = vmatpush1.msra.mxu0 %v2716
    %3031 = vmatprep.subr.mxu0 %v2725
    %3032 = vmatpush1.msra.mxu0 %v2724
    %3033 = vmatprep.subr.mxu0 %v2733
    %3034 = vmatpush1.msra.mxu0 %v2732
    %3035 = vmatprep.subr.mxu0 %v2741
    %3036 = vmatpush1.msra.mxu0 %v2740
    %3037 = vmatprep.subr.mxu0 %v2749
    %3038 = vmatpush1.msra.mxu0 %v2748
    %3039 = vmatprep.subr.mxu0 %v2757
    %3040 = vmatpush1.msra.mxu0 %v2756
    %3041 = vmatprep.subr.mxu0 %v2765
    %3042 = vmatpush1.msra.mxu0 %v2764
    %3043 = vmatprep.mubr.f32.mxu0 %v2498
    %3044 = vmatmul.mubr.f32.gmra.mrb[0].mxu0 %v2497
    %v3045 = vpop.f32.mrb[0].mxu0
    %v3046 = vadd.f32 0.0, %v3045
    %v3047 = vpop.f32.mrb[0].mxu0
    %v3048 = vadd.f32 0.0, %v3047
    %3049 = vdwg.mxu0
    %v3050 = vadd.f32 %v2502, %v2833
    %v3051 = vadd.f32 %v2503, %v2835
    %v3052 = vadd.f32 %v2504, %v2904
    %v3053 = vadd.f32 %v2505, %v2906
    %v3054 = vadd.f32 %v2506, %v2975
    %v3055 = vadd.f32 %v2507, %v2977
    %v3056 = vadd.f32 %v2508, %v3046
    %v3057 = vadd.f32 %v2509, %v3048
    %v3058 = vxor.u32 %v3050, 2147483648
    %v3059 = vxor.u32 %v3051, 2147483648
    %v3060 = vmul.f32 %v3058, 1.442695
    %v3061 = vpow.pop %v3060
    %v3062 = vmul.f32 %v3059, 1.442695
    %v3063 = vpow.pop %v3062
    %v3064 = vadd.f32 %v3061, 1.0
    %v3065 = vadd.f32 %v3063, 1.0
    %v3066 = vrcp.pop %v3064
    %v3067 = vmul.f32 1.0, %v3066
    %v3068 = vrcp.pop %v3065
    %v3069 = vmul.f32 1.0, %v3068
    %v3070 = vxor.u32 %v3052, 2147483648
    %v3071 = vxor.u32 %v3053, 2147483648
    %v3072 = vmul.f32 %v3070, 1.442695
    %v3073 = vpow.pop %v3072
    %v3074 = vmul.f32 %v3071, 1.442695
    %v3075 = vpow.pop %v3074
    %v3076 = vadd.f32 %v3073, 1.0
    %v3077 = vadd.f32 %v3075, 1.0
    %v3078 = vrcp.pop %v3076
    %v3079 = vmul.f32 1.0, %v3078
    %v3080 = vrcp.pop %v3077
    %v3081 = vmul.f32 1.0, %v3080
    %v3082 = vtanh.pop %v3054
    %v3083 = vtanh.pop %v3055
    %v3084 = vxor.u32 %v3056, 2147483648
    %v3085 = vxor.u32 %v3057, 2147483648
    %v3086 = vmul.f32 %v3084, 1.442695
    %v3087 = vpow.pop %v3086
    %v3088 = vmul.f32 %v3085, 1.442695
    %v3089 = vpow.pop %v3088
    %v3090 = vadd.f32 %v3087, 1.0
    %v3091 = vadd.f32 %v3089, 1.0
    %v3092 = vrcp.pop %v3090
    %v3093 = vmul.f32 1.0, %v3092
    %v3094 = vrcp.pop %v3091
    %v3095 = vmul.f32 1.0, %v3094
    %v3096 = vmul.f32 %v3079, %v2499
    %v3097 = vmul.f32 %v3081, %v2500
    %v3098 = vmul.f32 %v3067, %v3082
    %v3099 = vmul.f32 %v3069, %v3083
    %v3100 = vadd.f32 %v3096, %v3098
    %v3101 = vadd.f32 %v3097, %v3099
    %v3102 = vtanh.pop %v3100
    %v3103 = vtanh.pop %v3101
    %v3104 = vmul.f32 %v3093, %v3102
    %v3105 = vmul.f32 %v3095, %v3103
    %3106 = vst [vmem:[#allocation3] sm:$0xff] %v3104
    %3107 = vst [vmem:[#allocation3 + $0x8] sm:$0xff] %v3105
    %3108 = vst [vmem:[#allocation4] sm:$0xff] %v3100
    %3109 = vst [vmem:[#allocation4 + $0x8] sm:$0xff] %v3101
    %s3110 = scalar_lea.vmem [#allocation14], 32
    %3111 = vst [vmem:[%s3110] sm:$0xff] %v3104
    %3112 = vst [vmem:[%s3110 + $0x8] sm:$0xff] %v3105
    %v3113 = vld [vmem:[#allocation3] sm:$0xff]
    %v3114 = vld [vmem:[#allocation3 + $0x8] sm:$0xff]
    %v3115 = vld [vmem:[#allocation4] sm:$0xff]
    %v3116 = vld [vmem:[#allocation4 + $0x8] sm:$0xff]
    %s3117 = scalar_lea.vmem [#allocation2], 192
    %v3118 = vld [vmem:[%s3117] sm:$0xff]
    %v3119 = vld [vmem:[%s3117 + $0x8] sm:$0xff]
    %v3120 = vld [vmem:[%s3117 + $0x10] sm:$0xff]
    %v3121 = vld [vmem:[%s3117 + $0x18] sm:$0xff]
    %v3122 = vld [vmem:[%s3117 + $0x20] sm:$0xff]
    %v3123 = vld [vmem:[%s3117 + $0x28] sm:$0xff]
    %v3124 = vld [vmem:[%s3117 + $0x30] sm:$0xff]
    %v3125 = vld [vmem:[%s3117 + $0x38] sm:$0xff]
    %v3126 = vld [vmem:[#allocation13] sm:$0xff]
    %v3127 = vld [vmem:[#allocation13 + $0x8] sm:$0xff]
    %v3128 = vld [vmem:[#allocation13 + $0x10] sm:$0xff]
    %v3129 = vld [vmem:[#allocation13 + $0x18] sm:$0xff]
    %v3130 = vld [vmem:[#allocation13 + $0x20] sm:$0xff]
    %v3131 = vld [vmem:[#allocation13 + $0x28] sm:$0xff]
    %v3132 = vld [vmem:[#allocation13 + $0x30] sm:$0xff]
    %v3133 = vld [vmem:[#allocation13 + $0x38] sm:$0xff]
    %v3134 = vld [vmem:[#allocation13 + $0x40] sm:$0xff]
    %v3135 = vld [vmem:[#allocation13 + $0x48] sm:$0xff]
    %v3136 = vld [vmem:[#allocation13 + $0x50] sm:$0xff]
    %v3137 = vld [vmem:[#allocation13 + $0x58] sm:$0xff]
    %v3138 = vld [vmem:[#allocation13 + $0x60] sm:$0xff]
    %v3139 = vld [vmem:[#allocation13 + $0x68] sm:$0xff]
    %v3140 = vld [vmem:[#allocation13 + $0x70] sm:$0xff]
    %v3141 = vld [vmem:[#allocation13 + $0x78] sm:$0xff]
    %v3142 = vld [vmem:[#allocation13 + $0x80] sm:$0xff]
    %v3143 = vld [vmem:[#allocation13 + $0x88] sm:$0xff]
    %v3144 = vld [vmem:[#allocation13 + $0x90] sm:$0xff]
    %v3145 = vld [vmem:[#allocation13 + $0x98] sm:$0xff]
    %v3146 = vld [vmem:[#allocation13 + $0xa0] sm:$0xff]
    %v3147 = vld [vmem:[#allocation13 + $0xa8] sm:$0xff]
    %v3148 = vld [vmem:[#allocation13 + $0xb0] sm:$0xff]
    %v3149 = vld [vmem:[#allocation13 + $0xb8] sm:$0xff]
    %v3150 = vld [vmem:[#allocation13 + $0xc0] sm:$0xff]
    %v3151 = vld [vmem:[#allocation13 + $0xc8] sm:$0xff]
    %v3152 = vld [vmem:[#allocation13 + $0xd0] sm:$0xff]
    %v3153 = vld [vmem:[#allocation13 + $0xd8] sm:$0xff]
    %v3154 = vld [vmem:[#allocation13 + $0xe0] sm:$0xff]
    %v3155 = vld [vmem:[#allocation13 + $0xe8] sm:$0xff]
    %v3156 = vld [vmem:[#allocation13 + $0xf0] sm:$0xff]
    %v3157 = vld [vmem:[#allocation13 + $0xf8] sm:$0xff]
    %v3158 = vld [vmem:[#allocation13 + $0x100] sm:$0xff]
    %v3159 = vld [vmem:[#allocation13 + $0x108] sm:$0xff]
    %v3160 = vld [vmem:[#allocation13 + $0x110] sm:$0xff]
    %v3161 = vld [vmem:[#allocation13 + $0x118] sm:$0xff]
    %v3162 = vld [vmem:[#allocation13 + $0x120] sm:$0xff]
    %v3163 = vld [vmem:[#allocation13 + $0x128] sm:$0xff]
    %v3164 = vld [vmem:[#allocation13 + $0x130] sm:$0xff]
    %v3165 = vld [vmem:[#allocation13 + $0x138] sm:$0xff]
    %v3166 = vld [vmem:[#allocation13 + $0x140] sm:$0xff]
    %v3167 = vld [vmem:[#allocation13 + $0x148] sm:$0xff]
    %v3168 = vld [vmem:[#allocation13 + $0x150] sm:$0xff]
    %v3169 = vld [vmem:[#allocation13 + $0x158] sm:$0xff]
    %v3170 = vld [vmem:[#allocation13 + $0x160] sm:$0xff]
    %v3171 = vld [vmem:[#allocation13 + $0x168] sm:$0xff]
    %v3172 = vld [vmem:[#allocation13 + $0x170] sm:$0xff]
    %v3173 = vld [vmem:[#allocation13 + $0x178] sm:$0xff]
    %v3174 = vld [vmem:[#allocation13 + $0x180] sm:$0xff]
    %v3175 = vld [vmem:[#allocation13 + $0x188] sm:$0xff]
    %v3176 = vld [vmem:[#allocation13 + $0x190] sm:$0xff]
    %v3177 = vld [vmem:[#allocation13 + $0x198] sm:$0xff]
    %v3178 = vld [vmem:[#allocation13 + $0x1a0] sm:$0xff]
    %v3179 = vld [vmem:[#allocation13 + $0x1a8] sm:$0xff]
    %v3180 = vld [vmem:[#allocation13 + $0x1b0] sm:$0xff]
    %v3181 = vld [vmem:[#allocation13 + $0x1b8] sm:$0xff]
    %v3182 = vld [vmem:[#allocation13 + $0x1c0] sm:$0xff]
    %v3183 = vld [vmem:[#allocation13 + $0x1c8] sm:$0xff]
    %v3184 = vld [vmem:[#allocation13 + $0x1d0] sm:$0xff]
    %v3185 = vld [vmem:[#allocation13 + $0x1d8] sm:$0xff]
    %v3186 = vld [vmem:[#allocation13 + $0x1e0] sm:$0xff]
    %v3187 = vld [vmem:[#allocation13 + $0x1e8] sm:$0xff]
    %v3188 = vld [vmem:[#allocation13 + $0x1f0] sm:$0xff]
    %v3189 = vld [vmem:[#allocation13 + $0x1f8] sm:$0xff]
    %v3190 = vld [vmem:[#allocation13 + $0x200] sm:$0xff]
    %v3191 = vld [vmem:[#allocation13 + $0x208] sm:$0xff]
    %v3192 = vld [vmem:[#allocation13 + $0x210] sm:$0xff]
    %v3193 = vld [vmem:[#allocation13 + $0x218] sm:$0xff]
    %v3194 = vld [vmem:[#allocation13 + $0x220] sm:$0xff]
    %v3195 = vld [vmem:[#allocation13 + $0x228] sm:$0xff]
    %v3196 = vld [vmem:[#allocation13 + $0x230] sm:$0xff]
    %v3197 = vld [vmem:[#allocation13 + $0x238] sm:$0xff]
    %v3198 = vld [vmem:[#allocation13 + $0x240] sm:$0xff]
    %v3199 = vld [vmem:[#allocation13 + $0x248] sm:$0xff]
    %v3200 = vld [vmem:[#allocation13 + $0x250] sm:$0xff]
    %v3201 = vld [vmem:[#allocation13 + $0x258] sm:$0xff]
    %v3202 = vld [vmem:[#allocation13 + $0x260] sm:$0xff]
    %v3203 = vld [vmem:[#allocation13 + $0x268] sm:$0xff]
    %v3204 = vld [vmem:[#allocation13 + $0x270] sm:$0xff]
    %v3205 = vld [vmem:[#allocation13 + $0x278] sm:$0xff]
    %v3206 = vld [vmem:[#allocation13 + $0x280] sm:$0xff]
    %v3207 = vld [vmem:[#allocation13 + $0x288] sm:$0xff]
    %v3208 = vld [vmem:[#allocation13 + $0x290] sm:$0xff]
    %v3209 = vld [vmem:[#allocation13 + $0x298] sm:$0xff]
    %v3210 = vld [vmem:[#allocation13 + $0x2a0] sm:$0xff]
    %v3211 = vld [vmem:[#allocation13 + $0x2a8] sm:$0xff]
    %v3212 = vld [vmem:[#allocation13 + $0x2b0] sm:$0xff]
    %v3213 = vld [vmem:[#allocation13 + $0x2b8] sm:$0xff]
    %v3214 = vld [vmem:[#allocation13 + $0x2c0] sm:$0xff]
    %v3215 = vld [vmem:[#allocation13 + $0x2c8] sm:$0xff]
    %v3216 = vld [vmem:[#allocation13 + $0x2d0] sm:$0xff]
    %v3217 = vld [vmem:[#allocation13 + $0x2d8] sm:$0xff]
    %v3218 = vld [vmem:[#allocation13 + $0x2e0] sm:$0xff]
    %v3219 = vld [vmem:[#allocation13 + $0x2e8] sm:$0xff]
    %v3220 = vld [vmem:[#allocation13 + $0x2f0] sm:$0xff]
    %v3221 = vld [vmem:[#allocation13 + $0x2f8] sm:$0xff]
    %v3222 = vld [vmem:[#allocation13 + $0x300] sm:$0xff]
    %v3223 = vld [vmem:[#allocation13 + $0x308] sm:$0xff]
    %v3224 = vld [vmem:[#allocation13 + $0x310] sm:$0xff]
    %v3225 = vld [vmem:[#allocation13 + $0x318] sm:$0xff]
    %v3226 = vld [vmem:[#allocation13 + $0x320] sm:$0xff]
    %v3227 = vld [vmem:[#allocation13 + $0x328] sm:$0xff]
    %v3228 = vld [vmem:[#allocation13 + $0x330] sm:$0xff]
    %v3229 = vld [vmem:[#allocation13 + $0x338] sm:$0xff]
    %v3230 = vld [vmem:[#allocation13 + $0x340] sm:$0xff]
    %v3231 = vld [vmem:[#allocation13 + $0x348] sm:$0xff]
    %v3232 = vld [vmem:[#allocation13 + $0x350] sm:$0xff]
    %v3233 = vld [vmem:[#allocation13 + $0x358] sm:$0xff]
    %v3234 = vld [vmem:[#allocation13 + $0x360] sm:$0xff]
    %v3235 = vld [vmem:[#allocation13 + $0x368] sm:$0xff]
    %v3236 = vld [vmem:[#allocation13 + $0x370] sm:$0xff]
    %v3237 = vld [vmem:[#allocation13 + $0x378] sm:$0xff]
    %v3238 = vld [vmem:[#allocation13 + $0x380] sm:$0xff]
    %v3239 = vld [vmem:[#allocation13 + $0x388] sm:$0xff]
    %v3240 = vld [vmem:[#allocation13 + $0x390] sm:$0xff]
    %v3241 = vld [vmem:[#allocation13 + $0x398] sm:$0xff]
    %v3242 = vld [vmem:[#allocation13 + $0x3a0] sm:$0xff]
    %v3243 = vld [vmem:[#allocation13 + $0x3a8] sm:$0xff]
    %v3244 = vld [vmem:[#allocation13 + $0x3b0] sm:$0xff]
    %v3245 = vld [vmem:[#allocation13 + $0x3b8] sm:$0xff]
    %v3246 = vld [vmem:[#allocation13 + $0x3c0] sm:$0xff]
    %v3247 = vld [vmem:[#allocation13 + $0x3c8] sm:$0xff]
    %v3248 = vld [vmem:[#allocation13 + $0x3d0] sm:$0xff]
    %v3249 = vld [vmem:[#allocation13 + $0x3d8] sm:$0xff]
    %v3250 = vld [vmem:[#allocation13 + $0x3e0] sm:$0xff]
    %v3251 = vld [vmem:[#allocation13 + $0x3e8] sm:$0xff]
    %v3252 = vld [vmem:[#allocation13 + $0x3f0] sm:$0xff]
    %v3253 = vld [vmem:[#allocation13 + $0x3f8] sm:$0xff]
    %v3254 = vld [vmem:[#allocation13 + $0x400] sm:$0xff]
    %v3255 = vld [vmem:[#allocation13 + $0x408] sm:$0xff]
    %v3256 = vld [vmem:[#allocation13 + $0x410] sm:$0xff]
    %v3257 = vld [vmem:[#allocation13 + $0x418] sm:$0xff]
    %v3258 = vld [vmem:[#allocation13 + $0x420] sm:$0xff]
    %v3259 = vld [vmem:[#allocation13 + $0x428] sm:$0xff]
    %v3260 = vld [vmem:[#allocation13 + $0x430] sm:$0xff]
    %v3261 = vld [vmem:[#allocation13 + $0x438] sm:$0xff]
    %v3262 = vld [vmem:[#allocation13 + $0x440] sm:$0xff]
    %v3263 = vld [vmem:[#allocation13 + $0x448] sm:$0xff]
    %v3264 = vld [vmem:[#allocation13 + $0x450] sm:$0xff]
    %v3265 = vld [vmem:[#allocation13 + $0x458] sm:$0xff]
    %v3266 = vld [vmem:[#allocation13 + $0x460] sm:$0xff]
    %v3267 = vld [vmem:[#allocation13 + $0x468] sm:$0xff]
    %v3268 = vld [vmem:[#allocation13 + $0x470] sm:$0xff]
    %v3269 = vld [vmem:[#allocation13 + $0x478] sm:$0xff]
    %v3270 = vld [vmem:[#allocation13 + $0x480] sm:$0xff]
    %v3271 = vld [vmem:[#allocation13 + $0x488] sm:$0xff]
    %v3272 = vld [vmem:[#allocation13 + $0x490] sm:$0xff]
    %v3273 = vld [vmem:[#allocation13 + $0x498] sm:$0xff]
    %v3274 = vld [vmem:[#allocation13 + $0x4a0] sm:$0xff]
    %v3275 = vld [vmem:[#allocation13 + $0x4a8] sm:$0xff]
    %v3276 = vld [vmem:[#allocation13 + $0x4b0] sm:$0xff]
    %v3277 = vld [vmem:[#allocation13 + $0x4b8] sm:$0xff]
    %v3278 = vld [vmem:[#allocation13 + $0x4c0] sm:$0xff]
    %v3279 = vld [vmem:[#allocation13 + $0x4c8] sm:$0xff]
    %v3280 = vld [vmem:[#allocation13 + $0x4d0] sm:$0xff]
    %v3281 = vld [vmem:[#allocation13 + $0x4d8] sm:$0xff]
    %v3282 = vld [vmem:[#allocation13 + $0x4e0] sm:$0xff]
    %v3283 = vld [vmem:[#allocation13 + $0x4e8] sm:$0xff]
    %v3284 = vld [vmem:[#allocation13 + $0x4f0] sm:$0xff]
    %v3285 = vld [vmem:[#allocation13 + $0x4f8] sm:$0xff]
    %v3286 = vld [vmem:[#allocation13 + $0x500] sm:$0xff]
    %v3287 = vld [vmem:[#allocation13 + $0x508] sm:$0xff]
    %v3288 = vld [vmem:[#allocation13 + $0x510] sm:$0xff]
    %v3289 = vld [vmem:[#allocation13 + $0x518] sm:$0xff]
    %v3290 = vld [vmem:[#allocation13 + $0x520] sm:$0xff]
    %v3291 = vld [vmem:[#allocation13 + $0x528] sm:$0xff]
    %v3292 = vld [vmem:[#allocation13 + $0x530] sm:$0xff]
    %v3293 = vld [vmem:[#allocation13 + $0x538] sm:$0xff]
    %v3294 = vld [vmem:[#allocation13 + $0x540] sm:$0xff]
    %v3295 = vld [vmem:[#allocation13 + $0x548] sm:$0xff]
    %v3296 = vld [vmem:[#allocation13 + $0x550] sm:$0xff]
    %v3297 = vld [vmem:[#allocation13 + $0x558] sm:$0xff]
    %v3298 = vld [vmem:[#allocation13 + $0x560] sm:$0xff]
    %v3299 = vld [vmem:[#allocation13 + $0x568] sm:$0xff]
    %v3300 = vld [vmem:[#allocation13 + $0x570] sm:$0xff]
    %v3301 = vld [vmem:[#allocation13 + $0x578] sm:$0xff]
    %v3302 = vld [vmem:[#allocation13 + $0x580] sm:$0xff]
    %v3303 = vld [vmem:[#allocation13 + $0x588] sm:$0xff]
    %v3304 = vld [vmem:[#allocation13 + $0x590] sm:$0xff]
    %v3305 = vld [vmem:[#allocation13 + $0x598] sm:$0xff]
    %v3306 = vld [vmem:[#allocation13 + $0x5a0] sm:$0xff]
    %v3307 = vld [vmem:[#allocation13 + $0x5a8] sm:$0xff]
    %v3308 = vld [vmem:[#allocation13 + $0x5b0] sm:$0xff]
    %v3309 = vld [vmem:[#allocation13 + $0x5b8] sm:$0xff]
    %v3310 = vld [vmem:[#allocation13 + $0x5c0] sm:$0xff]
    %v3311 = vld [vmem:[#allocation13 + $0x5c8] sm:$0xff]
    %v3312 = vld [vmem:[#allocation13 + $0x5d0] sm:$0xff]
    %v3313 = vld [vmem:[#allocation13 + $0x5d8] sm:$0xff]
    %v3314 = vld [vmem:[#allocation13 + $0x5e0] sm:$0xff]
    %v3315 = vld [vmem:[#allocation13 + $0x5e8] sm:$0xff]
    %v3316 = vld [vmem:[#allocation13 + $0x5f0] sm:$0xff]
    %v3317 = vld [vmem:[#allocation13 + $0x5f8] sm:$0xff]
    %v3318 = vld [vmem:[#allocation13 + $0x600] sm:$0xff]
    %v3319 = vld [vmem:[#allocation13 + $0x608] sm:$0xff]
    %v3320 = vld [vmem:[#allocation13 + $0x610] sm:$0xff]
    %v3321 = vld [vmem:[#allocation13 + $0x618] sm:$0xff]
    %v3322 = vld [vmem:[#allocation13 + $0x620] sm:$0xff]
    %v3323 = vld [vmem:[#allocation13 + $0x628] sm:$0xff]
    %v3324 = vld [vmem:[#allocation13 + $0x630] sm:$0xff]
    %v3325 = vld [vmem:[#allocation13 + $0x638] sm:$0xff]
    %v3326 = vld [vmem:[#allocation13 + $0x640] sm:$0xff]
    %v3327 = vld [vmem:[#allocation13 + $0x648] sm:$0xff]
    %v3328 = vld [vmem:[#allocation13 + $0x650] sm:$0xff]
    %v3329 = vld [vmem:[#allocation13 + $0x658] sm:$0xff]
    %v3330 = vld [vmem:[#allocation13 + $0x660] sm:$0xff]
    %v3331 = vld [vmem:[#allocation13 + $0x668] sm:$0xff]
    %v3332 = vld [vmem:[#allocation13 + $0x670] sm:$0xff]
    %v3333 = vld [vmem:[#allocation13 + $0x678] sm:$0xff]
    %v3334 = vld [vmem:[#allocation13 + $0x680] sm:$0xff]
    %v3335 = vld [vmem:[#allocation13 + $0x688] sm:$0xff]
    %v3336 = vld [vmem:[#allocation13 + $0x690] sm:$0xff]
    %v3337 = vld [vmem:[#allocation13 + $0x698] sm:$0xff]
    %v3338 = vld [vmem:[#allocation13 + $0x6a0] sm:$0xff]
    %v3339 = vld [vmem:[#allocation13 + $0x6a8] sm:$0xff]
    %v3340 = vld [vmem:[#allocation13 + $0x6b0] sm:$0xff]
    %v3341 = vld [vmem:[#allocation13 + $0x6b8] sm:$0xff]
    %v3342 = vld [vmem:[#allocation13 + $0x6c0] sm:$0xff]
    %v3343 = vld [vmem:[#allocation13 + $0x6c8] sm:$0xff]
    %v3344 = vld [vmem:[#allocation13 + $0x6d0] sm:$0xff]
    %v3345 = vld [vmem:[#allocation13 + $0x6d8] sm:$0xff]
    %v3346 = vld [vmem:[#allocation13 + $0x6e0] sm:$0xff]
    %v3347 = vld [vmem:[#allocation13 + $0x6e8] sm:$0xff]
    %v3348 = vld [vmem:[#allocation13 + $0x6f0] sm:$0xff]
    %v3349 = vld [vmem:[#allocation13 + $0x6f8] sm:$0xff]
    %v3350 = vld [vmem:[#allocation13 + $0x700] sm:$0xff]
    %v3351 = vld [vmem:[#allocation13 + $0x708] sm:$0xff]
    %v3352 = vld [vmem:[#allocation13 + $0x710] sm:$0xff]
    %v3353 = vld [vmem:[#allocation13 + $0x718] sm:$0xff]
    %v3354 = vld [vmem:[#allocation13 + $0x720] sm:$0xff]
    %v3355 = vld [vmem:[#allocation13 + $0x728] sm:$0xff]
    %v3356 = vld [vmem:[#allocation13 + $0x730] sm:$0xff]
    %v3357 = vld [vmem:[#allocation13 + $0x738] sm:$0xff]
    %v3358 = vld [vmem:[#allocation13 + $0x740] sm:$0xff]
    %v3359 = vld [vmem:[#allocation13 + $0x748] sm:$0xff]
    %v3360 = vld [vmem:[#allocation13 + $0x750] sm:$0xff]
    %v3361 = vld [vmem:[#allocation13 + $0x758] sm:$0xff]
    %v3362 = vld [vmem:[#allocation13 + $0x760] sm:$0xff]
    %v3363 = vld [vmem:[#allocation13 + $0x768] sm:$0xff]
    %v3364 = vld [vmem:[#allocation13 + $0x770] sm:$0xff]
    %v3365 = vld [vmem:[#allocation13 + $0x778] sm:$0xff]
    %v3366 = vld [vmem:[#allocation13 + $0x780] sm:$0xff]
    %v3367 = vld [vmem:[#allocation13 + $0x788] sm:$0xff]
    %v3368 = vld [vmem:[#allocation13 + $0x790] sm:$0xff]
    %v3369 = vld [vmem:[#allocation13 + $0x798] sm:$0xff]
    %v3370 = vld [vmem:[#allocation13 + $0x7a0] sm:$0xff]
    %v3371 = vld [vmem:[#allocation13 + $0x7a8] sm:$0xff]
    %v3372 = vld [vmem:[#allocation13 + $0x7b0] sm:$0xff]
    %v3373 = vld [vmem:[#allocation13 + $0x7b8] sm:$0xff]
    %v3374 = vld [vmem:[#allocation13 + $0x7c0] sm:$0xff]
    %v3375 = vld [vmem:[#allocation13 + $0x7c8] sm:$0xff]
    %v3376 = vld [vmem:[#allocation13 + $0x7d0] sm:$0xff]
    %v3377 = vld [vmem:[#allocation13 + $0x7d8] sm:$0xff]
    %v3378 = vld [vmem:[#allocation13 + $0x7e0] sm:$0xff]
    %v3379 = vld [vmem:[#allocation13 + $0x7e8] sm:$0xff]
    %v3380 = vld [vmem:[#allocation13 + $0x7f0] sm:$0xff]
    %v3381 = vld [vmem:[#allocation13 + $0x7f8] sm:$0xff]
    %3382 = vmatprep.subr.mxu0 %v3127
    %3383 = vmatpush1.msra.mxu0 %v3126
    %3384 = vmatprep.subr.mxu0 %v3135
    %3385 = vmatpush1.msra.mxu0 %v3134
    %3386 = vmatprep.subr.mxu0 %v3143
    %3387 = vmatpush1.msra.mxu0 %v3142
    %3388 = vmatprep.subr.mxu0 %v3151
    %3389 = vmatpush1.msra.mxu0 %v3150
    %3390 = vmatprep.subr.mxu0 %v3159
    %3391 = vmatpush1.msra.mxu0 %v3158
    %3392 = vmatprep.subr.mxu0 %v3167
    %3393 = vmatpush1.msra.mxu0 %v3166
    %3394 = vmatprep.subr.mxu0 %v3175
    %3395 = vmatpush1.msra.mxu0 %v3174
    %3396 = vmatprep.subr.mxu0 %v3183
    %3397 = vmatpush1.msra.mxu0 %v3182
    %3398 = vmatprep.subr.mxu0 %v3191
    %3399 = vmatpush1.msra.mxu0 %v3190
    %3400 = vmatprep.subr.mxu0 %v3199
    %3401 = vmatpush1.msra.mxu0 %v3198
    %3402 = vmatprep.subr.mxu0 %v3207
    %3403 = vmatpush1.msra.mxu0 %v3206
    %3404 = vmatprep.subr.mxu0 %v3215
    %3405 = vmatpush1.msra.mxu0 %v3214
    %3406 = vmatprep.subr.mxu0 %v3223
    %3407 = vmatpush1.msra.mxu0 %v3222
    %3408 = vmatprep.subr.mxu0 %v3231
    %3409 = vmatpush1.msra.mxu0 %v3230
    %3410 = vmatprep.subr.mxu0 %v3239
    %3411 = vmatpush1.msra.mxu0 %v3238
    %3412 = vmatprep.subr.mxu0 %v3247
    %3413 = vmatpush1.msra.mxu0 %v3246
    %3414 = vmatprep.subr.mxu0 %v3255
    %3415 = vmatpush1.msra.mxu0 %v3254
    %3416 = vmatprep.subr.mxu0 %v3263
    %3417 = vmatpush1.msra.mxu0 %v3262
    %3418 = vmatprep.subr.mxu0 %v3271
    %3419 = vmatpush1.msra.mxu0 %v3270
    %3420 = vmatprep.subr.mxu0 %v3279
    %3421 = vmatpush1.msra.mxu0 %v3278
    %3422 = vmatprep.subr.mxu0 %v3287
    %3423 = vmatpush1.msra.mxu0 %v3286
    %3424 = vmatprep.subr.mxu0 %v3295
    %3425 = vmatpush1.msra.mxu0 %v3294
    %3426 = vmatprep.subr.mxu0 %v3303
    %3427 = vmatpush1.msra.mxu0 %v3302
    %3428 = vmatprep.subr.mxu0 %v3311
    %3429 = vmatpush1.msra.mxu0 %v3310
    %3430 = vmatprep.subr.mxu0 %v3319
    %3431 = vmatpush1.msra.mxu0 %v3318
    %3432 = vmatprep.subr.mxu0 %v3327
    %3433 = vmatpush1.msra.mxu0 %v3326
    %3434 = vmatprep.subr.mxu0 %v3335
    %3435 = vmatpush1.msra.mxu0 %v3334
    %3436 = vmatprep.subr.mxu0 %v3343
    %3437 = vmatpush1.msra.mxu0 %v3342
    %3438 = vmatprep.subr.mxu0 %v3351
    %3439 = vmatpush1.msra.mxu0 %v3350
    %3440 = vmatprep.subr.mxu0 %v3359
    %3441 = vmatpush1.msra.mxu0 %v3358
    %3442 = vmatprep.subr.mxu0 %v3367
    %3443 = vmatpush1.msra.mxu0 %v3366
    %3444 = vmatprep.subr.mxu0 %v3375
    %3445 = vmatpush1.msra.mxu0 %v3374
    %3446 = vmatprep.mubr.f32.mxu0 %v3114
    %3447 = vmatmul.mubr.f32.gmra.mrb[0].mxu0 %v3113
    %v3448 = vpop.f32.mrb[0].mxu0
    %v3449 = vadd.f32 0.0, %v3448
    %v3450 = vpop.f32.mrb[0].mxu0
    %v3451 = vadd.f32 0.0, %v3450
    %3452 = vdwg.mxu0
    %3453 = vmatprep.subr.mxu0 %v3129
    %3454 = vmatpush1.msra.mxu0 %v3128
    %3455 = vmatprep.subr.mxu0 %v3137
    %3456 = vmatpush1.msra.mxu0 %v3136
    %3457 = vmatprep.subr.mxu0 %v3145
    %3458 = vmatpush1.msra.mxu0 %v3144
    %3459 = vmatprep.subr.mxu0 %v3153
    %3460 = vmatpush1.msra.mxu0 %v3152
    %3461 = vmatprep.subr.mxu0 %v3161
    %3462 = vmatpush1.msra.mxu0 %v3160
    %3463 = vmatprep.subr.mxu0 %v3169
    %3464 = vmatpush1.msra.mxu0 %v3168
    %3465 = vmatprep.subr.mxu0 %v3177
    %3466 = vmatpush1.msra.mxu0 %v3176
    %3467 = vmatprep.subr.mxu0 %v3185
    %3468 = vmatpush1.msra.mxu0 %v3184
    %3469 = vmatprep.subr.mxu0 %v3193
    %3470 = vmatpush1.msra.mxu0 %v3192
    %3471 = vmatprep.subr.mxu0 %v3201
    %3472 = vmatpush1.msra.mxu0 %v3200
    %3473 = vmatprep.subr.mxu0 %v3209
    %3474 = vmatpush1.msra.mxu0 %v3208
    %3475 = vmatprep.subr.mxu0 %v3217
    %3476 = vmatpush1.msra.mxu0 %v3216
    %3477 = vmatprep.subr.mxu0 %v3225
    %3478 = vmatpush1.msra.mxu0 %v3224
    %3479 = vmatprep.subr.mxu0 %v3233
    %3480 = vmatpush1.msra.mxu0 %v3232
    %3481 = vmatprep.subr.mxu0 %v3241
    %3482 = vmatpush1.msra.mxu0 %v3240
    %3483 = vmatprep.subr.mxu0 %v3249
    %3484 = vmatpush1.msra.mxu0 %v3248
    %3485 = vmatprep.subr.mxu0 %v3257
    %3486 = vmatpush1.msra.mxu0 %v3256
    %3487 = vmatprep.subr.mxu0 %v3265
    %3488 = vmatpush1.msra.mxu0 %v3264
    %3489 = vmatprep.subr.mxu0 %v3273
    %3490 = vmatpush1.msra.mxu0 %v3272
    %3491 = vmatprep.subr.mxu0 %v3281
    %3492 = vmatpush1.msra.mxu0 %v3280
    %3493 = vmatprep.subr.mxu0 %v3289
    %3494 = vmatpush1.msra.mxu0 %v3288
    %3495 = vmatprep.subr.mxu0 %v3297
    %3496 = vmatpush1.msra.mxu0 %v3296
    %3497 = vmatprep.subr.mxu0 %v3305
    %3498 = vmatpush1.msra.mxu0 %v3304
    %3499 = vmatprep.subr.mxu0 %v3313
    %3500 = vmatpush1.msra.mxu0 %v3312
    %3501 = vmatprep.subr.mxu0 %v3321
    %3502 = vmatpush1.msra.mxu0 %v3320
    %3503 = vmatprep.subr.mxu0 %v3329
    %3504 = vmatpush1.msra.mxu0 %v3328
    %3505 = vmatprep.subr.mxu0 %v3337
    %3506 = vmatpush1.msra.mxu0 %v3336
    %3507 = vmatprep.subr.mxu0 %v3345
    %3508 = vmatpush1.msra.mxu0 %v3344
    %3509 = vmatprep.subr.mxu0 %v3353
    %3510 = vmatpush1.msra.mxu0 %v3352
    %3511 = vmatprep.subr.mxu0 %v3361
    %3512 = vmatpush1.msra.mxu0 %v3360
    %3513 = vmatprep.subr.mxu0 %v3369
    %3514 = vmatpush1.msra.mxu0 %v3368
    %3515 = vmatprep.subr.mxu0 %v3377
    %3516 = vmatpush1.msra.mxu0 %v3376
    %3517 = vmatprep.mubr.f32.mxu0 %v3114
    %3518 = vmatmul.mubr.f32.gmra.mrb[0].mxu0 %v3113
    %v3519 = vpop.f32.mrb[0].mxu0
    %v3520 = vadd.f32 0.0, %v3519
    %v3521 = vpop.f32.mrb[0].mxu0
    %v3522 = vadd.f32 0.0, %v3521
    %3523 = vdwg.mxu0
    %3524 = vmatprep.subr.mxu0 %v3131
    %3525 = vmatpush1.msra.mxu0 %v3130
    %3526 = vmatprep.subr.mxu0 %v3139
    %3527 = vmatpush1.msra.mxu0 %v3138
    %3528 = vmatprep.subr.mxu0 %v3147
    %3529 = vmatpush1.msra.mxu0 %v3146
    %3530 = vmatprep.subr.mxu0 %v3155
    %3531 = vmatpush1.msra.mxu0 %v3154
    %3532 = vmatprep.subr.mxu0 %v3163
    %3533 = vmatpush1.msra.mxu0 %v3162
    %3534 = vmatprep.subr.mxu0 %v3171
    %3535 = vmatpush1.msra.mxu0 %v3170
    %3536 = vmatprep.subr.mxu0 %v3179
    %3537 = vmatpush1.msra.mxu0 %v3178
    %3538 = vmatprep.subr.mxu0 %v3187
    %3539 = vmatpush1.msra.mxu0 %v3186
    %3540 = vmatprep.subr.mxu0 %v3195
    %3541 = vmatpush1.msra.mxu0 %v3194
    %3542 = vmatprep.subr.mxu0 %v3203
    %3543 = vmatpush1.msra.mxu0 %v3202
    %3544 = vmatprep.subr.mxu0 %v3211
    %3545 = vmatpush1.msra.mxu0 %v3210
    %3546 = vmatprep.subr.mxu0 %v3219
    %3547 = vmatpush1.msra.mxu0 %v3218
    %3548 = vmatprep.subr.mxu0 %v3227
    %3549 = vmatpush1.msra.mxu0 %v3226
    %3550 = vmatprep.subr.mxu0 %v3235
    %3551 = vmatpush1.msra.mxu0 %v3234
    %3552 = vmatprep.subr.mxu0 %v3243
    %3553 = vmatpush1.msra.mxu0 %v3242
    %3554 = vmatprep.subr.mxu0 %v3251
    %3555 = vmatpush1.msra.mxu0 %v3250
    %3556 = vmatprep.subr.mxu0 %v3259
    %3557 = vmatpush1.msra.mxu0 %v3258
    %3558 = vmatprep.subr.mxu0 %v3267
    %3559 = vmatpush1.msra.mxu0 %v3266
    %3560 = vmatprep.subr.mxu0 %v3275
    %3561 = vmatpush1.msra.mxu0 %v3274
    %3562 = vmatprep.subr.mxu0 %v3283
    %3563 = vmatpush1.msra.mxu0 %v3282
    %3564 = vmatprep.subr.mxu0 %v3291
    %3565 = vmatpush1.msra.mxu0 %v3290
    %3566 = vmatprep.subr.mxu0 %v3299
    %3567 = vmatpush1.msra.mxu0 %v3298
    %3568 = vmatprep.subr.mxu0 %v3307
    %3569 = vmatpush1.msra.mxu0 %v3306
    %3570 = vmatprep.subr.mxu0 %v3315
    %3571 = vmatpush1.msra.mxu0 %v3314
    %3572 = vmatprep.subr.mxu0 %v3323
    %3573 = vmatpush1.msra.mxu0 %v3322
    %3574 = vmatprep.subr.mxu0 %v3331
    %3575 = vmatpush1.msra.mxu0 %v3330
    %3576 = vmatprep.subr.mxu0 %v3339
    %3577 = vmatpush1.msra.mxu0 %v3338
    %3578 = vmatprep.subr.mxu0 %v3347
    %3579 = vmatpush1.msra.mxu0 %v3346
    %3580 = vmatprep.subr.mxu0 %v3355
    %3581 = vmatpush1.msra.mxu0 %v3354
    %3582 = vmatprep.subr.mxu0 %v3363
    %3583 = vmatpush1.msra.mxu0 %v3362
    %3584 = vmatprep.subr.mxu0 %v3371
    %3585 = vmatpush1.msra.mxu0 %v3370
    %3586 = vmatprep.subr.mxu0 %v3379
    %3587 = vmatpush1.msra.mxu0 %v3378
    %3588 = vmatprep.mubr.f32.mxu0 %v3114
    %3589 = vmatmul.mubr.f32.gmra.mrb[0].mxu0 %v3113
    %v3590 = vpop.f32.mrb[0].mxu0
    %v3591 = vadd.f32 0.0, %v3590
    %v3592 = vpop.f32.mrb[0].mxu0
    %v3593 = vadd.f32 0.0, %v3592
    %3594 = vdwg.mxu0
    %3595 = vmatprep.subr.mxu0 %v3133
    %3596 = vmatpush1.msra.mxu0 %v3132
    %3597 = vmatprep.subr.mxu0 %v3141
    %3598 = vmatpush1.msra.mxu0 %v3140
    %3599 = vmatprep.subr.mxu0 %v3149
    %3600 = vmatpush1.msra.mxu0 %v3148
    %3601 = vmatprep.subr.mxu0 %v3157
    %3602 = vmatpush1.msra.mxu0 %v3156
    %3603 = vmatprep.subr.mxu0 %v3165
    %3604 = vmatpush1.msra.mxu0 %v3164
    %3605 = vmatprep.subr.mxu0 %v3173
    %3606 = vmatpush1.msra.mxu0 %v3172
    %3607 = vmatprep.subr.mxu0 %v3181
    %3608 = vmatpush1.msra.mxu0 %v3180
    %3609 = vmatprep.subr.mxu0 %v3189
    %3610 = vmatpush1.msra.mxu0 %v3188
    %3611 = vmatprep.subr.mxu0 %v3197
    %3612 = vmatpush1.msra.mxu0 %v3196
    %3613 = vmatprep.subr.mxu0 %v3205
    %3614 = vmatpush1.msra.mxu0 %v3204
    %3615 = vmatprep.subr.mxu0 %v3213
    %3616 = vmatpush1.msra.mxu0 %v3212
    %3617 = vmatprep.subr.mxu0 %v3221
    %3618 = vmatpush1.msra.mxu0 %v3220
    %3619 = vmatprep.subr.mxu0 %v3229
    %3620 = vmatpush1.msra.mxu0 %v3228
    %3621 = vmatprep.subr.mxu0 %v3237
    %3622 = vmatpush1.msra.mxu0 %v3236
    %3623 = vmatprep.subr.mxu0 %v3245
    %3624 = vmatpush1.msra.mxu0 %v3244
    %3625 = vmatprep.subr.mxu0 %v3253
    %3626 = vmatpush1.msra.mxu0 %v3252
    %3627 = vmatprep.subr.mxu0 %v3261
    %3628 = vmatpush1.msra.mxu0 %v3260
    %3629 = vmatprep.subr.mxu0 %v3269
    %3630 = vmatpush1.msra.mxu0 %v3268
    %3631 = vmatprep.subr.mxu0 %v3277
    %3632 = vmatpush1.msra.mxu0 %v3276
    %3633 = vmatprep.subr.mxu0 %v3285
    %3634 = vmatpush1.msra.mxu0 %v3284
    %3635 = vmatprep.subr.mxu0 %v3293
    %3636 = vmatpush1.msra.mxu0 %v3292
    %3637 = vmatprep.subr.mxu0 %v3301
    %3638 = vmatpush1.msra.mxu0 %v3300
    %3639 = vmatprep.subr.mxu0 %v3309
    %3640 = vmatpush1.msra.mxu0 %v3308
    %3641 = vmatprep.subr.mxu0 %v3317
    %3642 = vmatpush1.msra.mxu0 %v3316
    %3643 = vmatprep.subr.mxu0 %v3325
    %3644 = vmatpush1.msra.mxu0 %v3324
    %3645 = vmatprep.subr.mxu0 %v3333
    %3646 = vmatpush1.msra.mxu0 %v3332
    %3647 = vmatprep.subr.mxu0 %v3341
    %3648 = vmatpush1.msra.mxu0 %v3340
    %3649 = vmatprep.subr.mxu0 %v3349
    %3650 = vmatpush1.msra.mxu0 %v3348
    %3651 = vmatprep.subr.mxu0 %v3357
    %3652 = vmatpush1.msra.mxu0 %v3356
    %3653 = vmatprep.subr.mxu0 %v3365
    %3654 = vmatpush1.msra.mxu0 %v3364
    %3655 = vmatprep.subr.mxu0 %v3373
    %3656 = vmatpush1.msra.mxu0 %v3372
    %3657 = vmatprep.subr.mxu0 %v3381
    %3658 = vmatpush1.msra.mxu0 %v3380
    %3659 = vmatprep.mubr.f32.mxu0 %v3114
    %3660 = vmatmul.mubr.f32.gmra.mrb[0].mxu0 %v3113
    %v3661 = vpop.f32.mrb[0].mxu0
    %v3662 = vadd.f32 0.0, %v3661
    %v3663 = vpop.f32.mrb[0].mxu0
    %v3664 = vadd.f32 0.0, %v3663
    %3665 = vdwg.mxu0
    %v3666 = vadd.f32 %v3118, %v3449
    %v3667 = vadd.f32 %v3119, %v3451
    %v3668 = vadd.f32 %v3120, %v3520
    %v3669 = vadd.f32 %v3121, %v3522
    %v3670 = vadd.f32 %v3122, %v3591
    %v3671 = vadd.f32 %v3123, %v3593
    %v3672 = vadd.f32 %v3124, %v3662
    %v3673 = vadd.f32 %v3125, %v3664
    %v3674 = vxor.u32 %v3666, 2147483648
    %v3675 = vxor.u32 %v3667, 2147483648
    %v3676 = vmul.f32 %v3674, 1.442695
    %v3677 = vpow.pop %v3676
    %v3678 = vmul.f32 %v3675, 1.442695
    %v3679 = vpow.pop %v3678
    %v3680 = vadd.f32 %v3677, 1.0
    %v3681 = vadd.f32 %v3679, 1.0
    %v3682 = vrcp.pop %v3680
    %v3683 = vmul.f32 1.0, %v3682
    %v3684 = vrcp.pop %v3681
    %v3685 = vmul.f32 1.0, %v3684
    %v3686 = vxor.u32 %v3668, 2147483648
    %v3687 = vxor.u32 %v3669, 2147483648
    %v3688 = vmul.f32 %v3686, 1.442695
    %v3689 = vpow.pop %v3688
    %v3690 = vmul.f32 %v3687, 1.442695
    %v3691 = vpow.pop %v3690
    %v3692 = vadd.f32 %v3689, 1.0
    %v3693 = vadd.f32 %v3691, 1.0
    %v3694 = vrcp.pop %v3692
    %v3695 = vmul.f32 1.0, %v3694
    %v3696 = vrcp.pop %v3693
    %v3697 = vmul.f32 1.0, %v3696
    %v3698 = vtanh.pop %v3670
    %v3699 = vtanh.pop %v3671
    %v3700 = vxor.u32 %v3672, 2147483648
    %v3701 = vxor.u32 %v3673, 2147483648
    %v3702 = vmul.f32 %v3700, 1.442695
    %v3703 = vpow.pop %v3702
    %v3704 = vmul.f32 %v3701, 1.442695
    %v3705 = vpow.pop %v3704
    %v3706 = vadd.f32 %v3703, 1.0
    %v3707 = vadd.f32 %v3705, 1.0
    %v3708 = vrcp.pop %v3706
    %v3709 = vmul.f32 1.0, %v3708
    %v3710 = vrcp.pop %v3707
    %v3711 = vmul.f32 1.0, %v3710
    %v3712 = vmul.f32 %v3695, %v3115
    %v3713 = vmul.f32 %v3697, %v3116
    %v3714 = vmul.f32 %v3683, %v3698
    %v3715 = vmul.f32 %v3685, %v3699
    %v3716 = vadd.f32 %v3712, %v3714
    %v3717 = vadd.f32 %v3713, %v3715
    %v3718 = vtanh.pop %v3716
    %v3719 = vtanh.pop %v3717
    %v3720 = vmul.f32 %v3709, %v3718
    %v3721 = vmul.f32 %v3711, %v3719
    %3722 = vst [vmem:[#allocation3] sm:$0xff] %v3720
    %3723 = vst [vmem:[#allocation3 + $0x8] sm:$0xff] %v3721
    %3724 = vst [vmem:[#allocation4] sm:$0xff] %v3716
    %3725 = vst [vmem:[#allocation4 + $0x8] sm:$0xff] %v3717
    %s3726 = scalar_lea.vmem [#allocation14], 48
    %3727 = vst [vmem:[%s3726] sm:$0xff] %v3720
    %3728 = vst [vmem:[%s3726 + $0x8] sm:$0xff] %v3721
    %v3729 = vld [vmem:[#allocation3] sm:$0xff]
    %v3730 = vld [vmem:[#allocation3 + $0x8] sm:$0xff]
    %v3731 = vld [vmem:[#allocation4] sm:$0xff]
    %v3732 = vld [vmem:[#allocation4 + $0x8] sm:$0xff]
    %s3733 = scalar_lea.vmem [#allocation2], 256
    %v3734 = vld [vmem:[%s3733] sm:$0xff]
    %v3735 = vld [vmem:[%s3733 + $0x8] sm:$0xff]
    %v3736 = vld [vmem:[%s3733 + $0x10] sm:$0xff]
    %v3737 = vld [vmem:[%s3733 + $0x18] sm:$0xff]
    %v3738 = vld [vmem:[%s3733 + $0x20] sm:$0xff]
    %v3739 = vld [vmem:[%s3733 + $0x28] sm:$0xff]
    %v3740 = vld [vmem:[%s3733 + $0x30] sm:$0xff]
    %v3741 = vld [vmem:[%s3733 + $0x38] sm:$0xff]
    %v3742 = vld [vmem:[#allocation13] sm:$0xff]
    %v3743 = vld [vmem:[#allocation13 + $0x8] sm:$0xff]
    %v3744 = vld [vmem:[#allocation13 + $0x10] sm:$0xff]
    %v3745 = vld [vmem:[#allocation13 + $0x18] sm:$0xff]
    %v3746 = vld [vmem:[#allocation13 + $0x20] sm:$0xff]
    %v3747 = vld [vmem:[#allocation13 + $0x28] sm:$0xff]
    %v3748 = vld [vmem:[#allocation13 + $0x30] sm:$0xff]
    %v3749 = vld [vmem:[#allocation13 + $0x38] sm:$0xff]
    %v3750 = vld [vmem:[#allocation13 + $0x40] sm:$0xff]
    %v3751 = vld [vmem:[#allocation13 + $0x48] sm:$0xff]
    %v3752 = vld [vmem:[#allocation13 + $0x50] sm:$0xff]
    %v3753 = vld [vmem:[#allocation13 + $0x58] sm:$0xff]
    %v3754 = vld [vmem:[#allocation13 + $0x60] sm:$0xff]
    %v3755 = vld [vmem:[#allocation13 + $0x68] sm:$0xff]
    %v3756 = vld [vmem:[#allocation13 + $0x70] sm:$0xff]
    %v3757 = vld [vmem:[#allocation13 + $0x78] sm:$0xff]
    %v3758 = vld [vmem:[#allocation13 + $0x80] sm:$0xff]
    %v3759 = vld [vmem:[#allocation13 + $0x88] sm:$0xff]
    %v3760 = vld [vmem:[#allocation13 + $0x90] sm:$0xff]
    %v3761 = vld [vmem:[#allocation13 + $0x98] sm:$0xff]
    %v3762 = vld [vmem:[#allocation13 + $0xa0] sm:$0xff]
    %v3763 = vld [vmem:[#allocation13 + $0xa8] sm:$0xff]
    %v3764 = vld [vmem:[#allocation13 + $0xb0] sm:$0xff]
    %v3765 = vld [vmem:[#allocation13 + $0xb8] sm:$0xff]
    %v3766 = vld [vmem:[#allocation13 + $0xc0] sm:$0xff]
    %v3767 = vld [vmem:[#allocation13 + $0xc8] sm:$0xff]
    %v3768 = vld [vmem:[#allocation13 + $0xd0] sm:$0xff]
    %v3769 = vld [vmem:[#allocation13 + $0xd8] sm:$0xff]
    %v3770 = vld [vmem:[#allocation13 + $0xe0] sm:$0xff]
    %v3771 = vld [vmem:[#allocation13 + $0xe8] sm:$0xff]
    %v3772 = vld [vmem:[#allocation13 + $0xf0] sm:$0xff]
    %v3773 = vld [vmem:[#allocation13 + $0xf8] sm:$0xff]
    %v3774 = vld [vmem:[#allocation13 + $0x100] sm:$0xff]
    %v3775 = vld [vmem:[#allocation13 + $0x108] sm:$0xff]
    %v3776 = vld [vmem:[#allocation13 + $0x110] sm:$0xff]
    %v3777 = vld [vmem:[#allocation13 + $0x118] sm:$0xff]
    %v3778 = vld [vmem:[#allocation13 + $0x120] sm:$0xff]
    %v3779 = vld [vmem:[#allocation13 + $0x128] sm:$0xff]
    %v3780 = vld [vmem:[#allocation13 + $0x130] sm:$0xff]
    %v3781 = vld [vmem:[#allocation13 + $0x138] sm:$0xff]
    %v3782 = vld [vmem:[#allocation13 + $0x140] sm:$0xff]
    %v3783 = vld [vmem:[#allocation13 + $0x148] sm:$0xff]
    %v3784 = vld [vmem:[#allocation13 + $0x150] sm:$0xff]
    %v3785 = vld [vmem:[#allocation13 + $0x158] sm:$0xff]
    %v3786 = vld [vmem:[#allocation13 + $0x160] sm:$0xff]
    %v3787 = vld [vmem:[#allocation13 + $0x168] sm:$0xff]
    %v3788 = vld [vmem:[#allocation13 + $0x170] sm:$0xff]
    %v3789 = vld [vmem:[#allocation13 + $0x178] sm:$0xff]
    %v3790 = vld [vmem:[#allocation13 + $0x180] sm:$0xff]
    %v3791 = vld [vmem:[#allocation13 + $0x188] sm:$0xff]
    %v3792 = vld [vmem:[#allocation13 + $0x190] sm:$0xff]
    %v3793 = vld [vmem:[#allocation13 + $0x198] sm:$0xff]
    %v3794 = vld [vmem:[#allocation13 + $0x1a0] sm:$0xff]
    %v3795 = vld [vmem:[#allocation13 + $0x1a8] sm:$0xff]
    %v3796 = vld [vmem:[#allocation13 + $0x1b0] sm:$0xff]
    %v3797 = vld [vmem:[#allocation13 + $0x1b8] sm:$0xff]
    %v3798 = vld [vmem:[#allocation13 + $0x1c0] sm:$0xff]
    %v3799 = vld [vmem:[#allocation13 + $0x1c8] sm:$0xff]
    %v3800 = vld [vmem:[#allocation13 + $0x1d0] sm:$0xff]
    %v3801 = vld [vmem:[#allocation13 + $0x1d8] sm:$0xff]
    %v3802 = vld [vmem:[#allocation13 + $0x1e0] sm:$0xff]
    %v3803 = vld [vmem:[#allocation13 + $0x1e8] sm:$0xff]
    %v3804 = vld [vmem:[#allocation13 + $0x1f0] sm:$0xff]
    %v3805 = vld [vmem:[#allocation13 + $0x1f8] sm:$0xff]
    %v3806 = vld [vmem:[#allocation13 + $0x200] sm:$0xff]
    %v3807 = vld [vmem:[#allocation13 + $0x208] sm:$0xff]
    %v3808 = vld [vmem:[#allocation13 + $0x210] sm:$0xff]
    %v3809 = vld [vmem:[#allocation13 + $0x218] sm:$0xff]
    %v3810 = vld [vmem:[#allocation13 + $0x220] sm:$0xff]
    %v3811 = vld [vmem:[#allocation13 + $0x228] sm:$0xff]
    %v3812 = vld [vmem:[#allocation13 + $0x230] sm:$0xff]
    %v3813 = vld [vmem:[#allocation13 + $0x238] sm:$0xff]
    %v3814 = vld [vmem:[#allocation13 + $0x240] sm:$0xff]
    %v3815 = vld [vmem:[#allocation13 + $0x248] sm:$0xff]
    %v3816 = vld [vmem:[#allocation13 + $0x250] sm:$0xff]
    %v3817 = vld [vmem:[#allocation13 + $0x258] sm:$0xff]
    %v3818 = vld [vmem:[#allocation13 + $0x260] sm:$0xff]
    %v3819 = vld [vmem:[#allocation13 + $0x268] sm:$0xff]
    %v3820 = vld [vmem:[#allocation13 + $0x270] sm:$0xff]
    %v3821 = vld [vmem:[#allocation13 + $0x278] sm:$0xff]
    %v3822 = vld [vmem:[#allocation13 + $0x280] sm:$0xff]
    %v3823 = vld [vmem:[#allocation13 + $0x288] sm:$0xff]
    %v3824 = vld [vmem:[#allocation13 + $0x290] sm:$0xff]
    %v3825 = vld [vmem:[#allocation13 + $0x298] sm:$0xff]
    %v3826 = vld [vmem:[#allocation13 + $0x2a0] sm:$0xff]
    %v3827 = vld [vmem:[#allocation13 + $0x2a8] sm:$0xff]
    %v3828 = vld [vmem:[#allocation13 + $0x2b0] sm:$0xff]
    %v3829 = vld [vmem:[#allocation13 + $0x2b8] sm:$0xff]
    %v3830 = vld [vmem:[#allocation13 + $0x2c0] sm:$0xff]
    %v3831 = vld [vmem:[#allocation13 + $0x2c8] sm:$0xff]
    %v3832 = vld [vmem:[#allocation13 + $0x2d0] sm:$0xff]
    %v3833 = vld [vmem:[#allocation13 + $0x2d8] sm:$0xff]
    %v3834 = vld [vmem:[#allocation13 + $0x2e0] sm:$0xff]
    %v3835 = vld [vmem:[#allocation13 + $0x2e8] sm:$0xff]
    %v3836 = vld [vmem:[#allocation13 + $0x2f0] sm:$0xff]
    %v3837 = vld [vmem:[#allocation13 + $0x2f8] sm:$0xff]
    %v3838 = vld [vmem:[#allocation13 + $0x300] sm:$0xff]
    %v3839 = vld [vmem:[#allocation13 + $0x308] sm:$0xff]
    %v3840 = vld [vmem:[#allocation13 + $0x310] sm:$0xff]
    %v3841 = vld [vmem:[#allocation13 + $0x318] sm:$0xff]
    %v3842 = vld [vmem:[#allocation13 + $0x320] sm:$0xff]
    %v3843 = vld [vmem:[#allocation13 + $0x328] sm:$0xff]
    %v3844 = vld [vmem:[#allocation13 + $0x330] sm:$0xff]
    %v3845 = vld [vmem:[#allocation13 + $0x338] sm:$0xff]
    %v3846 = vld [vmem:[#allocation13 + $0x340] sm:$0xff]
    %v3847 = vld [vmem:[#allocation13 + $0x348] sm:$0xff]
    %v3848 = vld [vmem:[#allocation13 + $0x350] sm:$0xff]
    %v3849 = vld [vmem:[#allocation13 + $0x358] sm:$0xff]
    %v3850 = vld [vmem:[#allocation13 + $0x360] sm:$0xff]
    %v3851 = vld [vmem:[#allocation13 + $0x368] sm:$0xff]
    %v3852 = vld [vmem:[#allocation13 + $0x370] sm:$0xff]
    %v3853 = vld [vmem:[#allocation13 + $0x378] sm:$0xff]
    %v3854 = vld [vmem:[#allocation13 + $0x380] sm:$0xff]
    %v3855 = vld [vmem:[#allocation13 + $0x388] sm:$0xff]
    %v3856 = vld [vmem:[#allocation13 + $0x390] sm:$0xff]
    %v3857 = vld [vmem:[#allocation13 + $0x398] sm:$0xff]
    %v3858 = vld [vmem:[#allocation13 + $0x3a0] sm:$0xff]
    %v3859 = vld [vmem:[#allocation13 + $0x3a8] sm:$0xff]
    %v3860 = vld [vmem:[#allocation13 + $0x3b0] sm:$0xff]
    %v3861 = vld [vmem:[#allocation13 + $0x3b8] sm:$0xff]
    %v3862 = vld [vmem:[#allocation13 + $0x3c0] sm:$0xff]
    %v3863 = vld [vmem:[#allocation13 + $0x3c8] sm:$0xff]
    %v3864 = vld [vmem:[#allocation13 + $0x3d0] sm:$0xff]
    %v3865 = vld [vmem:[#allocation13 + $0x3d8] sm:$0xff]
    %v3866 = vld [vmem:[#allocation13 + $0x3e0] sm:$0xff]
    %v3867 = vld [vmem:[#allocation13 + $0x3e8] sm:$0xff]
    %v3868 = vld [vmem:[#allocation13 + $0x3f0] sm:$0xff]
    %v3869 = vld [vmem:[#allocation13 + $0x3f8] sm:$0xff]
    %v3870 = vld [vmem:[#allocation13 + $0x400] sm:$0xff]
    %v3871 = vld [vmem:[#allocation13 + $0x408] sm:$0xff]
    %v3872 = vld [vmem:[#allocation13 + $0x410] sm:$0xff]
    %v3873 = vld [vmem:[#allocation13 + $0x418] sm:$0xff]
    %v3874 = vld [vmem:[#allocation13 + $0x420] sm:$0xff]
    %v3875 = vld [vmem:[#allocation13 + $0x428] sm:$0xff]
    %v3876 = vld [vmem:[#allocation13 + $0x430] sm:$0xff]
    %v3877 = vld [vmem:[#allocation13 + $0x438] sm:$0xff]
    %v3878 = vld [vmem:[#allocation13 + $0x440] sm:$0xff]
    %v3879 = vld [vmem:[#allocation13 + $0x448] sm:$0xff]
    %v3880 = vld [vmem:[#allocation13 + $0x450] sm:$0xff]
    %v3881 = vld [vmem:[#allocation13 + $0x458] sm:$0xff]
    %v3882 = vld [vmem:[#allocation13 + $0x460] sm:$0xff]
    %v3883 = vld [vmem:[#allocation13 + $0x468] sm:$0xff]
    %v3884 = vld [vmem:[#allocation13 + $0x470] sm:$0xff]
    %v3885 = vld [vmem:[#allocation13 + $0x478] sm:$0xff]
    %v3886 = vld [vmem:[#allocation13 + $0x480] sm:$0xff]
    %v3887 = vld [vmem:[#allocation13 + $0x488] sm:$0xff]
    %v3888 = vld [vmem:[#allocation13 + $0x490] sm:$0xff]
    %v3889 = vld [vmem:[#allocation13 + $0x498] sm:$0xff]
    %v3890 = vld [vmem:[#allocation13 + $0x4a0] sm:$0xff]
    %v3891 = vld [vmem:[#allocation13 + $0x4a8] sm:$0xff]
    %v3892 = vld [vmem:[#allocation13 + $0x4b0] sm:$0xff]
    %v3893 = vld [vmem:[#allocation13 + $0x4b8] sm:$0xff]
    %v3894 = vld [vmem:[#allocation13 + $0x4c0] sm:$0xff]
    %v3895 = vld [vmem:[#allocation13 + $0x4c8] sm:$0xff]
    %v3896 = vld [vmem:[#allocation13 + $0x4d0] sm:$0xff]
    %v3897 = vld [vmem:[#allocation13 + $0x4d8] sm:$0xff]
    %v3898 = vld [vmem:[#allocation13 + $0x4e0] sm:$0xff]
    %v3899 = vld [vmem:[#allocation13 + $0x4e8] sm:$0xff]
    %v3900 = vld [vmem:[#allocation13 + $0x4f0] sm:$0xff]
    %v3901 = vld [vmem:[#allocation13 + $0x4f8] sm:$0xff]
    %v3902 = vld [vmem:[#allocation13 + $0x500] sm:$0xff]
    %v3903 = vld [vmem:[#allocation13 + $0x508] sm:$0xff]
    %v3904 = vld [vmem:[#allocation13 + $0x510] sm:$0xff]
    %v3905 = vld [vmem:[#allocation13 + $0x518] sm:$0xff]
    %v3906 = vld [vmem:[#allocation13 + $0x520] sm:$0xff]
    %v3907 = vld [vmem:[#allocation13 + $0x528] sm:$0xff]
    %v3908 = vld [vmem:[#allocation13 + $0x530] sm:$0xff]
    %v3909 = vld [vmem:[#allocation13 + $0x538] sm:$0xff]
    %v3910 = vld [vmem:[#allocation13 + $0x540] sm:$0xff]
    %v3911 = vld [vmem:[#allocation13 + $0x548] sm:$0xff]
    %v3912 = vld [vmem:[#allocation13 + $0x550] sm:$0xff]
    %v3913 = vld [vmem:[#allocation13 + $0x558] sm:$0xff]
    %v3914 = vld [vmem:[#allocation13 + $0x560] sm:$0xff]
    %v3915 = vld [vmem:[#allocation13 + $0x568] sm:$0xff]
    %v3916 = vld [vmem:[#allocation13 + $0x570] sm:$0xff]
    %v3917 = vld [vmem:[#allocation13 + $0x578] sm:$0xff]
    %v3918 = vld [vmem:[#allocation13 + $0x580] sm:$0xff]
    %v3919 = vld [vmem:[#allocation13 + $0x588] sm:$0xff]
    %v3920 = vld [vmem:[#allocation13 + $0x590] sm:$0xff]
    %v3921 = vld [vmem:[#allocation13 + $0x598] sm:$0xff]
    %v3922 = vld [vmem:[#allocation13 + $0x5a0] sm:$0xff]
    %v3923 = vld [vmem:[#allocation13 + $0x5a8] sm:$0xff]
    %v3924 = vld [vmem:[#allocation13 + $0x5b0] sm:$0xff]
    %v3925 = vld [vmem:[#allocation13 + $0x5b8] sm:$0xff]
    %v3926 = vld [vmem:[#allocation13 + $0x5c0] sm:$0xff]
    %v3927 = vld [vmem:[#allocation13 + $0x5c8] sm:$0xff]
    %v3928 = vld [vmem:[#allocation13 + $0x5d0] sm:$0xff]
    %v3929 = vld [vmem:[#allocation13 + $0x5d8] sm:$0xff]
    %v3930 = vld [vmem:[#allocation13 + $0x5e0] sm:$0xff]
    %v3931 = vld [vmem:[#allocation13 + $0x5e8] sm:$0xff]
    %v3932 = vld [vmem:[#allocation13 + $0x5f0] sm:$0xff]
    %v3933 = vld [vmem:[#allocation13 + $0x5f8] sm:$0xff]
    %v3934 = vld [vmem:[#allocation13 + $0x600] sm:$0xff]
    %v3935 = vld [vmem:[#allocation13 + $0x608] sm:$0xff]
    %v3936 = vld [vmem:[#allocation13 + $0x610] sm:$0xff]
    %v3937 = vld [vmem:[#allocation13 + $0x618] sm:$0xff]
    %v3938 = vld [vmem:[#allocation13 + $0x620] sm:$0xff]
    %v3939 = vld [vmem:[#allocation13 + $0x628] sm:$0xff]
    %v3940 = vld [vmem:[#allocation13 + $0x630] sm:$0xff]
    %v3941 = vld [vmem:[#allocation13 + $0x638] sm:$0xff]
    %v3942 = vld [vmem:[#allocation13 + $0x640] sm:$0xff]
    %v3943 = vld [vmem:[#allocation13 + $0x648] sm:$0xff]
    %v3944 = vld [vmem:[#allocation13 + $0x650] sm:$0xff]
    %v3945 = vld [vmem:[#allocation13 + $0x658] sm:$0xff]
    %v3946 = vld [vmem:[#allocation13 + $0x660] sm:$0xff]
    %v3947 = vld [vmem:[#allocation13 + $0x668] sm:$0xff]
    %v3948 = vld [vmem:[#allocation13 + $0x670] sm:$0xff]
    %v3949 = vld [vmem:[#allocation13 + $0x678] sm:$0xff]
    %v3950 = vld [vmem:[#allocation13 + $0x680] sm:$0xff]
    %v3951 = vld [vmem:[#allocation13 + $0x688] sm:$0xff]
    %v3952 = vld [vmem:[#allocation13 + $0x690] sm:$0xff]
    %v3953 = vld [vmem:[#allocation13 + $0x698] sm:$0xff]
    %v3954 = vld [vmem:[#allocation13 + $0x6a0] sm:$0xff]
    %v3955 = vld [vmem:[#allocation13 + $0x6a8] sm:$0xff]
    %v3956 = vld [vmem:[#allocation13 + $0x6b0] sm:$0xff]
    %v3957 = vld [vmem:[#allocation13 + $0x6b8] sm:$0xff]
    %v3958 = vld [vmem:[#allocation13 + $0x6c0] sm:$0xff]
    %v3959 = vld [vmem:[#allocation13 + $0x6c8] sm:$0xff]
    %v3960 = vld [vmem:[#allocation13 + $0x6d0] sm:$0xff]
    %v3961 = vld [vmem:[#allocation13 + $0x6d8] sm:$0xff]
    %v3962 = vld [vmem:[#allocation13 + $0x6e0] sm:$0xff]
    %v3963 = vld [vmem:[#allocation13 + $0x6e8] sm:$0xff]
    %v3964 = vld [vmem:[#allocation13 + $0x6f0] sm:$0xff]
    %v3965 = vld [vmem:[#allocation13 + $0x6f8] sm:$0xff]
    %v3966 = vld [vmem:[#allocation13 + $0x700] sm:$0xff]
    %v3967 = vld [vmem:[#allocation13 + $0x708] sm:$0xff]
    %v3968 = vld [vmem:[#allocation13 + $0x710] sm:$0xff]
    %v3969 = vld [vmem:[#allocation13 + $0x718] sm:$0xff]
    %v3970 = vld [vmem:[#allocation13 + $0x720] sm:$0xff]
    %v3971 = vld [vmem:[#allocation13 + $0x728] sm:$0xff]
    %v3972 = vld [vmem:[#allocation13 + $0x730] sm:$0xff]
    %v3973 = vld [vmem:[#allocation13 + $0x738] sm:$0xff]
    %v3974 = vld [vmem:[#allocation13 + $0x740] sm:$0xff]
    %v3975 = vld [vmem:[#allocation13 + $0x748] sm:$0xff]
    %v3976 = vld [vmem:[#allocation13 + $0x750] sm:$0xff]
    %v3977 = vld [vmem:[#allocation13 + $0x758] sm:$0xff]
    %v3978 = vld [vmem:[#allocation13 + $0x760] sm:$0xff]
    %v3979 = vld [vmem:[#allocation13 + $0x768] sm:$0xff]
    %v3980 = vld [vmem:[#allocation13 + $0x770] sm:$0xff]
    %v3981 = vld [vmem:[#allocation13 + $0x778] sm:$0xff]
    %v3982 = vld [vmem:[#allocation13 + $0x780] sm:$0xff]
    %v3983 = vld [vmem:[#allocation13 + $0x788] sm:$0xff]
    %v3984 = vld [vmem:[#allocation13 + $0x790] sm:$0xff]
    %v3985 = vld [vmem:[#allocation13 + $0x798] sm:$0xff]
    %v3986 = vld [vmem:[#allocation13 + $0x7a0] sm:$0xff]
    %v3987 = vld [vmem:[#allocation13 + $0x7a8] sm:$0xff]
    %v3988 = vld [vmem:[#allocation13 + $0x7b0] sm:$0xff]
    %v3989 = vld [vmem:[#allocation13 + $0x7b8] sm:$0xff]
    %v3990 = vld [vmem:[#allocation13 + $0x7c0] sm:$0xff]
    %v3991 = vld [vmem:[#allocation13 + $0x7c8] sm:$0xff]
    %v3992 = vld [vmem:[#allocation13 + $0x7d0] sm:$0xff]
    %v3993 = vld [vmem:[#allocation13 + $0x7d8] sm:$0xff]
    %v3994 = vld [vmem:[#allocation13 + $0x7e0] sm:$0xff]
    %v3995 = vld [vmem:[#allocation13 + $0x7e8] sm:$0xff]
    %v3996 = vld [vmem:[#allocation13 + $0x7f0] sm:$0xff]
    %v3997 = vld [vmem:[#allocation13 + $0x7f8] sm:$0xff]
    %3998 = vmatprep.subr.mxu0 %v3743
    %3999 = vmatpush1.msra.mxu0 %v3742
    %4000 = vmatprep.subr.mxu0 %v3751
    %4001 = vmatpush1.msra.mxu0 %v3750
    %4002 = vmatprep.subr.mxu0 %v3759
    %4003 = vmatpush1.msra.mxu0 %v3758
    %4004 = vmatprep.subr.mxu0 %v3767
    %4005 = vmatpush1.msra.mxu0 %v3766
    %4006 = vmatprep.subr.mxu0 %v3775
    %4007 = vmatpush1.msra.mxu0 %v3774
    %4008 = vmatprep.subr.mxu0 %v3783
    %4009 = vmatpush1.msra.mxu0 %v3782
    %4010 = vmatprep.subr.mxu0 %v3791
    %4011 = vmatpush1.msra.mxu0 %v3790
    %4012 = vmatprep.subr.mxu0 %v3799
    %4013 = vmatpush1.msra.mxu0 %v3798
    %4014 = vmatprep.subr.mxu0 %v3807
    %4015 = vmatpush1.msra.mxu0 %v3806
    %4016 = vmatprep.subr.mxu0 %v3815
    %4017 = vmatpush1.msra.mxu0 %v3814
    %4018 = vmatprep.subr.mxu0 %v3823
    %4019 = vmatpush1.msra.mxu0 %v3822
    %4020 = vmatprep.subr.mxu0 %v3831
    %4021 = vmatpush1.msra.mxu0 %v3830
    %4022 = vmatprep.subr.mxu0 %v3839
    %4023 = vmatpush1.msra.mxu0 %v3838
    %4024 = vmatprep.subr.mxu0 %v3847
    %4025 = vmatpush1.msra.mxu0 %v3846
    %4026 = vmatprep.subr.mxu0 %v3855
    %4027 = vmatpush1.msra.mxu0 %v3854
    %4028 = vmatprep.subr.mxu0 %v3863
    %4029 = vmatpush1.msra.mxu0 %v3862
    %4030 = vmatprep.subr.mxu0 %v3871
    %4031 = vmatpush1.msra.mxu0 %v3870
    %4032 = vmatprep.subr.mxu0 %v3879
    %4033 = vmatpush1.msra.mxu0 %v3878
    %4034 = vmatprep.subr.mxu0 %v3887
    %4035 = vmatpush1.msra.mxu0 %v3886
    %4036 = vmatprep.subr.mxu0 %v3895
    %4037 = vmatpush1.msra.mxu0 %v3894
    %4038 = vmatprep.subr.mxu0 %v3903
    %4039 = vmatpush1.msra.mxu0 %v3902
    %4040 = vmatprep.subr.mxu0 %v3911
    %4041 = vmatpush1.msra.mxu0 %v3910
    %4042 = vmatprep.subr.mxu0 %v3919
    %4043 = vmatpush1.msra.mxu0 %v3918
    %4044 = vmatprep.subr.mxu0 %v3927
    %4045 = vmatpush1.msra.mxu0 %v3926
    %4046 = vmatprep.subr.mxu0 %v3935
    %4047 = vmatpush1.msra.mxu0 %v3934
    %4048 = vmatprep.subr.mxu0 %v3943
    %4049 = vmatpush1.msra.mxu0 %v3942
    %4050 = vmatprep.subr.mxu0 %v3951
    %4051 = vmatpush1.msra.mxu0 %v3950
    %4052 = vmatprep.subr.mxu0 %v3959
    %4053 = vmatpush1.msra.mxu0 %v3958
    %4054 = vmatprep.subr.mxu0 %v3967
    %4055 = vmatpush1.msra.mxu0 %v3966
    %4056 = vmatprep.subr.mxu0 %v3975
    %4057 = vmatpush1.msra.mxu0 %v3974
    %4058 = vmatprep.subr.mxu0 %v3983
    %4059 = vmatpush1.msra.mxu0 %v3982
    %4060 = vmatprep.subr.mxu0 %v3991
    %4061 = vmatpush1.msra.mxu0 %v3990
    %4062 = vmatprep.mubr.f32.mxu0 %v3730
    %4063 = vmatmul.mubr.f32.gmra.mrb[0].mxu0 %v3729
    %v4064 = vpop.f32.mrb[0].mxu0
    %v4065 = vadd.f32 0.0, %v4064
    %v4066 = vpop.f32.mrb[0].mxu0
    %v4067 = vadd.f32 0.0, %v4066
    %4068 = vdwg.mxu0
    %4069 = vmatprep.subr.mxu0 %v3745
    %4070 = vmatpush1.msra.mxu0 %v3744
    %4071 = vmatprep.subr.mxu0 %v3753
    %4072 = vmatpush1.msra.mxu0 %v3752
    %4073 = vmatprep.subr.mxu0 %v3761
    %4074 = vmatpush1.msra.mxu0 %v3760
    %4075 = vmatprep.subr.mxu0 %v3769
    %4076 = vmatpush1.msra.mxu0 %v3768
    %4077 = vmatprep.subr.mxu0 %v3777
    %4078 = vmatpush1.msra.mxu0 %v3776
    %4079 = vmatprep.subr.mxu0 %v3785
    %4080 = vmatpush1.msra.mxu0 %v3784
    %4081 = vmatprep.subr.mxu0 %v3793
    %4082 = vmatpush1.msra.mxu0 %v3792
    %4083 = vmatprep.subr.mxu0 %v3801
    %4084 = vmatpush1.msra.mxu0 %v3800
    %4085 = vmatprep.subr.mxu0 %v3809
    %4086 = vmatpush1.msra.mxu0 %v3808
    %4087 = vmatprep.subr.mxu0 %v3817
    %4088 = vmatpush1.msra.mxu0 %v3816
    %4089 = vmatprep.subr.mxu0 %v3825
    %4090 = vmatpush1.msra.mxu0 %v3824
    %4091 = vmatprep.subr.mxu0 %v3833
    %4092 = vmatpush1.msra.mxu0 %v3832
    %4093 = vmatprep.subr.mxu0 %v3841
    %4094 = vmatpush1.msra.mxu0 %v3840
    %4095 = vmatprep.subr.mxu0 %v3849
    %4096 = vmatpush1.msra.mxu0 %v3848
    %4097 = vmatprep.subr.mxu0 %v3857
    %4098 = vmatpush1.msra.mxu0 %v3856
    %4099 = vmatprep.subr.mxu0 %v3865
    %4100 = vmatpush1.msra.mxu0 %v3864
    %4101 = vmatprep.subr.mxu0 %v3873
    %4102 = vmatpush1.msra.mxu0 %v3872
    %4103 = vmatprep.subr.mxu0 %v3881
    %4104 = vmatpush1.msra.mxu0 %v3880
    %4105 = vmatprep.subr.mxu0 %v3889
    %4106 = vmatpush1.msra.mxu0 %v3888
    %4107 = vmatprep.subr.mxu0 %v3897
    %4108 = vmatpush1.msra.mxu0 %v3896
    %4109 = vmatprep.subr.mxu0 %v3905
    %4110 = vmatpush1.msra.mxu0 %v3904
    %4111 = vmatprep.subr.mxu0 %v3913
    %4112 = vmatpush1.msra.mxu0 %v3912
    %4113 = vmatprep.subr.mxu0 %v3921
    %4114 = vmatpush1.msra.mxu0 %v3920
    %4115 = vmatprep.subr.mxu0 %v3929
    %4116 = vmatpush1.msra.mxu0 %v3928
    %4117 = vmatprep.subr.mxu0 %v3937
    %4118 = vmatpush1.msra.mxu0 %v3936
    %4119 = vmatprep.subr.mxu0 %v3945
    %4120 = vmatpush1.msra.mxu0 %v3944
    %4121 = vmatprep.subr.mxu0 %v3953
    %4122 = vmatpush1.msra.mxu0 %v3952
    %4123 = vmatprep.subr.mxu0 %v3961
    %4124 = vmatpush1.msra.mxu0 %v3960
    %4125 = vmatprep.subr.mxu0 %v3969
    %4126 = vmatpush1.msra.mxu0 %v3968
    %4127 = vmatprep.subr.mxu0 %v3977
    %4128 = vmatpush1.msra.mxu0 %v3976
    %4129 = vmatprep.subr.mxu0 %v3985
    %4130 = vmatpush1.msra.mxu0 %v3984
    %4131 = vmatprep.subr.mxu0 %v3993
    %4132 = vmatpush1.msra.mxu0 %v3992
    %4133 = vmatprep.mubr.f32.mxu0 %v3730
    %4134 = vmatmul.mubr.f32.gmra.mrb[0].mxu0 %v3729
    %v4135 = vpop.f32.mrb[0].mxu0
    %v4136 = vadd.f32 0.0, %v4135
    %v4137 = vpop.f32.mrb[0].mxu0
    %v4138 = vadd.f32 0.0, %v4137
    %4139 = vdwg.mxu0
    %4140 = vmatprep.subr.mxu0 %v3747
    %4141 = vmatpush1.msra.mxu0 %v3746
    %4142 = vmatprep.subr.mxu0 %v3755
    %4143 = vmatpush1.msra.mxu0 %v3754
    %4144 = vmatprep.subr.mxu0 %v3763
    %4145 = vmatpush1.msra.mxu0 %v3762
    %4146 = vmatprep.subr.mxu0 %v3771
    %4147 = vmatpush1.msra.mxu0 %v3770
    %4148 = vmatprep.subr.mxu0 %v3779
    %4149 = vmatpush1.msra.mxu0 %v3778
    %4150 = vmatprep.subr.mxu0 %v3787
    %4151 = vmatpush1.msra.mxu0 %v3786
    %4152 = vmatprep.subr.mxu0 %v3795
    %4153 = vmatpush1.msra.mxu0 %v3794
    %4154 = vmatprep.subr.mxu0 %v3803
    %4155 = vmatpush1.msra.mxu0 %v3802
    %4156 = vmatprep.subr.mxu0 %v3811
    %4157 = vmatpush1.msra.mxu0 %v3810
    %4158 = vmatprep.subr.mxu0 %v3819
    %4159 = vmatpush1.msra.mxu0 %v3818
    %4160 = vmatprep.subr.mxu0 %v3827
    %4161 = vmatpush1.msra.mxu0 %v3826
    %4162 = vmatprep.subr.mxu0 %v3835
    %4163 = vmatpush1.msra.mxu0 %v3834
    %4164 = vmatprep.subr.mxu0 %v3843
    %4165 = vmatpush1.msra.mxu0 %v3842
    %4166 = vmatprep.subr.mxu0 %v3851
    %4167 = vmatpush1.msra.mxu0 %v3850
    %4168 = vmatprep.subr.mxu0 %v3859
    %4169 = vmatpush1.msra.mxu0 %v3858
    %4170 = vmatprep.subr.mxu0 %v3867
    %4171 = vmatpush1.msra.mxu0 %v3866
    %4172 = vmatprep.subr.mxu0 %v3875
    %4173 = vmatpush1.msra.mxu0 %v3874
    %4174 = vmatprep.subr.mxu0 %v3883
    %4175 = vmatpush1.msra.mxu0 %v3882
    %4176 = vmatprep.subr.mxu0 %v3891
    %4177 = vmatpush1.msra.mxu0 %v3890
    %4178 = vmatprep.subr.mxu0 %v3899
    %4179 = vmatpush1.msra.mxu0 %v3898
    %4180 = vmatprep.subr.mxu0 %v3907
    %4181 = vmatpush1.msra.mxu0 %v3906
    %4182 = vmatprep.subr.mxu0 %v3915
    %4183 = vmatpush1.msra.mxu0 %v3914
    %4184 = vmatprep.subr.mxu0 %v3923
    %4185 = vmatpush1.msra.mxu0 %v3922
    %4186 = vmatprep.subr.mxu0 %v3931
    %4187 = vmatpush1.msra.mxu0 %v3930
    %4188 = vmatprep.subr.mxu0 %v3939
    %4189 = vmatpush1.msra.mxu0 %v3938
    %4190 = vmatprep.subr.mxu0 %v3947
    %4191 = vmatpush1.msra.mxu0 %v3946
    %4192 = vmatprep.subr.mxu0 %v3955
    %4193 = vmatpush1.msra.mxu0 %v3954
    %4194 = vmatprep.subr.mxu0 %v3963
    %4195 = vmatpush1.msra.mxu0 %v3962
    %4196 = vmatprep.subr.mxu0 %v3971
    %4197 = vmatpush1.msra.mxu0 %v3970
    %4198 = vmatprep.subr.mxu0 %v3979
    %4199 = vmatpush1.msra.mxu0 %v3978
    %4200 = vmatprep.subr.mxu0 %v3987
    %4201 = vmatpush1.msra.mxu0 %v3986
    %4202 = vmatprep.subr.mxu0 %v3995
    %4203 = vmatpush1.msra.mxu0 %v3994
    %4204 = vmatprep.mubr.f32.mxu0 %v3730
    %4205 = vmatmul.mubr.f32.gmra.mrb[0].mxu0 %v3729
    %v4206 = vpop.f32.mrb[0].mxu0
    %v4207 = vadd.f32 0.0, %v4206
    %v4208 = vpop.f32.mrb[0].mxu0
    %v4209 = vadd.f32 0.0, %v4208
    %4210 = vdwg.mxu0
    %4211 = vmatprep.subr.mxu0 %v3749
    %4212 = vmatpush1.msra.mxu0 %v3748
    %4213 = vmatprep.subr.mxu0 %v3757
    %4214 = vmatpush1.msra.mxu0 %v3756
    %4215 = vmatprep.subr.mxu0 %v3765
    %4216 = vmatpush1.msra.mxu0 %v3764
    %4217 = vmatprep.subr.mxu0 %v3773
    %4218 = vmatpush1.msra.mxu0 %v3772
    %4219 = vmatprep.subr.mxu0 %v3781
    %4220 = vmatpush1.msra.mxu0 %v3780
    %4221 = vmatprep.subr.mxu0 %v3789
    %4222 = vmatpush1.msra.mxu0 %v3788
    %4223 = vmatprep.subr.mxu0 %v3797
    %4224 = vmatpush1.msra.mxu0 %v3796
    %4225 = vmatprep.subr.mxu0 %v3805
    %4226 = vmatpush1.msra.mxu0 %v3804
    %4227 = vmatprep.subr.mxu0 %v3813
    %4228 = vmatpush1.msra.mxu0 %v3812
    %4229 = vmatprep.subr.mxu0 %v3821
    %4230 = vmatpush1.msra.mxu0 %v3820
    %4231 = vmatprep.subr.mxu0 %v3829
    %4232 = vmatpush1.msra.mxu0 %v3828
    %4233 = vmatprep.subr.mxu0 %v3837
    %4234 = vmatpush1.msra.mxu0 %v3836
    %4235 = vmatprep.subr.mxu0 %v3845
    %4236 = vmatpush1.msra.mxu0 %v3844
    %4237 = vmatprep.subr.mxu0 %v3853
    %4238 = vmatpush1.msra.mxu0 %v3852
    %4239 = vmatprep.subr.mxu0 %v3861
    %4240 = vmatpush1.msra.mxu0 %v3860
    %4241 = vmatprep.subr.mxu0 %v3869
    %4242 = vmatpush1.msra.mxu0 %v3868
    %4243 = vmatprep.subr.mxu0 %v3877
    %4244 = vmatpush1.msra.mxu0 %v3876
    %4245 = vmatprep.subr.mxu0 %v3885
    %4246 = vmatpush1.msra.mxu0 %v3884
    %4247 = vmatprep.subr.mxu0 %v3893
    %4248 = vmatpush1.msra.mxu0 %v3892
    %4249 = vmatprep.subr.mxu0 %v3901
    %4250 = vmatpush1.msra.mxu0 %v3900
    %4251 = vmatprep.subr.mxu0 %v3909
    %4252 = vmatpush1.msra.mxu0 %v3908
    %4253 = vmatprep.subr.mxu0 %v3917
    %4254 = vmatpush1.msra.mxu0 %v3916
    %4255 = vmatprep.subr.mxu0 %v3925
    %4256 = vmatpush1.msra.mxu0 %v3924
    %4257 = vmatprep.subr.mxu0 %v3933
    %4258 = vmatpush1.msra.mxu0 %v3932
    %4259 = vmatprep.subr.mxu0 %v3941
    %4260 = vmatpush1.msra.mxu0 %v3940
    %4261 = vmatprep.subr.mxu0 %v3949
    %4262 = vmatpush1.msra.mxu0 %v3948
    %4263 = vmatprep.subr.mxu0 %v3957
    %4264 = vmatpush1.msra.mxu0 %v3956
    %4265 = vmatprep.subr.mxu0 %v3965
    %4266 = vmatpush1.msra.mxu0 %v3964
    %4267 = vmatprep.subr.mxu0 %v3973
    %4268 = vmatpush1.msra.mxu0 %v3972
    %4269 = vmatprep.subr.mxu0 %v3981
    %4270 = vmatpush1.msra.mxu0 %v3980
    %4271 = vmatprep.subr.mxu0 %v3989
    %4272 = vmatpush1.msra.mxu0 %v3988
    %4273 = vmatprep.subr.mxu0 %v3997
    %4274 = vmatpush1.msra.mxu0 %v3996
    %4275 = vmatprep.mubr.f32.mxu0 %v3730
    %4276 = vmatmul.mubr.f32.gmra.mrb[0].mxu0 %v3729
    %v4277 = vpop.f32.mrb[0].mxu0
    %v4278 = vadd.f32 0.0, %v4277
    %v4279 = vpop.f32.mrb[0].mxu0
    %v4280 = vadd.f32 0.0, %v4279
    %4281 = vdwg.mxu0
    %v4282 = vadd.f32 %v3734, %v4065
    %v4283 = vadd.f32 %v3735, %v4067
    %v4284 = vadd.f32 %v3736, %v4136
    %v4285 = vadd.f32 %v3737, %v4138
    %v4286 = vadd.f32 %v3738, %v4207
    %v4287 = vadd.f32 %v3739, %v4209
    %v4288 = vadd.f32 %v3740, %v4278
    %v4289 = vadd.f32 %v3741, %v4280
    %v4290 = vxor.u32 %v4282, 2147483648
    %v4291 = vxor.u32 %v4283, 2147483648
    %v4292 = vmul.f32 %v4290, 1.442695
    %v4293 = vpow.pop %v4292
    %v4294 = vmul.f32 %v4291, 1.442695
    %v4295 = vpow.pop %v4294
    %v4296 = vadd.f32 %v4293, 1.0
    %v4297 = vadd.f32 %v4295, 1.0
    %v4298 = vrcp.pop %v4296
    %v4299 = vmul.f32 1.0, %v4298
    %v4300 = vrcp.pop %v4297
    %v4301 = vmul.f32 1.0, %v4300
    %v4302 = vxor.u32 %v4284, 2147483648
    %v4303 = vxor.u32 %v4285, 2147483648
    %v4304 = vmul.f32 %v4302, 1.442695
    %v4305 = vpow.pop %v4304
    %v4306 = vmul.f32 %v4303, 1.442695
    %v4307 = vpow.pop %v4306
    %v4308 = vadd.f32 %v4305, 1.0
    %v4309 = vadd.f32 %v4307, 1.0
    %v4310 = vrcp.pop %v4308
    %v4311 = vmul.f32 1.0, %v4310
    %v4312 = vrcp.pop %v4309
    %v4313 = vmul.f32 1.0, %v4312
    %v4314 = vtanh.pop %v4286
    %v4315 = vtanh.pop %v4287
    %v4316 = vxor.u32 %v4288, 2147483648
    %v4317 = vxor.u32 %v4289, 2147483648
    %v4318 = vmul.f32 %v4316, 1.442695
    %v4319 = vpow.pop %v4318
    %v4320 = vmul.f32 %v4317, 1.442695
    %v4321 = vpow.pop %v4320
    %v4322 = vadd.f32 %v4319, 1.0
    %v4323 = vadd.f32 %v4321, 1.0
    %v4324 = vrcp.pop %v4322
    %v4325 = vmul.f32 1.0, %v4324
    %v4326 = vrcp.pop %v4323
    %v4327 = vmul.f32 1.0, %v4326
    %v4328 = vmul.f32 %v4311, %v3731
    %v4329 = vmul.f32 %v4313, %v3732
    %v4330 = vmul.f32 %v4299, %v4314
    %v4331 = vmul.f32 %v4301, %v4315
    %v4332 = vadd.f32 %v4328, %v4330
    %v4333 = vadd.f32 %v4329, %v4331
    %v4334 = vtanh.pop %v4332
    %v4335 = vtanh.pop %v4333
    %v4336 = vmul.f32 %v4325, %v4334
    %v4337 = vmul.f32 %v4327, %v4335
    %4338 = vst [vmem:[#allocation3] sm:$0xff] %v4336
    %4339 = vst [vmem:[#allocation3 + $0x8] sm:$0xff] %v4337
    %4340 = vst [vmem:[#allocation4] sm:$0xff] %v4332
    %4341 = vst [vmem:[#allocation4 + $0x8] sm:$0xff] %v4333
    %s4342 = scalar_lea.vmem [#allocation14], 64
    %4343 = vst [vmem:[%s4342] sm:$0xff] %v4336
    %4344 = vst [vmem:[%s4342 + $0x8] sm:$0xff] %v4337
    %v4345 = vld [vmem:[#allocation3] sm:$0xff]
    %v4346 = vld [vmem:[#allocation3 + $0x8] sm:$0xff]
    %v4347 = vld [vmem:[#allocation4] sm:$0xff]
    %v4348 = vld [vmem:[#allocation4 + $0x8] sm:$0xff]
    %s4349 = scalar_lea.vmem [#allocation2], 320
    %v4350 = vld [vmem:[%s4349] sm:$0xff]
    %v4351 = vld [vmem:[%s4349 + $0x8] sm:$0xff]
    %v4352 = vld [vmem:[%s4349 + $0x10] sm:$0xff]
    %v4353 = vld [vmem:[%s4349 + $0x18] sm:$0xff]
    %v4354 = vld [vmem:[%s4349 + $0x20] sm:$0xff]
    %v4355 = vld [vmem:[%s4349 + $0x28] sm:$0xff]
    %v4356 = vld [vmem:[%s4349 + $0x30] sm:$0xff]
    %v4357 = vld [vmem:[%s4349 + $0x38] sm:$0xff]
    %v4358 = vld [vmem:[#allocation13] sm:$0xff]
    %v4359 = vld [vmem:[#allocation13 + $0x8] sm:$0xff]
    %v4360 = vld [vmem:[#allocation13 + $0x10] sm:$0xff]
    %v4361 = vld [vmem:[#allocation13 + $0x18] sm:$0xff]
    %v4362 = vld [vmem:[#allocation13 + $0x20] sm:$0xff]
    %v4363 = vld [vmem:[#allocation13 + $0x28] sm:$0xff]
    %v4364 = vld [vmem:[#allocation13 + $0x30] sm:$0xff]
    %v4365 = vld [vmem:[#allocation13 + $0x38] sm:$0xff]
    %v4366 = vld [vmem:[#allocation13 + $0x40] sm:$0xff]
    %v4367 = vld [vmem:[#allocation13 + $0x48] sm:$0xff]
    %v4368 = vld [vmem:[#allocation13 + $0x50] sm:$0xff]
    %v4369 = vld [vmem:[#allocation13 + $0x58] sm:$0xff]
    %v4370 = vld [vmem:[#allocation13 + $0x60] sm:$0xff]
    %v4371 = vld [vmem:[#allocation13 + $0x68] sm:$0xff]
    %v4372 = vld [vmem:[#allocation13 + $0x70] sm:$0xff]
    %v4373 = vld [vmem:[#allocation13 + $0x78] sm:$0xff]
    %v4374 = vld [vmem:[#allocation13 + $0x80] sm:$0xff]
    %v4375 = vld [vmem:[#allocation13 + $0x88] sm:$0xff]
    %v4376 = vld [vmem:[#allocation13 + $0x90] sm:$0xff]
    %v4377 = vld [vmem:[#allocation13 + $0x98] sm:$0xff]
    %v4378 = vld [vmem:[#allocation13 + $0xa0] sm:$0xff]
    %v4379 = vld [vmem:[#allocation13 + $0xa8] sm:$0xff]
    %v4380 = vld [vmem:[#allocation13 + $0xb0] sm:$0xff]
    %v4381 = vld [vmem:[#allocation13 + $0xb8] sm:$0xff]
    %v4382 = vld [vmem:[#allocation13 + $0xc0] sm:$0xff]
    %v4383 = vld [vmem:[#allocation13 + $0xc8] sm:$0xff]
    %v4384 = vld [vmem:[#allocation13 + $0xd0] sm:$0xff]
    %v4385 = vld [vmem:[#allocation13 + $0xd8] sm:$0xff]
    %v4386 = vld [vmem:[#allocation13 + $0xe0] sm:$0xff]
    %v4387 = vld [vmem:[#allocation13 + $0xe8] sm:$0xff]
    %v4388 = vld [vmem:[#allocation13 + $0xf0] sm:$0xff]
    %v4389 = vld [vmem:[#allocation13 + $0xf8] sm:$0xff]
    %v4390 = vld [vmem:[#allocation13 + $0x100] sm:$0xff]
    %v4391 = vld [vmem:[#allocation13 + $0x108] sm:$0xff]
    %v4392 = vld [vmem:[#allocation13 + $0x110] sm:$0xff]
    %v4393 = vld [vmem:[#allocation13 + $0x118] sm:$0xff]
    %v4394 = vld [vmem:[#allocation13 + $0x120] sm:$0xff]
    %v4395 = vld [vmem:[#allocation13 + $0x128] sm:$0xff]
    %v4396 = vld [vmem:[#allocation13 + $0x130] sm:$0xff]
    %v4397 = vld [vmem:[#allocation13 + $0x138] sm:$0xff]
    %v4398 = vld [vmem:[#allocation13 + $0x140] sm:$0xff]
    %v4399 = vld [vmem:[#allocation13 + $0x148] sm:$0xff]
    %v4400 = vld [vmem:[#allocation13 + $0x150] sm:$0xff]
    %v4401 = vld [vmem:[#allocation13 + $0x158] sm:$0xff]
    %v4402 = vld [vmem:[#allocation13 + $0x160] sm:$0xff]
    %v4403 = vld [vmem:[#allocation13 + $0x168] sm:$0xff]
    %v4404 = vld [vmem:[#allocation13 + $0x170] sm:$0xff]
    %v4405 = vld [vmem:[#allocation13 + $0x178] sm:$0xff]
    %v4406 = vld [vmem:[#allocation13 + $0x180] sm:$0xff]
    %v4407 = vld [vmem:[#allocation13 + $0x188] sm:$0xff]
    %v4408 = vld [vmem:[#allocation13 + $0x190] sm:$0xff]
    %v4409 = vld [vmem:[#allocation13 + $0x198] sm:$0xff]
    %v4410 = vld [vmem:[#allocation13 + $0x1a0] sm:$0xff]
    %v4411 = vld [vmem:[#allocation13 + $0x1a8] sm:$0xff]
    %v4412 = vld [vmem:[#allocation13 + $0x1b0] sm:$0xff]
    %v4413 = vld [vmem:[#allocation13 + $0x1b8] sm:$0xff]
    %v4414 = vld [vmem:[#allocation13 + $0x1c0] sm:$0xff]
    %v4415 = vld [vmem:[#allocation13 + $0x1c8] sm:$0xff]
    %v4416 = vld [vmem:[#allocation13 + $0x1d0] sm:$0xff]
    %v4417 = vld [vmem:[#allocation13 + $0x1d8] sm:$0xff]
    %v4418 = vld [vmem:[#allocation13 + $0x1e0] sm:$0xff]
    %v4419 = vld [vmem:[#allocation13 + $0x1e8] sm:$0xff]
    %v4420 = vld [vmem:[#allocation13 + $0x1f0] sm:$0xff]
    %v4421 = vld [vmem:[#allocation13 + $0x1f8] sm:$0xff]
    %v4422 = vld [vmem:[#allocation13 + $0x200] sm:$0xff]
    %v4423 = vld [vmem:[#allocation13 + $0x208] sm:$0xff]
    %v4424 = vld [vmem:[#allocation13 + $0x210] sm:$0xff]
    %v4425 = vld [vmem:[#allocation13 + $0x218] sm:$0xff]
    %v4426 = vld [vmem:[#allocation13 + $0x220] sm:$0xff]
    %v4427 = vld [vmem:[#allocation13 + $0x228] sm:$0xff]
    %v4428 = vld [vmem:[#allocation13 + $0x230] sm:$0xff]
    %v4429 = vld [vmem:[#allocation13 + $0x238] sm:$0xff]
    %v4430 = vld [vmem:[#allocation13 + $0x240] sm:$0xff]
    %v4431 = vld [vmem:[#allocation13 + $0x248] sm:$0xff]
    %v4432 = vld [vmem:[#allocation13 + $0x250] sm:$0xff]
    %v4433 = vld [vmem:[#allocation13 + $0x258] sm:$0xff]
    %v4434 = vld [vmem:[#allocation13 + $0x260] sm:$0xff]
    %v4435 = vld [vmem:[#allocation13 + $0x268] sm:$0xff]
    %v4436 = vld [vmem:[#allocation13 + $0x270] sm:$0xff]
    %v4437 = vld [vmem:[#allocation13 + $0x278] sm:$0xff]
    %v4438 = vld [vmem:[#allocation13 + $0x280] sm:$0xff]
    %v4439 = vld [vmem:[#allocation13 + $0x288] sm:$0xff]
    %v4440 = vld [vmem:[#allocation13 + $0x290] sm:$0xff]
    %v4441 = vld [vmem:[#allocation13 + $0x298] sm:$0xff]
    %v4442 = vld [vmem:[#allocation13 + $0x2a0] sm:$0xff]
    %v4443 = vld [vmem:[#allocation13 + $0x2a8] sm:$0xff]
    %v4444 = vld [vmem:[#allocation13 + $0x2b0] sm:$0xff]
    %v4445 = vld [vmem:[#allocation13 + $0x2b8] sm:$0xff]
    %v4446 = vld [vmem:[#allocation13 + $0x2c0] sm:$0xff]
    %v4447 = vld [vmem:[#allocation13 + $0x2c8] sm:$0xff]
    %v4448 = vld [vmem:[#allocation13 + $0x2d0] sm:$0xff]
    %v4449 = vld [vmem:[#allocation13 + $0x2d8] sm:$0xff]
    %v4450 = vld [vmem:[#allocation13 + $0x2e0] sm:$0xff]
    %v4451 = vld [vmem:[#allocation13 + $0x2e8] sm:$0xff]
    %v4452 = vld [vmem:[#allocation13 + $0x2f0] sm:$0xff]
    %v4453 = vld [vmem:[#allocation13 + $0x2f8] sm:$0xff]
    %v4454 = vld [vmem:[#allocation13 + $0x300] sm:$0xff]
    %v4455 = vld [vmem:[#allocation13 + $0x308] sm:$0xff]
    %v4456 = vld [vmem:[#allocation13 + $0x310] sm:$0xff]
    %v4457 = vld [vmem:[#allocation13 + $0x318] sm:$0xff]
    %v4458 = vld [vmem:[#allocation13 + $0x320] sm:$0xff]
    %v4459 = vld [vmem:[#allocation13 + $0x328] sm:$0xff]
    %v4460 = vld [vmem:[#allocation13 + $0x330] sm:$0xff]
    %v4461 = vld [vmem:[#allocation13 + $0x338] sm:$0xff]
    %v4462 = vld [vmem:[#allocation13 + $0x340] sm:$0xff]
    %v4463 = vld [vmem:[#allocation13 + $0x348] sm:$0xff]
    %v4464 = vld [vmem:[#allocation13 + $0x350] sm:$0xff]
    %v4465 = vld [vmem:[#allocation13 + $0x358] sm:$0xff]
    %v4466 = vld [vmem:[#allocation13 + $0x360] sm:$0xff]
    %v4467 = vld [vmem:[#allocation13 + $0x368] sm:$0xff]
    %v4468 = vld [vmem:[#allocation13 + $0x370] sm:$0xff]
    %v4469 = vld [vmem:[#allocation13 + $0x378] sm:$0xff]
    %v4470 = vld [vmem:[#allocation13 + $0x380] sm:$0xff]
    %v4471 = vld [vmem:[#allocation13 + $0x388] sm:$0xff]
    %v4472 = vld [vmem:[#allocation13 + $0x390] sm:$0xff]
    %v4473 = vld [vmem:[#allocation13 + $0x398] sm:$0xff]
    %v4474 = vld [vmem:[#allocation13 + $0x3a0] sm:$0xff]
    %v4475 = vld [vmem:[#allocation13 + $0x3a8] sm:$0xff]
    %v4476 = vld [vmem:[#allocation13 + $0x3b0] sm:$0xff]
    %v4477 = vld [vmem:[#allocation13 + $0x3b8] sm:$0xff]
    %v4478 = vld [vmem:[#allocation13 + $0x3c0] sm:$0xff]
    %v4479 = vld [vmem:[#allocation13 + $0x3c8] sm:$0xff]
    %v4480 = vld [vmem:[#allocation13 + $0x3d0] sm:$0xff]
    %v4481 = vld [vmem:[#allocation13 + $0x3d8] sm:$0xff]
    %v4482 = vld [vmem:[#allocation13 + $0x3e0] sm:$0xff]
    %v4483 = vld [vmem:[#allocation13 + $0x3e8] sm:$0xff]
    %v4484 = vld [vmem:[#allocation13 + $0x3f0] sm:$0xff]
    %v4485 = vld [vmem:[#allocation13 + $0x3f8] sm:$0xff]
    %v4486 = vld [vmem:[#allocation13 + $0x400] sm:$0xff]
    %v4487 = vld [vmem:[#allocation13 + $0x408] sm:$0xff]
    %v4488 = vld [vmem:[#allocation13 + $0x410] sm:$0xff]
    %v4489 = vld [vmem:[#allocation13 + $0x418] sm:$0xff]
    %v4490 = vld [vmem:[#allocation13 + $0x420] sm:$0xff]
    %v4491 = vld [vmem:[#allocation13 + $0x428] sm:$0xff]
    %v4492 = vld [vmem:[#allocation13 + $0x430] sm:$0xff]
    %v4493 = vld [vmem:[#allocation13 + $0x438] sm:$0xff]
    %v4494 = vld [vmem:[#allocation13 + $0x440] sm:$0xff]
    %v4495 = vld [vmem:[#allocation13 + $0x448] sm:$0xff]
    %v4496 = vld [vmem:[#allocation13 + $0x450] sm:$0xff]
    %v4497 = vld [vmem:[#allocation13 + $0x458] sm:$0xff]
    %v4498 = vld [vmem:[#allocation13 + $0x460] sm:$0xff]
    %v4499 = vld [vmem:[#allocation13 + $0x468] sm:$0xff]
    %v4500 = vld [vmem:[#allocation13 + $0x470] sm:$0xff]
    %v4501 = vld [vmem:[#allocation13 + $0x478] sm:$0xff]
    %v4502 = vld [vmem:[#allocation13 + $0x480] sm:$0xff]
    %v4503 = vld [vmem:[#allocation13 + $0x488] sm:$0xff]
    %v4504 = vld [vmem:[#allocation13 + $0x490] sm:$0xff]
    %v4505 = vld [vmem:[#allocation13 + $0x498] sm:$0xff]
    %v4506 = vld [vmem:[#allocation13 + $0x4a0] sm:$0xff]
    %v4507 = vld [vmem:[#allocation13 + $0x4a8] sm:$0xff]
    %v4508 = vld [vmem:[#allocation13 + $0x4b0] sm:$0xff]
    %v4509 = vld [vmem:[#allocation13 + $0x4b8] sm:$0xff]
    %v4510 = vld [vmem:[#allocation13 + $0x4c0] sm:$0xff]
    %v4511 = vld [vmem:[#allocation13 + $0x4c8] sm:$0xff]
    %v4512 = vld [vmem:[#allocation13 + $0x4d0] sm:$0xff]
    %v4513 = vld [vmem:[#allocation13 + $0x4d8] sm:$0xff]
    %v4514 = vld [vmem:[#allocation13 + $0x4e0] sm:$0xff]
    %v4515 = vld [vmem:[#allocation13 + $0x4e8] sm:$0xff]
    %v4516 = vld [vmem:[#allocation13 + $0x4f0] sm:$0xff]
    %v4517 = vld [vmem:[#allocation13 + $0x4f8] sm:$0xff]
    %v4518 = vld [vmem:[#allocation13 + $0x500] sm:$0xff]
    %v4519 = vld [vmem:[#allocation13 + $0x508] sm:$0xff]
    %v4520 = vld [vmem:[#allocation13 + $0x510] sm:$0xff]
    %v4521 = vld [vmem:[#allocation13 + $0x518] sm:$0xff]
    %v4522 = vld [vmem:[#allocation13 + $0x520] sm:$0xff]
    %v4523 = vld [vmem:[#allocation13 + $0x528] sm:$0xff]
    %v4524 = vld [vmem:[#allocation13 + $0x530] sm:$0xff]
    %v4525 = vld [vmem:[#allocation13 + $0x538] sm:$0xff]
    %v4526 = vld [vmem:[#allocation13 + $0x540] sm:$0xff]
    %v4527 = vld [vmem:[#allocation13 + $0x548] sm:$0xff]
    %v4528 = vld [vmem:[#allocation13 + $0x550] sm:$0xff]
    %v4529 = vld [vmem:[#allocation13 + $0x558] sm:$0xff]
    %v4530 = vld [vmem:[#allocation13 + $0x560] sm:$0xff]
    %v4531 = vld [vmem:[#allocation13 + $0x568] sm:$0xff]
    %v4532 = vld [vmem:[#allocation13 + $0x570] sm:$0xff]
    %v4533 = vld [vmem:[#allocation13 + $0x578] sm:$0xff]
    %v4534 = vld [vmem:[#allocation13 + $0x580] sm:$0xff]
    %v4535 = vld [vmem:[#allocation13 + $0x588] sm:$0xff]
    %v4536 = vld [vmem:[#allocation13 + $0x590] sm:$0xff]
    %v4537 = vld [vmem:[#allocation13 + $0x598] sm:$0xff]
    %v4538 = vld [vmem:[#allocation13 + $0x5a0] sm:$0xff]
    %v4539 = vld [vmem:[#allocation13 + $0x5a8] sm:$0xff]
    %v4540 = vld [vmem:[#allocation13 + $0x5b0] sm:$0xff]
    %v4541 = vld [vmem:[#allocation13 + $0x5b8] sm:$0xff]
    %v4542 = vld [vmem:[#allocation13 + $0x5c0] sm:$0xff]
    %v4543 = vld [vmem:[#allocation13 + $0x5c8] sm:$0xff]
    %v4544 = vld [vmem:[#allocation13 + $0x5d0] sm:$0xff]
    %v4545 = vld [vmem:[#allocation13 + $0x5d8] sm:$0xff]
    %v4546 = vld [vmem:[#allocation13 + $0x5e0] sm:$0xff]
    %v4547 = vld [vmem:[#allocation13 + $0x5e8] sm:$0xff]
    %v4548 = vld [vmem:[#allocation13 + $0x5f0] sm:$0xff]
    %v4549 = vld [vmem:[#allocation13 + $0x5f8] sm:$0xff]
    %v4550 = vld [vmem:[#allocation13 + $0x600] sm:$0xff]
    %v4551 = vld [vmem:[#allocation13 + $0x608] sm:$0xff]
    %v4552 = vld [vmem:[#allocation13 + $0x610] sm:$0xff]
    %v4553 = vld [vmem:[#allocation13 + $0x618] sm:$0xff]
    %v4554 = vld [vmem:[#allocation13 + $0x620] sm:$0xff]
    %v4555 = vld [vmem:[#allocation13 + $0x628] sm:$0xff]
    %v4556 = vld [vmem:[#allocation13 + $0x630] sm:$0xff]
    %v4557 = vld [vmem:[#allocation13 + $0x638] sm:$0xff]
    %v4558 = vld [vmem:[#allocation13 + $0x640] sm:$0xff]
    %v4559 = vld [vmem:[#allocation13 + $0x648] sm:$0xff]
    %v4560 = vld [vmem:[#allocation13 + $0x650] sm:$0xff]
    %v4561 = vld [vmem:[#allocation13 + $0x658] sm:$0xff]
    %v4562 = vld [vmem:[#allocation13 + $0x660] sm:$0xff]
    %v4563 = vld [vmem:[#allocation13 + $0x668] sm:$0xff]
    %v4564 = vld [vmem:[#allocation13 + $0x670] sm:$0xff]
    %v4565 = vld [vmem:[#allocation13 + $0x678] sm:$0xff]
    %v4566 = vld [vmem:[#allocation13 + $0x680] sm:$0xff]
    %v4567 = vld [vmem:[#allocation13 + $0x688] sm:$0xff]
    %v4568 = vld [vmem:[#allocation13 + $0x690] sm:$0xff]
    %v4569 = vld [vmem:[#allocation13 + $0x698] sm:$0xff]
    %v4570 = vld [vmem:[#allocation13 + $0x6a0] sm:$0xff]
    %v4571 = vld [vmem:[#allocation13 + $0x6a8] sm:$0xff]
    %v4572 = vld [vmem:[#allocation13 + $0x6b0] sm:$0xff]
    %v4573 = vld [vmem:[#allocation13 + $0x6b8] sm:$0xff]
    %v4574 = vld [vmem:[#allocation13 + $0x6c0] sm:$0xff]
    %v4575 = vld [vmem:[#allocation13 + $0x6c8] sm:$0xff]
    %v4576 = vld [vmem:[#allocation13 + $0x6d0] sm:$0xff]
    %v4577 = vld [vmem:[#allocation13 + $0x6d8] sm:$0xff]
    %v4578 = vld [vmem:[#allocation13 + $0x6e0] sm:$0xff]
    %v4579 = vld [vmem:[#allocation13 + $0x6e8] sm:$0xff]
    %v4580 = vld [vmem:[#allocation13 + $0x6f0] sm:$0xff]
    %v4581 = vld [vmem:[#allocation13 + $0x6f8] sm:$0xff]
    %v4582 = vld [vmem:[#allocation13 + $0x700] sm:$0xff]
    %v4583 = vld [vmem:[#allocation13 + $0x708] sm:$0xff]
    %v4584 = vld [vmem:[#allocation13 + $0x710] sm:$0xff]
    %v4585 = vld [vmem:[#allocation13 + $0x718] sm:$0xff]
    %v4586 = vld [vmem:[#allocation13 + $0x720] sm:$0xff]
    %v4587 = vld [vmem:[#allocation13 + $0x728] sm:$0xff]
    %v4588 = vld [vmem:[#allocation13 + $0x730] sm:$0xff]
    %v4589 = vld [vmem:[#allocation13 + $0x738] sm:$0xff]
    %v4590 = vld [vmem:[#allocation13 + $0x740] sm:$0xff]
    %v4591 = vld [vmem:[#allocation13 + $0x748] sm:$0xff]
    %v4592 = vld [vmem:[#allocation13 + $0x750] sm:$0xff]
    %v4593 = vld [vmem:[#allocation13 + $0x758] sm:$0xff]
    %v4594 = vld [vmem:[#allocation13 + $0x760] sm:$0xff]
    %v4595 = vld [vmem:[#allocation13 + $0x768] sm:$0xff]
    %v4596 = vld [vmem:[#allocation13 + $0x770] sm:$0xff]
    %v4597 = vld [vmem:[#allocation13 + $0x778] sm:$0xff]
    %v4598 = vld [vmem:[#allocation13 + $0x780] sm:$0xff]
    %v4599 = vld [vmem:[#allocation13 + $0x788] sm:$0xff]
    %v4600 = vld [vmem:[#allocation13 + $0x790] sm:$0xff]
    %v4601 = vld [vmem:[#allocation13 + $0x798] sm:$0xff]
    %v4602 = vld [vmem:[#allocation13 + $0x7a0] sm:$0xff]
    %v4603 = vld [vmem:[#allocation13 + $0x7a8] sm:$0xff]
    %v4604 = vld [vmem:[#allocation13 + $0x7b0] sm:$0xff]
    %v4605 = vld [vmem:[#allocation13 + $0x7b8] sm:$0xff]
    %v4606 = vld [vmem:[#allocation13 + $0x7c0] sm:$0xff]
    %v4607 = vld [vmem:[#allocation13 + $0x7c8] sm:$0xff]
    %v4608 = vld [vmem:[#allocation13 + $0x7d0] sm:$0xff]
    %v4609 = vld [vmem:[#allocation13 + $0x7d8] sm:$0xff]
    %v4610 = vld [vmem:[#allocation13 + $0x7e0] sm:$0xff]
    %v4611 = vld [vmem:[#allocation13 + $0x7e8] sm:$0xff]
    %v4612 = vld [vmem:[#allocation13 + $0x7f0] sm:$0xff]
    %v4613 = vld [vmem:[#allocation13 + $0x7f8] sm:$0xff]
    %4614 = vmatprep.subr.mxu0 %v4359
    %4615 = vmatpush1.msra.mxu0 %v4358
    %4616 = vmatprep.subr.mxu0 %v4367
    %4617 = vmatpush1.msra.mxu0 %v4366
    %4618 = vmatprep.subr.mxu0 %v4375
    %4619 = vmatpush1.msra.mxu0 %v4374
    %4620 = vmatprep.subr.mxu0 %v4383
    %4621 = vmatpush1.msra.mxu0 %v4382
    %4622 = vmatprep.subr.mxu0 %v4391
    %4623 = vmatpush1.msra.mxu0 %v4390
    %4624 = vmatprep.subr.mxu0 %v4399
    %4625 = vmatpush1.msra.mxu0 %v4398
    %4626 = vmatprep.subr.mxu0 %v4407
    %4627 = vmatpush1.msra.mxu0 %v4406
    %4628 = vmatprep.subr.mxu0 %v4415
    %4629 = vmatpush1.msra.mxu0 %v4414
    %4630 = vmatprep.subr.mxu0 %v4423
    %4631 = vmatpush1.msra.mxu0 %v4422
    %4632 = vmatprep.subr.mxu0 %v4431
    %4633 = vmatpush1.msra.mxu0 %v4430
    %4634 = vmatprep.subr.mxu0 %v4439
    %4635 = vmatpush1.msra.mxu0 %v4438
    %4636 = vmatprep.subr.mxu0 %v4447
    %4637 = vmatpush1.msra.mxu0 %v4446
    %4638 = vmatprep.subr.mxu0 %v4455
    %4639 = vmatpush1.msra.mxu0 %v4454
    %4640 = vmatprep.subr.mxu0 %v4463
    %4641 = vmatpush1.msra.mxu0 %v4462
    %4642 = vmatprep.subr.mxu0 %v4471
    %4643 = vmatpush1.msra.mxu0 %v4470
    %4644 = vmatprep.subr.mxu0 %v4479
    %4645 = vmatpush1.msra.mxu0 %v4478
    %4646 = vmatprep.subr.mxu0 %v4487
    %4647 = vmatpush1.msra.mxu0 %v4486
    %4648 = vmatprep.subr.mxu0 %v4495
    %4649 = vmatpush1.msra.mxu0 %v4494
    %4650 = vmatprep.subr.mxu0 %v4503
    %4651 = vmatpush1.msra.mxu0 %v4502
    %4652 = vmatprep.subr.mxu0 %v4511
    %4653 = vmatpush1.msra.mxu0 %v4510
    %4654 = vmatprep.subr.mxu0 %v4519
    %4655 = vmatpush1.msra.mxu0 %v4518
    %4656 = vmatprep.subr.mxu0 %v4527
    %4657 = vmatpush1.msra.mxu0 %v4526
    %4658 = vmatprep.subr.mxu0 %v4535
    %4659 = vmatpush1.msra.mxu0 %v4534
    %4660 = vmatprep.subr.mxu0 %v4543
    %4661 = vmatpush1.msra.mxu0 %v4542
    %4662 = vmatprep.subr.mxu0 %v4551
    %4663 = vmatpush1.msra.mxu0 %v4550
    %4664 = vmatprep.subr.mxu0 %v4559
    %4665 = vmatpush1.msra.mxu0 %v4558
    %4666 = vmatprep.subr.mxu0 %v4567
    %4667 = vmatpush1.msra.mxu0 %v4566
    %4668 = vmatprep.subr.mxu0 %v4575
    %4669 = vmatpush1.msra.mxu0 %v4574
    %4670 = vmatprep.subr.mxu0 %v4583
    %4671 = vmatpush1.msra.mxu0 %v4582
    %4672 = vmatprep.subr.mxu0 %v4591
    %4673 = vmatpush1.msra.mxu0 %v4590
    %4674 = vmatprep.subr.mxu0 %v4599
    %4675 = vmatpush1.msra.mxu0 %v4598
    %4676 = vmatprep.subr.mxu0 %v4607
    %4677 = vmatpush1.msra.mxu0 %v4606
    %4678 = vmatprep.mubr.f32.mxu0 %v4346
    %4679 = vmatmul.mubr.f32.gmra.mrb[0].mxu0 %v4345
    %v4680 = vpop.f32.mrb[0].mxu0
    %v4681 = vadd.f32 0.0, %v4680
    %v4682 = vpop.f32.mrb[0].mxu0
    %v4683 = vadd.f32 0.0, %v4682
    %4684 = vdwg.mxu0
    %4685 = vmatprep.subr.mxu0 %v4361
    %4686 = vmatpush1.msra.mxu0 %v4360
    %4687 = vmatprep.subr.mxu0 %v4369
    %4688 = vmatpush1.msra.mxu0 %v4368
    %4689 = vmatprep.subr.mxu0 %v4377
    %4690 = vmatpush1.msra.mxu0 %v4376
    %4691 = vmatprep.subr.mxu0 %v4385
    %4692 = vmatpush1.msra.mxu0 %v4384
    %4693 = vmatprep.subr.mxu0 %v4393
    %4694 = vmatpush1.msra.mxu0 %v4392
    %4695 = vmatprep.subr.mxu0 %v4401
    %4696 = vmatpush1.msra.mxu0 %v4400
    %4697 = vmatprep.subr.mxu0 %v4409
    %4698 = vmatpush1.msra.mxu0 %v4408
    %4699 = vmatprep.subr.mxu0 %v4417
    %4700 = vmatpush1.msra.mxu0 %v4416
    %4701 = vmatprep.subr.mxu0 %v4425
    %4702 = vmatpush1.msra.mxu0 %v4424
    %4703 = vmatprep.subr.mxu0 %v4433
    %4704 = vmatpush1.msra.mxu0 %v4432
    %4705 = vmatprep.subr.mxu0 %v4441
    %4706 = vmatpush1.msra.mxu0 %v4440
    %4707 = vmatprep.subr.mxu0 %v4449
    %4708 = vmatpush1.msra.mxu0 %v4448
    %4709 = vmatprep.subr.mxu0 %v4457
    %4710 = vmatpush1.msra.mxu0 %v4456
    %4711 = vmatprep.subr.mxu0 %v4465
    %4712 = vmatpush1.msra.mxu0 %v4464
    %4713 = vmatprep.subr.mxu0 %v4473
    %4714 = vmatpush1.msra.mxu0 %v4472
    %4715 = vmatprep.subr.mxu0 %v4481
    %4716 = vmatpush1.msra.mxu0 %v4480
    %4717 = vmatprep.subr.mxu0 %v4489
    %4718 = vmatpush1.msra.mxu0 %v4488
    %4719 = vmatprep.subr.mxu0 %v4497
    %4720 = vmatpush1.msra.mxu0 %v4496
    %4721 = vmatprep.subr.mxu0 %v4505
    %4722 = vmatpush1.msra.mxu0 %v4504
    %4723 = vmatprep.subr.mxu0 %v4513
    %4724 = vmatpush1.msra.mxu0 %v4512
    %4725 = vmatprep.subr.mxu0 %v4521
    %4726 = vmatpush1.msra.mxu0 %v4520
    %4727 = vmatprep.subr.mxu0 %v4529
    %4728 = vmatpush1.msra.mxu0 %v4528
    %4729 = vmatprep.subr.mxu0 %v4537
    %4730 = vmatpush1.msra.mxu0 %v4536
    %4731 = vmatprep.subr.mxu0 %v4545
    %4732 = vmatpush1.msra.mxu0 %v4544
    %4733 = vmatprep.subr.mxu0 %v4553
    %4734 = vmatpush1.msra.mxu0 %v4552
    %4735 = vmatprep.subr.mxu0 %v4561
    %4736 = vmatpush1.msra.mxu0 %v4560
    %4737 = vmatprep.subr.mxu0 %v4569
    %4738 = vmatpush1.msra.mxu0 %v4568
    %4739 = vmatprep.subr.mxu0 %v4577
    %4740 = vmatpush1.msra.mxu0 %v4576
    %4741 = vmatprep.subr.mxu0 %v4585
    %4742 = vmatpush1.msra.mxu0 %v4584
    %4743 = vmatprep.subr.mxu0 %v4593
    %4744 = vmatpush1.msra.mxu0 %v4592
    %4745 = vmatprep.subr.mxu0 %v4601
    %4746 = vmatpush1.msra.mxu0 %v4600
    %4747 = vmatprep.subr.mxu0 %v4609
    %4748 = vmatpush1.msra.mxu0 %v4608
    %4749 = vmatprep.mubr.f32.mxu0 %v4346
    %4750 = vmatmul.mubr.f32.gmra.mrb[0].mxu0 %v4345
    %v4751 = vpop.f32.mrb[0].mxu0
    %v4752 = vadd.f32 0.0, %v4751
    %v4753 = vpop.f32.mrb[0].mxu0
    %v4754 = vadd.f32 0.0, %v4753
    %4755 = vdwg.mxu0
    %4756 = vmatprep.subr.mxu0 %v4363
    %4757 = vmatpush1.msra.mxu0 %v4362
    %4758 = vmatprep.subr.mxu0 %v4371
    %4759 = vmatpush1.msra.mxu0 %v4370
    %4760 = vmatprep.subr.mxu0 %v4379
    %4761 = vmatpush1.msra.mxu0 %v4378
    %4762 = vmatprep.subr.mxu0 %v4387
    %4763 = vmatpush1.msra.mxu0 %v4386
    %4764 = vmatprep.subr.mxu0 %v4395
    %4765 = vmatpush1.msra.mxu0 %v4394
    %4766 = vmatprep.subr.mxu0 %v4403
    %4767 = vmatpush1.msra.mxu0 %v4402
    %4768 = vmatprep.subr.mxu0 %v4411
    %4769 = vmatpush1.msra.mxu0 %v4410
    %4770 = vmatprep.subr.mxu0 %v4419
    %4771 = vmatpush1.msra.mxu0 %v4418
    %4772 = vmatprep.subr.mxu0 %v4427
    %4773 = vmatpush1.msra.mxu0 %v4426
    %4774 = vmatprep.subr.mxu0 %v4435
    %4775 = vmatpush1.msra.mxu0 %v4434
    %4776 = vmatprep.subr.mxu0 %v4443
    %4777 = vmatpush1.msra.mxu0 %v4442
    %4778 = vmatprep.subr.mxu0 %v4451
    %4779 = vmatpush1.msra.mxu0 %v4450
    %4780 = vmatprep.subr.mxu0 %v4459
    %4781 = vmatpush1.msra.mxu0 %v4458
    %4782 = vmatprep.subr.mxu0 %v4467
    %4783 = vmatpush1.msra.mxu0 %v4466
    %4784 = vmatprep.subr.mxu0 %v4475
    %4785 = vmatpush1.msra.mxu0 %v4474
    %4786 = vmatprep.subr.mxu0 %v4483
    %4787 = vmatpush1.msra.mxu0 %v4482
    %4788 = vmatprep.subr.mxu0 %v4491
    %4789 = vmatpush1.msra.mxu0 %v4490
    %4790 = vmatprep.subr.mxu0 %v4499
    %4791 = vmatpush1.msra.mxu0 %v4498
    %4792 = vmatprep.subr.mxu0 %v4507
    %4793 = vmatpush1.msra.mxu0 %v4506
    %4794 = vmatprep.subr.mxu0 %v4515
    %4795 = vmatpush1.msra.mxu0 %v4514
    %4796 = vmatprep.subr.mxu0 %v4523
    %4797 = vmatpush1.msra.mxu0 %v4522
    %4798 = vmatprep.subr.mxu0 %v4531
    %4799 = vmatpush1.msra.mxu0 %v4530
    %4800 = vmatprep.subr.mxu0 %v4539
    %4801 = vmatpush1.msra.mxu0 %v4538
    %4802 = vmatprep.subr.mxu0 %v4547
    %4803 = vmatpush1.msra.mxu0 %v4546
    %4804 = vmatprep.subr.mxu0 %v4555
    %4805 = vmatpush1.msra.mxu0 %v4554
    %4806 = vmatprep.subr.mxu0 %v4563
    %4807 = vmatpush1.msra.mxu0 %v4562
    %4808 = vmatprep.subr.mxu0 %v4571
    %4809 = vmatpush1.msra.mxu0 %v4570
    %4810 = vmatprep.subr.mxu0 %v4579
    %4811 = vmatpush1.msra.mxu0 %v4578
    %4812 = vmatprep.subr.mxu0 %v4587
    %4813 = vmatpush1.msra.mxu0 %v4586
    %4814 = vmatprep.subr.mxu0 %v4595
    %4815 = vmatpush1.msra.mxu0 %v4594
    %4816 = vmatprep.subr.mxu0 %v4603
    %4817 = vmatpush1.msra.mxu0 %v4602
    %4818 = vmatprep.subr.mxu0 %v4611
    %4819 = vmatpush1.msra.mxu0 %v4610
    %4820 = vmatprep.mubr.f32.mxu0 %v4346
    %4821 = vmatmul.mubr.f32.gmra.mrb[0].mxu0 %v4345
    %v4822 = vpop.f32.mrb[0].mxu0
    %v4823 = vadd.f32 0.0, %v4822
    %v4824 = vpop.f32.mrb[0].mxu0
    %v4825 = vadd.f32 0.0, %v4824
    %4826 = vdwg.mxu0
    %4827 = vmatprep.subr.mxu0 %v4365
    %4828 = vmatpush1.msra.mxu0 %v4364
    %4829 = vmatprep.subr.mxu0 %v4373
    %4830 = vmatpush1.msra.mxu0 %v4372
    %4831 = vmatprep.subr.mxu0 %v4381
    %4832 = vmatpush1.msra.mxu0 %v4380
    %4833 = vmatprep.subr.mxu0 %v4389
    %4834 = vmatpush1.msra.mxu0 %v4388
    %4835 = vmatprep.subr.mxu0 %v4397
    %4836 = vmatpush1.msra.mxu0 %v4396
    %4837 = vmatprep.subr.mxu0 %v4405
    %4838 = vmatpush1.msra.mxu0 %v4404
    %4839 = vmatprep.subr.mxu0 %v4413
    %4840 = vmatpush1.msra.mxu0 %v4412
    %4841 = vmatprep.subr.mxu0 %v4421
    %4842 = vmatpush1.msra.mxu0 %v4420
    %4843 = vmatprep.subr.mxu0 %v4429
    %4844 = vmatpush1.msra.mxu0 %v4428
    %4845 = vmatprep.subr.mxu0 %v4437
    %4846 = vmatpush1.msra.mxu0 %v4436
    %4847 = vmatprep.subr.mxu0 %v4445
    %4848 = vmatpush1.msra.mxu0 %v4444
    %4849 = vmatprep.subr.mxu0 %v4453
    %4850 = vmatpush1.msra.mxu0 %v4452
    %4851 = vmatprep.subr.mxu0 %v4461
    %4852 = vmatpush1.msra.mxu0 %v4460
    %4853 = vmatprep.subr.mxu0 %v4469
    %4854 = vmatpush1.msra.mxu0 %v4468
    %4855 = vmatprep.subr.mxu0 %v4477
    %4856 = vmatpush1.msra.mxu0 %v4476
    %4857 = vmatprep.subr.mxu0 %v4485
    %4858 = vmatpush1.msra.mxu0 %v4484
    %4859 = vmatprep.subr.mxu0 %v4493
    %4860 = vmatpush1.msra.mxu0 %v4492
    %4861 = vmatprep.subr.mxu0 %v4501
    %4862 = vmatpush1.msra.mxu0 %v4500
    %4863 = vmatprep.subr.mxu0 %v4509
    %4864 = vmatpush1.msra.mxu0 %v4508
    %4865 = vmatprep.subr.mxu0 %v4517
    %4866 = vmatpush1.msra.mxu0 %v4516
    %4867 = vmatprep.subr.mxu0 %v4525
    %4868 = vmatpush1.msra.mxu0 %v4524
    %4869 = vmatprep.subr.mxu0 %v4533
    %4870 = vmatpush1.msra.mxu0 %v4532
    %4871 = vmatprep.subr.mxu0 %v4541
    %4872 = vmatpush1.msra.mxu0 %v4540
    %4873 = vmatprep.subr.mxu0 %v4549
    %4874 = vmatpush1.msra.mxu0 %v4548
    %4875 = vmatprep.subr.mxu0 %v4557
    %4876 = vmatpush1.msra.mxu0 %v4556
    %4877 = vmatprep.subr.mxu0 %v4565
    %4878 = vmatpush1.msra.mxu0 %v4564
    %4879 = vmatprep.subr.mxu0 %v4573
    %4880 = vmatpush1.msra.mxu0 %v4572
    %4881 = vmatprep.subr.mxu0 %v4581
    %4882 = vmatpush1.msra.mxu0 %v4580
    %4883 = vmatprep.subr.mxu0 %v4589
    %4884 = vmatpush1.msra.mxu0 %v4588
    %4885 = vmatprep.subr.mxu0 %v4597
    %4886 = vmatpush1.msra.mxu0 %v4596
    %4887 = vmatprep.subr.mxu0 %v4605
    %4888 = vmatpush1.msra.mxu0 %v4604
    %4889 = vmatprep.subr.mxu0 %v4613
    %4890 = vmatpush1.msra.mxu0 %v4612
    %4891 = vmatprep.mubr.f32.mxu0 %v4346
    %4892 = vmatmul.mubr.f32.gmra.mrb[0].mxu0 %v4345
    %v4893 = vpop.f32.mrb[0].mxu0
    %v4894 = vadd.f32 0.0, %v4893
    %v4895 = vpop.f32.mrb[0].mxu0
    %v4896 = vadd.f32 0.0, %v4895
    %4897 = vdwg.mxu0
    %v4898 = vadd.f32 %v4350, %v4681
    %v4899 = vadd.f32 %v4351, %v4683
    %v4900 = vadd.f32 %v4352, %v4752
    %v4901 = vadd.f32 %v4353, %v4754
    %v4902 = vadd.f32 %v4354, %v4823
    %v4903 = vadd.f32 %v4355, %v4825
    %v4904 = vadd.f32 %v4356, %v4894
    %v4905 = vadd.f32 %v4357, %v4896
    %v4906 = vxor.u32 %v4898, 2147483648
    %v4907 = vxor.u32 %v4899, 2147483648
    %v4908 = vmul.f32 %v4906, 1.442695
    %v4909 = vpow.pop %v4908
    %v4910 = vmul.f32 %v4907, 1.442695
    %v4911 = vpow.pop %v4910
    %v4912 = vadd.f32 %v4909, 1.0
    %v4913 = vadd.f32 %v4911, 1.0
    %v4914 = vrcp.pop %v4912
    %v4915 = vmul.f32 1.0, %v4914
    %v4916 = vrcp.pop %v4913
    %v4917 = vmul.f32 1.0, %v4916
    %v4918 = vxor.u32 %v4900, 2147483648
    %v4919 = vxor.u32 %v4901, 2147483648
    %v4920 = vmul.f32 %v4918, 1.442695
    %v4921 = vpow.pop %v4920
    %v4922 = vmul.f32 %v4919, 1.442695
    %v4923 = vpow.pop %v4922
    %v4924 = vadd.f32 %v4921, 1.0
    %v4925 = vadd.f32 %v4923, 1.0
    %v4926 = vrcp.pop %v4924
    %v4927 = vmul.f32 1.0, %v4926
    %v4928 = vrcp.pop %v4925
    %v4929 = vmul.f32 1.0, %v4928
    %v4930 = vtanh.pop %v4902
    %v4931 = vtanh.pop %v4903
    %v4932 = vxor.u32 %v4904, 2147483648
    %v4933 = vxor.u32 %v4905, 2147483648
    %v4934 = vmul.f32 %v4932, 1.442695
    %v4935 = vpow.pop %v4934
    %v4936 = vmul.f32 %v4933, 1.442695
    %v4937 = vpow.pop %v4936
    %v4938 = vadd.f32 %v4935, 1.0
    %v4939 = vadd.f32 %v4937, 1.0
    %v4940 = vrcp.pop %v4938
    %v4941 = vmul.f32 1.0, %v4940
    %v4942 = vrcp.pop %v4939
    %v4943 = vmul.f32 1.0, %v4942
    %v4944 = vmul.f32 %v4927, %v4347
    %v4945 = vmul.f32 %v4929, %v4348
    %v4946 = vmul.f32 %v4915, %v4930
    %v4947 = vmul.f32 %v4917, %v4931
    %v4948 = vadd.f32 %v4944, %v4946
    %v4949 = vadd.f32 %v4945, %v4947
    %v4950 = vtanh.pop %v4948
    %v4951 = vtanh.pop %v4949
    %v4952 = vmul.f32 %v4941, %v4950
    %v4953 = vmul.f32 %v4943, %v4951
    %4954 = vst [vmem:[#allocation3] sm:$0xff] %v4952
    %4955 = vst [vmem:[#allocation3 + $0x8] sm:$0xff] %v4953
    %4956 = vst [vmem:[#allocation4] sm:$0xff] %v4948
    %4957 = vst [vmem:[#allocation4 + $0x8] sm:$0xff] %v4949
    %s4958 = scalar_lea.vmem [#allocation14], 80
    %4959 = vst [vmem:[%s4958] sm:$0xff] %v4952
    %4960 = vst [vmem:[%s4958 + $0x8] sm:$0xff] %v4953
    %v4961 = vld [vmem:[#allocation3] sm:$0xff]
    %v4962 = vld [vmem:[#allocation3 + $0x8] sm:$0xff]
    %v4963 = vld [vmem:[#allocation4] sm:$0xff]
    %v4964 = vld [vmem:[#allocation4 + $0x8] sm:$0xff]
    %s4965 = scalar_lea.vmem [#allocation2], 384
    %v4966 = vld [vmem:[%s4965] sm:$0xff]
    %v4967 = vld [vmem:[%s4965 + $0x8] sm:$0xff]
    %v4968 = vld [vmem:[%s4965 + $0x10] sm:$0xff]
    %v4969 = vld [vmem:[%s4965 + $0x18] sm:$0xff]
    %v4970 = vld [vmem:[%s4965 + $0x20] sm:$0xff]
    %v4971 = vld [vmem:[%s4965 + $0x28] sm:$0xff]
    %v4972 = vld [vmem:[%s4965 + $0x30] sm:$0xff]
    %v4973 = vld [vmem:[%s4965 + $0x38] sm:$0xff]
    %v4974 = vld [vmem:[#allocation13] sm:$0xff]
    %v4975 = vld [vmem:[#allocation13 + $0x8] sm:$0xff]
    %v4976 = vld [vmem:[#allocation13 + $0x10] sm:$0xff]
    %v4977 = vld [vmem:[#allocation13 + $0x18] sm:$0xff]
    %v4978 = vld [vmem:[#allocation13 + $0x20] sm:$0xff]
    %v4979 = vld [vmem:[#allocation13 + $0x28] sm:$0xff]
    %v4980 = vld [vmem:[#allocation13 + $0x30] sm:$0xff]
    %v4981 = vld [vmem:[#allocation13 + $0x38] sm:$0xff]
    %v4982 = vld [vmem:[#allocation13 + $0x40] sm:$0xff]
    %v4983 = vld [vmem:[#allocation13 + $0x48] sm:$0xff]
    %v4984 = vld [vmem:[#allocation13 + $0x50] sm:$0xff]
    %v4985 = vld [vmem:[#allocation13 + $0x58] sm:$0xff]
    %v4986 = vld [vmem:[#allocation13 + $0x60] sm:$0xff]
    %v4987 = vld [vmem:[#allocation13 + $0x68] sm:$0xff]
    %v4988 = vld [vmem:[#allocation13 + $0x70] sm:$0xff]
    %v4989 = vld [vmem:[#allocation13 + $0x78] sm:$0xff]
    %v4990 = vld [vmem:[#allocation13 + $0x80] sm:$0xff]
    %v4991 = vld [vmem:[#allocation13 + $0x88] sm:$0xff]
    %v4992 = vld [vmem:[#allocation13 + $0x90] sm:$0xff]
    %v4993 = vld [vmem:[#allocation13 + $0x98] sm:$0xff]
    %v4994 = vld [vmem:[#allocation13 + $0xa0] sm:$0xff]
    %v4995 = vld [vmem:[#allocation13 + $0xa8] sm:$0xff]
    %v4996 = vld [vmem:[#allocation13 + $0xb0] sm:$0xff]
    %v4997 = vld [vmem:[#allocation13 + $0xb8] sm:$0xff]
    %v4998 = vld [vmem:[#allocation13 + $0xc0] sm:$0xff]
    %v4999 = vld [vmem:[#allocation13 + $0xc8] sm:$0xff]
    %v5000 = vld [vmem:[#allocation13 + $0xd0] sm:$0xff]
    %v5001 = vld [vmem:[#allocation13 + $0xd8] sm:$0xff]
    %v5002 = vld [vmem:[#allocation13 + $0xe0] sm:$0xff]
    %v5003 = vld [vmem:[#allocation13 + $0xe8] sm:$0xff]
    %v5004 = vld [vmem:[#allocation13 + $0xf0] sm:$0xff]
    %v5005 = vld [vmem:[#allocation13 + $0xf8] sm:$0xff]
    %v5006 = vld [vmem:[#allocation13 + $0x100] sm:$0xff]
    %v5007 = vld [vmem:[#allocation13 + $0x108] sm:$0xff]
    %v5008 = vld [vmem:[#allocation13 + $0x110] sm:$0xff]
    %v5009 = vld [vmem:[#allocation13 + $0x118] sm:$0xff]
    %v5010 = vld [vmem:[#allocation13 + $0x120] sm:$0xff]
    %v5011 = vld [vmem:[#allocation13 + $0x128] sm:$0xff]
    %v5012 = vld [vmem:[#allocation13 + $0x130] sm:$0xff]
    %v5013 = vld [vmem:[#allocation13 + $0x138] sm:$0xff]
    %v5014 = vld [vmem:[#allocation13 + $0x140] sm:$0xff]
    %v5015 = vld [vmem:[#allocation13 + $0x148] sm:$0xff]
    %v5016 = vld [vmem:[#allocation13 + $0x150] sm:$0xff]
    %v5017 = vld [vmem:[#allocation13 + $0x158] sm:$0xff]
    %v5018 = vld [vmem:[#allocation13 + $0x160] sm:$0xff]
    %v5019 = vld [vmem:[#allocation13 + $0x168] sm:$0xff]
    %v5020 = vld [vmem:[#allocation13 + $0x170] sm:$0xff]
    %v5021 = vld [vmem:[#allocation13 + $0x178] sm:$0xff]
    %v5022 = vld [vmem:[#allocation13 + $0x180] sm:$0xff]
    %v5023 = vld [vmem:[#allocation13 + $0x188] sm:$0xff]
    %v5024 = vld [vmem:[#allocation13 + $0x190] sm:$0xff]
    %v5025 = vld [vmem:[#allocation13 + $0x198] sm:$0xff]
    %v5026 = vld [vmem:[#allocation13 + $0x1a0] sm:$0xff]
    %v5027 = vld [vmem:[#allocation13 + $0x1a8] sm:$0xff]
    %v5028 = vld [vmem:[#allocation13 + $0x1b0] sm:$0xff]
    %v5029 = vld [vmem:[#allocation13 + $0x1b8] sm:$0xff]
    %v5030 = vld [vmem:[#allocation13 + $0x1c0] sm:$0xff]
    %v5031 = vld [vmem:[#allocation13 + $0x1c8] sm:$0xff]
    %v5032 = vld [vmem:[#allocation13 + $0x1d0] sm:$0xff]
    %v5033 = vld [vmem:[#allocation13 + $0x1d8] sm:$0xff]
    %v5034 = vld [vmem:[#allocation13 + $0x1e0] sm:$0xff]
    %v5035 = vld [vmem:[#allocation13 + $0x1e8] sm:$0xff]
    %v5036 = vld [vmem:[#allocation13 + $0x1f0] sm:$0xff]
    %v5037 = vld [vmem:[#allocation13 + $0x1f8] sm:$0xff]
    %v5038 = vld [vmem:[#allocation13 + $0x200] sm:$0xff]
    %v5039 = vld [vmem:[#allocation13 + $0x208] sm:$0xff]
    %v5040 = vld [vmem:[#allocation13 + $0x210] sm:$0xff]
    %v5041 = vld [vmem:[#allocation13 + $0x218] sm:$0xff]
    %v5042 = vld [vmem:[#allocation13 + $0x220] sm:$0xff]
    %v5043 = vld [vmem:[#allocation13 + $0x228] sm:$0xff]
    %v5044 = vld [vmem:[#allocation13 + $0x230] sm:$0xff]
    %v5045 = vld [vmem:[#allocation13 + $0x238] sm:$0xff]
    %v5046 = vld [vmem:[#allocation13 + $0x240] sm:$0xff]
    %v5047 = vld [vmem:[#allocation13 + $0x248] sm:$0xff]
    %v5048 = vld [vmem:[#allocation13 + $0x250] sm:$0xff]
    %v5049 = vld [vmem:[#allocation13 + $0x258] sm:$0xff]
    %v5050 = vld [vmem:[#allocation13 + $0x260] sm:$0xff]
    %v5051 = vld [vmem:[#allocation13 + $0x268] sm:$0xff]
    %v5052 = vld [vmem:[#allocation13 + $0x270] sm:$0xff]
    %v5053 = vld [vmem:[#allocation13 + $0x278] sm:$0xff]
    %v5054 = vld [vmem:[#allocation13 + $0x280] sm:$0xff]
    %v5055 = vld [vmem:[#allocation13 + $0x288] sm:$0xff]
    %v5056 = vld [vmem:[#allocation13 + $0x290] sm:$0xff]
    %v5057 = vld [vmem:[#allocation13 + $0x298] sm:$0xff]
    %v5058 = vld [vmem:[#allocation13 + $0x2a0] sm:$0xff]
    %v5059 = vld [vmem:[#allocation13 + $0x2a8] sm:$0xff]
    %v5060 = vld [vmem:[#allocation13 + $0x2b0] sm:$0xff]
    %v5061 = vld [vmem:[#allocation13 + $0x2b8] sm:$0xff]
    %v5062 = vld [vmem:[#allocation13 + $0x2c0] sm:$0xff]
    %v5063 = vld [vmem:[#allocation13 + $0x2c8] sm:$0xff]
    %v5064 = vld [vmem:[#allocation13 + $0x2d0] sm:$0xff]
    %v5065 = vld [vmem:[#allocation13 + $0x2d8] sm:$0xff]
    %v5066 = vld [vmem:[#allocation13 + $0x2e0] sm:$0xff]
    %v5067 = vld [vmem:[#allocation13 + $0x2e8] sm:$0xff]
    %v5068 = vld [vmem:[#allocation13 + $0x2f0] sm:$0xff]
    %v5069 = vld [vmem:[#allocation13 + $0x2f8] sm:$0xff]
    %v5070 = vld [vmem:[#allocation13 + $0x300] sm:$0xff]
    %v5071 = vld [vmem:[#allocation13 + $0x308] sm:$0xff]
    %v5072 = vld [vmem:[#allocation13 + $0x310] sm:$0xff]
    %v5073 = vld [vmem:[#allocation13 + $0x318] sm:$0xff]
    %v5074 = vld [vmem:[#allocation13 + $0x320] sm:$0xff]
    %v5075 = vld [vmem:[#allocation13 + $0x328] sm:$0xff]
    %v5076 = vld [vmem:[#allocation13 + $0x330] sm:$0xff]
    %v5077 = vld [vmem:[#allocation13 + $0x338] sm:$0xff]
    %v5078 = vld [vmem:[#allocation13 + $0x340] sm:$0xff]
    %v5079 = vld [vmem:[#allocation13 + $0x348] sm:$0xff]
    %v5080 = vld [vmem:[#allocation13 + $0x350] sm:$0xff]
    %v5081 = vld [vmem:[#allocation13 + $0x358] sm:$0xff]
    %v5082 = vld [vmem:[#allocation13 + $0x360] sm:$0xff]
    %v5083 = vld [vmem:[#allocation13 + $0x368] sm:$0xff]
    %v5084 = vld [vmem:[#allocation13 + $0x370] sm:$0xff]
    %v5085 = vld [vmem:[#allocation13 + $0x378] sm:$0xff]
    %v5086 = vld [vmem:[#allocation13 + $0x380] sm:$0xff]
    %v5087 = vld [vmem:[#allocation13 + $0x388] sm:$0xff]
    %v5088 = vld [vmem:[#allocation13 + $0x390] sm:$0xff]
    %v5089 = vld [vmem:[#allocation13 + $0x398] sm:$0xff]
    %v5090 = vld [vmem:[#allocation13 + $0x3a0] sm:$0xff]
    %v5091 = vld [vmem:[#allocation13 + $0x3a8] sm:$0xff]
    %v5092 = vld [vmem:[#allocation13 + $0x3b0] sm:$0xff]
    %v5093 = vld [vmem:[#allocation13 + $0x3b8] sm:$0xff]
    %v5094 = vld [vmem:[#allocation13 + $0x3c0] sm:$0xff]
    %v5095 = vld [vmem:[#allocation13 + $0x3c8] sm:$0xff]
    %v5096 = vld [vmem:[#allocation13 + $0x3d0] sm:$0xff]
    %v5097 = vld [vmem:[#allocation13 + $0x3d8] sm:$0xff]
    %v5098 = vld [vmem:[#allocation13 + $0x3e0] sm:$0xff]
    %v5099 = vld [vmem:[#allocation13 + $0x3e8] sm:$0xff]
    %v5100 = vld [vmem:[#allocation13 + $0x3f0] sm:$0xff]
    %v5101 = vld [vmem:[#allocation13 + $0x3f8] sm:$0xff]
    %v5102 = vld [vmem:[#allocation13 + $0x400] sm:$0xff]
    %v5103 = vld [vmem:[#allocation13 + $0x408] sm:$0xff]
    %v5104 = vld [vmem:[#allocation13 + $0x410] sm:$0xff]
    %v5105 = vld [vmem:[#allocation13 + $0x418] sm:$0xff]
    %v5106 = vld [vmem:[#allocation13 + $0x420] sm:$0xff]
    %v5107 = vld [vmem:[#allocation13 + $0x428] sm:$0xff]
    %v5108 = vld [vmem:[#allocation13 + $0x430] sm:$0xff]
    %v5109 = vld [vmem:[#allocation13 + $0x438] sm:$0xff]
    %v5110 = vld [vmem:[#allocation13 + $0x440] sm:$0xff]
    %v5111 = vld [vmem:[#allocation13 + $0x448] sm:$0xff]
    %v5112 = vld [vmem:[#allocation13 + $0x450] sm:$0xff]
    %v5113 = vld [vmem:[#allocation13 + $0x458] sm:$0xff]
    %v5114 = vld [vmem:[#allocation13 + $0x460] sm:$0xff]
    %v5115 = vld [vmem:[#allocation13 + $0x468] sm:$0xff]
    %v5116 = vld [vmem:[#allocation13 + $0x470] sm:$0xff]
    %v5117 = vld [vmem:[#allocation13 + $0x478] sm:$0xff]
    %v5118 = vld [vmem:[#allocation13 + $0x480] sm:$0xff]
    %v5119 = vld [vmem:[#allocation13 + $0x488] sm:$0xff]
    %v5120 = vld [vmem:[#allocation13 + $0x490] sm:$0xff]
    %v5121 = vld [vmem:[#allocation13 + $0x498] sm:$0xff]
    %v5122 = vld [vmem:[#allocation13 + $0x4a0] sm:$0xff]
    %v5123 = vld [vmem:[#allocation13 + $0x4a8] sm:$0xff]
    %v5124 = vld [vmem:[#allocation13 + $0x4b0] sm:$0xff]
    %v5125 = vld [vmem:[#allocation13 + $0x4b8] sm:$0xff]
    %v5126 = vld [vmem:[#allocation13 + $0x4c0] sm:$0xff]
    %v5127 = vld [vmem:[#allocation13 + $0x4c8] sm:$0xff]
    %v5128 = vld [vmem:[#allocation13 + $0x4d0] sm:$0xff]
    %v5129 = vld [vmem:[#allocation13 + $0x4d8] sm:$0xff]
    %v5130 = vld [vmem:[#allocation13 + $0x4e0] sm:$0xff]
    %v5131 = vld [vmem:[#allocation13 + $0x4e8] sm:$0xff]
    %v5132 = vld [vmem:[#allocation13 + $0x4f0] sm:$0xff]
    %v5133 = vld [vmem:[#allocation13 + $0x4f8] sm:$0xff]
    %v5134 = vld [vmem:[#allocation13 + $0x500] sm:$0xff]
    %v5135 = vld [vmem:[#allocation13 + $0x508] sm:$0xff]
    %v5136 = vld [vmem:[#allocation13 + $0x510] sm:$0xff]
    %v5137 = vld [vmem:[#allocation13 + $0x518] sm:$0xff]
    %v5138 = vld [vmem:[#allocation13 + $0x520] sm:$0xff]
    %v5139 = vld [vmem:[#allocation13 + $0x528] sm:$0xff]
    %v5140 = vld [vmem:[#allocation13 + $0x530] sm:$0xff]
    %v5141 = vld [vmem:[#allocation13 + $0x538] sm:$0xff]
    %v5142 = vld [vmem:[#allocation13 + $0x540] sm:$0xff]
    %v5143 = vld [vmem:[#allocation13 + $0x548] sm:$0xff]
    %v5144 = vld [vmem:[#allocation13 + $0x550] sm:$0xff]
    %v5145 = vld [vmem:[#allocation13 + $0x558] sm:$0xff]
    %v5146 = vld [vmem:[#allocation13 + $0x560] sm:$0xff]
    %v5147 = vld [vmem:[#allocation13 + $0x568] sm:$0xff]
    %v5148 = vld [vmem:[#allocation13 + $0x570] sm:$0xff]
    %v5149 = vld [vmem:[#allocation13 + $0x578] sm:$0xff]
    %v5150 = vld [vmem:[#allocation13 + $0x580] sm:$0xff]
    %v5151 = vld [vmem:[#allocation13 + $0x588] sm:$0xff]
    %v5152 = vld [vmem:[#allocation13 + $0x590] sm:$0xff]
    %v5153 = vld [vmem:[#allocation13 + $0x598] sm:$0xff]
    %v5154 = vld [vmem:[#allocation13 + $0x5a0] sm:$0xff]
    %v5155 = vld [vmem:[#allocation13 + $0x5a8] sm:$0xff]
    %v5156 = vld [vmem:[#allocation13 + $0x5b0] sm:$0xff]
    %v5157 = vld [vmem:[#allocation13 + $0x5b8] sm:$0xff]
    %v5158 = vld [vmem:[#allocation13 + $0x5c0] sm:$0xff]
    %v5159 = vld [vmem:[#allocation13 + $0x5c8] sm:$0xff]
    %v5160 = vld [vmem:[#allocation13 + $0x5d0] sm:$0xff]
    %v5161 = vld [vmem:[#allocation13 + $0x5d8] sm:$0xff]
    %v5162 = vld [vmem:[#allocation13 + $0x5e0] sm:$0xff]
    %v5163 = vld [vmem:[#allocation13 + $0x5e8] sm:$0xff]
    %v5164 = vld [vmem:[#allocation13 + $0x5f0] sm:$0xff]
    %v5165 = vld [vmem:[#allocation13 + $0x5f8] sm:$0xff]
    %v5166 = vld [vmem:[#allocation13 + $0x600] sm:$0xff]
    %v5167 = vld [vmem:[#allocation13 + $0x608] sm:$0xff]
    %v5168 = vld [vmem:[#allocation13 + $0x610] sm:$0xff]
    %v5169 = vld [vmem:[#allocation13 + $0x618] sm:$0xff]
    %v5170 = vld [vmem:[#allocation13 + $0x620] sm:$0xff]
    %v5171 = vld [vmem:[#allocation13 + $0x628] sm:$0xff]
    %v5172 = vld [vmem:[#allocation13 + $0x630] sm:$0xff]
    %v5173 = vld [vmem:[#allocation13 + $0x638] sm:$0xff]
    %v5174 = vld [vmem:[#allocation13 + $0x640] sm:$0xff]
    %v5175 = vld [vmem:[#allocation13 + $0x648] sm:$0xff]
    %v5176 = vld [vmem:[#allocation13 + $0x650] sm:$0xff]
    %v5177 = vld [vmem:[#allocation13 + $0x658] sm:$0xff]
    %v5178 = vld [vmem:[#allocation13 + $0x660] sm:$0xff]
    %v5179 = vld [vmem:[#allocation13 + $0x668] sm:$0xff]
    %v5180 = vld [vmem:[#allocation13 + $0x670] sm:$0xff]
    %v5181 = vld [vmem:[#allocation13 + $0x678] sm:$0xff]
    %v5182 = vld [vmem:[#allocation13 + $0x680] sm:$0xff]
    %v5183 = vld [vmem:[#allocation13 + $0x688] sm:$0xff]
    %v5184 = vld [vmem:[#allocation13 + $0x690] sm:$0xff]
    %v5185 = vld [vmem:[#allocation13 + $0x698] sm:$0xff]
    %v5186 = vld [vmem:[#allocation13 + $0x6a0] sm:$0xff]
    %v5187 = vld [vmem:[#allocation13 + $0x6a8] sm:$0xff]
    %v5188 = vld [vmem:[#allocation13 + $0x6b0] sm:$0xff]
    %v5189 = vld [vmem:[#allocation13 + $0x6b8] sm:$0xff]
    %v5190 = vld [vmem:[#allocation13 + $0x6c0] sm:$0xff]
    %v5191 = vld [vmem:[#allocation13 + $0x6c8] sm:$0xff]
    %v5192 = vld [vmem:[#allocation13 + $0x6d0] sm:$0xff]
    %v5193 = vld [vmem:[#allocation13 + $0x6d8] sm:$0xff]
    %v5194 = vld [vmem:[#allocation13 + $0x6e0] sm:$0xff]
    %v5195 = vld [vmem:[#allocation13 + $0x6e8] sm:$0xff]
    %v5196 = vld [vmem:[#allocation13 + $0x6f0] sm:$0xff]
    %v5197 = vld [vmem:[#allocation13 + $0x6f8] sm:$0xff]
    %v5198 = vld [vmem:[#allocation13 + $0x700] sm:$0xff]
    %v5199 = vld [vmem:[#allocation13 + $0x708] sm:$0xff]
    %v5200 = vld [vmem:[#allocation13 + $0x710] sm:$0xff]
    %v5201 = vld [vmem:[#allocation13 + $0x718] sm:$0xff]
    %v5202 = vld [vmem:[#allocation13 + $0x720] sm:$0xff]
    %v5203 = vld [vmem:[#allocation13 + $0x728] sm:$0xff]
    %v5204 = vld [vmem:[#allocation13 + $0x730] sm:$0xff]
    %v5205 = vld [vmem:[#allocation13 + $0x738] sm:$0xff]
    %v5206 = vld [vmem:[#allocation13 + $0x740] sm:$0xff]
    %v5207 = vld [vmem:[#allocation13 + $0x748] sm:$0xff]
    %v5208 = vld [vmem:[#allocation13 + $0x750] sm:$0xff]
    %v5209 = vld [vmem:[#allocation13 + $0x758] sm:$0xff]
    %v5210 = vld [vmem:[#allocation13 + $0x760] sm:$0xff]
    %v5211 = vld [vmem:[#allocation13 + $0x768] sm:$0xff]
    %v5212 = vld [vmem:[#allocation13 + $0x770] sm:$0xff]
    %v5213 = vld [vmem:[#allocation13 + $0x778] sm:$0xff]
    %v5214 = vld [vmem:[#allocation13 + $0x780] sm:$0xff]
    %v5215 = vld [vmem:[#allocation13 + $0x788] sm:$0xff]
    %v5216 = vld [vmem:[#allocation13 + $0x790] sm:$0xff]
    %v5217 = vld [vmem:[#allocation13 + $0x798] sm:$0xff]
    %v5218 = vld [vmem:[#allocation13 + $0x7a0] sm:$0xff]
    %v5219 = vld [vmem:[#allocation13 + $0x7a8] sm:$0xff]
    %v5220 = vld [vmem:[#allocation13 + $0x7b0] sm:$0xff]
    %v5221 = vld [vmem:[#allocation13 + $0x7b8] sm:$0xff]
    %v5222 = vld [vmem:[#allocation13 + $0x7c0] sm:$0xff]
    %v5223 = vld [vmem:[#allocation13 + $0x7c8] sm:$0xff]
    %v5224 = vld [vmem:[#allocation13 + $0x7d0] sm:$0xff]
    %v5225 = vld [vmem:[#allocation13 + $0x7d8] sm:$0xff]
    %v5226 = vld [vmem:[#allocation13 + $0x7e0] sm:$0xff]
    %v5227 = vld [vmem:[#allocation13 + $0x7e8] sm:$0xff]
    %v5228 = vld [vmem:[#allocation13 + $0x7f0] sm:$0xff]
    %v5229 = vld [vmem:[#allocation13 + $0x7f8] sm:$0xff]
    %5230 = vmatprep.subr.mxu0 %v4975
    %5231 = vmatpush1.msra.mxu0 %v4974
    %5232 = vmatprep.subr.mxu0 %v4983
    %5233 = vmatpush1.msra.mxu0 %v4982
    %5234 = vmatprep.subr.mxu0 %v4991
    %5235 = vmatpush1.msra.mxu0 %v4990
    %5236 = vmatprep.subr.mxu0 %v4999
    %5237 = vmatpush1.msra.mxu0 %v4998
    %5238 = vmatprep.subr.mxu0 %v5007
    %5239 = vmatpush1.msra.mxu0 %v5006
    %5240 = vmatprep.subr.mxu0 %v5015
    %5241 = vmatpush1.msra.mxu0 %v5014
    %5242 = vmatprep.subr.mxu0 %v5023
    %5243 = vmatpush1.msra.mxu0 %v5022
    %5244 = vmatprep.subr.mxu0 %v5031
    %5245 = vmatpush1.msra.mxu0 %v5030
    %5246 = vmatprep.subr.mxu0 %v5039
    %5247 = vmatpush1.msra.mxu0 %v5038
    %5248 = vmatprep.subr.mxu0 %v5047
    %5249 = vmatpush1.msra.mxu0 %v5046
    %5250 = vmatprep.subr.mxu0 %v5055
    %5251 = vmatpush1.msra.mxu0 %v5054
    %5252 = vmatprep.subr.mxu0 %v5063
    %5253 = vmatpush1.msra.mxu0 %v5062
    %5254 = vmatprep.subr.mxu0 %v5071
    %5255 = vmatpush1.msra.mxu0 %v5070
    %5256 = vmatprep.subr.mxu0 %v5079
    %5257 = vmatpush1.msra.mxu0 %v5078
    %5258 = vmatprep.subr.mxu0 %v5087
    %5259 = vmatpush1.msra.mxu0 %v5086
    %5260 = vmatprep.subr.mxu0 %v5095
    %5261 = vmatpush1.msra.mxu0 %v5094
    %5262 = vmatprep.subr.mxu0 %v5103
    %5263 = vmatpush1.msra.mxu0 %v5102
    %5264 = vmatprep.subr.mxu0 %v5111
    %5265 = vmatpush1.msra.mxu0 %v5110
    %5266 = vmatprep.subr.mxu0 %v5119
    %5267 = vmatpush1.msra.mxu0 %v5118
    %5268 = vmatprep.subr.mxu0 %v5127
    %5269 = vmatpush1.msra.mxu0 %v5126
    %5270 = vmatprep.subr.mxu0 %v5135
    %5271 = vmatpush1.msra.mxu0 %v5134
    %5272 = vmatprep.subr.mxu0 %v5143
    %5273 = vmatpush1.msra.mxu0 %v5142
    %5274 = vmatprep.subr.mxu0 %v5151
    %5275 = vmatpush1.msra.mxu0 %v5150
    %5276 = vmatprep.subr.mxu0 %v5159
    %5277 = vmatpush1.msra.mxu0 %v5158
    %5278 = vmatprep.subr.mxu0 %v5167
    %5279 = vmatpush1.msra.mxu0 %v5166
    %5280 = vmatprep.subr.mxu0 %v5175
    %5281 = vmatpush1.msra.mxu0 %v5174
    %5282 = vmatprep.subr.mxu0 %v5183
    %5283 = vmatpush1.msra.mxu0 %v5182
    %5284 = vmatprep.subr.mxu0 %v5191
    %5285 = vmatpush1.msra.mxu0 %v5190
    %5286 = vmatprep.subr.mxu0 %v5199
    %5287 = vmatpush1.msra.mxu0 %v5198
    %5288 = vmatprep.subr.mxu0 %v5207
    %5289 = vmatpush1.msra.mxu0 %v5206
    %5290 = vmatprep.subr.mxu0 %v5215
    %5291 = vmatpush1.msra.mxu0 %v5214
    %5292 = vmatprep.subr.mxu0 %v5223
    %5293 = vmatpush1.msra.mxu0 %v5222
    %5294 = vmatprep.mubr.f32.mxu0 %v4962
    %5295 = vmatmul.mubr.f32.gmra.mrb[0].mxu0 %v4961
    %v5296 = vpop.f32.mrb[0].mxu0
    %v5297 = vadd.f32 0.0, %v5296
    %v5298 = vpop.f32.mrb[0].mxu0
    %v5299 = vadd.f32 0.0, %v5298
    %5300 = vdwg.mxu0
    %5301 = vmatprep.subr.mxu0 %v4977
    %5302 = vmatpush1.msra.mxu0 %v4976
    %5303 = vmatprep.subr.mxu0 %v4985
    %5304 = vmatpush1.msra.mxu0 %v4984
    %5305 = vmatprep.subr.mxu0 %v4993
    %5306 = vmatpush1.msra.mxu0 %v4992
    %5307 = vmatprep.subr.mxu0 %v5001
    %5308 = vmatpush1.msra.mxu0 %v5000
    %5309 = vmatprep.subr.mxu0 %v5009
    %5310 = vmatpush1.msra.mxu0 %v5008
    %5311 = vmatprep.subr.mxu0 %v5017
    %5312 = vmatpush1.msra.mxu0 %v5016
    %5313 = vmatprep.subr.mxu0 %v5025
    %5314 = vmatpush1.msra.mxu0 %v5024
    %5315 = vmatprep.subr.mxu0 %v5033
    %5316 = vmatpush1.msra.mxu0 %v5032
    %5317 = vmatprep.subr.mxu0 %v5041
    %5318 = vmatpush1.msra.mxu0 %v5040
    %5319 = vmatprep.subr.mxu0 %v5049
    %5320 = vmatpush1.msra.mxu0 %v5048
    %5321 = vmatprep.subr.mxu0 %v5057
    %5322 = vmatpush1.msra.mxu0 %v5056
    %5323 = vmatprep.subr.mxu0 %v5065
    %5324 = vmatpush1.msra.mxu0 %v5064
    %5325 = vmatprep.subr.mxu0 %v5073
    %5326 = vmatpush1.msra.mxu0 %v5072
    %5327 = vmatprep.subr.mxu0 %v5081
    %5328 = vmatpush1.msra.mxu0 %v5080
    %5329 = vmatprep.subr.mxu0 %v5089
    %5330 = vmatpush1.msra.mxu0 %v5088
    %5331 = vmatprep.subr.mxu0 %v5097
    %5332 = vmatpush1.msra.mxu0 %v5096
    %5333 = vmatprep.subr.mxu0 %v5105
    %5334 = vmatpush1.msra.mxu0 %v5104
    %5335 = vmatprep.subr.mxu0 %v5113
    %5336 = vmatpush1.msra.mxu0 %v5112
    %5337 = vmatprep.subr.mxu0 %v5121
    %5338 = vmatpush1.msra.mxu0 %v5120
    %5339 = vmatprep.subr.mxu0 %v5129
    %5340 = vmatpush1.msra.mxu0 %v5128
    %5341 = vmatprep.subr.mxu0 %v5137
    %5342 = vmatpush1.msra.mxu0 %v5136
    %5343 = vmatprep.subr.mxu0 %v5145
    %5344 = vmatpush1.msra.mxu0 %v5144
    %5345 = vmatprep.subr.mxu0 %v5153
    %5346 = vmatpush1.msra.mxu0 %v5152
    %5347 = vmatprep.subr.mxu0 %v5161
    %5348 = vmatpush1.msra.mxu0 %v5160
    %5349 = vmatprep.subr.mxu0 %v5169
    %5350 = vmatpush1.msra.mxu0 %v5168
    %5351 = vmatprep.subr.mxu0 %v5177
    %5352 = vmatpush1.msra.mxu0 %v5176
    %5353 = vmatprep.subr.mxu0 %v5185
    %5354 = vmatpush1.msra.mxu0 %v5184
    %5355 = vmatprep.subr.mxu0 %v5193
    %5356 = vmatpush1.msra.mxu0 %v5192
    %5357 = vmatprep.subr.mxu0 %v5201
    %5358 = vmatpush1.msra.mxu0 %v5200
    %5359 = vmatprep.subr.mxu0 %v5209
    %5360 = vmatpush1.msra.mxu0 %v5208
    %5361 = vmatprep.subr.mxu0 %v5217
    %5362 = vmatpush1.msra.mxu0 %v5216
    %5363 = vmatprep.subr.mxu0 %v5225
    %5364 = vmatpush1.msra.mxu0 %v5224
    %5365 = vmatprep.mubr.f32.mxu0 %v4962
    %5366 = vmatmul.mubr.f32.gmra.mrb[0].mxu0 %v4961
    %v5367 = vpop.f32.mrb[0].mxu0
    %v5368 = vadd.f32 0.0, %v5367
    %v5369 = vpop.f32.mrb[0].mxu0
    %v5370 = vadd.f32 0.0, %v5369
    %5371 = vdwg.mxu0
    %5372 = vmatprep.subr.mxu0 %v4979
    %5373 = vmatpush1.msra.mxu0 %v4978
    %5374 = vmatprep.subr.mxu0 %v4987
    %5375 = vmatpush1.msra.mxu0 %v4986
    %5376 = vmatprep.subr.mxu0 %v4995
    %5377 = vmatpush1.msra.mxu0 %v4994
    %5378 = vmatprep.subr.mxu0 %v5003
    %5379 = vmatpush1.msra.mxu0 %v5002
    %5380 = vmatprep.subr.mxu0 %v5011
    %5381 = vmatpush1.msra.mxu0 %v5010
    %5382 = vmatprep.subr.mxu0 %v5019
    %5383 = vmatpush1.msra.mxu0 %v5018
    %5384 = vmatprep.subr.mxu0 %v5027
    %5385 = vmatpush1.msra.mxu0 %v5026
    %5386 = vmatprep.subr.mxu0 %v5035
    %5387 = vmatpush1.msra.mxu0 %v5034
    %5388 = vmatprep.subr.mxu0 %v5043
    %5389 = vmatpush1.msra.mxu0 %v5042
    %5390 = vmatprep.subr.mxu0 %v5051
    %5391 = vmatpush1.msra.mxu0 %v5050
    %5392 = vmatprep.subr.mxu0 %v5059
    %5393 = vmatpush1.msra.mxu0 %v5058
    %5394 = vmatprep.subr.mxu0 %v5067
    %5395 = vmatpush1.msra.mxu0 %v5066
    %5396 = vmatprep.subr.mxu0 %v5075
    %5397 = vmatpush1.msra.mxu0 %v5074
    %5398 = vmatprep.subr.mxu0 %v5083
    %5399 = vmatpush1.msra.mxu0 %v5082
    %5400 = vmatprep.subr.mxu0 %v5091
    %5401 = vmatpush1.msra.mxu0 %v5090
    %5402 = vmatprep.subr.mxu0 %v5099
    %5403 = vmatpush1.msra.mxu0 %v5098
    %5404 = vmatprep.subr.mxu0 %v5107
    %5405 = vmatpush1.msra.mxu0 %v5106
    %5406 = vmatprep.subr.mxu0 %v5115
    %5407 = vmatpush1.msra.mxu0 %v5114
    %5408 = vmatprep.subr.mxu0 %v5123
    %5409 = vmatpush1.msra.mxu0 %v5122
    %5410 = vmatprep.subr.mxu0 %v5131
    %5411 = vmatpush1.msra.mxu0 %v5130
    %5412 = vmatprep.subr.mxu0 %v5139
    %5413 = vmatpush1.msra.mxu0 %v5138
    %5414 = vmatprep.subr.mxu0 %v5147
    %5415 = vmatpush1.msra.mxu0 %v5146
    %5416 = vmatprep.subr.mxu0 %v5155
    %5417 = vmatpush1.msra.mxu0 %v5154
    %5418 = vmatprep.subr.mxu0 %v5163
    %5419 = vmatpush1.msra.mxu0 %v5162
    %5420 = vmatprep.subr.mxu0 %v5171
    %5421 = vmatpush1.msra.mxu0 %v5170
    %5422 = vmatprep.subr.mxu0 %v5179
    %5423 = vmatpush1.msra.mxu0 %v5178
    %5424 = vmatprep.subr.mxu0 %v5187
    %5425 = vmatpush1.msra.mxu0 %v5186
    %5426 = vmatprep.subr.mxu0 %v5195
    %5427 = vmatpush1.msra.mxu0 %v5194
    %5428 = vmatprep.subr.mxu0 %v5203
    %5429 = vmatpush1.msra.mxu0 %v5202
    %5430 = vmatprep.subr.mxu0 %v5211
    %5431 = vmatpush1.msra.mxu0 %v5210
    %5432 = vmatprep.subr.mxu0 %v5219
    %5433 = vmatpush1.msra.mxu0 %v5218
    %5434 = vmatprep.subr.mxu0 %v5227
    %5435 = vmatpush1.msra.mxu0 %v5226
    %5436 = vmatprep.mubr.f32.mxu0 %v4962
    %5437 = vmatmul.mubr.f32.gmra.mrb[0].mxu0 %v4961
    %v5438 = vpop.f32.mrb[0].mxu0
    %v5439 = vadd.f32 0.0, %v5438
    %v5440 = vpop.f32.mrb[0].mxu0
    %v5441 = vadd.f32 0.0, %v5440
    %5442 = vdwg.mxu0
    %5443 = vmatprep.subr.mxu0 %v4981
    %5444 = vmatpush1.msra.mxu0 %v4980
    %5445 = vmatprep.subr.mxu0 %v4989
    %5446 = vmatpush1.msra.mxu0 %v4988
    %5447 = vmatprep.subr.mxu0 %v4997
    %5448 = vmatpush1.msra.mxu0 %v4996
    %5449 = vmatprep.subr.mxu0 %v5005
    %5450 = vmatpush1.msra.mxu0 %v5004
    %5451 = vmatprep.subr.mxu0 %v5013
    %5452 = vmatpush1.msra.mxu0 %v5012
    %5453 = vmatprep.subr.mxu0 %v5021
    %5454 = vmatpush1.msra.mxu0 %v5020
    %5455 = vmatprep.subr.mxu0 %v5029
    %5456 = vmatpush1.msra.mxu0 %v5028
    %5457 = vmatprep.subr.mxu0 %v5037
    %5458 = vmatpush1.msra.mxu0 %v5036
    %5459 = vmatprep.subr.mxu0 %v5045
    %5460 = vmatpush1.msra.mxu0 %v5044
    %5461 = vmatprep.subr.mxu0 %v5053
    %5462 = vmatpush1.msra.mxu0 %v5052
    %5463 = vmatprep.subr.mxu0 %v5061
    %5464 = vmatpush1.msra.mxu0 %v5060
    %5465 = vmatprep.subr.mxu0 %v5069
    %5466 = vmatpush1.msra.mxu0 %v5068
    %5467 = vmatprep.subr.mxu0 %v5077
    %5468 = vmatpush1.msra.mxu0 %v5076
    %5469 = vmatprep.subr.mxu0 %v5085
    %5470 = vmatpush1.msra.mxu0 %v5084
    %5471 = vmatprep.subr.mxu0 %v5093
    %5472 = vmatpush1.msra.mxu0 %v5092
    %5473 = vmatprep.subr.mxu0 %v5101
    %5474 = vmatpush1.msra.mxu0 %v5100
    %5475 = vmatprep.subr.mxu0 %v5109
    %5476 = vmatpush1.msra.mxu0 %v5108
    %5477 = vmatprep.subr.mxu0 %v5117
    %5478 = vmatpush1.msra.mxu0 %v5116
    %5479 = vmatprep.subr.mxu0 %v5125
    %5480 = vmatpush1.msra.mxu0 %v5124
    %5481 = vmatprep.subr.mxu0 %v5133
    %5482 = vmatpush1.msra.mxu0 %v5132
    %5483 = vmatprep.subr.mxu0 %v5141
    %5484 = vmatpush1.msra.mxu0 %v5140
    %5485 = vmatprep.subr.mxu0 %v5149
    %5486 = vmatpush1.msra.mxu0 %v5148
    %5487 = vmatprep.subr.mxu0 %v5157
    %5488 = vmatpush1.msra.mxu0 %v5156
    %5489 = vmatprep.subr.mxu0 %v5165
    %5490 = vmatpush1.msra.mxu0 %v5164
    %5491 = vmatprep.subr.mxu0 %v5173
    %5492 = vmatpush1.msra.mxu0 %v5172
    %5493 = vmatprep.subr.mxu0 %v5181
    %5494 = vmatpush1.msra.mxu0 %v5180
    %5495 = vmatprep.subr.mxu0 %v5189
    %5496 = vmatpush1.msra.mxu0 %v5188
    %5497 = vmatprep.subr.mxu0 %v5197
    %5498 = vmatpush1.msra.mxu0 %v5196
    %5499 = vmatprep.subr.mxu0 %v5205
    %5500 = vmatpush1.msra.mxu0 %v5204
    %5501 = vmatprep.subr.mxu0 %v5213
    %5502 = vmatpush1.msra.mxu0 %v5212
    %5503 = vmatprep.subr.mxu0 %v5221
    %5504 = vmatpush1.msra.mxu0 %v5220
    %5505 = vmatprep.subr.mxu0 %v5229
    %5506 = vmatpush1.msra.mxu0 %v5228
    %5507 = vmatprep.mubr.f32.mxu0 %v4962
    %5508 = vmatmul.mubr.f32.gmra.mrb[0].mxu0 %v4961
    %v5509 = vpop.f32.mrb[0].mxu0
    %v5510 = vadd.f32 0.0, %v5509
    %v5511 = vpop.f32.mrb[0].mxu0
    %v5512 = vadd.f32 0.0, %v5511
    %5513 = vdwg.mxu0
    %v5514 = vadd.f32 %v4966, %v5297
    %v5515 = vadd.f32 %v4967, %v5299
    %v5516 = vadd.f32 %v4968, %v5368
    %v5517 = vadd.f32 %v4969, %v5370
    %v5518 = vadd.f32 %v4970, %v5439
    %v5519 = vadd.f32 %v4971, %v5441
    %v5520 = vadd.f32 %v4972, %v5510
    %v5521 = vadd.f32 %v4973, %v5512
    %v5522 = vxor.u32 %v5514, 2147483648
    %v5523 = vxor.u32 %v5515, 2147483648
    %v5524 = vmul.f32 %v5522, 1.442695
    %v5525 = vpow.pop %v5524
    %v5526 = vmul.f32 %v5523, 1.442695
    %v5527 = vpow.pop %v5526
    %v5528 = vadd.f32 %v5525, 1.0
    %v5529 = vadd.f32 %v5527, 1.0
    %v5530 = vrcp.pop %v5528
    %v5531 = vmul.f32 1.0, %v5530
    %v5532 = vrcp.pop %v5529
    %v5533 = vmul.f32 1.0, %v5532
    %v5534 = vxor.u32 %v5516, 2147483648
    %v5535 = vxor.u32 %v5517, 2147483648
    %v5536 = vmul.f32 %v5534, 1.442695
    %v5537 = vpow.pop %v5536
    %v5538 = vmul.f32 %v5535, 1.442695
    %v5539 = vpow.pop %v5538
    %v5540 = vadd.f32 %v5537, 1.0
    %v5541 = vadd.f32 %v5539, 1.0
    %v5542 = vrcp.pop %v5540
    %v5543 = vmul.f32 1.0, %v5542
    %v5544 = vrcp.pop %v5541
    %v5545 = vmul.f32 1.0, %v5544
    %v5546 = vtanh.pop %v5518
    %v5547 = vtanh.pop %v5519
    %v5548 = vxor.u32 %v5520, 2147483648
    %v5549 = vxor.u32 %v5521, 2147483648
    %v5550 = vmul.f32 %v5548, 1.442695
    %v5551 = vpow.pop %v5550
    %v5552 = vmul.f32 %v5549, 1.442695
    %v5553 = vpow.pop %v5552
    %v5554 = vadd.f32 %v5551, 1.0
    %v5555 = vadd.f32 %v5553, 1.0
    %v5556 = vrcp.pop %v5554
    %v5557 = vmul.f32 1.0, %v5556
    %v5558 = vrcp.pop %v5555
    %v5559 = vmul.f32 1.0, %v5558
    %v5560 = vmul.f32 %v5543, %v4963
    %v5561 = vmul.f32 %v5545, %v4964
    %v5562 = vmul.f32 %v5531, %v5546
    %v5563 = vmul.f32 %v5533, %v5547
    %v5564 = vadd.f32 %v5560, %v5562
    %v5565 = vadd.f32 %v5561, %v5563
    %v5566 = vtanh.pop %v5564
    %v5567 = vtanh.pop %v5565
    %v5568 = vmul.f32 %v5557, %v5566
    %v5569 = vmul.f32 %v5559, %v5567
    %5570 = vst [vmem:[#allocation3] sm:$0xff] %v5568
    %5571 = vst [vmem:[#allocation3 + $0x8] sm:$0xff] %v5569
    %5572 = vst [vmem:[#allocation4] sm:$0xff] %v5564
    %5573 = vst [vmem:[#allocation4 + $0x8] sm:$0xff] %v5565
    %s5574 = scalar_lea.vmem [#allocation14], 96
    %5575 = vst [vmem:[%s5574] sm:$0xff] %v5568
    %5576 = vst [vmem:[%s5574 + $0x8] sm:$0xff] %v5569
    %v5577 = vld [vmem:[#allocation3] sm:$0xff]
    %v5578 = vld [vmem:[#allocation3 + $0x8] sm:$0xff]
    %v5579 = vld [vmem:[#allocation4] sm:$0xff]
    %v5580 = vld [vmem:[#allocation4 + $0x8] sm:$0xff]
    %s5581 = scalar_lea.vmem [#allocation2], 448
    %v5582 = vld [vmem:[%s5581] sm:$0xff]
    %v5583 = vld [vmem:[%s5581 + $0x8] sm:$0xff]
    %v5584 = vld [vmem:[%s5581 + $0x10] sm:$0xff]
    %v5585 = vld [vmem:[%s5581 + $0x18] sm:$0xff]
    %v5586 = vld [vmem:[%s5581 + $0x20] sm:$0xff]
    %v5587 = vld [vmem:[%s5581 + $0x28] sm:$0xff]
    %v5588 = vld [vmem:[%s5581 + $0x30] sm:$0xff]
    %v5589 = vld [vmem:[%s5581 + $0x38] sm:$0xff]
    %v5590 = vld [vmem:[#allocation13] sm:$0xff]
    %v5591 = vld [vmem:[#allocation13 + $0x8] sm:$0xff]
    %v5592 = vld [vmem:[#allocation13 + $0x10] sm:$0xff]
    %v5593 = vld [vmem:[#allocation13 + $0x18] sm:$0xff]
    %v5594 = vld [vmem:[#allocation13 + $0x20] sm:$0xff]
    %v5595 = vld [vmem:[#allocation13 + $0x28] sm:$0xff]
    %v5596 = vld [vmem:[#allocation13 + $0x30] sm:$0xff]
    %v5597 = vld [vmem:[#allocation13 + $0x38] sm:$0xff]
    %v5598 = vld [vmem:[#allocation13 + $0x40] sm:$0xff]
    %v5599 = vld [vmem:[#allocation13 + $0x48] sm:$0xff]
    %v5600 = vld [vmem:[#allocation13 + $0x50] sm:$0xff]
    %v5601 = vld [vmem:[#allocation13 + $0x58] sm:$0xff]
    %v5602 = vld [vmem:[#allocation13 + $0x60] sm:$0xff]
    %v5603 = vld [vmem:[#allocation13 + $0x68] sm:$0xff]
    %v5604 = vld [vmem:[#allocation13 + $0x70] sm:$0xff]
    %v5605 = vld [vmem:[#allocation13 + $0x78] sm:$0xff]
    %v5606 = vld [vmem:[#allocation13 + $0x80] sm:$0xff]
    %v5607 = vld [vmem:[#allocation13 + $0x88] sm:$0xff]
    %v5608 = vld [vmem:[#allocation13 + $0x90] sm:$0xff]
    %v5609 = vld [vmem:[#allocation13 + $0x98] sm:$0xff]
    %v5610 = vld [vmem:[#allocation13 + $0xa0] sm:$0xff]
    %v5611 = vld [vmem:[#allocation13 + $0xa8] sm:$0xff]
    %v5612 = vld [vmem:[#allocation13 + $0xb0] sm:$0xff]
    %v5613 = vld [vmem:[#allocation13 + $0xb8] sm:$0xff]
    %v5614 = vld [vmem:[#allocation13 + $0xc0] sm:$0xff]
    %v5615 = vld [vmem:[#allocation13 + $0xc8] sm:$0xff]
    %v5616 = vld [vmem:[#allocation13 + $0xd0] sm:$0xff]
    %v5617 = vld [vmem:[#allocation13 + $0xd8] sm:$0xff]
    %v5618 = vld [vmem:[#allocation13 + $0xe0] sm:$0xff]
    %v5619 = vld [vmem:[#allocation13 + $0xe8] sm:$0xff]
    %v5620 = vld [vmem:[#allocation13 + $0xf0] sm:$0xff]
    %v5621 = vld [vmem:[#allocation13 + $0xf8] sm:$0xff]
    %v5622 = vld [vmem:[#allocation13 + $0x100] sm:$0xff]
    %v5623 = vld [vmem:[#allocation13 + $0x108] sm:$0xff]
    %v5624 = vld [vmem:[#allocation13 + $0x110] sm:$0xff]
    %v5625 = vld [vmem:[#allocation13 + $0x118] sm:$0xff]
    %v5626 = vld [vmem:[#allocation13 + $0x120] sm:$0xff]
    %v5627 = vld [vmem:[#allocation13 + $0x128] sm:$0xff]
    %v5628 = vld [vmem:[#allocation13 + $0x130] sm:$0xff]
    %v5629 = vld [vmem:[#allocation13 + $0x138] sm:$0xff]
    %v5630 = vld [vmem:[#allocation13 + $0x140] sm:$0xff]
    %v5631 = vld [vmem:[#allocation13 + $0x148] sm:$0xff]
    %v5632 = vld [vmem:[#allocation13 + $0x150] sm:$0xff]
    %v5633 = vld [vmem:[#allocation13 + $0x158] sm:$0xff]
    %v5634 = vld [vmem:[#allocation13 + $0x160] sm:$0xff]
    %v5635 = vld [vmem:[#allocation13 + $0x168] sm:$0xff]
    %v5636 = vld [vmem:[#allocation13 + $0x170] sm:$0xff]
    %v5637 = vld [vmem:[#allocation13 + $0x178] sm:$0xff]
    %v5638 = vld [vmem:[#allocation13 + $0x180] sm:$0xff]
    %v5639 = vld [vmem:[#allocation13 + $0x188] sm:$0xff]
    %v5640 = vld [vmem:[#allocation13 + $0x190] sm:$0xff]
    %v5641 = vld [vmem:[#allocation13 + $0x198] sm:$0xff]
    %v5642 = vld [vmem:[#allocation13 + $0x1a0] sm:$0xff]
    %v5643 = vld [vmem:[#allocation13 + $0x1a8] sm:$0xff]
    %v5644 = vld [vmem:[#allocation13 + $0x1b0] sm:$0xff]
    %v5645 = vld [vmem:[#allocation13 + $0x1b8] sm:$0xff]
    %v5646 = vld [vmem:[#allocation13 + $0x1c0] sm:$0xff]
    %v5647 = vld [vmem:[#allocation13 + $0x1c8] sm:$0xff]
    %v5648 = vld [vmem:[#allocation13 + $0x1d0] sm:$0xff]
    %v5649 = vld [vmem:[#allocation13 + $0x1d8] sm:$0xff]
    %v5650 = vld [vmem:[#allocation13 + $0x1e0] sm:$0xff]
    %v5651 = vld [vmem:[#allocation13 + $0x1e8] sm:$0xff]
    %v5652 = vld [vmem:[#allocation13 + $0x1f0] sm:$0xff]
    %v5653 = vld [vmem:[#allocation13 + $0x1f8] sm:$0xff]
    %v5654 = vld [vmem:[#allocation13 + $0x200] sm:$0xff]
    %v5655 = vld [vmem:[#allocation13 + $0x208] sm:$0xff]
    %v5656 = vld [vmem:[#allocation13 + $0x210] sm:$0xff]
    %v5657 = vld [vmem:[#allocation13 + $0x218] sm:$0xff]
    %v5658 = vld [vmem:[#allocation13 + $0x220] sm:$0xff]
    %v5659 = vld [vmem:[#allocation13 + $0x228] sm:$0xff]
    %v5660 = vld [vmem:[#allocation13 + $0x230] sm:$0xff]
    %v5661 = vld [vmem:[#allocation13 + $0x238] sm:$0xff]
    %v5662 = vld [vmem:[#allocation13 + $0x240] sm:$0xff]
    %v5663 = vld [vmem:[#allocation13 + $0x248] sm:$0xff]
    %v5664 = vld [vmem:[#allocation13 + $0x250] sm:$0xff]
    %v5665 = vld [vmem:[#allocation13 + $0x258] sm:$0xff]
    %v5666 = vld [vmem:[#allocation13 + $0x260] sm:$0xff]
    %v5667 = vld [vmem:[#allocation13 + $0x268] sm:$0xff]
    %v5668 = vld [vmem:[#allocation13 + $0x270] sm:$0xff]
    %v5669 = vld [vmem:[#allocation13 + $0x278] sm:$0xff]
    %v5670 = vld [vmem:[#allocation13 + $0x280] sm:$0xff]
    %v5671 = vld [vmem:[#allocation13 + $0x288] sm:$0xff]
    %v5672 = vld [vmem:[#allocation13 + $0x290] sm:$0xff]
    %v5673 = vld [vmem:[#allocation13 + $0x298] sm:$0xff]
    %v5674 = vld [vmem:[#allocation13 + $0x2a0] sm:$0xff]
    %v5675 = vld [vmem:[#allocation13 + $0x2a8] sm:$0xff]
    %v5676 = vld [vmem:[#allocation13 + $0x2b0] sm:$0xff]
    %v5677 = vld [vmem:[#allocation13 + $0x2b8] sm:$0xff]
    %v5678 = vld [vmem:[#allocation13 + $0x2c0] sm:$0xff]
    %v5679 = vld [vmem:[#allocation13 + $0x2c8] sm:$0xff]
    %v5680 = vld [vmem:[#allocation13 + $0x2d0] sm:$0xff]
    %v5681 = vld [vmem:[#allocation13 + $0x2d8] sm:$0xff]
    %v5682 = vld [vmem:[#allocation13 + $0x2e0] sm:$0xff]
    %v5683 = vld [vmem:[#allocation13 + $0x2e8] sm:$0xff]
    %v5684 = vld [vmem:[#allocation13 + $0x2f0] sm:$0xff]
    %v5685 = vld [vmem:[#allocation13 + $0x2f8] sm:$0xff]
    %v5686 = vld [vmem:[#allocation13 + $0x300] sm:$0xff]
    %v5687 = vld [vmem:[#allocation13 + $0x308] sm:$0xff]
    %v5688 = vld [vmem:[#allocation13 + $0x310] sm:$0xff]
    %v5689 = vld [vmem:[#allocation13 + $0x318] sm:$0xff]
    %v5690 = vld [vmem:[#allocation13 + $0x320] sm:$0xff]
    %v5691 = vld [vmem:[#allocation13 + $0x328] sm:$0xff]
    %v5692 = vld [vmem:[#allocation13 + $0x330] sm:$0xff]
    %v5693 = vld [vmem:[#allocation13 + $0x338] sm:$0xff]
    %v5694 = vld [vmem:[#allocation13 + $0x340] sm:$0xff]
    %v5695 = vld [vmem:[#allocation13 + $0x348] sm:$0xff]
    %v5696 = vld [vmem:[#allocation13 + $0x350] sm:$0xff]
    %v5697 = vld [vmem:[#allocation13 + $0x358] sm:$0xff]
    %v5698 = vld [vmem:[#allocation13 + $0x360] sm:$0xff]
    %v5699 = vld [vmem:[#allocation13 + $0x368] sm:$0xff]
    %v5700 = vld [vmem:[#allocation13 + $0x370] sm:$0xff]
    %v5701 = vld [vmem:[#allocation13 + $0x378] sm:$0xff]
    %v5702 = vld [vmem:[#allocation13 + $0x380] sm:$0xff]
    %v5703 = vld [vmem:[#allocation13 + $0x388] sm:$0xff]
    %v5704 = vld [vmem:[#allocation13 + $0x390] sm:$0xff]
    %v5705 = vld [vmem:[#allocation13 + $0x398] sm:$0xff]
    %v5706 = vld [vmem:[#allocation13 + $0x3a0] sm:$0xff]
    %v5707 = vld [vmem:[#allocation13 + $0x3a8] sm:$0xff]
    %v5708 = vld [vmem:[#allocation13 + $0x3b0] sm:$0xff]
    %v5709 = vld [vmem:[#allocation13 + $0x3b8] sm:$0xff]
    %v5710 = vld [vmem:[#allocation13 + $0x3c0] sm:$0xff]
    %v5711 = vld [vmem:[#allocation13 + $0x3c8] sm:$0xff]
    %v5712 = vld [vmem:[#allocation13 + $0x3d0] sm:$0xff]
    %v5713 = vld [vmem:[#allocation13 + $0x3d8] sm:$0xff]
    %v5714 = vld [vmem:[#allocation13 + $0x3e0] sm:$0xff]
    %v5715 = vld [vmem:[#allocation13 + $0x3e8] sm:$0xff]
    %v5716 = vld [vmem:[#allocation13 + $0x3f0] sm:$0xff]
    %v5717 = vld [vmem:[#allocation13 + $0x3f8] sm:$0xff]
    %v5718 = vld [vmem:[#allocation13 + $0x400] sm:$0xff]
    %v5719 = vld [vmem:[#allocation13 + $0x408] sm:$0xff]
    %v5720 = vld [vmem:[#allocation13 + $0x410] sm:$0xff]
    %v5721 = vld [vmem:[#allocation13 + $0x418] sm:$0xff]
    %v5722 = vld [vmem:[#allocation13 + $0x420] sm:$0xff]
    %v5723 = vld [vmem:[#allocation13 + $0x428] sm:$0xff]
    %v5724 = vld [vmem:[#allocation13 + $0x430] sm:$0xff]
    %v5725 = vld [vmem:[#allocation13 + $0x438] sm:$0xff]
    %v5726 = vld [vmem:[#allocation13 + $0x440] sm:$0xff]
    %v5727 = vld [vmem:[#allocation13 + $0x448] sm:$0xff]
    %v5728 = vld [vmem:[#allocation13 + $0x450] sm:$0xff]
    %v5729 = vld [vmem:[#allocation13 + $0x458] sm:$0xff]
    %v5730 = vld [vmem:[#allocation13 + $0x460] sm:$0xff]
    %v5731 = vld [vmem:[#allocation13 + $0x468] sm:$0xff]
    %v5732 = vld [vmem:[#allocation13 + $0x470] sm:$0xff]
    %v5733 = vld [vmem:[#allocation13 + $0x478] sm:$0xff]
    %v5734 = vld [vmem:[#allocation13 + $0x480] sm:$0xff]
    %v5735 = vld [vmem:[#allocation13 + $0x488] sm:$0xff]
    %v5736 = vld [vmem:[#allocation13 + $0x490] sm:$0xff]
    %v5737 = vld [vmem:[#allocation13 + $0x498] sm:$0xff]
    %v5738 = vld [vmem:[#allocation13 + $0x4a0] sm:$0xff]
    %v5739 = vld [vmem:[#allocation13 + $0x4a8] sm:$0xff]
    %v5740 = vld [vmem:[#allocation13 + $0x4b0] sm:$0xff]
    %v5741 = vld [vmem:[#allocation13 + $0x4b8] sm:$0xff]
    %v5742 = vld [vmem:[#allocation13 + $0x4c0] sm:$0xff]
    %v5743 = vld [vmem:[#allocation13 + $0x4c8] sm:$0xff]
    %v5744 = vld [vmem:[#allocation13 + $0x4d0] sm:$0xff]
    %v5745 = vld [vmem:[#allocation13 + $0x4d8] sm:$0xff]
    %v5746 = vld [vmem:[#allocation13 + $0x4e0] sm:$0xff]
    %v5747 = vld [vmem:[#allocation13 + $0x4e8] sm:$0xff]
    %v5748 = vld [vmem:[#allocation13 + $0x4f0] sm:$0xff]
    %v5749 = vld [vmem:[#allocation13 + $0x4f8] sm:$0xff]
    %v5750 = vld [vmem:[#allocation13 + $0x500] sm:$0xff]
    %v5751 = vld [vmem:[#allocation13 + $0x508] sm:$0xff]
    %v5752 = vld [vmem:[#allocation13 + $0x510] sm:$0xff]
    %v5753 = vld [vmem:[#allocation13 + $0x518] sm:$0xff]
    %v5754 = vld [vmem:[#allocation13 + $0x520] sm:$0xff]
    %v5755 = vld [vmem:[#allocation13 + $0x528] sm:$0xff]
    %v5756 = vld [vmem:[#allocation13 + $0x530] sm:$0xff]
    %v5757 = vld [vmem:[#allocation13 + $0x538] sm:$0xff]
    %v5758 = vld [vmem:[#allocation13 + $0x540] sm:$0xff]
    %v5759 = vld [vmem:[#allocation13 + $0x548] sm:$0xff]
    %v5760 = vld [vmem:[#allocation13 + $0x550] sm:$0xff]
    %v5761 = vld [vmem:[#allocation13 + $0x558] sm:$0xff]
    %v5762 = vld [vmem:[#allocation13 + $0x560] sm:$0xff]
    %v5763 = vld [vmem:[#allocation13 + $0x568] sm:$0xff]
    %v5764 = vld [vmem:[#allocation13 + $0x570] sm:$0xff]
    %v5765 = vld [vmem:[#allocation13 + $0x578] sm:$0xff]
    %v5766 = vld [vmem:[#allocation13 + $0x580] sm:$0xff]
    %v5767 = vld [vmem:[#allocation13 + $0x588] sm:$0xff]
    %v5768 = vld [vmem:[#allocation13 + $0x590] sm:$0xff]
    %v5769 = vld [vmem:[#allocation13 + $0x598] sm:$0xff]
    %v5770 = vld [vmem:[#allocation13 + $0x5a0] sm:$0xff]
    %v5771 = vld [vmem:[#allocation13 + $0x5a8] sm:$0xff]
    %v5772 = vld [vmem:[#allocation13 + $0x5b0] sm:$0xff]
    %v5773 = vld [vmem:[#allocation13 + $0x5b8] sm:$0xff]
    %v5774 = vld [vmem:[#allocation13 + $0x5c0] sm:$0xff]
    %v5775 = vld [vmem:[#allocation13 + $0x5c8] sm:$0xff]
    %v5776 = vld [vmem:[#allocation13 + $0x5d0] sm:$0xff]
    %v5777 = vld [vmem:[#allocation13 + $0x5d8] sm:$0xff]
    %v5778 = vld [vmem:[#allocation13 + $0x5e0] sm:$0xff]
    %v5779 = vld [vmem:[#allocation13 + $0x5e8] sm:$0xff]
    %v5780 = vld [vmem:[#allocation13 + $0x5f0] sm:$0xff]
    %v5781 = vld [vmem:[#allocation13 + $0x5f8] sm:$0xff]
    %v5782 = vld [vmem:[#allocation13 + $0x600] sm:$0xff]
    %v5783 = vld [vmem:[#allocation13 + $0x608] sm:$0xff]
    %v5784 = vld [vmem:[#allocation13 + $0x610] sm:$0xff]
    %v5785 = vld [vmem:[#allocation13 + $0x618] sm:$0xff]
    %v5786 = vld [vmem:[#allocation13 + $0x620] sm:$0xff]
    %v5787 = vld [vmem:[#allocation13 + $0x628] sm:$0xff]
    %v5788 = vld [vmem:[#allocation13 + $0x630] sm:$0xff]
    %v5789 = vld [vmem:[#allocation13 + $0x638] sm:$0xff]
    %v5790 = vld [vmem:[#allocation13 + $0x640] sm:$0xff]
    %v5791 = vld [vmem:[#allocation13 + $0x648] sm:$0xff]
    %v5792 = vld [vmem:[#allocation13 + $0x650] sm:$0xff]
    %v5793 = vld [vmem:[#allocation13 + $0x658] sm:$0xff]
    %v5794 = vld [vmem:[#allocation13 + $0x660] sm:$0xff]
    %v5795 = vld [vmem:[#allocation13 + $0x668] sm:$0xff]
    %v5796 = vld [vmem:[#allocation13 + $0x670] sm:$0xff]
    %v5797 = vld [vmem:[#allocation13 + $0x678] sm:$0xff]
    %v5798 = vld [vmem:[#allocation13 + $0x680] sm:$0xff]
    %v5799 = vld [vmem:[#allocation13 + $0x688] sm:$0xff]
    %v5800 = vld [vmem:[#allocation13 + $0x690] sm:$0xff]
    %v5801 = vld [vmem:[#allocation13 + $0x698] sm:$0xff]
    %v5802 = vld [vmem:[#allocation13 + $0x6a0] sm:$0xff]
    %v5803 = vld [vmem:[#allocation13 + $0x6a8] sm:$0xff]
    %v5804 = vld [vmem:[#allocation13 + $0x6b0] sm:$0xff]
    %v5805 = vld [vmem:[#allocation13 + $0x6b8] sm:$0xff]
    %v5806 = vld [vmem:[#allocation13 + $0x6c0] sm:$0xff]
    %v5807 = vld [vmem:[#allocation13 + $0x6c8] sm:$0xff]
    %v5808 = vld [vmem:[#allocation13 + $0x6d0] sm:$0xff]
    %v5809 = vld [vmem:[#allocation13 + $0x6d8] sm:$0xff]
    %v5810 = vld [vmem:[#allocation13 + $0x6e0] sm:$0xff]
    %v5811 = vld [vmem:[#allocation13 + $0x6e8] sm:$0xff]
    %v5812 = vld [vmem:[#allocation13 + $0x6f0] sm:$0xff]
    %v5813 = vld [vmem:[#allocation13 + $0x6f8] sm:$0xff]
    %v5814 = vld [vmem:[#allocation13 + $0x700] sm:$0xff]
    %v5815 = vld [vmem:[#allocation13 + $0x708] sm:$0xff]
    %v5816 = vld [vmem:[#allocation13 + $0x710] sm:$0xff]
    %v5817 = vld [vmem:[#allocation13 + $0x718] sm:$0xff]
    %v5818 = vld [vmem:[#allocation13 + $0x720] sm:$0xff]
    %v5819 = vld [vmem:[#allocation13 + $0x728] sm:$0xff]
    %v5820 = vld [vmem:[#allocation13 + $0x730] sm:$0xff]
    %v5821 = vld [vmem:[#allocation13 + $0x738] sm:$0xff]
    %v5822 = vld [vmem:[#allocation13 + $0x740] sm:$0xff]
    %v5823 = vld [vmem:[#allocation13 + $0x748] sm:$0xff]
    %v5824 = vld [vmem:[#allocation13 + $0x750] sm:$0xff]
    %v5825 = vld [vmem:[#allocation13 + $0x758] sm:$0xff]
    %v5826 = vld [vmem:[#allocation13 + $0x760] sm:$0xff]
    %v5827 = vld [vmem:[#allocation13 + $0x768] sm:$0xff]
    %v5828 = vld [vmem:[#allocation13 + $0x770] sm:$0xff]
    %v5829 = vld [vmem:[#allocation13 + $0x778] sm:$0xff]
    %v5830 = vld [vmem:[#allocation13 + $0x780] sm:$0xff]
    %v5831 = vld [vmem:[#allocation13 + $0x788] sm:$0xff]
    %v5832 = vld [vmem:[#allocation13 + $0x790] sm:$0xff]
    %v5833 = vld [vmem:[#allocation13 + $0x798] sm:$0xff]
    %v5834 = vld [vmem:[#allocation13 + $0x7a0] sm:$0xff]
    %v5835 = vld [vmem:[#allocation13 + $0x7a8] sm:$0xff]
    %v5836 = vld [vmem:[#allocation13 + $0x7b0] sm:$0xff]
    %v5837 = vld [vmem:[#allocation13 + $0x7b8] sm:$0xff]
    %v5838 = vld [vmem:[#allocation13 + $0x7c0] sm:$0xff]
    %v5839 = vld [vmem:[#allocation13 + $0x7c8] sm:$0xff]
    %v5840 = vld [vmem:[#allocation13 + $0x7d0] sm:$0xff]
    %v5841 = vld [vmem:[#allocation13 + $0x7d8] sm:$0xff]
    %v5842 = vld [vmem:[#allocation13 + $0x7e0] sm:$0xff]
    %v5843 = vld [vmem:[#allocation13 + $0x7e8] sm:$0xff]
    %v5844 = vld [vmem:[#allocation13 + $0x7f0] sm:$0xff]
    %v5845 = vld [vmem:[#allocation13 + $0x7f8] sm:$0xff]
    %5846 = vmatprep.subr.mxu0 %v5591
    %5847 = vmatpush1.msra.mxu0 %v5590
    %5848 = vmatprep.subr.mxu0 %v5599
    %5849 = vmatpush1.msra.mxu0 %v5598
    %5850 = vmatprep.subr.mxu0 %v5607
    %5851 = vmatpush1.msra.mxu0 %v5606
    %5852 = vmatprep.subr.mxu0 %v5615
    %5853 = vmatpush1.msra.mxu0 %v5614
    %5854 = vmatprep.subr.mxu0 %v5623
    %5855 = vmatpush1.msra.mxu0 %v5622
    %5856 = vmatprep.subr.mxu0 %v5631
    %5857 = vmatpush1.msra.mxu0 %v5630
    %5858 = vmatprep.subr.mxu0 %v5639
    %5859 = vmatpush1.msra.mxu0 %v5638
    %5860 = vmatprep.subr.mxu0 %v5647
    %5861 = vmatpush1.msra.mxu0 %v5646
    %5862 = vmatprep.subr.mxu0 %v5655
    %5863 = vmatpush1.msra.mxu0 %v5654
    %5864 = vmatprep.subr.mxu0 %v5663
    %5865 = vmatpush1.msra.mxu0 %v5662
    %5866 = vmatprep.subr.mxu0 %v5671
    %5867 = vmatpush1.msra.mxu0 %v5670
    %5868 = vmatprep.subr.mxu0 %v5679
    %5869 = vmatpush1.msra.mxu0 %v5678
    %5870 = vmatprep.subr.mxu0 %v5687
    %5871 = vmatpush1.msra.mxu0 %v5686
    %5872 = vmatprep.subr.mxu0 %v5695
    %5873 = vmatpush1.msra.mxu0 %v5694
    %5874 = vmatprep.subr.mxu0 %v5703
    %5875 = vmatpush1.msra.mxu0 %v5702
    %5876 = vmatprep.subr.mxu0 %v5711
    %5877 = vmatpush1.msra.mxu0 %v5710
    %5878 = vmatprep.subr.mxu0 %v5719
    %5879 = vmatpush1.msra.mxu0 %v5718
    %5880 = vmatprep.subr.mxu0 %v5727
    %5881 = vmatpush1.msra.mxu0 %v5726
    %5882 = vmatprep.subr.mxu0 %v5735
    %5883 = vmatpush1.msra.mxu0 %v5734
    %5884 = vmatprep.subr.mxu0 %v5743
    %5885 = vmatpush1.msra.mxu0 %v5742
    %5886 = vmatprep.subr.mxu0 %v5751
    %5887 = vmatpush1.msra.mxu0 %v5750
    %5888 = vmatprep.subr.mxu0 %v5759
    %5889 = vmatpush1.msra.mxu0 %v5758
    %5890 = vmatprep.subr.mxu0 %v5767
    %5891 = vmatpush1.msra.mxu0 %v5766
    %5892 = vmatprep.subr.mxu0 %v5775
    %5893 = vmatpush1.msra.mxu0 %v5774
    %5894 = vmatprep.subr.mxu0 %v5783
    %5895 = vmatpush1.msra.mxu0 %v5782
    %5896 = vmatprep.subr.mxu0 %v5791
    %5897 = vmatpush1.msra.mxu0 %v5790
    %5898 = vmatprep.subr.mxu0 %v5799
    %5899 = vmatpush1.msra.mxu0 %v5798
    %5900 = vmatprep.subr.mxu0 %v5807
    %5901 = vmatpush1.msra.mxu0 %v5806
    %5902 = vmatprep.subr.mxu0 %v5815
    %5903 = vmatpush1.msra.mxu0 %v5814
    %5904 = vmatprep.subr.mxu0 %v5823
    %5905 = vmatpush1.msra.mxu0 %v5822
    %5906 = vmatprep.subr.mxu0 %v5831
    %5907 = vmatpush1.msra.mxu0 %v5830
    %5908 = vmatprep.subr.mxu0 %v5839
    %5909 = vmatpush1.msra.mxu0 %v5838
    %5910 = vmatprep.mubr.f32.mxu0 %v5578
    %5911 = vmatmul.mubr.f32.gmra.mrb[0].mxu0 %v5577
    %v5912 = vpop.f32.mrb[0].mxu0
    %v5913 = vadd.f32 0.0, %v5912
    %v5914 = vpop.f32.mrb[0].mxu0
    %v5915 = vadd.f32 0.0, %v5914
    %5916 = vdwg.mxu0
    %5917 = vmatprep.subr.mxu0 %v5593
    %5918 = vmatpush1.msra.mxu0 %v5592
    %5919 = vmatprep.subr.mxu0 %v5601
    %5920 = vmatpush1.msra.mxu0 %v5600
    %5921 = vmatprep.subr.mxu0 %v5609
    %5922 = vmatpush1.msra.mxu0 %v5608
    %5923 = vmatprep.subr.mxu0 %v5617
    %5924 = vmatpush1.msra.mxu0 %v5616
    %5925 = vmatprep.subr.mxu0 %v5625
    %5926 = vmatpush1.msra.mxu0 %v5624
    %5927 = vmatprep.subr.mxu0 %v5633
    %5928 = vmatpush1.msra.mxu0 %v5632
    %5929 = vmatprep.subr.mxu0 %v5641
    %5930 = vmatpush1.msra.mxu0 %v5640
    %5931 = vmatprep.subr.mxu0 %v5649
    %5932 = vmatpush1.msra.mxu0 %v5648
    %5933 = vmatprep.subr.mxu0 %v5657
    %5934 = vmatpush1.msra.mxu0 %v5656
    %5935 = vmatprep.subr.mxu0 %v5665
    %5936 = vmatpush1.msra.mxu0 %v5664
    %5937 = vmatprep.subr.mxu0 %v5673
    %5938 = vmatpush1.msra.mxu0 %v5672
    %5939 = vmatprep.subr.mxu0 %v5681
    %5940 = vmatpush1.msra.mxu0 %v5680
    %5941 = vmatprep.subr.mxu0 %v5689
    %5942 = vmatpush1.msra.mxu0 %v5688
    %5943 = vmatprep.subr.mxu0 %v5697
    %5944 = vmatpush1.msra.mxu0 %v5696
    %5945 = vmatprep.subr.mxu0 %v5705
    %5946 = vmatpush1.msra.mxu0 %v5704
    %5947 = vmatprep.subr.mxu0 %v5713
    %5948 = vmatpush1.msra.mxu0 %v5712
    %5949 = vmatprep.subr.mxu0 %v5721
    %5950 = vmatpush1.msra.mxu0 %v5720
    %5951 = vmatprep.subr.mxu0 %v5729
    %5952 = vmatpush1.msra.mxu0 %v5728
    %5953 = vmatprep.subr.mxu0 %v5737
    %5954 = vmatpush1.msra.mxu0 %v5736
    %5955 = vmatprep.subr.mxu0 %v5745
    %5956 = vmatpush1.msra.mxu0 %v5744
    %5957 = vmatprep.subr.mxu0 %v5753
    %5958 = vmatpush1.msra.mxu0 %v5752
    %5959 = vmatprep.subr.mxu0 %v5761
    %5960 = vmatpush1.msra.mxu0 %v5760
    %5961 = vmatprep.subr.mxu0 %v5769
    %5962 = vmatpush1.msra.mxu0 %v5768
    %5963 = vmatprep.subr.mxu0 %v5777
    %5964 = vmatpush1.msra.mxu0 %v5776
    %5965 = vmatprep.subr.mxu0 %v5785
    %5966 = vmatpush1.msra.mxu0 %v5784
    %5967 = vmatprep.subr.mxu0 %v5793
    %5968 = vmatpush1.msra.mxu0 %v5792
    %5969 = vmatprep.subr.mxu0 %v5801
    %5970 = vmatpush1.msra.mxu0 %v5800
    %5971 = vmatprep.subr.mxu0 %v5809
    %5972 = vmatpush1.msra.mxu0 %v5808
    %5973 = vmatprep.subr.mxu0 %v5817
    %5974 = vmatpush1.msra.mxu0 %v5816
    %5975 = vmatprep.subr.mxu0 %v5825
    %5976 = vmatpush1.msra.mxu0 %v5824
    %5977 = vmatprep.subr.mxu0 %v5833
    %5978 = vmatpush1.msra.mxu0 %v5832
    %5979 = vmatprep.subr.mxu0 %v5841
    %5980 = vmatpush1.msra.mxu0 %v5840
    %5981 = vmatprep.mubr.f32.mxu0 %v5578
    %5982 = vmatmul.mubr.f32.gmra.mrb[0].mxu0 %v5577
    %v5983 = vpop.f32.mrb[0].mxu0
    %v5984 = vadd.f32 0.0, %v5983
    %v5985 = vpop.f32.mrb[0].mxu0
    %v5986 = vadd.f32 0.0, %v5985
    %5987 = vdwg.mxu0
    %5988 = vmatprep.subr.mxu0 %v5595
    %5989 = vmatpush1.msra.mxu0 %v5594
    %5990 = vmatprep.subr.mxu0 %v5603
    %5991 = vmatpush1.msra.mxu0 %v5602
    %5992 = vmatprep.subr.mxu0 %v5611
    %5993 = vmatpush1.msra.mxu0 %v5610
    %5994 = vmatprep.subr.mxu0 %v5619
    %5995 = vmatpush1.msra.mxu0 %v5618
    %5996 = vmatprep.subr.mxu0 %v5627
    %5997 = vmatpush1.msra.mxu0 %v5626
    %5998 = vmatprep.subr.mxu0 %v5635
    %5999 = vmatpush1.msra.mxu0 %v5634
    %6000 = vmatprep.subr.mxu0 %v5643
    %6001 = vmatpush1.msra.mxu0 %v5642
    %6002 = vmatprep.subr.mxu0 %v5651
    %6003 = vmatpush1.msra.mxu0 %v5650
    %6004 = vmatprep.subr.mxu0 %v5659
    %6005 = vmatpush1.msra.mxu0 %v5658
    %6006 = vmatprep.subr.mxu0 %v5667
    %6007 = vmatpush1.msra.mxu0 %v5666
    %6008 = vmatprep.subr.mxu0 %v5675
    %6009 = vmatpush1.msra.mxu0 %v5674
    %6010 = vmatprep.subr.mxu0 %v5683
    %6011 = vmatpush1.msra.mxu0 %v5682
    %6012 = vmatprep.subr.mxu0 %v5691
    %6013 = vmatpush1.msra.mxu0 %v5690
    %6014 = vmatprep.subr.mxu0 %v5699
    %6015 = vmatpush1.msra.mxu0 %v5698
    %6016 = vmatprep.subr.mxu0 %v5707
    %6017 = vmatpush1.msra.mxu0 %v5706
    %6018 = vmatprep.subr.mxu0 %v5715
    %6019 = vmatpush1.msra.mxu0 %v5714
    %6020 = vmatprep.subr.mxu0 %v5723
    %6021 = vmatpush1.msra.mxu0 %v5722
    %6022 = vmatprep.subr.mxu0 %v5731
    %6023 = vmatpush1.msra.mxu0 %v5730
    %6024 = vmatprep.subr.mxu0 %v5739
    %6025 = vmatpush1.msra.mxu0 %v5738
    %6026 = vmatprep.subr.mxu0 %v5747
    %6027 = vmatpush1.msra.mxu0 %v5746
    %6028 = vmatprep.subr.mxu0 %v5755
    %6029 = vmatpush1.msra.mxu0 %v5754
    %6030 = vmatprep.subr.mxu0 %v5763
    %6031 = vmatpush1.msra.mxu0 %v5762
    %6032 = vmatprep.subr.mxu0 %v5771
    %6033 = vmatpush1.msra.mxu0 %v5770
    %6034 = vmatprep.subr.mxu0 %v5779
    %6035 = vmatpush1.msra.mxu0 %v5778
    %6036 = vmatprep.subr.mxu0 %v5787
    %6037 = vmatpush1.msra.mxu0 %v5786
    %6038 = vmatprep.subr.mxu0 %v5795
    %6039 = vmatpush1.msra.mxu0 %v5794
    %6040 = vmatprep.subr.mxu0 %v5803
    %6041 = vmatpush1.msra.mxu0 %v5802
    %6042 = vmatprep.subr.mxu0 %v5811
    %6043 = vmatpush1.msra.mxu0 %v5810
    %6044 = vmatprep.subr.mxu0 %v5819
    %6045 = vmatpush1.msra.mxu0 %v5818
    %6046 = vmatprep.subr.mxu0 %v5827
    %6047 = vmatpush1.msra.mxu0 %v5826
    %6048 = vmatprep.subr.mxu0 %v5835
    %6049 = vmatpush1.msra.mxu0 %v5834
    %6050 = vmatprep.subr.mxu0 %v5843
    %6051 = vmatpush1.msra.mxu0 %v5842
    %6052 = vmatprep.mubr.f32.mxu0 %v5578
    %6053 = vmatmul.mubr.f32.gmra.mrb[0].mxu0 %v5577
    %v6054 = vpop.f32.mrb[0].mxu0
    %v6055 = vadd.f32 0.0, %v6054
    %v6056 = vpop.f32.mrb[0].mxu0
    %v6057 = vadd.f32 0.0, %v6056
    %6058 = vdwg.mxu0
    %6059 = vmatprep.subr.mxu0 %v5597
    %6060 = vmatpush1.msra.mxu0 %v5596
    %6061 = vmatprep.subr.mxu0 %v5605
    %6062 = vmatpush1.msra.mxu0 %v5604
    %6063 = vmatprep.subr.mxu0 %v5613
    %6064 = vmatpush1.msra.mxu0 %v5612
    %6065 = vmatprep.subr.mxu0 %v5621
    %6066 = vmatpush1.msra.mxu0 %v5620
    %6067 = vmatprep.subr.mxu0 %v5629
    %6068 = vmatpush1.msra.mxu0 %v5628
    %6069 = vmatprep.subr.mxu0 %v5637
    %6070 = vmatpush1.msra.mxu0 %v5636
    %6071 = vmatprep.subr.mxu0 %v5645
    %6072 = vmatpush1.msra.mxu0 %v5644
    %6073 = vmatprep.subr.mxu0 %v5653
    %6074 = vmatpush1.msra.mxu0 %v5652
    %6075 = vmatprep.subr.mxu0 %v5661
    %6076 = vmatpush1.msra.mxu0 %v5660
    %6077 = vmatprep.subr.mxu0 %v5669
    %6078 = vmatpush1.msra.mxu0 %v5668
    %6079 = vmatprep.subr.mxu0 %v5677
    %6080 = vmatpush1.msra.mxu0 %v5676
    %6081 = vmatprep.subr.mxu0 %v5685
    %6082 = vmatpush1.msra.mxu0 %v5684
    %6083 = vmatprep.subr.mxu0 %v5693
    %6084 = vmatpush1.msra.mxu0 %v5692
    %6085 = vmatprep.subr.mxu0 %v5701
    %6086 = vmatpush1.msra.mxu0 %v5700
    %6087 = vmatprep.subr.mxu0 %v5709
    %6088 = vmatpush1.msra.mxu0 %v5708
    %6089 = vmatprep.subr.mxu0 %v5717
    %6090 = vmatpush1.msra.mxu0 %v5716
    %6091 = vmatprep.subr.mxu0 %v5725
    %6092 = vmatpush1.msra.mxu0 %v5724
    %6093 = vmatprep.subr.mxu0 %v5733
    %6094 = vmatpush1.msra.mxu0 %v5732
    %6095 = vmatprep.subr.mxu0 %v5741
    %6096 = vmatpush1.msra.mxu0 %v5740
    %6097 = vmatprep.subr.mxu0 %v5749
    %6098 = vmatpush1.msra.mxu0 %v5748
    %6099 = vmatprep.subr.mxu0 %v5757
    %6100 = vmatpush1.msra.mxu0 %v5756
    %6101 = vmatprep.subr.mxu0 %v5765
    %6102 = vmatpush1.msra.mxu0 %v5764
    %6103 = vmatprep.subr.mxu0 %v5773
    %6104 = vmatpush1.msra.mxu0 %v5772
    %6105 = vmatprep.subr.mxu0 %v5781
    %6106 = vmatpush1.msra.mxu0 %v5780
    %6107 = vmatprep.subr.mxu0 %v5789
    %6108 = vmatpush1.msra.mxu0 %v5788
    %6109 = vmatprep.subr.mxu0 %v5797
    %6110 = vmatpush1.msra.mxu0 %v5796
    %6111 = vmatprep.subr.mxu0 %v5805
    %6112 = vmatpush1.msra.mxu0 %v5804
    %6113 = vmatprep.subr.mxu0 %v5813
    %6114 = vmatpush1.msra.mxu0 %v5812
    %6115 = vmatprep.subr.mxu0 %v5821
    %6116 = vmatpush1.msra.mxu0 %v5820
    %6117 = vmatprep.subr.mxu0 %v5829
    %6118 = vmatpush1.msra.mxu0 %v5828
    %6119 = vmatprep.subr.mxu0 %v5837
    %6120 = vmatpush1.msra.mxu0 %v5836
    %6121 = vmatprep.subr.mxu0 %v5845
    %6122 = vmatpush1.msra.mxu0 %v5844
    %6123 = vmatprep.mubr.f32.mxu0 %v5578
    %6124 = vmatmul.mubr.f32.gmra.mrb[0].mxu0 %v5577
    %v6125 = vpop.f32.mrb[0].mxu0
    %v6126 = vadd.f32 0.0, %v6125
    %v6127 = vpop.f32.mrb[0].mxu0
    %v6128 = vadd.f32 0.0, %v6127
    %6129 = vdwg.mxu0
    %v6130 = vadd.f32 %v5582, %v5913
    %v6131 = vadd.f32 %v5583, %v5915
    %v6132 = vadd.f32 %v5584, %v5984
    %v6133 = vadd.f32 %v5585, %v5986
    %v6134 = vadd.f32 %v5586, %v6055
    %v6135 = vadd.f32 %v5587, %v6057
    %v6136 = vadd.f32 %v5588, %v6126
    %v6137 = vadd.f32 %v5589, %v6128
    %v6138 = vxor.u32 %v6130, 2147483648
    %v6139 = vxor.u32 %v6131, 2147483648
    %v6140 = vmul.f32 %v6138, 1.442695
    %v6141 = vpow.pop %v6140
    %v6142 = vmul.f32 %v6139, 1.442695
    %v6143 = vpow.pop %v6142
    %v6144 = vadd.f32 %v6141, 1.0
    %v6145 = vadd.f32 %v6143, 1.0
    %v6146 = vrcp.pop %v6144
    %v6147 = vmul.f32 1.0, %v6146
    %v6148 = vrcp.pop %v6145
    %v6149 = vmul.f32 1.0, %v6148
    %v6150 = vxor.u32 %v6132, 2147483648
    %v6151 = vxor.u32 %v6133, 2147483648
    %v6152 = vmul.f32 %v6150, 1.442695
    %v6153 = vpow.pop %v6152
    %v6154 = vmul.f32 %v6151, 1.442695
    %v6155 = vpow.pop %v6154
    %v6156 = vadd.f32 %v6153, 1.0
    %v6157 = vadd.f32 %v6155, 1.0
    %v6158 = vrcp.pop %v6156
    %v6159 = vmul.f32 1.0, %v6158
    %v6160 = vrcp.pop %v6157
    %v6161 = vmul.f32 1.0, %v6160
    %v6162 = vtanh.pop %v6134
    %v6163 = vtanh.pop %v6135
    %v6164 = vxor.u32 %v6136, 2147483648
    %v6165 = vxor.u32 %v6137, 2147483648
    %v6166 = vmul.f32 %v6164, 1.442695
    %v6167 = vpow.pop %v6166
    %v6168 = vmul.f32 %v6165, 1.442695
    %v6169 = vpow.pop %v6168
    %v6170 = vadd.f32 %v6167, 1.0
    %v6171 = vadd.f32 %v6169, 1.0
    %v6172 = vrcp.pop %v6170
    %v6173 = vmul.f32 1.0, %v6172
    %v6174 = vrcp.pop %v6171
    %v6175 = vmul.f32 1.0, %v6174
    %v6176 = vmul.f32 %v6159, %v5579
    %v6177 = vmul.f32 %v6161, %v5580
    %v6178 = vmul.f32 %v6147, %v6162
    %v6179 = vmul.f32 %v6149, %v6163
    %v6180 = vadd.f32 %v6176, %v6178
    %v6181 = vadd.f32 %v6177, %v6179
    %v6182 = vtanh.pop %v6180
    %v6183 = vtanh.pop %v6181
    %v6184 = vmul.f32 %v6173, %v6182
    %v6185 = vmul.f32 %v6175, %v6183
    %6186 = vst [vmem:[#allocation3] sm:$0xff] %v6184
    %6187 = vst [vmem:[#allocation3 + $0x8] sm:$0xff] %v6185
    %6188 = vst [vmem:[#allocation4] sm:$0xff] %v6180
    %6189 = vst [vmem:[#allocation4 + $0x8] sm:$0xff] %v6181
    %s6190 = scalar_lea.vmem [#allocation14], 112
    %6191 = vst [vmem:[%s6190] sm:$0xff] %v6184
    %6192 = vst [vmem:[%s6190 + $0x8] sm:$0xff] %v6185
    // Predicated region
    $region46: #{tpu_custom_call.1} parent=1 // pred_check
      _
    $region47: #{tpu_custom_call.1} parent=1 // pred_check_branch
      %6194 = sbr.rel (0) target = $region49
    $region48: #{tpu_custom_call.1} parent=1 // pred_region
      %s6196 = ssub.s32 2048, 2048
      %6197 = vsyncadd [#allocation7], %s6196
      %s6198 = sshll.u32 [#allocation14], 4
      %s6199 = int_to_ptr.vmem [resolvable:$true] %s6198
      %6204 = dma.vmem_to_hbm [thread:$0]  %s6199, 2048, %s6, [#allocation7], 256, 256, 16
    $region49: #{tpu_custom_call.1} parent=1 // pred_fallthru
      _
    // Predicated region
    $region50: #{tpu_custom_call.1} parent=1 // pred_check
      _
    $region51: #{tpu_custom_call.1} parent=1 // pred_check_branch
      %6206 = sbr.rel (0) target = $region53
    $region52: #{tpu_custom_call.1} parent=1 // pred_region
      %6207 = dma.done [#allocation7], 2048
    $region53: #{tpu_custom_call.1} parent=1 // pred_fallthru
      _
    %6208 = vsyncpa [#allocation6], 1
    %6209 = vsyncpa [#allocation9], 1
    %6210 = vsyncpa [#allocation12], 1
    %6211 = vsyncpa [#allocation7], 1

</llo_original>
